<compile_context>
chip_gen: v7x
topology: tpu7x:2x2x1
jax: 0.10.0
libtpu: 0.0.40
codegen_flags: <defaults>
</compile_context>

<pallas_src>
import functools

import jax
import jax.numpy as jnp
import numpy as np
from jax.experimental import pallas as pl
from jax.experimental.pallas import tpu as pltpu

VMEM = pltpu.MemorySpace.VMEM


# ---------------------------------------------------------------------------
# Fused ConvLSTM layer kernel: runs all T time steps for one batch element,
# one fused gate matmul per step, h/c resident in VMEM scratch.
#   ci = sigmoid(Wxi*x + Whi*h)           (peephole term c*Wci == 0)
#   cf = sigmoid(Wxf*x + Whf*h)
#   cc = cf*c + ci*tanh(Wxc*x + Whc*h)
#   co = sigmoid(Wxo*x + Who*h)           (peephole term cc*Wco == 0)
#   ch = co*tanh(cc)
# ---------------------------------------------------------------------------
def _convlstm_layer_kernel(xp_ref, w_ref, b_ref, hseq_ref, hp_scr, c_scr,
                           *, H, W, Cin, Ch, K):
    # xp_ref  : (Hp, Wp, Cin)        zero-padded input frame for (b, t)   [f32]
    # w_ref   : (K*K*(Cin+Ch), 4*Ch) fused gate weights, gates i|f|c|o    [bf16]
    # b_ref   : (1, 4*Ch)            fused x-conv biases                  [f32]
    # hseq_ref: (Hp, Wp, Ch)         padded hidden output frame for (b, t)
    # hp_scr  : (Hp, Wp, Ch)         previous hidden state, zero border   [scratch]
    # c_scr   : (H*W, Ch)            previous cell state                  [scratch]
    t = pl.program_id(1)
    N = H * W
    pad = (K - 1) // 2

    @pl.when(t == 0)
    def _():  # init_hidden: h = c = 0 (also zeroes the halo border once)
        hp_scr[...] = jnp.zeros_like(hp_scr)
        c_scr[...] = jnp.zeros_like(c_scr)

    xp = xp_ref[...]          # (Hp, Wp, Cin)
    hp = hp_scr[...]          # (Hp, Wp, Ch)

    # im2col: 9 shifted x-taps followed by 9 shifted h-taps, concatenated along
    # channels -> a single MXU-friendly matmul instead of 72 tiny ones.
    cols = []
    for dy in range(K):
        for dx in range(K):
            cols.append(xp[dy:dy + H, dx:dx + W, :].reshape(N, Cin))
    for dy in range(K):
        for dx in range(K):
            cols.append(hp[dy:dy + H, dx:dx + W, :].reshape(N, Ch))
    im2col = jnp.concatenate(cols, axis=1).astype(jnp.bfloat16)  # (N, K*K*(Cin+Ch))

    gates = jnp.dot(im2col, w_ref[...],
                    preferred_element_type=jnp.float32) + b_ref[...]  # (N, 4*Ch) f32

    def sig(z):  # exp -> EUP, approx reciprocal -> EUP (keeps VPU slots free)
        return pl.reciprocal(1.0 + jnp.exp(-z), approx=True)

    c = c_scr[...]                       # (N, Ch)
    gi = gates[:, 0 * Ch:1 * Ch]
    gf = gates[:, 1 * Ch:2 * Ch]
    gc = gates[:, 2 * Ch:3 * Ch]
    go = gates[:, 3 * Ch:4 * Ch]
    ci = sig(gi)
    cf = sig(gf)
    cc = cf * c + ci * jnp.tanh(gc)
    co = sig(go)
    ch = co * jnp.tanh(cc)

    c_scr[...] = cc
    hp_scr[pl.ds(pad, H), pl.ds(pad, W), :] = ch.reshape(H, W, Ch)
    hseq_ref[...] = hp_scr[...]          # emit already-padded hidden frame


def convlstm_layer(xp_seq, w_fused, b_fused, *, Ch, K=3):
    # xp_seq: (T, B, Hp, Wp, Cin) zero-padded input sequence (f32).
    T, B, Hp, Wp, Cin = xp_seq.shape
    pad = (K - 1) // 2
    H, W = Hp - 2 * pad, Wp - 2 * pad
    Kdim, Gch = w_fused.shape

    kernel = functools.partial(_convlstm_layer_kernel,
                               H=H, W=W, Cin=Cin, Ch=Ch, K=K)
    return pl.pallas_call(
        kernel,
        out_shape=jax.ShapeDtypeStruct((T, B, Hp, Wp, Ch), jnp.float32),
        grid=(B, T),
        in_specs=[
            pl.BlockSpec((None, None, Hp, Wp, Cin), lambda b, t: (t, b, 0, 0, 0)),
            pl.BlockSpec((Kdim, Gch), lambda b, t: (0, 0)),
            pl.BlockSpec((1, Gch), lambda b, t: (0, 0)),
        ],
        out_specs=pl.BlockSpec((None, None, Hp, Wp, Ch),
                               lambda b, t: (t, b, 0, 0, 0)),
        scratch_shapes=[
            pltpu.VMEM((Hp, Wp, Ch), jnp.float32),   # padded previous h
            pltpu.VMEM((H * W, Ch), jnp.float32),    # previous c
        ],
        compiler_params=pltpu.CompilerParams(
            dimension_semantics=("parallel", "arbitrary")),
    )(xp_seq, w_fused, b_fused)


# ---------------------------------------------------------------------------
# 1x1 conv (Encoder.conv2 : Conv2d(32, 3, 1)) as a single matmul kernel.
# ---------------------------------------------------------------------------
def _conv1x1_kernel(x_ref, w_ref, b_ref, o_ref):
    B, H, W, Cin = x_ref.shape
    Cout = w_ref.shape[-1]
    x = x_ref[...].reshape(B * H * W, Cin)
    y = jnp.dot(x, w_ref[...], preferred_element_type=jnp.float32) + b_ref[...]
    o_ref[...] = y.reshape(B, H, W, Cout).astype(o_ref.dtype)


def conv1x1(x, w, b):
    B, H, W, _ = x.shape
    Cout = w.shape[-1]
    return pl.pallas_call(
        _conv1x1_kernel,
        out_shape=jax.ShapeDtypeStruct((B, H, W, Cout), jnp.float32),
        in_specs=[pl.BlockSpec(memory_space=VMEM)] * 3,
        out_specs=pl.BlockSpec(memory_space=VMEM),
    )(x, w, b)


# ---------------------------------------------------------------------------
# Parameter init (deterministic, synthetic — shapes follow the PyTorch module)
# plus weight fusion for the im2col matmul.
# ---------------------------------------------------------------------------
def fuse_cell_weights(wx, wh, b):
    # wx: (4, K, K, Cin, Ch), wh: (4, K, K, Ch, Ch), b: (4, Ch)
    # -> rows ordered (ky, kx, cin) for x then (ky, kx, ch) for h;
    #    columns ordered (gate i|f|c|o, ch).
    G, K, _, Cin, Ch = wx.shape
    wx_r = jnp.transpose(wx, (1, 2, 3, 0, 4)).reshape(K * K * Cin, G * Ch)
    wh_r = jnp.transpose(wh, (1, 2, 3, 0, 4)).reshape(K * K * Ch, G * Ch)
    w_fused = jnp.concatenate([wx_r, wh_r], axis=0).astype(jnp.bfloat16)
    b_fused = b.reshape(1, G * Ch).astype(jnp.float32)
    return w_fused, b_fused


def init_encoder_params(key, hidden_channels):
    in_channels = [3] + list(hidden_channels)
    raw_cells, fused_cells = [], []
    for i, ch in enumerate(hidden_channels):
        assert ch % 2 == 0
        cin = in_channels[i]
        key, k1, k2, k3 = jax.random.split(key, 4)
        wx = 0.1 * jax.random.normal(k1, (4, 3, 3, cin, ch), jnp.float32)  # Wxi/Wxf/Wxc/Wxo
        wh = 0.1 * jax.random.normal(k2, (4, 3, 3, ch, ch), jnp.float32)   # Whi/Whf/Whc/Who
        b = 0.1 * jax.random.normal(k3, (4, ch), jnp.float32)              # x-conv biases
        raw_cells.append((wx, wh, b))
        wf, bf = fuse_cell_weights(wx, wh, b)
        fused_cells.append((wf, bf, ch))
    key, k4, k5 = jax.random.split(key, 3)
    w2 = 0.1 * jax.random.normal(k4, (hidden_channels[-1], 3), jnp.float32)  # conv2: 1x1, 32->3
    b2 = 0.1 * jax.random.normal(k5, (1, 3), jnp.float32)
    return raw_cells, fused_cells, (w2, b2)


# ---------------------------------------------------------------------------
# Encoder.forward using the Pallas kernels.
# ---------------------------------------------------------------------------
def encoder_forward(x_btchw, fused_cells, conv2_params, step, effective_step):
    # x: (B, T, C, H, W) as in PyTorch; permute(1,0,2,3,4), NCHW->NHWC per frame.
    x_seq = jnp.transpose(x_btchw, (1, 0, 3, 4, 2)).astype(jnp.float32)  # (T,B,H,W,C)
    T, B, H, W, _ = x_seq.shape
    assert step == T
    pad = 1
    # Single pad of the raw input sequence; all later layers consume the
    # already-padded hidden sequences produced by the previous layer's kernel.
    cur = jnp.pad(x_seq, ((0, 0), (0, 0), (pad, pad), (pad, pad), (0, 0)))
    for (w_fused, b_fused, ch) in fused_cells:
        cur = convlstm_layer(cur, w_fused, b_fused, Ch=ch, K=3)  # (T,B,H+2,W+2,ch)
    s = effective_step[0]                         # Encoder uses output_convlstm[0]
    h_out = cur[s, :, pad:pad + H, pad:pad + W, :]               # (B, H, W, Ch_last)
    w2, b2 = conv2_params
    return conv1x1(h_out, w2, b2)                 # (B, H, W, 3) == PyTorch (B,3,H,W) in NHWC


# ---------------------------------------------------------------------------
# Pure-JAX f32 reference for validation.
# ---------------------------------------------------------------------------
def _conv_ref(x, w, b=None):
    y = jax.lax.conv_general_dilated(
        x, w, (1, 1), 'SAME', dimension_numbers=('NHWC', 'HWIO', 'NHWC'),
        preferred_element_type=jnp.float32)
    return y if b is None else y + b


def encoder_forward_ref(x_btchw, raw_cells, conv2_params, step, effective_step):
    x_seq = jnp.transpose(x_btchw, (1, 0, 3, 4, 2))
    T, B, H, W, _ = x_seq.shape
    state = [None] * len(raw_cells)
    outputs = []
    for s in range(step):
        x = x_seq[s]
        for i, (wx, wh, b) in enumerate(raw_cells):
            ch_dim = wx.shape[-1]
            if s == 0:
                z = jnp.zeros((B, H, W, ch_dim), jnp.float32)
                state[i] = (z, z)
            h, c = state[i]
            gi = _conv_ref(x, wx[0], b[0]) + _conv_ref(h, wh[0])
            gf = _conv_ref(x, wx[1], b[1]) + _conv_ref(h, wh[1])
            gc = _conv_ref(x, wx[2], b[2]) + _conv_ref(h, wh[2])
            go = _conv_ref(x, wx[3], b[3]) + _conv_ref(h, wh[3])
            # peephole terms omitted: Wci/Wcf/Wco are zeros per init_hidden
            ci = jax.nn.sigmoid(gi)
            cf = jax.nn.sigmoid(gf)
            cc = cf * c + ci * jnp.tanh(gc)
            co = jax.nn.sigmoid(go)
            x = co * jnp.tanh(cc)
            state[i] = (x, cc)
        if s in effective_step:
            outputs.append(x)
    w2, b2 = conv2_params
    return jnp.einsum('bhwc,cd->bhwd', outputs[0], w2) + b2


if __name__ == "__main__":
    # Encoder(hidden_channels, sample_size, sample_duration):
    # last hidden channel must be 32 (conv2 = Conv2d(32, 3, 1)).
    hidden_channels = [16, 32]
    sample_duration = 4                     # ConvLSTM step; effective_step = [T-1]
    effective_step = [sample_duration - 1]
    B, C, H, W = 2, 3, 16, 16

    key = jax.random.PRNGKey(0)
    key, kx = jax.random.split(key)
    x = jax.random.normal(kx, (B, sample_duration, C, H, W), jnp.float32)

    raw_cells, fused_cells, conv2_params = init_encoder_params(key, hidden_channels)

    fwd = jax.jit(lambda xin: encoder_forward(xin, fused_cells, conv2_params,
                                              sample_duration, effective_step))
    out = jax.block_until_ready(fwd(x))
    assert out.shape == (B, H, W, 3)

    ref = encoder_forward_ref(x, raw_cells, conv2_params,
                              sample_duration, effective_step)
    # Kernel uses bf16 MXU inputs (f32 accumulation) vs pure-f32 reference,
    # so tolerance is loosened accordingly.
    np.testing.assert_allclose(np.asarray(out), np.asarray(ref),
                               atol=2e-2, rtol=2e-2)

    print("KERNEL_OK")
</pallas_src>

<mosaic_0001>
module attributes {stable_mosaic.version = 11 : i64} {
  func.func @_convlstm_layer_kernel(%arg0: i32, %arg1: i32, %arg2: memref<1x1x18x18x3xf32, #tpu.memory_space<vmem>>, %arg3: memref<171x64xbf16, #tpu.memory_space<vmem>>, %arg4: memref<1x64xf32, #tpu.memory_space<vmem>>, %arg5: memref<1x1x18x18x16xf32, #tpu.memory_space<vmem>>, %arg6: memref<18x18x16xf32, #tpu.memory_space<vmem>>, %arg7: memref<256x16xf32, #tpu.memory_space<vmem>>) attributes {dimension_semantics = [#tpu.dimension_semantics<parallel>, #tpu.dimension_semantics<arbitrary>], iteration_bounds = array<i64: 2, 4>, scalar_prefetch = 0 : i64, scratch_operands = 2 : i64, tpu.core_type = #tpu.core_type<tc>, window_params = [{transform_indices = @transform_0, window_bounds = array<i64: 1, 1, 18, 18, 3>}, {pipeline_mode = #tpu.pipeline_mode<synchronous>, transform_indices = @transform_1, window_bounds = array<i64: 171, 64>}, {pipeline_mode = #tpu.pipeline_mode<synchronous>, transform_indices = @transform_2, window_bounds = array<i64: 1, 64>}, {transform_indices = @transform_3, window_bounds = array<i64: 1, 1, 18, 18, 16>}]} {
    %c0_i32 = arith.constant 0 : i32
    %0 = arith.cmpi eq, %arg1, %c0_i32 : i32
    %1 = arith.extui %0 : i1 to i32
    %c0_i32_0 = arith.constant 0 : i32
    %2 = arith.cmpi ne, %1, %c0_i32_0 : i32
    scf.if %2 {
      %cst_32 = arith.constant 0.000000e+00 : f32
      %87 = vector.broadcast %cst_32 : f32 to vector<18x18x16xf32>
      %c0_33 = arith.constant 0 : index
      %c0_34 = arith.constant 0 : index
      %c0_35 = arith.constant 0 : index
      %88 = vector.load %arg6[%c0_33, %c0_34, %c0_35] : memref<18x18x16xf32, #tpu.memory_space<vmem>>, vector<18x18x16xf32>
      tpu.vector_store %arg6[%c0_33, %c0_34, %c0_35], %87 {strides = array<i32>} : memref<18x18x16xf32, #tpu.memory_space<vmem>>, vector<18x18x16xf32>,
      %cst_36 = arith.constant 0.000000e+00 : f32
      %89 = vector.broadcast %cst_36 : f32 to vector<256x16xf32>
      %c0_37 = arith.constant 0 : index
      %c0_38 = arith.constant 0 : index
      %90 = vector.load %arg7[%c0_37, %c0_38] : memref<256x16xf32, #tpu.memory_space<vmem>>, vector<256x16xf32>
      tpu.vector_store %arg7[%c0_37, %c0_38], %89 {strides = array<i32>} : memref<256x16xf32, #tpu.memory_space<vmem>>, vector<256x16xf32>,
    } else {
    }
    %c0 = arith.constant 0 : index
    %c0_1 = arith.constant 0 : index
    %c0_2 = arith.constant 0 : index
    %c0_3 = arith.constant 0 : index
    %c0_4 = arith.constant 0 : index
    %3 = vector.load %arg2[%c0, %c0_1, %c0_2, %c0_3, %c0_4] : memref<1x1x18x18x3xf32, #tpu.memory_space<vmem>>, vector<1x1x18x18x3xf32>
    %4 = vector.shape_cast %3 : vector<1x1x18x18x3xf32> to vector<18x18x3xf32>
    %c0_5 = arith.constant 0 : index
    %c0_6 = arith.constant 0 : index
    %c0_7 = arith.constant 0 : index
    %5 = vector.load %arg6[%c0_5, %c0_6, %c0_7] : memref<18x18x16xf32, #tpu.memory_space<vmem>>, vector<18x18x16xf32>
    %6 = vector.extract_strided_slice %4 {offsets = [0, 0, 0], sizes = [16, 16, 3], strides = [1, 1, 1]} : vector<18x18x3xf32> to vector<16x16x3xf32>
    %7 = vector.shape_cast %6 : vector<16x16x3xf32> to vector<256x3xf32>
    %8 = vector.extract_strided_slice %4 {offsets = [0, 1, 0], sizes = [16, 16, 3], strides = [1, 1, 1]} : vector<18x18x3xf32> to vector<16x16x3xf32>
    %9 = vector.shape_cast %8 : vector<16x16x3xf32> to vector<256x3xf32>
    %10 = vector.extract_strided_slice %4 {offsets = [0, 2, 0], sizes = [16, 16, 3], strides = [1, 1, 1]} : vector<18x18x3xf32> to vector<16x16x3xf32>
    %11 = vector.shape_cast %10 : vector<16x16x3xf32> to vector<256x3xf32>
    %12 = vector.extract_strided_slice %4 {offsets = [1, 0, 0], sizes = [16, 16, 3], strides = [1, 1, 1]} : vector<18x18x3xf32> to vector<16x16x3xf32>
    %13 = vector.shape_cast %12 : vector<16x16x3xf32> to vector<256x3xf32>
    %14 = vector.extract_strided_slice %4 {offsets = [1, 1, 0], sizes = [16, 16, 3], strides = [1, 1, 1]} : vector<18x18x3xf32> to vector<16x16x3xf32>
    %15 = vector.shape_cast %14 : vector<16x16x3xf32> to vector<256x3xf32>
    %16 = vector.extract_strided_slice %4 {offsets = [1, 2, 0], sizes = [16, 16, 3], strides = [1, 1, 1]} : vector<18x18x3xf32> to vector<16x16x3xf32>
    %17 = vector.shape_cast %16 : vector<16x16x3xf32> to vector<256x3xf32>
    %18 = vector.extract_strided_slice %4 {offsets = [2, 0, 0], sizes = [16, 16, 3], strides = [1, 1, 1]} : vector<18x18x3xf32> to vector<16x16x3xf32>
    %19 = vector.shape_cast %18 : vector<16x16x3xf32> to vector<256x3xf32>
    %20 = vector.extract_strided_slice %4 {offsets = [2, 1, 0], sizes = [16, 16, 3], strides = [1, 1, 1]} : vector<18x18x3xf32> to vector<16x16x3xf32>
    %21 = vector.shape_cast %20 : vector<16x16x3xf32> to vector<256x3xf32>
    %22 = vector.extract_strided_slice %4 {offsets = [2, 2, 0], sizes = [16, 16, 3], strides = [1, 1, 1]} : vector<18x18x3xf32> to vector<16x16x3xf32>
    %23 = vector.shape_cast %22 : vector<16x16x3xf32> to vector<256x3xf32>
    %24 = vector.extract_strided_slice %5 {offsets = [0, 0, 0], sizes = [16, 16, 16], strides = [1, 1, 1]} : vector<18x18x16xf32> to vector<16x16x16xf32>
    %25 = vector.shape_cast %24 : vector<16x16x16xf32> to vector<256x16xf32>
    %26 = vector.extract_strided_slice %5 {offsets = [0, 1, 0], sizes = [16, 16, 16], strides = [1, 1, 1]} : vector<18x18x16xf32> to vector<16x16x16xf32>
    %27 = vector.shape_cast %26 : vector<16x16x16xf32> to vector<256x16xf32>
    %28 = vector.extract_strided_slice %5 {offsets = [0, 2, 0], sizes = [16, 16, 16], strides = [1, 1, 1]} : vector<18x18x16xf32> to vector<16x16x16xf32>
    %29 = vector.shape_cast %28 : vector<16x16x16xf32> to vector<256x16xf32>
    %30 = vector.extract_strided_slice %5 {offsets = [1, 0, 0], sizes = [16, 16, 16], strides = [1, 1, 1]} : vector<18x18x16xf32> to vector<16x16x16xf32>
    %31 = vector.shape_cast %30 : vector<16x16x16xf32> to vector<256x16xf32>
    %32 = vector.extract_strided_slice %5 {offsets = [1, 1, 0], sizes = [16, 16, 16], strides = [1, 1, 1]} : vector<18x18x16xf32> to vector<16x16x16xf32>
    %33 = vector.shape_cast %32 : vector<16x16x16xf32> to vector<256x16xf32>
    %34 = vector.extract_strided_slice %5 {offsets = [1, 2, 0], sizes = [16, 16, 16], strides = [1, 1, 1]} : vector<18x18x16xf32> to vector<16x16x16xf32>
    %35 = vector.shape_cast %34 : vector<16x16x16xf32> to vector<256x16xf32>
    %36 = vector.extract_strided_slice %5 {offsets = [2, 0, 0], sizes = [16, 16, 16], strides = [1, 1, 1]} : vector<18x18x16xf32> to vector<16x16x16xf32>
    %37 = vector.shape_cast %36 : vector<16x16x16xf32> to vector<256x16xf32>
    %38 = vector.extract_strided_slice %5 {offsets = [2, 1, 0], sizes = [16, 16, 16], strides = [1, 1, 1]} : vector<18x18x16xf32> to vector<16x16x16xf32>
    %39 = vector.shape_cast %38 : vector<16x16x16xf32> to vector<256x16xf32>
    %40 = vector.extract_strided_slice %5 {offsets = [2, 2, 0], sizes = [16, 16, 16], strides = [1, 1, 1]} : vector<18x18x16xf32> to vector<16x16x16xf32>
    %41 = vector.shape_cast %40 : vector<16x16x16xf32> to vector<256x16xf32>
    %42 = tpu.concatenate %7, %9, %11, %13, %15, %17, %19, %21, %23, %25, %27, %29, %31, %33, %35, %37 in 1 : vector<256x3xf32>, vector<256x3xf32>, vector<256x3xf32>, vector<256x3xf32>, vector<256x3xf32>, vector<256x3xf32>, vector<256x3xf32>, vector<256x3xf32>, vector<256x3xf32>, vector<256x16xf32>, vector<256x16xf32>, vector<256x16xf32>, vector<256x16xf32>, vector<256x16xf32>, vector<256x16xf32>, vector<256x16xf32> -> vector<256x139xf32>
    %43 = tpu.concatenate %39, %41 in 1 : vector<256x16xf32>, vector<256x16xf32> -> vector<256x32xf32>
    %44 = tpu.concatenate %42, %43 in 1 : vector<256x139xf32>, vector<256x32xf32> -> vector<256x171xf32>
    %45 = arith.truncf %44 : vector<256x171xf32> to vector<256x171xbf16>
    %c0_8 = arith.constant 0 : index
    %c0_9 = arith.constant 0 : index
    %46 = vector.load %arg3[%c0_8, %c0_9] : memref<171x64xbf16, #tpu.memory_space<vmem>>, vector<171x64xbf16>
    %cst = arith.constant dense<0.000000e+00> : vector<256x64xf32>
    %47 = tpu.matmul %45, %46, %cst {dimension_numbers = #tpu.dot_dimension_numbers<[1], [0], [0], [1], [0, 0, 1, 1], [], []>} : vector<256x171xbf16>, vector<171x64xbf16>, vector<256x64xf32> -> vector<256x64xf32>
    %c0_10 = arith.constant 0 : index
    %c0_11 = arith.constant 0 : index
    %48 = vector.load %arg4[%c0_10, %c0_11] : memref<1x64xf32, #tpu.memory_space<vmem>>, vector<1x64xf32>
    %49 = vector.broadcast %48 : vector<1x64xf32> to vector<256x64xf32>
    %50 = arith.addf %47, %49 : vector<256x64xf32>
    %c0_12 = arith.constant 0 : index
    %c0_13 = arith.constant 0 : index
    %51 = vector.load %arg7[%c0_12, %c0_13] : memref<256x16xf32, #tpu.memory_space<vmem>>, vector<256x16xf32>
    %52 = vector.extract_strided_slice %50 {offsets = [0, 0], sizes = [256, 16], strides = [1, 1]} : vector<256x64xf32> to vector<256x16xf32>
    %53 = vector.extract_strided_slice %50 {offsets = [0, 16], sizes = [256, 16], strides = [1, 1]} : vector<256x64xf32> to vector<256x16xf32>
    %54 = vector.extract_strided_slice %50 {offsets = [0, 32], sizes = [256, 16], strides = [1, 1]} : vector<256x64xf32> to vector<256x16xf32>
    %55 = vector.extract_strided_slice %50 {offsets = [0, 48], sizes = [256, 16], strides = [1, 1]} : vector<256x64xf32> to vector<256x16xf32>
    %cst_14 = arith.constant 0.000000e+00 : f32
    %56 = vector.broadcast %cst_14 : f32 to vector<256x16xf32>
    %57 = arith.subf %56, %52 : vector<256x16xf32>
    %58 = math.exp %57 : vector<256x16xf32>
    %cst_15 = arith.constant 1.000000e+00 : f32
    %59 = vector.broadcast %cst_15 : f32 to vector<256x16xf32>
    %60 = arith.addf %59, %58 : vector<256x16xf32>
    %61 = tpu.reciprocal %60 {approx = true} : vector<256x16xf32> -> vector<256x16xf32>
    %cst_16 = arith.constant 0.000000e+00 : f32
    %62 = vector.broadcast %cst_16 : f32 to vector<256x16xf32>
    %63 = arith.subf %62, %53 : vector<256x16xf32>
    %64 = math.exp %63 : vector<256x16xf32>
    %cst_17 = arith.constant 1.000000e+00 : f32
    %65 = vector.broadcast %cst_17 : f32 to vector<256x16xf32>
    %66 = arith.addf %65, %64 : vector<256x16xf32>
    %67 = tpu.reciprocal %66 {approx = true} : vector<256x16xf32> -> vector<256x16xf32>
    %68 = arith.mulf %67, %51 : vector<256x16xf32>
    %69 = math.tanh %54 : vector<256x16xf32>
    %70 = arith.mulf %61, %69 : vector<256x16xf32>
    %71 = arith.addf %68, %70 : vector<256x16xf32>
    %cst_18 = arith.constant 0.000000e+00 : f32
    %72 = vector.broadcast %cst_18 : f32 to vector<256x16xf32>
    %73 = arith.subf %72, %55 : vector<256x16xf32>
    %74 = math.exp %73 : vector<256x16xf32>
    %cst_19 = arith.constant 1.000000e+00 : f32
    %75 = vector.broadcast %cst_19 : f32 to vector<256x16xf32>
    %76 = arith.addf %75, %74 : vector<256x16xf32>
    %77 = tpu.reciprocal %76 {approx = true} : vector<256x16xf32> -> vector<256x16xf32>
    %78 = math.tanh %71 : vector<256x16xf32>
    %79 = arith.mulf %77, %78 : vector<256x16xf32>
    %c0_20 = arith.constant 0 : index
    %c0_21 = arith.constant 0 : index
    %80 = vector.load %arg7[%c0_20, %c0_21] : memref<256x16xf32, #tpu.memory_space<vmem>>, vector<256x16xf32>
    tpu.vector_store %arg7[%c0_20, %c0_21], %71 {strides = array<i32>} : memref<256x16xf32, #tpu.memory_space<vmem>>, vector<256x16xf32>,
    %81 = vector.shape_cast %79 : vector<256x16xf32> to vector<16x16x16xf32>
    %c1 = arith.constant 1 : index
    %c1_22 = arith.constant 1 : index
    %c0_23 = arith.constant 0 : index
    %82 = vector.load %arg6[%c1, %c1_22, %c0_23] : memref<18x18x16xf32, #tpu.memory_space<vmem>>, vector<16x16x16xf32>
    tpu.vector_store %arg6[%c1, %c1_22, %c0_23], %81 {strides = array<i32>} : memref<18x18x16xf32, #tpu.memory_space<vmem>>, vector<16x16x16xf32>,
    %c0_24 = arith.constant 0 : index
    %c0_25 = arith.constant 0 : index
    %c0_26 = arith.constant 0 : index
    %83 = vector.load %arg6[%c0_24, %c0_25, %c0_26] : memref<18x18x16xf32, #tpu.memory_space<vmem>>, vector<18x18x16xf32>
    %c0_27 = arith.constant 0 : index
    %c0_28 = arith.constant 0 : index
    %c0_29 = arith.constant 0 : index
    %c0_30 = arith.constant 0 : index
    %c0_31 = arith.constant 0 : index
    %84 = vector.load %arg5[%c0_27, %c0_28, %c0_29, %c0_30, %c0_31] : memref<1x1x18x18x16xf32, #tpu.memory_space<vmem>>, vector<1x1x18x18x16xf32>
    %85 = vector.shape_cast %84 : vector<1x1x18x18x16xf32> to vector<18x18x16xf32>
    %86 = vector.shape_cast %83 : vector<18x18x16xf32> to vector<1x1x18x18x16xf32>
    tpu.vector_store %arg5[%c0_27, %c0_28, %c0_29, %c0_30, %c0_31], %86 {strides = array<i32>} : memref<1x1x18x18x16xf32, #tpu.memory_space<vmem>>, vector<1x1x18x18x16xf32>,
    return
  }
  func.func @transform_0(%arg0: i32, %arg1: i32) -> (i32, i32, i32, i32, i32) {
    %c0_i32 = arith.constant 0 : i32
    %c0_i32_0 = arith.constant 0 : i32
    %c0_i32_1 = arith.constant 0 : i32
    %c0_i32_2 = arith.constant 0 : i32
    return %arg1, %arg0, %c0_i32, %c0_i32_0, %c0_i32_1 : i32, i32, i32, i32, i32
  }
  func.func @transform_1(%arg0: i32, %arg1: i32) -> (i32, i32) {
    %c0_i32 = arith.constant 0 : i32
    %c0_i32_0 = arith.constant 0 : i32
    %c0_i32_1 = arith.constant 0 : i32
    return %c0_i32, %c0_i32_0 : i32, i32
  }
  func.func @transform_2(%arg0: i32, %arg1: i32) -> (i32, i32) {
    %c0_i32 = arith.constant 0 : i32
    %c0_i32_0 = arith.constant 0 : i32
    %c0_i32_1 = arith.constant 0 : i32
    return %c0_i32, %c0_i32_0 : i32, i32
  }
  func.func @transform_3(%arg0: i32, %arg1: i32) -> (i32, i32, i32, i32, i32) {
    %c0_i32 = arith.constant 0 : i32
    %c0_i32_0 = arith.constant 0 : i32
    %c0_i32_1 = arith.constant 0 : i32
    %c0_i32_2 = arith.constant 0 : i32
    return %arg1, %arg0, %c0_i32, %c0_i32_0, %c0_i32_1 : i32, i32, i32, i32, i32
  }
}

module attributes {stable_mosaic.version = 11 : i64} {
  func.func @_convlstm_layer_kernel(%arg0: i32, %arg1: i32, %arg2: memref<1x1x18x18x16xf32, #tpu.memory_space<vmem>>, %arg3: memref<432x128xbf16, #tpu.memory_space<vmem>>, %arg4: memref<1x128xf32, #tpu.memory_space<vmem>>, %arg5: memref<1x1x18x18x32xf32, #tpu.memory_space<vmem>>, %arg6: memref<18x18x32xf32, #tpu.memory_space<vmem>>, %arg7: memref<256x32xf32, #tpu.memory_space<vmem>>) attributes {dimension_semantics = [#tpu.dimension_semantics<parallel>, #tpu.dimension_semantics<arbitrary>], iteration_bounds = array<i64: 2, 4>, scalar_prefetch = 0 : i64, scratch_operands = 2 : i64, tpu.core_type = #tpu.core_type<tc>, window_params = [{transform_indices = @transform_0, window_bounds = array<i64: 1, 1, 18, 18, 16>}, {pipeline_mode = #tpu.pipeline_mode<synchronous>, transform_indices = @transform_1, window_bounds = array<i64: 432, 128>}, {pipeline_mode = #tpu.pipeline_mode<synchronous>, transform_indices = @transform_2, window_bounds = array<i64: 1, 128>}, {transform_indices = @transform_3, window_bounds = array<i64: 1, 1, 18, 18, 32>}]} {
    %c0_i32 = arith.constant 0 : i32
    %0 = arith.cmpi eq, %arg1, %c0_i32 : i32
    %1 = arith.extui %0 : i1 to i32
    %c0_i32_0 = arith.constant 0 : i32
    %2 = arith.cmpi ne, %1, %c0_i32_0 : i32
    scf.if %2 {
      %cst_32 = arith.constant 0.000000e+00 : f32
      %87 = vector.broadcast %cst_32 : f32 to vector<18x18x32xf32>
      %c0_33 = arith.constant 0 : index
      %c0_34 = arith.constant 0 : index
      %c0_35 = arith.constant 0 : index
      %88 = vector.load %arg6[%c0_33, %c0_34, %c0_35] : memref<18x18x32xf32, #tpu.memory_space<vmem>>, vector<18x18x32xf32>
      tpu.vector_store %arg6[%c0_33, %c0_34, %c0_35], %87 {strides = array<i32>} : memref<18x18x32xf32, #tpu.memory_space<vmem>>, vector<18x18x32xf32>,
      %cst_36 = arith.constant 0.000000e+00 : f32
      %89 = vector.broadcast %cst_36 : f32 to vector<256x32xf32>
      %c0_37 = arith.constant 0 : index
      %c0_38 = arith.constant 0 : index
      %90 = vector.load %arg7[%c0_37, %c0_38] : memref<256x32xf32, #tpu.memory_space<vmem>>, vector<256x32xf32>
      tpu.vector_store %arg7[%c0_37, %c0_38], %89 {strides = array<i32>} : memref<256x32xf32, #tpu.memory_space<vmem>>, vector<256x32xf32>,
    } else {
    }
    %c0 = arith.constant 0 : index
    %c0_1 = arith.constant 0 : index
    %c0_2 = arith.constant 0 : index
    %c0_3 = arith.constant 0 : index
    %c0_4 = arith.constant 0 : index
    %3 = vector.load %arg2[%c0, %c0_1, %c0_2, %c0_3, %c0_4] : memref<1x1x18x18x16xf32, #tpu.memory_space<vmem>>, vector<1x1x18x18x16xf32>
    %4 = vector.shape_cast %3 : vector<1x1x18x18x16xf32> to vector<18x18x16xf32>
    %c0_5 = arith.constant 0 : index
    %c0_6 = arith.constant 0 : index
    %c0_7 = arith.constant 0 : index
    %5 = vector.load %arg6[%c0_5, %c0_6, %c0_7] : memref<18x18x32xf32, #tpu.memory_space<vmem>>, vector<18x18x32xf32>
    %6 = vector.extract_strided_slice %4 {offsets = [0, 0, 0], sizes = [16, 16, 16], strides = [1, 1, 1]} : vector<18x18x16xf32> to vector<16x16x16xf32>
    %7 = vector.shape_cast %6 : vector<16x16x16xf32> to vector<256x16xf32>
    %8 = vector.extract_strided_slice %4 {offsets = [0, 1, 0], sizes = [16, 16, 16], strides = [1, 1, 1]} : vector<18x18x16xf32> to vector<16x16x16xf32>
    %9 = vector.shape_cast %8 : vector<16x16x16xf32> to vector<256x16xf32>
    %10 = vector.extract_strided_slice %4 {offsets = [0, 2, 0], sizes = [16, 16, 16], strides = [1, 1, 1]} : vector<18x18x16xf32> to vector<16x16x16xf32>
    %11 = vector.shape_cast %10 : vector<16x16x16xf32> to vector<256x16xf32>
    %12 = vector.extract_strided_slice %4 {offsets = [1, 0, 0], sizes = [16, 16, 16], strides = [1, 1, 1]} : vector<18x18x16xf32> to vector<16x16x16xf32>
    %13 = vector.shape_cast %12 : vector<16x16x16xf32> to vector<256x16xf32>
    %14 = vector.extract_strided_slice %4 {offsets = [1, 1, 0], sizes = [16, 16, 16], strides = [1, 1, 1]} : vector<18x18x16xf32> to vector<16x16x16xf32>
    %15 = vector.shape_cast %14 : vector<16x16x16xf32> to vector<256x16xf32>
    %16 = vector.extract_strided_slice %4 {offsets = [1, 2, 0], sizes = [16, 16, 16], strides = [1, 1, 1]} : vector<18x18x16xf32> to vector<16x16x16xf32>
    %17 = vector.shape_cast %16 : vector<16x16x16xf32> to vector<256x16xf32>
    %18 = vector.extract_strided_slice %4 {offsets = [2, 0, 0], sizes = [16, 16, 16], strides = [1, 1, 1]} : vector<18x18x16xf32> to vector<16x16x16xf32>
    %19 = vector.shape_cast %18 : vector<16x16x16xf32> to vector<256x16xf32>
    %20 = vector.extract_strided_slice %4 {offsets = [2, 1, 0], sizes = [16, 16, 16], strides = [1, 1, 1]} : vector<18x18x16xf32> to vector<16x16x16xf32>
    %21 = vector.shape_cast %20 : vector<16x16x16xf32> to vector<256x16xf32>
    %22 = vector.extract_strided_slice %4 {offsets = [2, 2, 0], sizes = [16, 16, 16], strides = [1, 1, 1]} : vector<18x18x16xf32> to vector<16x16x16xf32>
    %23 = vector.shape_cast %22 : vector<16x16x16xf32> to vector<256x16xf32>
    %24 = vector.extract_strided_slice %5 {offsets = [0, 0, 0], sizes = [16, 16, 32], strides = [1, 1, 1]} : vector<18x18x32xf32> to vector<16x16x32xf32>
    %25 = vector.shape_cast %24 : vector<16x16x32xf32> to vector<256x32xf32>
    %26 = vector.extract_strided_slice %5 {offsets = [0, 1, 0], sizes = [16, 16, 32], strides = [1, 1, 1]} : vector<18x18x32xf32> to vector<16x16x32xf32>
    %27 = vector.shape_cast %26 : vector<16x16x32xf32> to vector<256x32xf32>
    %28 = vector.extract_strided_slice %5 {offsets = [0, 2, 0], sizes = [16, 16, 32], strides = [1, 1, 1]} : vector<18x18x32xf32> to vector<16x16x32xf32>
    %29 = vector.shape_cast %28 : vector<16x16x32xf32> to vector<256x32xf32>
    %30 = vector.extract_strided_slice %5 {offsets = [1, 0, 0], sizes = [16, 16, 32], strides = [1, 1, 1]} : vector<18x18x32xf32> to vector<16x16x32xf32>
    %31 = vector.shape_cast %30 : vector<16x16x32xf32> to vector<256x32xf32>
    %32 = vector.extract_strided_slice %5 {offsets = [1, 1, 0], sizes = [16, 16, 32], strides = [1, 1, 1]} : vector<18x18x32xf32> to vector<16x16x32xf32>
    %33 = vector.shape_cast %32 : vector<16x16x32xf32> to vector<256x32xf32>
    %34 = vector.extract_strided_slice %5 {offsets = [1, 2, 0], sizes = [16, 16, 32], strides = [1, 1, 1]} : vector<18x18x32xf32> to vector<16x16x32xf32>
    %35 = vector.shape_cast %34 : vector<16x16x32xf32> to vector<256x32xf32>
    %36 = vector.extract_strided_slice %5 {offsets = [2, 0, 0], sizes = [16, 16, 32], strides = [1, 1, 1]} : vector<18x18x32xf32> to vector<16x16x32xf32>
    %37 = vector.shape_cast %36 : vector<16x16x32xf32> to vector<256x32xf32>
    %38 = vector.extract_strided_slice %5 {offsets = [2, 1, 0], sizes = [16, 16, 32], strides = [1, 1, 1]} : vector<18x18x32xf32> to vector<16x16x32xf32>
    %39 = vector.shape_cast %38 : vector<16x16x32xf32> to vector<256x32xf32>
    %40 = vector.extract_strided_slice %5 {offsets = [2, 2, 0], sizes = [16, 16, 32], strides = [1, 1, 1]} : vector<18x18x32xf32> to vector<16x16x32xf32>
    %41 = vector.shape_cast %40 : vector<16x16x32xf32> to vector<256x32xf32>
    %42 = tpu.concatenate %7, %9, %11, %13, %15, %17, %19, %21, %23, %25, %27, %29, %31, %33, %35, %37 in 1 : vector<256x16xf32>, vector<256x16xf32>, vector<256x16xf32>, vector<256x16xf32>, vector<256x16xf32>, vector<256x16xf32>, vector<256x16xf32>, vector<256x16xf32>, vector<256x16xf32>, vector<256x32xf32>, vector<256x32xf32>, vector<256x32xf32>, vector<256x32xf32>, vector<256x32xf32>, vector<256x32xf32>, vector<256x32xf32> -> vector<256x368xf32>
    %43 = tpu.concatenate %39, %41 in 1 : vector<256x32xf32>, vector<256x32xf32> -> vector<256x64xf32>
    %44 = tpu.concatenate %42, %43 in 1 : vector<256x368xf32>, vector<256x64xf32> -> vector<256x432xf32>
    %45 = arith.truncf %44 : vector<256x432xf32> to vector<256x432xbf16>
    %c0_8 = arith.constant 0 : index
    %c0_9 = arith.constant 0 : index
    %46 = vector.load %arg3[%c0_8, %c0_9] : memref<432x128xbf16, #tpu.memory_space<vmem>>, vector<432x128xbf16>
    %cst = arith.constant dense<0.000000e+00> : vector<256x128xf32>
    %47 = tpu.matmul %45, %46, %cst {dimension_numbers = #tpu.dot_dimension_numbers<[1], [0], [0], [1], [0, 0, 1, 1], [], []>} : vector<256x432xbf16>, vector<432x128xbf16>, vector<256x128xf32> -> vector<256x128xf32>
    %c0_10 = arith.constant 0 : index
    %c0_11 = arith.constant 0 : index
    %48 = vector.load %arg4[%c0_10, %c0_11] : memref<1x128xf32, #tpu.memory_space<vmem>>, vector<1x128xf32>
    %49 = vector.broadcast %48 : vector<1x128xf32> to vector<256x128xf32>
    %50 = arith.addf %47, %49 : vector<256x128xf32>
    %c0_12 = arith.constant 0 : index
    %c0_13 = arith.constant 0 : index
    %51 = vector.load %arg7[%c0_12, %c0_13] : memref<256x32xf32, #tpu.memory_space<vmem>>, vector<256x32xf32>
    %52 = vector.extract_strided_slice %50 {offsets = [0, 0], sizes = [256, 32], strides = [1, 1]} : vector<256x128xf32> to vector<256x32xf32>
    %53 = vector.extract_strided_slice %50 {offsets = [0, 32], sizes = [256, 32], strides = [1, 1]} : vector<256x128xf32> to vector<256x32xf32>
    %54 = vector.extract_strided_slice %50 {offsets = [0, 64], sizes = [256, 32], strides = [1, 1]} : vector<256x128xf32> to vector<256x32xf32>
    %55 = vector.extract_strided_slice %50 {offsets = [0, 96], sizes = [256, 32], strides = [1, 1]} : vector<256x128xf32> to vector<256x32xf32>
    %cst_14 = arith.constant 0.000000e+00 : f32
    %56 = vector.broadcast %cst_14 : f32 to vector<256x32xf32>
    %57 = arith.subf %56, %52 : vector<256x32xf32>
    %58 = math.exp %57 : vector<256x32xf32>
    %cst_15 = arith.constant 1.000000e+00 : f32
    %59 = vector.broadcast %cst_15 : f32 to vector<256x32xf32>
    %60 = arith.addf %59, %58 : vector<256x32xf32>
    %61 = tpu.reciprocal %60 {approx = true} : vector<256x32xf32> -> vector<256x32xf32>
    %cst_16 = arith.constant 0.000000e+00 : f32
    %62 = vector.broadcast %cst_16 : f32 to vector<256x32xf32>
    %63 = arith.subf %62, %53 : vector<256x32xf32>
    %64 = math.exp %63 : vector<256x32xf32>
    %cst_17 = arith.constant 1.000000e+00 : f32
    %65 = vector.broadcast %cst_17 : f32 to vector<256x32xf32>
    %66 = arith.addf %65, %64 : vector<256x32xf32>
    %67 = tpu.reciprocal %66 {approx = true} : vector<256x32xf32> -> vector<256x32xf32>
    %68 = arith.mulf %67, %51 : vector<256x32xf32>
    %69 = math.tanh %54 : vector<256x32xf32>
    %70 = arith.mulf %61, %69 : vector<256x32xf32>
    %71 = arith.addf %68, %70 : vector<256x32xf32>
    %cst_18 = arith.constant 0.000000e+00 : f32
    %72 = vector.broadcast %cst_18 : f32 to vector<256x32xf32>
    %73 = arith.subf %72, %55 : vector<256x32xf32>
    %74 = math.exp %73 : vector<256x32xf32>
    %cst_19 = arith.constant 1.000000e+00 : f32
    %75 = vector.broadcast %cst_19 : f32 to vector<256x32xf32>
    %76 = arith.addf %75, %74 : vector<256x32xf32>
    %77 = tpu.reciprocal %76 {approx = true} : vector<256x32xf32> -> vector<256x32xf32>
    %78 = math.tanh %71 : vector<256x32xf32>
    %79 = arith.mulf %77, %78 : vector<256x32xf32>
    %c0_20 = arith.constant 0 : index
    %c0_21 = arith.constant 0 : index
    %80 = vector.load %arg7[%c0_20, %c0_21] : memref<256x32xf32, #tpu.memory_space<vmem>>, vector<256x32xf32>
    tpu.vector_store %arg7[%c0_20, %c0_21], %71 {strides = array<i32>} : memref<256x32xf32, #tpu.memory_space<vmem>>, vector<256x32xf32>,
    %81 = vector.shape_cast %79 : vector<256x32xf32> to vector<16x16x32xf32>
    %c1 = arith.constant 1 : index
    %c1_22 = arith.constant 1 : index
    %c0_23 = arith.constant 0 : index
    %82 = vector.load %arg6[%c1, %c1_22, %c0_23] : memref<18x18x32xf32, #tpu.memory_space<vmem>>, vector<16x16x32xf32>
    tpu.vector_store %arg6[%c1, %c1_22, %c0_23], %81 {strides = array<i32>} : memref<18x18x32xf32, #tpu.memory_space<vmem>>, vector<16x16x32xf32>,
    %c0_24 = arith.constant 0 : index
    %c0_25 = arith.constant 0 : index
    %c0_26 = arith.constant 0 : index
    %83 = vector.load %arg6[%c0_24, %c0_25, %c0_26] : memref<18x18x32xf32, #tpu.memory_space<vmem>>, vector<18x18x32xf32>
    %c0_27 = arith.constant 0 : index
    %c0_28 = arith.constant 0 : index
    %c0_29 = arith.constant 0 : index
    %c0_30 = arith.constant 0 : index
    %c0_31 = arith.constant 0 : index
    %84 = vector.load %arg5[%c0_27, %c0_28, %c0_29, %c0_30, %c0_31] : memref<1x1x18x18x32xf32, #tpu.memory_space<vmem>>, vector<1x1x18x18x32xf32>
    %85 = vector.shape_cast %84 : vector<1x1x18x18x32xf32> to vector<18x18x32xf32>
    %86 = vector.shape_cast %83 : vector<18x18x32xf32> to vector<1x1x18x18x32xf32>
    tpu.vector_store %arg5[%c0_27, %c0_28, %c0_29, %c0_30, %c0_31], %86 {strides = array<i32>} : memref<1x1x18x18x32xf32, #tpu.memory_space<vmem>>, vector<1x1x18x18x32xf32>,
    return
  }
  func.func @transform_0(%arg0: i32, %arg1: i32) -> (i32, i32, i32, i32, i32) {
    %c0_i32 = arith.constant 0 : i32
    %c0_i32_0 = arith.constant 0 : i32
    %c0_i32_1 = arith.constant 0 : i32
    %c0_i32_2 = arith.constant 0 : i32
    return %arg1, %arg0, %c0_i32, %c0_i32_0, %c0_i32_1 : i32, i32, i32, i32, i32
  }
  func.func @transform_1(%arg0: i32, %arg1: i32) -> (i32, i32) {
    %c0_i32 = arith.constant 0 : i32
    %c0_i32_0 = arith.constant 0 : i32
    %c0_i32_1 = arith.constant 0 : i32
    return %c0_i32, %c0_i32_0 : i32, i32
  }
  func.func @transform_2(%arg0: i32, %arg1: i32) -> (i32, i32) {
    %c0_i32 = arith.constant 0 : i32
    %c0_i32_0 = arith.constant 0 : i32
    %c0_i32_1 = arith.constant 0 : i32
    return %c0_i32, %c0_i32_0 : i32, i32
  }
  func.func @transform_3(%arg0: i32, %arg1: i32) -> (i32, i32, i32, i32, i32) {
    %c0_i32 = arith.constant 0 : i32
    %c0_i32_0 = arith.constant 0 : i32
    %c0_i32_1 = arith.constant 0 : i32
    %c0_i32_2 = arith.constant 0 : i32
    return %arg1, %arg0, %c0_i32, %c0_i32_0, %c0_i32_1 : i32, i32, i32, i32, i32
  }
}

module attributes {stable_mosaic.version = 11 : i64} {
  func.func @_conv1x1_kernel(%arg0: memref<2x16x16x32xf32, #tpu.memory_space<vmem>>, %arg1: memref<32x3xf32, #tpu.memory_space<vmem>>, %arg2: memref<1x3xf32, #tpu.memory_space<vmem>>, %arg3: memref<2x16x16x3xf32, #tpu.memory_space<vmem>>) attributes {dimension_semantics = [], scalar_prefetch = 0 : i64, scratch_operands = 0 : i64, tpu.core_type = #tpu.core_type<tc>} {
    %c0 = arith.constant 0 : index
    %c0_0 = arith.constant 0 : index
    %c0_1 = arith.constant 0 : index
    %c0_2 = arith.constant 0 : index
    %0 = vector.load %arg0[%c0, %c0_0, %c0_1, %c0_2] : memref<2x16x16x32xf32, #tpu.memory_space<vmem>>, vector<2x16x16x32xf32>
    %1 = vector.shape_cast %0 : vector<2x16x16x32xf32> to vector<512x32xf32>
    %c0_3 = arith.constant 0 : index
    %c0_4 = arith.constant 0 : index
    %2 = vector.load %arg1[%c0_3, %c0_4] : memref<32x3xf32, #tpu.memory_space<vmem>>, vector<32x3xf32>
    %cst = arith.constant dense<0.000000e+00> : vector<512x3xf32>
    %3 = tpu.matmul %1, %2, %cst {dimension_numbers = #tpu.dot_dimension_numbers<[1], [0], [0], [1], [0, 0, 1, 1], [], []>} : vector<512x32xf32>, vector<32x3xf32>, vector<512x3xf32> -> vector<512x3xf32>
    %c0_5 = arith.constant 0 : index
    %c0_6 = arith.constant 0 : index
    %4 = vector.load %arg2[%c0_5, %c0_6] : memref<1x3xf32, #tpu.memory_space<vmem>>, vector<1x3xf32>
    %5 = vector.broadcast %4 : vector<1x3xf32> to vector<512x3xf32>
    %6 = arith.addf %3, %5 : vector<512x3xf32>
    %7 = vector.shape_cast %6 : vector<512x3xf32> to vector<2x16x16x3xf32>
    %c0_7 = arith.constant 0 : index
    %c0_8 = arith.constant 0 : index
    %c0_9 = arith.constant 0 : index
    %c0_10 = arith.constant 0 : index
    %8 = vector.load %arg3[%c0_7, %c0_8, %c0_9, %c0_10] : memref<2x16x16x3xf32, #tpu.memory_space<vmem>>, vector<2x16x16x3xf32>
    tpu.vector_store %arg3[%c0_7, %c0_8, %c0_9, %c0_10], %7 {strides = array<i32>} : memref<2x16x16x3xf32, #tpu.memory_space<vmem>>, vector<2x16x16x3xf32>,
    return
  }
}

</mosaic_0001>

<llo_original>
// kernel: _lambda_.5
$region0: #{_lambda_.5}
  #allocation0 [shape = 'u32[]', space=smem, size = 0x4, offset = 0x4, fixed_abs, tag = 'smem constant byte address 0x4 - core index']
  #allocation1 [shape = 'u32[144,128]{1,0:T(1,128)}', space=vmem, size = 0x12000, scoped, tag = 'internal scratch']
  %s0 = inlined_call_operand.vmem [shape: f32[2,16,16,32], index: 0, kind: input, shape index: {}]
  %s1 = inlined_call_operand.vmem [shape: f32[32,3], index: 1, kind: input, shape index: {}]
  %s2 = inlined_call_operand.vmem [shape: f32[1,3], index: 2, kind: input, shape index: {}]
  %s3 = inlined_call_operand.vmem [shape: f32[2,16,16,3], index: 3, kind: output, shape index: {}]
  %s4 = sld [smem:[#allocation0]]
  $region22: #{_lambda_.5} parent=0
    _
  %s6 = ssub.s32 1, %s4
  %s7 = scalar_select 0, %s6, %s4
  // Predicated region
  $region2: #{_lambda_.5} parent=0 // pred_check
    _
  $region3: #{_lambda_.5} parent=0 // pred_check_branch
    %9 = sbr.rel (0) target = $region5
  $region4: #{_lambda_.5} parent=0 // pred_region
    _
  $region5: #{_lambda_.5} parent=0 // pred_fallthru
    _
  // Predicated region
  $region6: #{_lambda_.5} parent=0 // pred_check
    _
  $region7: #{_lambda_.5} parent=0 // pred_check_branch
    %11 = sbr.rel (0) target = $region9
  $region8: #{_lambda_.5} parent=0 // pred_region
    _
  $region9: #{_lambda_.5} parent=0 // pred_fallthru
    _
  // Predicated region
  $region10: #{_lambda_.5} parent=0 // pred_check
    _
  $region11: #{_lambda_.5} parent=0 // pred_check_branch
    %13 = sbr.rel (0) target = $region13
  $region12: #{_lambda_.5} parent=0 // pred_region
    _
  $region13: #{_lambda_.5} parent=0 // pred_fallthru
    _
  %v14 = vld [vmem:[%s0] sm:$0xff]
  %v15 = vld [vmem:[%s0 + $0x8] sm:$0xff]
  %v16 = vld [vmem:[%s0 + $0x10] sm:$0xff]
  %v17 = vld [vmem:[%s0 + $0x18] sm:$0xff]
  %v18 = vld [vmem:[%s0 + $0x20] sm:$0xff]
  %v19 = vld [vmem:[%s0 + $0x28] sm:$0xff]
  %v20 = vld [vmem:[%s0 + $0x30] sm:$0xff]
  %v21 = vld [vmem:[%s0 + $0x38] sm:$0xff]
  %v22 = vld [vmem:[%s0 + $0x40] sm:$0xff]
  %v23 = vld [vmem:[%s0 + $0x48] sm:$0xff]
  %v24 = vld [vmem:[%s0 + $0x50] sm:$0xff]
  %v25 = vld [vmem:[%s0 + $0x58] sm:$0xff]
  %v26 = vld [vmem:[%s0 + $0x60] sm:$0xff]
  %v27 = vld [vmem:[%s0 + $0x68] sm:$0xff]
  %v28 = vld [vmem:[%s0 + $0x70] sm:$0xff]
  %v29 = vld [vmem:[%s0 + $0x78] sm:$0xff]
  %v30 = vld [vmem:[%s0 + $0x80] sm:$0xff]
  %v31 = vld [vmem:[%s0 + $0x88] sm:$0xff]
  %v32 = vld [vmem:[%s0 + $0x90] sm:$0xff]
  %v33 = vld [vmem:[%s0 + $0x98] sm:$0xff]
  %v34 = vld [vmem:[%s0 + $0xa0] sm:$0xff]
  %v35 = vld [vmem:[%s0 + $0xa8] sm:$0xff]
  %v36 = vld [vmem:[%s0 + $0xb0] sm:$0xff]
  %v37 = vld [vmem:[%s0 + $0xb8] sm:$0xff]
  %v38 = vld [vmem:[%s0 + $0xc0] sm:$0xff]
  %v39 = vld [vmem:[%s0 + $0xc8] sm:$0xff]
  %v40 = vld [vmem:[%s0 + $0xd0] sm:$0xff]
  %v41 = vld [vmem:[%s0 + $0xd8] sm:$0xff]
  %v42 = vld [vmem:[%s0 + $0xe0] sm:$0xff]
  %v43 = vld [vmem:[%s0 + $0xe8] sm:$0xff]
  %v44 = vld [vmem:[%s0 + $0xf0] sm:$0xff]
  %v45 = vld [vmem:[%s0 + $0xf8] sm:$0xff]
  %v46 = vld [vmem:[%s0 + $0x100] sm:$0xff]
  %v47 = vld [vmem:[%s0 + $0x108] sm:$0xff]
  %v48 = vld [vmem:[%s0 + $0x110] sm:$0xff]
  %v49 = vld [vmem:[%s0 + $0x118] sm:$0xff]
  %v50 = vld [vmem:[%s0 + $0x120] sm:$0xff]
  %v51 = vld [vmem:[%s0 + $0x128] sm:$0xff]
  %v52 = vld [vmem:[%s0 + $0x130] sm:$0xff]
  %v53 = vld [vmem:[%s0 + $0x138] sm:$0xff]
  %v54 = vld [vmem:[%s0 + $0x140] sm:$0xff]
  %v55 = vld [vmem:[%s0 + $0x148] sm:$0xff]
  %v56 = vld [vmem:[%s0 + $0x150] sm:$0xff]
  %v57 = vld [vmem:[%s0 + $0x158] sm:$0xff]
  %v58 = vld [vmem:[%s0 + $0x160] sm:$0xff]
  %v59 = vld [vmem:[%s0 + $0x168] sm:$0xff]
  %v60 = vld [vmem:[%s0 + $0x170] sm:$0xff]
  %v61 = vld [vmem:[%s0 + $0x178] sm:$0xff]
  %v62 = vld [vmem:[%s0 + $0x180] sm:$0xff]
  %v63 = vld [vmem:[%s0 + $0x188] sm:$0xff]
  %v64 = vld [vmem:[%s0 + $0x190] sm:$0xff]
  %v65 = vld [vmem:[%s0 + $0x198] sm:$0xff]
  %v66 = vld [vmem:[%s0 + $0x1a0] sm:$0xff]
  %v67 = vld [vmem:[%s0 + $0x1a8] sm:$0xff]
  %v68 = vld [vmem:[%s0 + $0x1b0] sm:$0xff]
  %v69 = vld [vmem:[%s0 + $0x1b8] sm:$0xff]
  %v70 = vld [vmem:[%s0 + $0x1c0] sm:$0xff]
  %v71 = vld [vmem:[%s0 + $0x1c8] sm:$0xff]
  %v72 = vld [vmem:[%s0 + $0x1d0] sm:$0xff]
  %v73 = vld [vmem:[%s0 + $0x1d8] sm:$0xff]
  %v74 = vld [vmem:[%s0 + $0x1e0] sm:$0xff]
  %v75 = vld [vmem:[%s0 + $0x1e8] sm:$0xff]
  %v76 = vld [vmem:[%s0 + $0x1f0] sm:$0xff]
  %v77 = vld [vmem:[%s0 + $0x1f8] sm:$0xff]
  %v78 = vld [vmem:[%s1] sm:$0xff]
  %v79 = vld [vmem:[%s1 + $0x8] sm:$0xff]
  %v80 = vld [vmem:[%s1 + $0x10] sm:$0xff]
  %v81 = vld [vmem:[%s1 + $0x18] sm:$0xff]
  %v82 = vld [vmem:[%s2] sm:$0x1]
  %v84 = vlaneseq
  %v85 = vshrl.u32 %v84, 7
  %v86 = vsub.s32 0, %v85
  %v87 = vrot.slane %v82, %v86
  %vm89 = vcmask 261120
  %v91 = vsel %vm89, %v14, 0
  %v94 = vsel %vm89, %v15, 0
  %v97 = vsel %vm89, %v16, 0
  %v100 = vsel %vm89, %v17, 0
  %v103 = vsel %vm89, %v18, 0
  %v106 = vsel %vm89, %v19, 0
  %v109 = vsel %vm89, %v20, 0
  %v112 = vsel %vm89, %v21, 0
  %v115 = vsel %vm89, %v22, 0
  %v118 = vsel %vm89, %v23, 0
  %v121 = vsel %vm89, %v24, 0
  %v124 = vsel %vm89, %v25, 0
  %v127 = vsel %vm89, %v26, 0
  %v130 = vsel %vm89, %v27, 0
  %v133 = vsel %vm89, %v28, 0
  %v136 = vsel %vm89, %v29, 0
  %v139 = vsel %vm89, %v30, 0
  %v142 = vsel %vm89, %v31, 0
  %v145 = vsel %vm89, %v32, 0
  %v148 = vsel %vm89, %v33, 0
  %v151 = vsel %vm89, %v34, 0
  %v154 = vsel %vm89, %v35, 0
  %v157 = vsel %vm89, %v36, 0
  %v160 = vsel %vm89, %v37, 0
  %v163 = vsel %vm89, %v38, 0
  %v166 = vsel %vm89, %v39, 0
  %v169 = vsel %vm89, %v40, 0
  %v172 = vsel %vm89, %v41, 0
  %v175 = vsel %vm89, %v42, 0
  %v178 = vsel %vm89, %v43, 0
  %v181 = vsel %vm89, %v44, 0
  %v184 = vsel %vm89, %v45, 0
  %v187 = vsel %vm89, %v46, 0
  %v190 = vsel %vm89, %v47, 0
  %v193 = vsel %vm89, %v48, 0
  %v196 = vsel %vm89, %v49, 0
  %v199 = vsel %vm89, %v50, 0
  %v202 = vsel %vm89, %v51, 0
  %v205 = vsel %vm89, %v52, 0
  %v208 = vsel %vm89, %v53, 0
  %v211 = vsel %vm89, %v54, 0
  %v214 = vsel %vm89, %v55, 0
  %v217 = vsel %vm89, %v56, 0
  %v220 = vsel %vm89, %v57, 0
  %v223 = vsel %vm89, %v58, 0
  %v226 = vsel %vm89, %v59, 0
  %v229 = vsel %vm89, %v60, 0
  %v232 = vsel %vm89, %v61, 0
  %v235 = vsel %vm89, %v62, 0
  %v238 = vsel %vm89, %v63, 0
  %v241 = vsel %vm89, %v64, 0
  %v244 = vsel %vm89, %v65, 0
  %v247 = vsel %vm89, %v66, 0
  %v250 = vsel %vm89, %v67, 0
  %v253 = vsel %vm89, %v68, 0
  %v256 = vsel %vm89, %v69, 0
  %v259 = vsel %vm89, %v70, 0
  %v262 = vsel %vm89, %v71, 0
  %v265 = vsel %vm89, %v72, 0
  %v268 = vsel %vm89, %v73, 0
  %v271 = vsel %vm89, %v74, 0
  %v274 = vsel %vm89, %v75, 0
  %v277 = vsel %vm89, %v76, 0
  %v280 = vsel %vm89, %v77, 0
  %282 = vmatprep.subr.mxu0 0.0
  %283 = vmatpush1.msra.mxu0 %v78
  %284 = vmatprep.subr.mxu0 0.0
  %285 = vmatpush1.msra.mxu0 %v79
  %286 = vmatprep.subr.mxu0 0.0
  %287 = vmatpush1.msra.mxu0 %v80
  %288 = vmatprep.subr.mxu0 0.0
  %289 = vmatpush1.msra.mxu0 %v81
  %290 = vmatprep.subr.mxu0 0.0
  %291 = vmatpush1.msra.mxu0 0.0
  %292 = vmatprep.subr.mxu0 0.0
  %293 = vmatpush1.msra.mxu0 0.0
  %294 = vmatprep.subr.mxu0 0.0
  %295 = vmatpush1.msra.mxu0 0.0
  %296 = vmatprep.subr.mxu0 0.0
  %297 = vmatpush1.msra.mxu0 0.0
  %298 = vmatprep.subr.mxu0 0.0
  %299 = vmatpush1.msra.mxu0 0.0
  %300 = vmatprep.subr.mxu0 0.0
  %301 = vmatpush1.msra.mxu0 0.0
  %302 = vmatprep.subr.mxu0 0.0
  %303 = vmatpush1.msra.mxu0 0.0
  %304 = vmatprep.subr.mxu0 0.0
  %305 = vmatpush1.msra.mxu0 0.0
  %306 = vmatprep.subr.mxu0 0.0
  %307 = vmatpush1.msra.mxu0 0.0
  %308 = vmatprep.subr.mxu0 0.0
  %309 = vmatpush1.msra.mxu0 0.0
  %310 = vmatprep.subr.mxu0 0.0
  %311 = vmatpush1.msra.mxu0 0.0
  %312 = vmatprep.subr.mxu0 0.0
  %313 = vmatpush1.msra.mxu0 0.0
  %314 = vmatprep.subr.mxu0 0.0
  %315 = vmatpush1.msra.mxu0 0.0
  %316 = vmatprep.subr.mxu0 0.0
  %317 = vmatpush1.msra.mxu0 0.0
  %318 = vmatprep.subr.mxu0 0.0
  %319 = vmatpush1.msra.mxu0 0.0
  %320 = vmatprep.subr.mxu0 0.0
  %321 = vmatpush1.msra.mxu0 0.0
  %322 = vmatprep.subr.mxu0 0.0
  %323 = vmatpush1.msra.mxu0 0.0
  %324 = vmatprep.subr.mxu0 0.0
  %325 = vmatpush1.msra.mxu0 0.0
  %326 = vmatprep.subr.mxu0 0.0
  %327 = vmatpush1.msra.mxu0 0.0
  %328 = vmatprep.subr.mxu0 0.0
  %329 = vmatpush1.msra.mxu0 0.0
  %330 = vmatprep.subr.mxu0 0.0
  %331 = vmatpush1.msra.mxu0 0.0
  %332 = vmatprep.subr.mxu0 0.0
  %333 = vmatpush1.msra.mxu0 0.0
  %334 = vmatprep.subr.mxu0 0.0
  %335 = vmatpush1.msra.mxu0 0.0
  %336 = vmatprep.subr.mxu0 0.0
  %337 = vmatpush1.msra.mxu0 0.0
  %338 = vmatprep.subr.mxu0 0.0
  %339 = vmatpush1.msra.mxu0 0.0
  %340 = vmatprep.subr.mxu0 0.0
  %341 = vmatpush1.msra.mxu0 0.0
  %342 = vmatprep.subr.mxu0 0.0
  %343 = vmatpush1.msra.mxu0 0.0
  %344 = vmatprep.subr.mxu0 0.0
  %345 = vmatpush1.msra.mxu0 0.0
  %346 = vmatprep.mubr.f32.mxu0 0.0
  %347 = vmatmul.mubr.f32.gmra.mrb[0].mxu0 %v91
  %v348 = vpop.f32.mrb[0].mxu0
  %v349 = vadd.f32 %v87, %v348
  %v350 = vpop.f32.mrb[0].mxu0
  %351 = vmatprep.mubr.f32.mxu0 0.0
  %352 = vmatmul.mubr.f32.gmra.mrb[0].mxu0 %v94
  %v353 = vpop.f32.mrb[0].mxu0
  %v354 = vadd.f32 %v87, %v353
  %v355 = vpop.f32.mrb[0].mxu0
  %356 = vmatprep.mubr.f32.mxu0 0.0
  %357 = vmatmul.mubr.f32.gmra.mrb[0].mxu0 %v97
  %v358 = vpop.f32.mrb[0].mxu0
  %v359 = vadd.f32 %v87, %v358
  %v360 = vpop.f32.mrb[0].mxu0
  %361 = vmatprep.mubr.f32.mxu0 0.0
  %362 = vmatmul.mubr.f32.gmra.mrb[0].mxu0 %v100
  %v363 = vpop.f32.mrb[0].mxu0
  %v364 = vadd.f32 %v87, %v363
  %v365 = vpop.f32.mrb[0].mxu0
  %366 = vmatprep.mubr.f32.mxu0 0.0
  %367 = vmatmul.mubr.f32.gmra.mrb[0].mxu0 %v103
  %v368 = vpop.f32.mrb[0].mxu0
  %v369 = vadd.f32 %v87, %v368
  %v370 = vpop.f32.mrb[0].mxu0
  %371 = vmatprep.mubr.f32.mxu0 0.0
  %372 = vmatmul.mubr.f32.gmra.mrb[0].mxu0 %v106
  %v373 = vpop.f32.mrb[0].mxu0
  %v374 = vadd.f32 %v87, %v373
  %v375 = vpop.f32.mrb[0].mxu0
  %376 = vmatprep.mubr.f32.mxu0 0.0
  %377 = vmatmul.mubr.f32.gmra.mrb[0].mxu0 %v109
  %v378 = vpop.f32.mrb[0].mxu0
  %v379 = vadd.f32 %v87, %v378
  %v380 = vpop.f32.mrb[0].mxu0
  %381 = vmatprep.mubr.f32.mxu0 0.0
  %382 = vmatmul.mubr.f32.gmra.mrb[0].mxu0 %v112
  %v383 = vpop.f32.mrb[0].mxu0
  %v384 = vadd.f32 %v87, %v383
  %v385 = vpop.f32.mrb[0].mxu0
  %386 = vmatprep.mubr.f32.mxu0 0.0
  %387 = vmatmul.mubr.f32.gmra.mrb[0].mxu0 %v115
  %v388 = vpop.f32.mrb[0].mxu0
  %v389 = vadd.f32 %v87, %v388
  %v390 = vpop.f32.mrb[0].mxu0
  %391 = vmatprep.mubr.f32.mxu0 0.0
  %392 = vmatmul.mubr.f32.gmra.mrb[0].mxu0 %v118
  %v393 = vpop.f32.mrb[0].mxu0
  %v394 = vadd.f32 %v87, %v393
  %v395 = vpop.f32.mrb[0].mxu0
  %396 = vmatprep.mubr.f32.mxu0 0.0
  %397 = vmatmul.mubr.f32.gmra.mrb[0].mxu0 %v121
  %v398 = vpop.f32.mrb[0].mxu0
  %v399 = vadd.f32 %v87, %v398
  %v400 = vpop.f32.mrb[0].mxu0
  %401 = vmatprep.mubr.f32.mxu0 0.0
  %402 = vmatmul.mubr.f32.gmra.mrb[0].mxu0 %v124
  %v403 = vpop.f32.mrb[0].mxu0
  %v404 = vadd.f32 %v87, %v403
  %v405 = vpop.f32.mrb[0].mxu0
  %406 = vmatprep.mubr.f32.mxu0 0.0
  %407 = vmatmul.mubr.f32.gmra.mrb[0].mxu0 %v127
  %v408 = vpop.f32.mrb[0].mxu0
  %v409 = vadd.f32 %v87, %v408
  %v410 = vpop.f32.mrb[0].mxu0
  %411 = vmatprep.mubr.f32.mxu0 0.0
  %412 = vmatmul.mubr.f32.gmra.mrb[0].mxu0 %v130
  %v413 = vpop.f32.mrb[0].mxu0
  %v414 = vadd.f32 %v87, %v413
  %v415 = vpop.f32.mrb[0].mxu0
  %416 = vmatprep.mubr.f32.mxu0 0.0
  %417 = vmatmul.mubr.f32.gmra.mrb[0].mxu0 %v133
  %v418 = vpop.f32.mrb[0].mxu0
  %v419 = vadd.f32 %v87, %v418
  %v420 = vpop.f32.mrb[0].mxu0
  %421 = vmatprep.mubr.f32.mxu0 0.0
  %422 = vmatmul.mubr.f32.gmra.mrb[0].mxu0 %v136
  %v423 = vpop.f32.mrb[0].mxu0
  %v424 = vadd.f32 %v87, %v423
  %v425 = vpop.f32.mrb[0].mxu0
  %426 = vmatprep.mubr.f32.mxu0 0.0
  %427 = vmatmul.mubr.f32.gmra.mrb[0].mxu0 %v139
  %v428 = vpop.f32.mrb[0].mxu0
  %v429 = vadd.f32 %v87, %v428
  %v430 = vpop.f32.mrb[0].mxu0
  %431 = vmatprep.mubr.f32.mxu0 0.0
  %432 = vmatmul.mubr.f32.gmra.mrb[0].mxu0 %v142
  %v433 = vpop.f32.mrb[0].mxu0
  %v434 = vadd.f32 %v87, %v433
  %v435 = vpop.f32.mrb[0].mxu0
  %436 = vmatprep.mubr.f32.mxu0 0.0
  %437 = vmatmul.mubr.f32.gmra.mrb[0].mxu0 %v145
  %v438 = vpop.f32.mrb[0].mxu0
  %v439 = vadd.f32 %v87, %v438
  %v440 = vpop.f32.mrb[0].mxu0
  %441 = vmatprep.mubr.f32.mxu0 0.0
  %442 = vmatmul.mubr.f32.gmra.mrb[0].mxu0 %v148
  %v443 = vpop.f32.mrb[0].mxu0
  %v444 = vadd.f32 %v87, %v443
  %v445 = vpop.f32.mrb[0].mxu0
  %446 = vmatprep.mubr.f32.mxu0 0.0
  %447 = vmatmul.mubr.f32.gmra.mrb[0].mxu0 %v151
  %v448 = vpop.f32.mrb[0].mxu0
  %v449 = vadd.f32 %v87, %v448
  %v450 = vpop.f32.mrb[0].mxu0
  %451 = vmatprep.mubr.f32.mxu0 0.0
  %452 = vmatmul.mubr.f32.gmra.mrb[0].mxu0 %v154
  %v453 = vpop.f32.mrb[0].mxu0
  %v454 = vadd.f32 %v87, %v453
  %v455 = vpop.f32.mrb[0].mxu0
  %456 = vmatprep.mubr.f32.mxu0 0.0
  %457 = vmatmul.mubr.f32.gmra.mrb[0].mxu0 %v157
  %v458 = vpop.f32.mrb[0].mxu0
  %v459 = vadd.f32 %v87, %v458
  %v460 = vpop.f32.mrb[0].mxu0
  %461 = vmatprep.mubr.f32.mxu0 0.0
  %462 = vmatmul.mubr.f32.gmra.mrb[0].mxu0 %v160
  %v463 = vpop.f32.mrb[0].mxu0
  %v464 = vadd.f32 %v87, %v463
  %v465 = vpop.f32.mrb[0].mxu0
  %466 = vmatprep.mubr.f32.mxu0 0.0
  %467 = vmatmul.mubr.f32.gmra.mrb[0].mxu0 %v163
  %v468 = vpop.f32.mrb[0].mxu0
  %v469 = vadd.f32 %v87, %v468
  %v470 = vpop.f32.mrb[0].mxu0
  %471 = vmatprep.mubr.f32.mxu0 0.0
  %472 = vmatmul.mubr.f32.gmra.mrb[0].mxu0 %v166
  %v473 = vpop.f32.mrb[0].mxu0
  %v474 = vadd.f32 %v87, %v473
  %v475 = vpop.f32.mrb[0].mxu0
  %476 = vmatprep.mubr.f32.mxu0 0.0
  %477 = vmatmul.mubr.f32.gmra.mrb[0].mxu0 %v169
  %v478 = vpop.f32.mrb[0].mxu0
  %v479 = vadd.f32 %v87, %v478
  %v480 = vpop.f32.mrb[0].mxu0
  %481 = vmatprep.mubr.f32.mxu0 0.0
  %482 = vmatmul.mubr.f32.gmra.mrb[0].mxu0 %v172
  %v483 = vpop.f32.mrb[0].mxu0
  %v484 = vadd.f32 %v87, %v483
  %v485 = vpop.f32.mrb[0].mxu0
  %486 = vmatprep.mubr.f32.mxu0 0.0
  %487 = vmatmul.mubr.f32.gmra.mrb[0].mxu0 %v175
  %v488 = vpop.f32.mrb[0].mxu0
  %v489 = vadd.f32 %v87, %v488
  %v490 = vpop.f32.mrb[0].mxu0
  %491 = vmatprep.mubr.f32.mxu0 0.0
  %492 = vmatmul.mubr.f32.gmra.mrb[0].mxu0 %v178
  %v493 = vpop.f32.mrb[0].mxu0
  %v494 = vadd.f32 %v87, %v493
  %v495 = vpop.f32.mrb[0].mxu0
  %496 = vmatprep.mubr.f32.mxu0 0.0
  %497 = vmatmul.mubr.f32.gmra.mrb[0].mxu0 %v181
  %v498 = vpop.f32.mrb[0].mxu0
  %v499 = vadd.f32 %v87, %v498
  %v500 = vpop.f32.mrb[0].mxu0
  %501 = vmatprep.mubr.f32.mxu0 0.0
  %502 = vmatmul.mubr.f32.gmra.mrb[0].mxu0 %v184
  %v503 = vpop.f32.mrb[0].mxu0
  %v504 = vadd.f32 %v87, %v503
  %v505 = vpop.f32.mrb[0].mxu0
  %506 = vmatprep.mubr.f32.mxu0 0.0
  %507 = vmatmul.mubr.f32.gmra.mrb[0].mxu0 %v187
  %v508 = vpop.f32.mrb[0].mxu0
  %v509 = vadd.f32 %v87, %v508
  %v510 = vpop.f32.mrb[0].mxu0
  %511 = vmatprep.mubr.f32.mxu0 0.0
  %512 = vmatmul.mubr.f32.gmra.mrb[0].mxu0 %v190
  %v513 = vpop.f32.mrb[0].mxu0
  %v514 = vadd.f32 %v87, %v513
  %v515 = vpop.f32.mrb[0].mxu0
  %516 = vmatprep.mubr.f32.mxu0 0.0
  %517 = vmatmul.mubr.f32.gmra.mrb[0].mxu0 %v193
  %v518 = vpop.f32.mrb[0].mxu0
  %v519 = vadd.f32 %v87, %v518
  %v520 = vpop.f32.mrb[0].mxu0
  %521 = vmatprep.mubr.f32.mxu0 0.0
  %522 = vmatmul.mubr.f32.gmra.mrb[0].mxu0 %v196
  %v523 = vpop.f32.mrb[0].mxu0
  %v524 = vadd.f32 %v87, %v523
  %v525 = vpop.f32.mrb[0].mxu0
  %526 = vmatprep.mubr.f32.mxu0 0.0
  %527 = vmatmul.mubr.f32.gmra.mrb[0].mxu0 %v199
  %v528 = vpop.f32.mrb[0].mxu0
  %v529 = vadd.f32 %v87, %v528
  %v530 = vpop.f32.mrb[0].mxu0
  %531 = vmatprep.mubr.f32.mxu0 0.0
  %532 = vmatmul.mubr.f32.gmra.mrb[0].mxu0 %v202
  %v533 = vpop.f32.mrb[0].mxu0
  %v534 = vadd.f32 %v87, %v533
  %v535 = vpop.f32.mrb[0].mxu0
  %536 = vmatprep.mubr.f32.mxu0 0.0
  %537 = vmatmul.mubr.f32.gmra.mrb[0].mxu0 %v205
  %v538 = vpop.f32.mrb[0].mxu0
  %v539 = vadd.f32 %v87, %v538
  %v540 = vpop.f32.mrb[0].mxu0
  %541 = vmatprep.mubr.f32.mxu0 0.0
  %542 = vmatmul.mubr.f32.gmra.mrb[0].mxu0 %v208
  %v543 = vpop.f32.mrb[0].mxu0
  %v544 = vadd.f32 %v87, %v543
  %v545 = vpop.f32.mrb[0].mxu0
  %546 = vmatprep.mubr.f32.mxu0 0.0
  %547 = vmatmul.mubr.f32.gmra.mrb[0].mxu0 %v211
  %v548 = vpop.f32.mrb[0].mxu0
  %v549 = vadd.f32 %v87, %v548
  %v550 = vpop.f32.mrb[0].mxu0
  %551 = vmatprep.mubr.f32.mxu0 0.0
  %552 = vmatmul.mubr.f32.gmra.mrb[0].mxu0 %v214
  %v553 = vpop.f32.mrb[0].mxu0
  %v554 = vadd.f32 %v87, %v553
  %v555 = vpop.f32.mrb[0].mxu0
  %556 = vmatprep.mubr.f32.mxu0 0.0
  %557 = vmatmul.mubr.f32.gmra.mrb[0].mxu0 %v217
  %v558 = vpop.f32.mrb[0].mxu0
  %v559 = vadd.f32 %v87, %v558
  %v560 = vpop.f32.mrb[0].mxu0
  %561 = vmatprep.mubr.f32.mxu0 0.0
  %562 = vmatmul.mubr.f32.gmra.mrb[0].mxu0 %v220
  %v563 = vpop.f32.mrb[0].mxu0
  %v564 = vadd.f32 %v87, %v563
  %v565 = vpop.f32.mrb[0].mxu0
  %566 = vmatprep.mubr.f32.mxu0 0.0
  %567 = vmatmul.mubr.f32.gmra.mrb[0].mxu0 %v223
  %v568 = vpop.f32.mrb[0].mxu0
  %v569 = vadd.f32 %v87, %v568
  %v570 = vpop.f32.mrb[0].mxu0
  %571 = vmatprep.mubr.f32.mxu0 0.0
  %572 = vmatmul.mubr.f32.gmra.mrb[0].mxu0 %v226
  %v573 = vpop.f32.mrb[0].mxu0
  %v574 = vadd.f32 %v87, %v573
  %v575 = vpop.f32.mrb[0].mxu0
  %576 = vmatprep.mubr.f32.mxu0 0.0
  %577 = vmatmul.mubr.f32.gmra.mrb[0].mxu0 %v229
  %v578 = vpop.f32.mrb[0].mxu0
  %v579 = vadd.f32 %v87, %v578
  %v580 = vpop.f32.mrb[0].mxu0
  %581 = vmatprep.mubr.f32.mxu0 0.0
  %582 = vmatmul.mubr.f32.gmra.mrb[0].mxu0 %v232
  %v583 = vpop.f32.mrb[0].mxu0
  %v584 = vadd.f32 %v87, %v583
  %v585 = vpop.f32.mrb[0].mxu0
  %586 = vmatprep.mubr.f32.mxu0 0.0
  %587 = vmatmul.mubr.f32.gmra.mrb[0].mxu0 %v235
  %v588 = vpop.f32.mrb[0].mxu0
  %v589 = vadd.f32 %v87, %v588
  %v590 = vpop.f32.mrb[0].mxu0
  %591 = vmatprep.mubr.f32.mxu0 0.0
  %592 = vmatmul.mubr.f32.gmra.mrb[0].mxu0 %v238
  %v593 = vpop.f32.mrb[0].mxu0
  %v594 = vadd.f32 %v87, %v593
  %v595 = vpop.f32.mrb[0].mxu0
  %596 = vmatprep.mubr.f32.mxu0 0.0
  %597 = vmatmul.mubr.f32.gmra.mrb[0].mxu0 %v241
  %v598 = vpop.f32.mrb[0].mxu0
  %v599 = vadd.f32 %v87, %v598
  %v600 = vpop.f32.mrb[0].mxu0
  %601 = vmatprep.mubr.f32.mxu0 0.0
  %602 = vmatmul.mubr.f32.gmra.mrb[0].mxu0 %v244
  %v603 = vpop.f32.mrb[0].mxu0
  %v604 = vadd.f32 %v87, %v603
  %v605 = vpop.f32.mrb[0].mxu0
  %606 = vmatprep.mubr.f32.mxu0 0.0
  %607 = vmatmul.mubr.f32.gmra.mrb[0].mxu0 %v247
  %v608 = vpop.f32.mrb[0].mxu0
  %v609 = vadd.f32 %v87, %v608
  %v610 = vpop.f32.mrb[0].mxu0
  %611 = vmatprep.mubr.f32.mxu0 0.0
  %612 = vmatmul.mubr.f32.gmra.mrb[0].mxu0 %v250
  %v613 = vpop.f32.mrb[0].mxu0
  %v614 = vadd.f32 %v87, %v613
  %v615 = vpop.f32.mrb[0].mxu0
  %616 = vmatprep.mubr.f32.mxu0 0.0
  %617 = vmatmul.mubr.f32.gmra.mrb[0].mxu0 %v253
  %v618 = vpop.f32.mrb[0].mxu0
  %v619 = vadd.f32 %v87, %v618
  %v620 = vpop.f32.mrb[0].mxu0
  %621 = vmatprep.mubr.f32.mxu0 0.0
  %622 = vmatmul.mubr.f32.gmra.mrb[0].mxu0 %v256
  %v623 = vpop.f32.mrb[0].mxu0
  %v624 = vadd.f32 %v87, %v623
  %v625 = vpop.f32.mrb[0].mxu0
  %626 = vmatprep.mubr.f32.mxu0 0.0
  %627 = vmatmul.mubr.f32.gmra.mrb[0].mxu0 %v259
  %v628 = vpop.f32.mrb[0].mxu0
  %v629 = vadd.f32 %v87, %v628
  %v630 = vpop.f32.mrb[0].mxu0
  %631 = vmatprep.mubr.f32.mxu0 0.0
  %632 = vmatmul.mubr.f32.gmra.mrb[0].mxu0 %v262
  %v633 = vpop.f32.mrb[0].mxu0
  %v634 = vadd.f32 %v87, %v633
  %v635 = vpop.f32.mrb[0].mxu0
  %636 = vmatprep.mubr.f32.mxu0 0.0
  %637 = vmatmul.mubr.f32.gmra.mrb[0].mxu0 %v265
  %v638 = vpop.f32.mrb[0].mxu0
  %v639 = vadd.f32 %v87, %v638
  %v640 = vpop.f32.mrb[0].mxu0
  %641 = vmatprep.mubr.f32.mxu0 0.0
  %642 = vmatmul.mubr.f32.gmra.mrb[0].mxu0 %v268
  %v643 = vpop.f32.mrb[0].mxu0
  %v644 = vadd.f32 %v87, %v643
  %v645 = vpop.f32.mrb[0].mxu0
  %646 = vmatprep.mubr.f32.mxu0 0.0
  %647 = vmatmul.mubr.f32.gmra.mrb[0].mxu0 %v271
  %v648 = vpop.f32.mrb[0].mxu0
  %v649 = vadd.f32 %v87, %v648
  %v650 = vpop.f32.mrb[0].mxu0
  %651 = vmatprep.mubr.f32.mxu0 0.0
  %652 = vmatmul.mubr.f32.gmra.mrb[0].mxu0 %v274
  %v653 = vpop.f32.mrb[0].mxu0
  %v654 = vadd.f32 %v87, %v653
  %v655 = vpop.f32.mrb[0].mxu0
  %656 = vmatprep.mubr.f32.mxu0 0.0
  %657 = vmatmul.mubr.f32.gmra.mrb[0].mxu0 %v277
  %v658 = vpop.f32.mrb[0].mxu0
  %v659 = vadd.f32 %v87, %v658
  %v660 = vpop.f32.mrb[0].mxu0
  %661 = vmatprep.mubr.f32.mxu0 0.0
  %662 = vmatmul.mubr.f32.gmra.mrb[0].mxu0 %v280
  %v663 = vpop.f32.mrb[0].mxu0
  %v664 = vadd.f32 %v87, %v663
  %v665 = vpop.f32.mrb[0].mxu0
  %666 = vdwg.mxu0
  %vm667 = vcmask 23552
  %668 = vst.msk [vmem:[%s3] sm:$0xff] %vm667, %v349
  %669 = vst.msk [vmem:[%s3 + $0x8] sm:$0xff] %vm667, %v354
  %670 = vst.msk [vmem:[%s3 + $0x10] sm:$0xff] %vm667, %v359
  %671 = vst.msk [vmem:[%s3 + $0x18] sm:$0xff] %vm667, %v364
  %672 = vst.msk [vmem:[%s3 + $0x20] sm:$0xff] %vm667, %v369
  %673 = vst.msk [vmem:[%s3 + $0x28] sm:$0xff] %vm667, %v374
  %674 = vst.msk [vmem:[%s3 + $0x30] sm:$0xff] %vm667, %v379
  %675 = vst.msk [vmem:[%s3 + $0x38] sm:$0xff] %vm667, %v384
  %676 = vst.msk [vmem:[%s3 + $0x40] sm:$0xff] %vm667, %v389
  %677 = vst.msk [vmem:[%s3 + $0x48] sm:$0xff] %vm667, %v394
  %678 = vst.msk [vmem:[%s3 + $0x50] sm:$0xff] %vm667, %v399
  %679 = vst.msk [vmem:[%s3 + $0x58] sm:$0xff] %vm667, %v404
  %680 = vst.msk [vmem:[%s3 + $0x60] sm:$0xff] %vm667, %v409
  %681 = vst.msk [vmem:[%s3 + $0x68] sm:$0xff] %vm667, %v414
  %682 = vst.msk [vmem:[%s3 + $0x70] sm:$0xff] %vm667, %v419
  %683 = vst.msk [vmem:[%s3 + $0x78] sm:$0xff] %vm667, %v424
  %684 = vst.msk [vmem:[%s3 + $0x80] sm:$0xff] %vm667, %v429
  %685 = vst.msk [vmem:[%s3 + $0x88] sm:$0xff] %vm667, %v434
  %686 = vst.msk [vmem:[%s3 + $0x90] sm:$0xff] %vm667, %v439
  %687 = vst.msk [vmem:[%s3 + $0x98] sm:$0xff] %vm667, %v444
  %688 = vst.msk [vmem:[%s3 + $0xa0] sm:$0xff] %vm667, %v449
  %689 = vst.msk [vmem:[%s3 + $0xa8] sm:$0xff] %vm667, %v454
  %690 = vst.msk [vmem:[%s3 + $0xb0] sm:$0xff] %vm667, %v459
  %691 = vst.msk [vmem:[%s3 + $0xb8] sm:$0xff] %vm667, %v464
  %692 = vst.msk [vmem:[%s3 + $0xc0] sm:$0xff] %vm667, %v469
  %693 = vst.msk [vmem:[%s3 + $0xc8] sm:$0xff] %vm667, %v474
  %694 = vst.msk [vmem:[%s3 + $0xd0] sm:$0xff] %vm667, %v479
  %695 = vst.msk [vmem:[%s3 + $0xd8] sm:$0xff] %vm667, %v484
  %696 = vst.msk [vmem:[%s3 + $0xe0] sm:$0xff] %vm667, %v489
  %697 = vst.msk [vmem:[%s3 + $0xe8] sm:$0xff] %vm667, %v494
  %698 = vst.msk [vmem:[%s3 + $0xf0] sm:$0xff] %vm667, %v499
  %699 = vst.msk [vmem:[%s3 + $0xf8] sm:$0xff] %vm667, %v504
  %700 = vst.msk [vmem:[%s3 + $0x100] sm:$0xff] %vm667, %v509
  %701 = vst.msk [vmem:[%s3 + $0x108] sm:$0xff] %vm667, %v514
  %702 = vst.msk [vmem:[%s3 + $0x110] sm:$0xff] %vm667, %v519
  %703 = vst.msk [vmem:[%s3 + $0x118] sm:$0xff] %vm667, %v524
  %704 = vst.msk [vmem:[%s3 + $0x120] sm:$0xff] %vm667, %v529
  %705 = vst.msk [vmem:[%s3 + $0x128] sm:$0xff] %vm667, %v534
  %706 = vst.msk [vmem:[%s3 + $0x130] sm:$0xff] %vm667, %v539
  %707 = vst.msk [vmem:[%s3 + $0x138] sm:$0xff] %vm667, %v544
  %708 = vst.msk [vmem:[%s3 + $0x140] sm:$0xff] %vm667, %v549
  %709 = vst.msk [vmem:[%s3 + $0x148] sm:$0xff] %vm667, %v554
  %710 = vst.msk [vmem:[%s3 + $0x150] sm:$0xff] %vm667, %v559
  %711 = vst.msk [vmem:[%s3 + $0x158] sm:$0xff] %vm667, %v564
  %712 = vst.msk [vmem:[%s3 + $0x160] sm:$0xff] %vm667, %v569
  %713 = vst.msk [vmem:[%s3 + $0x168] sm:$0xff] %vm667, %v574
  %714 = vst.msk [vmem:[%s3 + $0x170] sm:$0xff] %vm667, %v579
  %715 = vst.msk [vmem:[%s3 + $0x178] sm:$0xff] %vm667, %v584
  %716 = vst.msk [vmem:[%s3 + $0x180] sm:$0xff] %vm667, %v589
  %717 = vst.msk [vmem:[%s3 + $0x188] sm:$0xff] %vm667, %v594
  %718 = vst.msk [vmem:[%s3 + $0x190] sm:$0xff] %vm667, %v599
  %719 = vst.msk [vmem:[%s3 + $0x198] sm:$0xff] %vm667, %v604
  %720 = vst.msk [vmem:[%s3 + $0x1a0] sm:$0xff] %vm667, %v609
  %721 = vst.msk [vmem:[%s3 + $0x1a8] sm:$0xff] %vm667, %v614
  %722 = vst.msk [vmem:[%s3 + $0x1b0] sm:$0xff] %vm667, %v619
  %723 = vst.msk [vmem:[%s3 + $0x1b8] sm:$0xff] %vm667, %v624
  %724 = vst.msk [vmem:[%s3 + $0x1c0] sm:$0xff] %vm667, %v629
  %725 = vst.msk [vmem:[%s3 + $0x1c8] sm:$0xff] %vm667, %v634
  %726 = vst.msk [vmem:[%s3 + $0x1d0] sm:$0xff] %vm667, %v639
  %727 = vst.msk [vmem:[%s3 + $0x1d8] sm:$0xff] %vm667, %v644
  %728 = vst.msk [vmem:[%s3 + $0x1e0] sm:$0xff] %vm667, %v649
  %729 = vst.msk [vmem:[%s3 + $0x1e8] sm:$0xff] %vm667, %v654
  %730 = vst.msk [vmem:[%s3 + $0x1f0] sm:$0xff] %vm667, %v659
  %731 = vst.msk [vmem:[%s3 + $0x1f8] sm:$0xff] %vm667, %v664
  // Predicated region
  $region14: #{_lambda_.5} parent=0 // pred_check
    _
  $region15: #{_lambda_.5} parent=0 // pred_check_branch
    %733 = sbr.rel (0) target = $region17
  $region16: #{_lambda_.5} parent=0 // pred_region
    _
  $region17: #{_lambda_.5} parent=0 // pred_fallthru
    _
  // Predicated region
  $region18: #{_lambda_.5} parent=0 // pred_check
    _
  $region19: #{_lambda_.5} parent=0 // pred_check_branch
    %735 = sbr.rel (0) target = $region21
  $region20: #{_lambda_.5} parent=0 // pred_region
    _
  $region21: #{_lambda_.5} parent=0 // pred_fallthru
    _

// kernel: _lambda_.3
$region0: #{_lambda_.3}
  #allocation0 [shape = 'u32[]', space=smem, size = 0x4, offset = 0x4, fixed_abs, tag = 'smem constant byte address 0x4 - core index']
  #allocation1 [shape = 'u32[144,128]{1,0:T(1,128)}', space=vmem, size = 0x12000, scoped, tag = 'internal scratch']
  #allocation2 [shape = 'f32[18,18,16]{2,1,0:T(8,128)}', space=vmem, size = 0x36000, scoped, tag = 'scratch operand']
  #allocation3 [shape = 'f32[256,16]{1,0:T(8,128)}', space=vmem, size = 0x20000, scoped, tag = 'scratch operand']
  %s0 = inlined_call_operand.vmem [shape: f32[4,2,18,18,3], index: 0, kind: input, shape index: {}]
  %s1 = inlined_call_operand.vmem [shape: bf16[171,64], index: 1, kind: input, shape index: {}]
  %s2 = inlined_call_operand.vmem [shape: f32[1,64], index: 2, kind: input, shape index: {}]
  %s3 = inlined_call_operand.vmem [shape: f32[4,2,18,18,16], index: 3, kind: output, shape index: {}]
  %s4 = sld [smem:[#allocation0]]
  $region49: #{_lambda_.3} parent=0
    _
  %s6 = ssub.s32 1, %s4
  %s7 = scalar_select 0, %s6, %s4
  loop: start=0, step=1, limit=10
  $region2: #{_lambda_.3} parent=0 // loop_pre_header
    _
  $region3: #{_lambda_.3} parent=0 // loop_header
    %s9 = sphi 0, %s13
    %p10 = scmp.ge.s32.totalorder %s9, 10
    %s16 = sphi 0, %s28
    %s17 = sphi 0, %s24
    %s18 = sphi 0, %s16
    %s19 = sphi 0, %s17
    %s20 = sphi 0, %s18
    %s21 = sphi 0, %s19
    %s33 = sphi 0, %s35
    %s36 = sphi 0, %s33
    %s37 = sphi 0, %s36
    %s53 = sphi 0, %s37
    %s57 = sphi 0, %s57
    %s59 = sphi 0, %s57
    %s60 = sphi 0, %s59
    %s74 = sphi 0, %s60
    %s78 = sphi 0, %s78
    %s80 = sphi 0, %s78
    %s81 = sphi 0, %s80
    %s95 = sphi 0, %s81
    %s103 = sphi 0, %s105
    %s106 = sphi 0, %s103
    %s107 = sphi 0, %s106
    %s123 = sphi 0, %s107
  $region4: #{_lambda_.3} parent=0 // loop_header_branch
    %12 = sbr.rel (%p10) target = $region8
  $region5: #{_lambda_.3} parent=0 // loop_body
    %s14 = ssub.s32 %s9, 1
    %s15 = ssub.s32 %s9, 2
    %s22 = sadd.s32 1, %s17
    %p23 = scmp.ge.s32.totalorder %s22, 4
    %s24 = scalar_select %p23, 0, %s22
    %s25 = sadd.s32 1, %s16
    %s26 = scalar_select %p23, %s25, %s16
    %p27 = scmp.ge.s32.totalorder %s26, 2
    %s28 = scalar_select %p27, 0, %s26
    %s29 = ssub.s32 %s17, %s24
    %s30 = ssub.s32 %s16, %s28
    %s31 = sor.u32 %s29, %s30
    %p32 = scmp.eq.s32.totalorder %s31, 0
    %s34 = sadd.s32 %s33, 1
    %s35 = scalar_select %p32, %s33, %s34
    %p38 = pneg %p32
    %p39 = scmp.eq.s32.totalorder %s9, 7
    %p40 = por %p38, %p39
    %p41 = scmp.ne.s32.totalorder %s33, %s36
    %p42 = scmp.eq.s32.totalorder %s9, 0
    %p43 = por %p41, %p42
    %p44 = scmp.ne.s32.totalorder %s33, %s36
    %p45 = scmp.eq.s32.totalorder %s14, 7
    %p46 = por %p44, %p45
    %p47 = scmp.ne.s32.totalorder %s36, %s37
    %p48 = scmp.eq.s32.totalorder %s14, 0
    %p49 = por %p47, %p48
    %p50 = scmp.ne.s32.totalorder %s36, %s37
    %p51 = scmp.eq.s32.totalorder %s15, 7
    %p52 = por %p50, %p51
    %p54 = scmp.ne.s32.totalorder %s37, %s53
    %p55 = scmp.eq.s32.totalorder %s15, 0
    %p56 = por %p54, %p55
    %s58 = sadd.s32 %s57, 1
    %p61 = scmp.eq.s32.totalorder %s9, 7
    %p62 = scmp.ne.s32.totalorder %s57, %s59
    %p63 = scmp.eq.s32.totalorder %s9, 0
    %p64 = por %p62, %p63
    %p65 = scmp.ne.s32.totalorder %s57, %s59
    %p66 = scmp.eq.s32.totalorder %s14, 7
    %p67 = por %p65, %p66
    %p68 = scmp.ne.s32.totalorder %s59, %s60
    %p69 = scmp.eq.s32.totalorder %s14, 0
    %p70 = por %p68, %p69
    %p71 = scmp.ne.s32.totalorder %s59, %s60
    %p72 = scmp.eq.s32.totalorder %s15, 7
    %p73 = por %p71, %p72
    %p75 = scmp.ne.s32.totalorder %s60, %s74
    %p76 = scmp.eq.s32.totalorder %s15, 0
    %p77 = por %p75, %p76
    %s79 = sadd.s32 %s78, 1
    %p82 = scmp.eq.s32.totalorder %s9, 7
    %p83 = scmp.ne.s32.totalorder %s78, %s80
    %p84 = scmp.eq.s32.totalorder %s9, 0
    %p85 = por %p83, %p84
    %p86 = scmp.ne.s32.totalorder %s78, %s80
    %p87 = scmp.eq.s32.totalorder %s14, 7
    %p88 = por %p86, %p87
    %p89 = scmp.ne.s32.totalorder %s80, %s81
    %p90 = scmp.eq.s32.totalorder %s14, 0
    %p91 = por %p89, %p90
    %p92 = scmp.ne.s32.totalorder %s80, %s81
    %p93 = scmp.eq.s32.totalorder %s15, 7
    %p94 = por %p92, %p93
    %p96 = scmp.ne.s32.totalorder %s81, %s95
    %p97 = scmp.eq.s32.totalorder %s15, 0
    %p98 = por %p96, %p97
    %s99 = ssub.s32 %s17, %s24
    %s100 = ssub.s32 %s16, %s28
    %s101 = sor.u32 %s99, %s100
    %p102 = scmp.eq.s32.totalorder %s101, 0
    %s104 = sadd.s32 %s103, 1
    %s105 = scalar_select %p102, %s103, %s104
    %p108 = pneg %p102
    %p109 = scmp.eq.s32.totalorder %s9, 7
    %p110 = por %p108, %p109
    %p111 = scmp.ne.s32.totalorder %s103, %s106
    %p112 = scmp.eq.s32.totalorder %s9, 0
    %p113 = por %p111, %p112
    %p114 = scmp.ne.s32.totalorder %s103, %s106
    %p115 = scmp.eq.s32.totalorder %s14, 7
    %p116 = por %p114, %p115
    %p117 = scmp.ne.s32.totalorder %s106, %s107
    %p118 = scmp.eq.s32.totalorder %s14, 0
    %p119 = por %p117, %p118
    %p120 = scmp.ne.s32.totalorder %s106, %s107
    %p121 = scmp.eq.s32.totalorder %s15, 7
    %p122 = por %p120, %p121
    %p124 = scmp.ne.s32.totalorder %s107, %s123
    %p125 = scmp.eq.s32.totalorder %s15, 0
    %p126 = por %p124, %p125
    %p127 = scmp.le.s32.totalorder 1, %s9
    %p128 = scmp.lt.s32.totalorder %s9, 9
    %p129 = pnand %p127, %p128
    %p130 = pneg %p129
    // Predicated region
    $region9: #{_lambda_.3} parent=5 // pred_check
      _
    $region10: #{_lambda_.3} parent=5 // pred_check_branch
      %132 = sbr.rel (%p129) target = $region12
    $region11: #{_lambda_.3} parent=5 // pred_region
      %s133 = ssub.s32 %s9, 1
      // Predicated region
      $region13: #{_lambda_.3} parent=11 // pred_check
        %p134 = pneg %p70
      $region14: #{_lambda_.3} parent=11 // pred_check_branch
        %136 = sbr.rel (%p134) target = $region16
      $region15: #{_lambda_.3} parent=11 // pred_region
        _
      $region16: #{_lambda_.3} parent=11 // pred_fallthru
        _
      // Predicated region
      $region17: #{_lambda_.3} parent=11 // pred_check
        %p137 = pneg %p91
      $region18: #{_lambda_.3} parent=11 // pred_check_branch
        %139 = sbr.rel (%p137) target = $region20
      $region19: #{_lambda_.3} parent=11 // pred_region
        _
      $region20: #{_lambda_.3} parent=11 // pred_fallthru
        _
    $region12: #{_lambda_.3} parent=5 // pred_fallthru
      _
    %p140 = scmp.lt.s32.totalorder %s9, 8
    // Predicated region
    $region21: #{_lambda_.3} parent=5 // pred_check
      %p141 = pneg %p140
    $region22: #{_lambda_.3} parent=5 // pred_check_branch
      %143 = sbr.rel (%p141) target = $region24
    $region23: #{_lambda_.3} parent=5 // pred_region
      // Predicated region
      $region25: #{_lambda_.3} parent=23 // pred_check
        %p144 = pneg %p43
      $region26: #{_lambda_.3} parent=23 // pred_check_branch
        %146 = sbr.rel (%p144) target = $region28
      $region27: #{_lambda_.3} parent=23 // pred_region
        %p147 = scmp.lt.s32.totalorder %s17, 3
        %s148 = scalar_select %p147, %s17, 3
        %p149 = scmp.lt.s32.totalorder %s16, 1
        %s150 = scalar_select %p149, %s16, 1
        %s151 = smul.addr %s150, 54
        %s152 = smul.addr %s148, 108
        %s153 = sadd.s32 %s151, %s152
        %s154 = smul.addr %s153, 8
        %s155 = scalar_lea.vmem %s0, %s154
      $region28: #{_lambda_.3} parent=23 // pred_fallthru
        _
    $region24: #{_lambda_.3} parent=5 // pred_fallthru
      _
    %p156 = scmp.le.s32.totalorder 1, %s9
    %p157 = scmp.lt.s32.totalorder %s9, 9
    %p158 = pnand %p156, %p157
    %p159 = pneg %p158
    // Predicated region
    $region29: #{_lambda_.3} parent=5 // pred_check
      _
    $region30: #{_lambda_.3} parent=5 // pred_check_branch
      %161 = sbr.rel (%p158) target = $region32
    $region31: #{_lambda_.3} parent=5 // pred_region
      %s162 = ssub.s32 %s9, 1
      %p163 = scmp.lt.s32.totalorder %s19, 3
      %s164 = scalar_select %p163, %s19, 3
      %p165 = scmp.lt.s32.totalorder %s18, 1
      %s166 = scalar_select %p165, %s18, 1
      %s167 = smul.addr %s166, 54
      %s168 = smul.addr %s164, 108
      %s169 = sadd.s32 %s167, %s168
      %s170 = smul.addr %s169, 8
      %s171 = scalar_lea.vmem %s0, %s170
      %p172 = pneg %p49
      %p173 = pneg %p46
      %p174 = pneg %p70
      %p175 = pneg %p67
      %p176 = pneg %p91
      %p177 = pneg %p88
      %p178 = pneg %p119
      %p179 = pneg %p116
      %p180 = scmp.lt.s32.totalorder %s19, 3
      %s181 = scalar_select %p180, %s19, 3
      %p182 = scmp.lt.s32.totalorder %s18, 1
      %s183 = scalar_select %p182, %s18, 1
      %s184 = smul.addr %s183, 54
      %s185 = smul.addr %s181, 108
      %s186 = sadd.s32 %s184, %s185
      %s187 = smul.addr %s186, 8
      %s188 = scalar_lea.vmem %s3, %s187
      %p189 = scmp.lt.s32.totalorder %s19, 3
      %s190 = scalar_select %p189, %s19, 3
      %p191 = scmp.lt.s32.totalorder %s18, 1
      %s192 = scalar_select %p191, %s18, 1
      %s193 = smul.addr %s192, 54
      %s194 = smul.addr %s190, 108
      %s195 = sadd.s32 %s193, %s194
      %s196 = smul.addr %s195, 8
      %s197 = scalar_lea.vmem %s0, %s196
      %p198 = scmp.lt.s32.totalorder %s19, 3
      %s199 = scalar_select %p198, %s19, 3
      %p200 = scmp.lt.s32.totalorder %s18, 1
      %s201 = scalar_select %p200, %s18, 1
      %s202 = smul.addr %s201, 54
      %s203 = smul.addr %s199, 108
      %s204 = sadd.s32 %s202, %s203
      %s205 = smul.addr %s204, 8
      %s206 = scalar_lea.vmem %s3, %s205
      %p208 = scmp.eq.s32.totalorder %s19, 0
      // Predicated region
      $region33: #{_lambda_.3} parent=31 // pred_check
        %p209 = pneg %p208
      $region34: #{_lambda_.3} parent=31 // pred_check_branch
        %211 = sbr.rel (%p209) target = $region36
      $region35: #{_lambda_.3} parent=31 // pred_region
        %vm212 = vcmask 130048
        %213 = vst.msk [vmem:[#allocation2] sm:$0xff] %vm212, 0.0
        %214 = vst.msk [vmem:[#allocation2 + $0x8] sm:$0xff] %vm212, 0.0
        %vm215 = vcmask 123904
        %216 = vst.msk [vmem:[#allocation2 + $0x10] sm:$0x3] %vm215, 0.0
        %217 = vst.msk [vmem:[#allocation2 + $0x18] sm:$0xff] %vm212, 0.0
        %218 = vst.msk [vmem:[#allocation2 + $0x20] sm:$0xff] %vm212, 0.0
        %219 = vst.msk [vmem:[#allocation2 + $0x28] sm:$0x3] %vm215, 0.0
        %220 = vst.msk [vmem:[#allocation2 + $0x30] sm:$0xff] %vm212, 0.0
        %221 = vst.msk [vmem:[#allocation2 + $0x38] sm:$0xff] %vm212, 0.0
        %222 = vst.msk [vmem:[#allocation2 + $0x40] sm:$0x3] %vm215, 0.0
        %223 = vst.msk [vmem:[#allocation2 + $0x48] sm:$0xff] %vm212, 0.0
        %224 = vst.msk [vmem:[#allocation2 + $0x50] sm:$0xff] %vm212, 0.0
        %225 = vst.msk [vmem:[#allocation2 + $0x58] sm:$0x3] %vm215, 0.0
        %226 = vst.msk [vmem:[#allocation2 + $0x60] sm:$0xff] %vm212, 0.0
        %227 = vst.msk [vmem:[#allocation2 + $0x68] sm:$0xff] %vm212, 0.0
        %228 = vst.msk [vmem:[#allocation2 + $0x70] sm:$0x3] %vm215, 0.0
        %229 = vst.msk [vmem:[#allocation2 + $0x78] sm:$0xff] %vm212, 0.0
        %230 = vst.msk [vmem:[#allocation2 + $0x80] sm:$0xff] %vm212, 0.0
        %231 = vst.msk [vmem:[#allocation2 + $0x88] sm:$0x3] %vm215, 0.0
        %232 = vst.msk [vmem:[#allocation2 + $0x90] sm:$0xff] %vm212, 0.0
        %233 = vst.msk [vmem:[#allocation2 + $0x98] sm:$0xff] %vm212, 0.0
        %234 = vst.msk [vmem:[#allocation2 + $0xa0] sm:$0x3] %vm215, 0.0
        %235 = vst.msk [vmem:[#allocation2 + $0xa8] sm:$0xff] %vm212, 0.0
        %236 = vst.msk [vmem:[#allocation2 + $0xb0] sm:$0xff] %vm212, 0.0
        %237 = vst.msk [vmem:[#allocation2 + $0xb8] sm:$0x3] %vm215, 0.0
        %238 = vst.msk [vmem:[#allocation2 + $0xc0] sm:$0xff] %vm212, 0.0
        %239 = vst.msk [vmem:[#allocation2 + $0xc8] sm:$0xff] %vm212, 0.0
        %240 = vst.msk [vmem:[#allocation2 + $0xd0] sm:$0x3] %vm215, 0.0
        %241 = vst.msk [vmem:[#allocation2 + $0xd8] sm:$0xff] %vm212, 0.0
        %242 = vst.msk [vmem:[#allocation2 + $0xe0] sm:$0xff] %vm212, 0.0
        %243 = vst.msk [vmem:[#allocation2 + $0xe8] sm:$0x3] %vm215, 0.0
        %244 = vst.msk [vmem:[#allocation2 + $0xf0] sm:$0xff] %vm212, 0.0
        %245 = vst.msk [vmem:[#allocation2 + $0xf8] sm:$0xff] %vm212, 0.0
        %246 = vst.msk [vmem:[#allocation2 + $0x100] sm:$0x3] %vm215, 0.0
        %247 = vst.msk [vmem:[#allocation2 + $0x108] sm:$0xff] %vm212, 0.0
        %248 = vst.msk [vmem:[#allocation2 + $0x110] sm:$0xff] %vm212, 0.0
        %249 = vst.msk [vmem:[#allocation2 + $0x118] sm:$0x3] %vm215, 0.0
        %250 = vst.msk [vmem:[#allocation2 + $0x120] sm:$0xff] %vm212, 0.0
        %251 = vst.msk [vmem:[#allocation2 + $0x128] sm:$0xff] %vm212, 0.0
        %252 = vst.msk [vmem:[#allocation2 + $0x130] sm:$0x3] %vm215, 0.0
        %253 = vst.msk [vmem:[#allocation2 + $0x138] sm:$0xff] %vm212, 0.0
        %254 = vst.msk [vmem:[#allocation2 + $0x140] sm:$0xff] %vm212, 0.0
        %255 = vst.msk [vmem:[#allocation2 + $0x148] sm:$0x3] %vm215, 0.0
        %256 = vst.msk [vmem:[#allocation2 + $0x150] sm:$0xff] %vm212, 0.0
        %257 = vst.msk [vmem:[#allocation2 + $0x158] sm:$0xff] %vm212, 0.0
        %258 = vst.msk [vmem:[#allocation2 + $0x160] sm:$0x3] %vm215, 0.0
        %259 = vst.msk [vmem:[#allocation2 + $0x168] sm:$0xff] %vm212, 0.0
        %260 = vst.msk [vmem:[#allocation2 + $0x170] sm:$0xff] %vm212, 0.0
        %261 = vst.msk [vmem:[#allocation2 + $0x178] sm:$0x3] %vm215, 0.0
        %262 = vst.msk [vmem:[#allocation2 + $0x180] sm:$0xff] %vm212, 0.0
        %263 = vst.msk [vmem:[#allocation2 + $0x188] sm:$0xff] %vm212, 0.0
        %264 = vst.msk [vmem:[#allocation2 + $0x190] sm:$0x3] %vm215, 0.0
        %265 = vst.msk [vmem:[#allocation2 + $0x198] sm:$0xff] %vm212, 0.0
        %266 = vst.msk [vmem:[#allocation2 + $0x1a0] sm:$0xff] %vm212, 0.0
        %267 = vst.msk [vmem:[#allocation2 + $0x1a8] sm:$0x3] %vm215, 0.0
        %268 = vst.msk [vmem:[#allocation3] sm:$0xff] %vm212, 0.0
        %269 = vst.msk [vmem:[#allocation3 + $0x8] sm:$0xff] %vm212, 0.0
        %270 = vst.msk [vmem:[#allocation3 + $0x10] sm:$0xff] %vm212, 0.0
        %271 = vst.msk [vmem:[#allocation3 + $0x18] sm:$0xff] %vm212, 0.0
        %272 = vst.msk [vmem:[#allocation3 + $0x20] sm:$0xff] %vm212, 0.0
        %273 = vst.msk [vmem:[#allocation3 + $0x28] sm:$0xff] %vm212, 0.0
        %274 = vst.msk [vmem:[#allocation3 + $0x30] sm:$0xff] %vm212, 0.0
        %275 = vst.msk [vmem:[#allocation3 + $0x38] sm:$0xff] %vm212, 0.0
        %276 = vst.msk [vmem:[#allocation3 + $0x40] sm:$0xff] %vm212, 0.0
        %277 = vst.msk [vmem:[#allocation3 + $0x48] sm:$0xff] %vm212, 0.0
        %278 = vst.msk [vmem:[#allocation3 + $0x50] sm:$0xff] %vm212, 0.0
        %279 = vst.msk [vmem:[#allocation3 + $0x58] sm:$0xff] %vm212, 0.0
        %280 = vst.msk [vmem:[#allocation3 + $0x60] sm:$0xff] %vm212, 0.0
        %281 = vst.msk [vmem:[#allocation3 + $0x68] sm:$0xff] %vm212, 0.0
        %282 = vst.msk [vmem:[#allocation3 + $0x70] sm:$0xff] %vm212, 0.0
        %283 = vst.msk [vmem:[#allocation3 + $0x78] sm:$0xff] %vm212, 0.0
        %284 = vst.msk [vmem:[#allocation3 + $0x80] sm:$0xff] %vm212, 0.0
        %285 = vst.msk [vmem:[#allocation3 + $0x88] sm:$0xff] %vm212, 0.0
        %286 = vst.msk [vmem:[#allocation3 + $0x90] sm:$0xff] %vm212, 0.0
        %287 = vst.msk [vmem:[#allocation3 + $0x98] sm:$0xff] %vm212, 0.0
        %288 = vst.msk [vmem:[#allocation3 + $0xa0] sm:$0xff] %vm212, 0.0
        %289 = vst.msk [vmem:[#allocation3 + $0xa8] sm:$0xff] %vm212, 0.0
        %290 = vst.msk [vmem:[#allocation3 + $0xb0] sm:$0xff] %vm212, 0.0
        %291 = vst.msk [vmem:[#allocation3 + $0xb8] sm:$0xff] %vm212, 0.0
        %292 = vst.msk [vmem:[#allocation3 + $0xc0] sm:$0xff] %vm212, 0.0
        %293 = vst.msk [vmem:[#allocation3 + $0xc8] sm:$0xff] %vm212, 0.0
        %294 = vst.msk [vmem:[#allocation3 + $0xd0] sm:$0xff] %vm212, 0.0
        %295 = vst.msk [vmem:[#allocation3 + $0xd8] sm:$0xff] %vm212, 0.0
        %296 = vst.msk [vmem:[#allocation3 + $0xe0] sm:$0xff] %vm212, 0.0
        %297 = vst.msk [vmem:[#allocation3 + $0xe8] sm:$0xff] %vm212, 0.0
        %298 = vst.msk [vmem:[#allocation3 + $0xf0] sm:$0xff] %vm212, 0.0
        %299 = vst.msk [vmem:[#allocation3 + $0xf8] sm:$0xff] %vm212, 0.0
      $region36: #{_lambda_.3} parent=31 // pred_fallthru
        _
      %v300 = vld [vmem:[%s197] sm:$0xff]
      %v301 = vld [vmem:[%s197 + $0x8] sm:$0xff]
      %v302 = vld [vmem:[%s197 + $0x10] sm:$0x3]
      %v303 = vld [vmem:[%s197 + $0x18] sm:$0xff]
      %v304 = vld [vmem:[%s197 + $0x20] sm:$0xff]
      %v305 = vld [vmem:[%s197 + $0x28] sm:$0x3]
      %v306 = vld [vmem:[%s197 + $0x30] sm:$0xff]
      %v307 = vld [vmem:[%s197 + $0x38] sm:$0xff]
      %v308 = vld [vmem:[%s197 + $0x40] sm:$0x3]
      %v309 = vld [vmem:[%s197 + $0x48] sm:$0xff]
      %v310 = vld [vmem:[%s197 + $0x50] sm:$0xff]
      %v311 = vld [vmem:[%s197 + $0x58] sm:$0x3]
      %v312 = vld [vmem:[%s197 + $0x60] sm:$0xff]
      %v313 = vld [vmem:[%s197 + $0x68] sm:$0xff]
      %v314 = vld [vmem:[%s197 + $0x70] sm:$0x3]
      %v315 = vld [vmem:[%s197 + $0x78] sm:$0xff]
      %v316 = vld [vmem:[%s197 + $0x80] sm:$0xff]
      %v317 = vld [vmem:[%s197 + $0x88] sm:$0x3]
      %v318 = vld [vmem:[%s197 + $0x90] sm:$0xff]
      %v319 = vld [vmem:[%s197 + $0x98] sm:$0xff]
      %v320 = vld [vmem:[%s197 + $0xa0] sm:$0x3]
      %v321 = vld [vmem:[%s197 + $0xa8] sm:$0xff]
      %v322 = vld [vmem:[%s197 + $0xb0] sm:$0xff]
      %v323 = vld [vmem:[%s197 + $0xb8] sm:$0x3]
      %v324 = vld [vmem:[%s197 + $0xc0] sm:$0xff]
      %v325 = vld [vmem:[%s197 + $0xc8] sm:$0xff]
      %v326 = vld [vmem:[%s197 + $0xd0] sm:$0x3]
      %v327 = vld [vmem:[%s197 + $0xd8] sm:$0xff]
      %v328 = vld [vmem:[%s197 + $0xe0] sm:$0xff]
      %v329 = vld [vmem:[%s197 + $0xe8] sm:$0x3]
      %v330 = vld [vmem:[%s197 + $0xf0] sm:$0xff]
      %v331 = vld [vmem:[%s197 + $0xf8] sm:$0xff]
      %v332 = vld [vmem:[%s197 + $0x100] sm:$0x3]
      %v333 = vld [vmem:[%s197 + $0x108] sm:$0xff]
      %v334 = vld [vmem:[%s197 + $0x110] sm:$0xff]
      %v335 = vld [vmem:[%s197 + $0x118] sm:$0x3]
      %v336 = vld [vmem:[%s197 + $0x120] sm:$0xff]
      %v337 = vld [vmem:[%s197 + $0x128] sm:$0xff]
      %v338 = vld [vmem:[%s197 + $0x130] sm:$0x3]
      %v339 = vld [vmem:[%s197 + $0x138] sm:$0xff]
      %v340 = vld [vmem:[%s197 + $0x140] sm:$0xff]
      %v341 = vld [vmem:[%s197 + $0x148] sm:$0x3]
      %v342 = vld [vmem:[%s197 + $0x150] sm:$0xff]
      %v343 = vld [vmem:[%s197 + $0x158] sm:$0xff]
      %v344 = vld [vmem:[%s197 + $0x160] sm:$0x3]
      %v345 = vld [vmem:[%s197 + $0x168] sm:$0xff]
      %v346 = vld [vmem:[%s197 + $0x170] sm:$0xff]
      %v347 = vld [vmem:[%s197 + $0x178] sm:$0x3]
      %v348 = vld [vmem:[%s197 + $0x180] sm:$0xff]
      %v349 = vld [vmem:[%s197 + $0x188] sm:$0xff]
      %v350 = vld [vmem:[%s197 + $0x190] sm:$0x3]
      %v351 = vld [vmem:[%s197 + $0x198] sm:$0xff]
      %v352 = vld [vmem:[%s197 + $0x1a0] sm:$0xff]
      %v353 = vld [vmem:[%s197 + $0x1a8] sm:$0x3]
      %v354 = vld [vmem:[#allocation2] sm:$0xff]
      %v355 = vld [vmem:[#allocation2 + $0x8] sm:$0xff]
      %v356 = vld [vmem:[#allocation2 + $0x10] sm:$0x3]
      %v357 = vld [vmem:[#allocation2 + $0x18] sm:$0xff]
      %v358 = vld [vmem:[#allocation2 + $0x20] sm:$0xff]
      %v359 = vld [vmem:[#allocation2 + $0x28] sm:$0x3]
      %v360 = vld [vmem:[#allocation2 + $0x30] sm:$0xff]
      %v361 = vld [vmem:[#allocation2 + $0x38] sm:$0xff]
      %v362 = vld [vmem:[#allocation2 + $0x40] sm:$0x3]
      %v363 = vld [vmem:[#allocation2 + $0x48] sm:$0xff]
      %v364 = vld [vmem:[#allocation2 + $0x50] sm:$0xff]
      %v365 = vld [vmem:[#allocation2 + $0x58] sm:$0x3]
      %v366 = vld [vmem:[#allocation2 + $0x60] sm:$0xff]
      %v367 = vld [vmem:[#allocation2 + $0x68] sm:$0xff]
      %v368 = vld [vmem:[#allocation2 + $0x70] sm:$0x3]
      %v369 = vld [vmem:[#allocation2 + $0x78] sm:$0xff]
      %v370 = vld [vmem:[#allocation2 + $0x80] sm:$0xff]
      %v371 = vld [vmem:[#allocation2 + $0x88] sm:$0x3]
      %v372 = vld [vmem:[#allocation2 + $0x90] sm:$0xff]
      %v373 = vld [vmem:[#allocation2 + $0x98] sm:$0xff]
      %v374 = vld [vmem:[#allocation2 + $0xa0] sm:$0x3]
      %v375 = vld [vmem:[#allocation2 + $0xa8] sm:$0xff]
      %v376 = vld [vmem:[#allocation2 + $0xb0] sm:$0xff]
      %v377 = vld [vmem:[#allocation2 + $0xb8] sm:$0x3]
      %v378 = vld [vmem:[#allocation2 + $0xc0] sm:$0xff]
      %v379 = vld [vmem:[#allocation2 + $0xc8] sm:$0xff]
      %v380 = vld [vmem:[#allocation2 + $0xd0] sm:$0x3]
      %v381 = vld [vmem:[#allocation2 + $0xd8] sm:$0xff]
      %v382 = vld [vmem:[#allocation2 + $0xe0] sm:$0xff]
      %v383 = vld [vmem:[#allocation2 + $0xe8] sm:$0x3]
      %v384 = vld [vmem:[#allocation2 + $0xf0] sm:$0xff]
      %v385 = vld [vmem:[#allocation2 + $0xf8] sm:$0xff]
      %v386 = vld [vmem:[#allocation2 + $0x100] sm:$0x3]
      %v387 = vld [vmem:[#allocation2 + $0x108] sm:$0xff]
      %v388 = vld [vmem:[#allocation2 + $0x110] sm:$0xff]
      %v389 = vld [vmem:[#allocation2 + $0x118] sm:$0x3]
      %v390 = vld [vmem:[#allocation2 + $0x120] sm:$0xff]
      %v391 = vld [vmem:[#allocation2 + $0x128] sm:$0xff]
      %v392 = vld [vmem:[#allocation2 + $0x130] sm:$0x3]
      %v393 = vld [vmem:[#allocation2 + $0x138] sm:$0xff]
      %v394 = vld [vmem:[#allocation2 + $0x140] sm:$0xff]
      %v395 = vld [vmem:[#allocation2 + $0x148] sm:$0x3]
      %v396 = vld [vmem:[#allocation2 + $0x150] sm:$0xff]
      %v397 = vld [vmem:[#allocation2 + $0x158] sm:$0xff]
      %v398 = vld [vmem:[#allocation2 + $0x160] sm:$0x3]
      %v399 = vld [vmem:[#allocation2 + $0x168] sm:$0xff]
      %v400 = vld [vmem:[#allocation2 + $0x170] sm:$0xff]
      %v401 = vld [vmem:[#allocation2 + $0x178] sm:$0x3]
      %v402 = vld [vmem:[#allocation2 + $0x180] sm:$0xff]
      %v403 = vld [vmem:[#allocation2 + $0x188] sm:$0xff]
      %v404 = vld [vmem:[#allocation2 + $0x190] sm:$0x3]
      %v405 = vld [vmem:[#allocation2 + $0x198] sm:$0xff]
      %v406 = vld [vmem:[#allocation2 + $0x1a0] sm:$0xff]
      %v407 = vld [vmem:[#allocation2 + $0x1a8] sm:$0x3]
      %vm456 = vcmask 1046528
      %v457 = vrot.slane %v300, 1
      %v458 = vrot.slane %v301, 1
      %v459 = vsel %vm456, %v457, %v458
      %v460 = vrot.slane %v302, 1
      %v461 = vsel %vm456, %v458, %v460
      %v462 = vrot.slane %v303, 1
      %v463 = vrot.slane %v304, 1
      %v464 = vsel %vm456, %v462, %v463
      %v465 = vrot.slane %v305, 1
      %v466 = vsel %vm456, %v463, %v465
      %v467 = vrot.slane %v306, 1
      %v468 = vrot.slane %v307, 1
      %v469 = vsel %vm456, %v467, %v468
      %v470 = vrot.slane %v308, 1
      %v471 = vsel %vm456, %v468, %v470
      %v472 = vrot.slane %v309, 1
      %v473 = vrot.slane %v310, 1
      %v474 = vsel %vm456, %v472, %v473
      %v475 = vrot.slane %v311, 1
      %v476 = vsel %vm456, %v473, %v475
      %v477 = vrot.slane %v312, 1
      %v478 = vrot.slane %v313, 1
      %v479 = vsel %vm456, %v477, %v478
      %v480 = vrot.slane %v314, 1
      %v481 = vsel %vm456, %v478, %v480
      %v482 = vrot.slane %v315, 1
      %v483 = vrot.slane %v316, 1
      %v484 = vsel %vm456, %v482, %v483
      %v485 = vrot.slane %v317, 1
      %v486 = vsel %vm456, %v483, %v485
      %v487 = vrot.slane %v318, 1
      %v488 = vrot.slane %v319, 1
      %v489 = vsel %vm456, %v487, %v488
      %v490 = vrot.slane %v320, 1
      %v491 = vsel %vm456, %v488, %v490
      %v492 = vrot.slane %v321, 1
      %v493 = vrot.slane %v322, 1
      %v494 = vsel %vm456, %v492, %v493
      %v495 = vrot.slane %v323, 1
      %v496 = vsel %vm456, %v493, %v495
      %v497 = vrot.slane %v324, 1
      %v498 = vrot.slane %v325, 1
      %v499 = vsel %vm456, %v497, %v498
      %v500 = vrot.slane %v326, 1
      %v501 = vsel %vm456, %v498, %v500
      %v502 = vrot.slane %v327, 1
      %v503 = vrot.slane %v328, 1
      %v504 = vsel %vm456, %v502, %v503
      %v505 = vrot.slane %v329, 1
      %v506 = vsel %vm456, %v503, %v505
      %v507 = vrot.slane %v330, 1
      %v508 = vrot.slane %v331, 1
      %v509 = vsel %vm456, %v507, %v508
      %v510 = vrot.slane %v332, 1
      %v511 = vsel %vm456, %v508, %v510
      %v512 = vrot.slane %v333, 1
      %v513 = vrot.slane %v334, 1
      %v514 = vsel %vm456, %v512, %v513
      %v515 = vrot.slane %v335, 1
      %v516 = vsel %vm456, %v513, %v515
      %v517 = vrot.slane %v336, 1
      %v518 = vrot.slane %v337, 1
      %v519 = vsel %vm456, %v517, %v518
      %v520 = vrot.slane %v338, 1
      %v521 = vsel %vm456, %v518, %v520
      %v522 = vrot.slane %v339, 1
      %v523 = vrot.slane %v340, 1
      %v524 = vsel %vm456, %v522, %v523
      %v525 = vrot.slane %v341, 1
      %v526 = vsel %vm456, %v523, %v525
      %v527 = vrot.slane %v342, 1
      %v528 = vrot.slane %v343, 1
      %v529 = vsel %vm456, %v527, %v528
      %v530 = vrot.slane %v344, 1
      %v531 = vsel %vm456, %v528, %v530
      %v532 = vrot.slane %v345, 1
      %v533 = vrot.slane %v346, 1
      %v534 = vsel %vm456, %v532, %v533
      %v535 = vrot.slane %v347, 1
      %v536 = vsel %vm456, %v533, %v535
      %vm537 = vcmask 1045504
      %v538 = vrot.slane %v300, 2
      %v539 = vrot.slane %v301, 2
      %v540 = vsel %vm537, %v538, %v539
      %v541 = vrot.slane %v302, 2
      %v542 = vsel %vm537, %v539, %v541
      %v543 = vrot.slane %v303, 2
      %v544 = vrot.slane %v304, 2
      %v545 = vsel %vm537, %v543, %v544
      %v546 = vrot.slane %v305, 2
      %v547 = vsel %vm537, %v544, %v546
      %v548 = vrot.slane %v306, 2
      %v549 = vrot.slane %v307, 2
      %v550 = vsel %vm537, %v548, %v549
      %v551 = vrot.slane %v308, 2
      %v552 = vsel %vm537, %v549, %v551
      %v553 = vrot.slane %v309, 2
      %v554 = vrot.slane %v310, 2
      %v555 = vsel %vm537, %v553, %v554
      %v556 = vrot.slane %v311, 2
      %v557 = vsel %vm537, %v554, %v556
      %v558 = vrot.slane %v312, 2
      %v559 = vrot.slane %v313, 2
      %v560 = vsel %vm537, %v558, %v559
      %v561 = vrot.slane %v314, 2
      %v562 = vsel %vm537, %v559, %v561
      %v563 = vrot.slane %v315, 2
      %v564 = vrot.slane %v316, 2
      %v565 = vsel %vm537, %v563, %v564
      %v566 = vrot.slane %v317, 2
      %v567 = vsel %vm537, %v564, %v566
      %v568 = vrot.slane %v318, 2
      %v569 = vrot.slane %v319, 2
      %v570 = vsel %vm537, %v568, %v569
      %v571 = vrot.slane %v320, 2
      %v572 = vsel %vm537, %v569, %v571
      %v573 = vrot.slane %v321, 2
      %v574 = vrot.slane %v322, 2
      %v575 = vsel %vm537, %v573, %v574
      %v576 = vrot.slane %v323, 2
      %v577 = vsel %vm537, %v574, %v576
      %v578 = vrot.slane %v324, 2
      %v579 = vrot.slane %v325, 2
      %v580 = vsel %vm537, %v578, %v579
      %v581 = vrot.slane %v326, 2
      %v582 = vsel %vm537, %v579, %v581
      %v583 = vrot.slane %v327, 2
      %v584 = vrot.slane %v328, 2
      %v585 = vsel %vm537, %v583, %v584
      %v586 = vrot.slane %v329, 2
      %v587 = vsel %vm537, %v584, %v586
      %v588 = vrot.slane %v330, 2
      %v589 = vrot.slane %v331, 2
      %v590 = vsel %vm537, %v588, %v589
      %v591 = vrot.slane %v332, 2
      %v592 = vsel %vm537, %v589, %v591
      %v593 = vrot.slane %v333, 2
      %v594 = vrot.slane %v334, 2
      %v595 = vsel %vm537, %v593, %v594
      %v596 = vrot.slane %v335, 2
      %v597 = vsel %vm537, %v594, %v596
      %v598 = vrot.slane %v336, 2
      %v599 = vrot.slane %v337, 2
      %v600 = vsel %vm537, %v598, %v599
      %v601 = vrot.slane %v338, 2
      %v602 = vsel %vm537, %v599, %v601
      %v603 = vrot.slane %v339, 2
      %v604 = vrot.slane %v340, 2
      %v605 = vsel %vm537, %v603, %v604
      %v606 = vrot.slane %v341, 2
      %v607 = vsel %vm537, %v604, %v606
      %v608 = vrot.slane %v342, 2
      %v609 = vrot.slane %v343, 2
      %v610 = vsel %vm537, %v608, %v609
      %v611 = vrot.slane %v344, 2
      %v612 = vsel %vm537, %v609, %v611
      %v613 = vrot.slane %v345, 2
      %v614 = vrot.slane %v346, 2
      %v615 = vsel %vm537, %v613, %v614
      %v616 = vrot.slane %v347, 2
      %v617 = vsel %vm537, %v614, %v616
      %v621 = vrot.slane %v348, 1
      %v622 = vrot.slane %v349, 1
      %v623 = vsel %vm456, %v621, %v622
      %v624 = vrot.slane %v350, 1
      %v625 = vsel %vm456, %v622, %v624
      %v626 = vrot.slane %v348, 2
      %v627 = vrot.slane %v349, 2
      %v628 = vsel %vm537, %v626, %v627
      %v629 = vrot.slane %v350, 2
      %v630 = vsel %vm537, %v627, %v629
      %v634 = vrot.slane %v351, 1
      %v635 = vrot.slane %v352, 1
      %v636 = vsel %vm456, %v634, %v635
      %v637 = vrot.slane %v353, 1
      %v638 = vsel %vm456, %v635, %v637
      %v639 = vrot.slane %v351, 2
      %v640 = vrot.slane %v352, 2
      %v641 = vsel %vm537, %v639, %v640
      %v642 = vrot.slane %v353, 2
      %v643 = vsel %vm537, %v640, %v642
      %v692 = vrot.slane %v354, 1
      %v693 = vrot.slane %v355, 1
      %v694 = vsel %vm456, %v692, %v693
      %v695 = vrot.slane %v356, 1
      %v696 = vsel %vm456, %v693, %v695
      %v697 = vrot.slane %v357, 1
      %v698 = vrot.slane %v358, 1
      %v699 = vsel %vm456, %v697, %v698
      %v700 = vrot.slane %v359, 1
      %v701 = vsel %vm456, %v698, %v700
      %v702 = vrot.slane %v360, 1
      %v703 = vrot.slane %v361, 1
      %v704 = vsel %vm456, %v702, %v703
      %v705 = vrot.slane %v362, 1
      %v706 = vsel %vm456, %v703, %v705
      %v707 = vrot.slane %v363, 1
      %v708 = vrot.slane %v364, 1
      %v709 = vsel %vm456, %v707, %v708
      %v710 = vrot.slane %v365, 1
      %v711 = vsel %vm456, %v708, %v710
      %v712 = vrot.slane %v366, 1
      %v713 = vrot.slane %v367, 1
      %v714 = vsel %vm456, %v712, %v713
      %v715 = vrot.slane %v368, 1
      %v716 = vsel %vm456, %v713, %v715
      %v717 = vrot.slane %v369, 1
      %v718 = vrot.slane %v370, 1
      %v719 = vsel %vm456, %v717, %v718
      %v720 = vrot.slane %v371, 1
      %v721 = vsel %vm456, %v718, %v720
      %v722 = vrot.slane %v372, 1
      %v723 = vrot.slane %v373, 1
      %v724 = vsel %vm456, %v722, %v723
      %v725 = vrot.slane %v374, 1
      %v726 = vsel %vm456, %v723, %v725
      %v727 = vrot.slane %v375, 1
      %v728 = vrot.slane %v376, 1
      %v729 = vsel %vm456, %v727, %v728
      %v730 = vrot.slane %v377, 1
      %v731 = vsel %vm456, %v728, %v730
      %v732 = vrot.slane %v378, 1
      %v733 = vrot.slane %v379, 1
      %v734 = vsel %vm456, %v732, %v733
      %v735 = vrot.slane %v380, 1
      %v736 = vsel %vm456, %v733, %v735
      %v737 = vrot.slane %v381, 1
      %v738 = vrot.slane %v382, 1
      %v739 = vsel %vm456, %v737, %v738
      %v740 = vrot.slane %v383, 1
      %v741 = vsel %vm456, %v738, %v740
      %v742 = vrot.slane %v384, 1
      %v743 = vrot.slane %v385, 1
      %v744 = vsel %vm456, %v742, %v743
      %v745 = vrot.slane %v386, 1
      %v746 = vsel %vm456, %v743, %v745
      %v747 = vrot.slane %v387, 1
      %v748 = vrot.slane %v388, 1
      %v749 = vsel %vm456, %v747, %v748
      %v750 = vrot.slane %v389, 1
      %v751 = vsel %vm456, %v748, %v750
      %v752 = vrot.slane %v390, 1
      %v753 = vrot.slane %v391, 1
      %v754 = vsel %vm456, %v752, %v753
      %v755 = vrot.slane %v392, 1
      %v756 = vsel %vm456, %v753, %v755
      %v757 = vrot.slane %v393, 1
      %v758 = vrot.slane %v394, 1
      %v759 = vsel %vm456, %v757, %v758
      %v760 = vrot.slane %v395, 1
      %v761 = vsel %vm456, %v758, %v760
      %v762 = vrot.slane %v396, 1
      %v763 = vrot.slane %v397, 1
      %v764 = vsel %vm456, %v762, %v763
      %v765 = vrot.slane %v398, 1
      %v766 = vsel %vm456, %v763, %v765
      %v767 = vrot.slane %v399, 1
      %v768 = vrot.slane %v400, 1
      %v769 = vsel %vm456, %v767, %v768
      %v770 = vrot.slane %v401, 1
      %v771 = vsel %vm456, %v768, %v770
      %v772 = vrot.slane %v354, 2
      %v773 = vrot.slane %v355, 2
      %v774 = vsel %vm537, %v772, %v773
      %v775 = vrot.slane %v356, 2
      %v776 = vsel %vm537, %v773, %v775
      %v777 = vrot.slane %v357, 2
      %v778 = vrot.slane %v358, 2
      %v779 = vsel %vm537, %v777, %v778
      %v780 = vrot.slane %v359, 2
      %v781 = vsel %vm537, %v778, %v780
      %v782 = vrot.slane %v360, 2
      %v783 = vrot.slane %v361, 2
      %v784 = vsel %vm537, %v782, %v783
      %v785 = vrot.slane %v362, 2
      %v786 = vsel %vm537, %v783, %v785
      %v787 = vrot.slane %v363, 2
      %v788 = vrot.slane %v364, 2
      %v789 = vsel %vm537, %v787, %v788
      %v790 = vrot.slane %v365, 2
      %v791 = vsel %vm537, %v788, %v790
      %v792 = vrot.slane %v366, 2
      %v793 = vrot.slane %v367, 2
      %v794 = vsel %vm537, %v792, %v793
      %v795 = vrot.slane %v368, 2
      %v796 = vsel %vm537, %v793, %v795
      %v797 = vrot.slane %v369, 2
      %v798 = vrot.slane %v370, 2
      %v799 = vsel %vm537, %v797, %v798
      %v800 = vrot.slane %v371, 2
      %v801 = vsel %vm537, %v798, %v800
      %v802 = vrot.slane %v372, 2
      %v803 = vrot.slane %v373, 2
      %v804 = vsel %vm537, %v802, %v803
      %v805 = vrot.slane %v374, 2
      %v806 = vsel %vm537, %v803, %v805
      %v807 = vrot.slane %v375, 2
      %v808 = vrot.slane %v376, 2
      %v809 = vsel %vm537, %v807, %v808
      %v810 = vrot.slane %v377, 2
      %v811 = vsel %vm537, %v808, %v810
      %v812 = vrot.slane %v378, 2
      %v813 = vrot.slane %v379, 2
      %v814 = vsel %vm537, %v812, %v813
      %v815 = vrot.slane %v380, 2
      %v816 = vsel %vm537, %v813, %v815
      %v817 = vrot.slane %v381, 2
      %v818 = vrot.slane %v382, 2
      %v819 = vsel %vm537, %v817, %v818
      %v820 = vrot.slane %v383, 2
      %v821 = vsel %vm537, %v818, %v820
      %v822 = vrot.slane %v384, 2
      %v823 = vrot.slane %v385, 2
      %v824 = vsel %vm537, %v822, %v823
      %v825 = vrot.slane %v386, 2
      %v826 = vsel %vm537, %v823, %v825
      %v827 = vrot.slane %v387, 2
      %v828 = vrot.slane %v388, 2
      %v829 = vsel %vm537, %v827, %v828
      %v830 = vrot.slane %v389, 2
      %v831 = vsel %vm537, %v828, %v830
      %v832 = vrot.slane %v390, 2
      %v833 = vrot.slane %v391, 2
      %v834 = vsel %vm537, %v832, %v833
      %v835 = vrot.slane %v392, 2
      %v836 = vsel %vm537, %v833, %v835
      %v837 = vrot.slane %v393, 2
      %v838 = vrot.slane %v394, 2
      %v839 = vsel %vm537, %v837, %v838
      %v840 = vrot.slane %v395, 2
      %v841 = vsel %vm537, %v838, %v840
      %v842 = vrot.slane %v396, 2
      %v843 = vrot.slane %v397, 2
      %v844 = vsel %vm537, %v842, %v843
      %v845 = vrot.slane %v398, 2
      %v846 = vsel %vm537, %v843, %v845
      %v847 = vrot.slane %v399, 2
      %v848 = vrot.slane %v400, 2
      %v849 = vsel %vm537, %v847, %v848
      %v850 = vrot.slane %v401, 2
      %v851 = vsel %vm537, %v848, %v850
      %v855 = vrot.slane %v402, 1
      %v856 = vrot.slane %v403, 1
      %v857 = vsel %vm456, %v855, %v856
      %v858 = vrot.slane %v404, 1
      %v859 = vsel %vm456, %v856, %v858
      %v860 = vrot.slane %v402, 2
      %v861 = vrot.slane %v403, 2
      %v862 = vsel %vm537, %v860, %v861
      %v863 = vrot.slane %v404, 2
      %v864 = vsel %vm537, %v861, %v863
      %v868 = vrot.slane %v405, 1
      %v869 = vrot.slane %v406, 1
      %v870 = vsel %vm456, %v868, %v869
      %v871 = vrot.slane %v407, 1
      %v872 = vsel %vm456, %v869, %v871
      %v905 = vrot.slane %v405, 2
      %v906 = vrot.slane %v406, 2
      %v907 = vsel %vm537, %v905, %v906
      %v908 = vrot.slane %v407, 2
      %v909 = vsel %vm537, %v906, %v908
      %910 = vrot.lane.b32.xlu0 %v459, 3
      %v911 = vpop.permute.xlu0 %910
      %912 = vrot.lane.b32.xlu0 %v461, 3
      %v913 = vpop.permute.xlu0 %912
      %914 = vrot.lane.b32.xlu0 %v464, 3
      %v915 = vpop.permute.xlu0 %914
      %916 = vrot.lane.b32.xlu0 %v466, 3
      %v917 = vpop.permute.xlu0 %916
      %918 = vrot.lane.b32.xlu0 %v469, 3
      %v919 = vpop.permute.xlu0 %918
      %920 = vrot.lane.b32.xlu0 %v471, 3
      %v921 = vpop.permute.xlu0 %920
      %922 = vrot.lane.b32.xlu0 %v474, 3
      %v923 = vpop.permute.xlu0 %922
      %924 = vrot.lane.b32.xlu0 %v476, 3
      %v925 = vpop.permute.xlu0 %924
      %926 = vrot.lane.b32.xlu0 %v479, 3
      %v927 = vpop.permute.xlu0 %926
      %928 = vrot.lane.b32.xlu0 %v481, 3
      %v929 = vpop.permute.xlu0 %928
      %930 = vrot.lane.b32.xlu0 %v484, 3
      %v931 = vpop.permute.xlu0 %930
      %932 = vrot.lane.b32.xlu0 %v486, 3
      %v933 = vpop.permute.xlu0 %932
      %934 = vrot.lane.b32.xlu0 %v489, 3
      %v935 = vpop.permute.xlu0 %934
      %936 = vrot.lane.b32.xlu0 %v491, 3
      %v937 = vpop.permute.xlu0 %936
      %938 = vrot.lane.b32.xlu0 %v494, 3
      %v939 = vpop.permute.xlu0 %938
      %940 = vrot.lane.b32.xlu0 %v496, 3
      %v941 = vpop.permute.xlu0 %940
      %942 = vrot.lane.b32.xlu0 %v499, 3
      %v943 = vpop.permute.xlu0 %942
      %944 = vrot.lane.b32.xlu0 %v501, 3
      %v945 = vpop.permute.xlu0 %944
      %946 = vrot.lane.b32.xlu0 %v504, 3
      %v947 = vpop.permute.xlu0 %946
      %948 = vrot.lane.b32.xlu0 %v506, 3
      %v949 = vpop.permute.xlu0 %948
      %950 = vrot.lane.b32.xlu0 %v509, 3
      %v951 = vpop.permute.xlu0 %950
      %952 = vrot.lane.b32.xlu0 %v511, 3
      %v953 = vpop.permute.xlu0 %952
      %954 = vrot.lane.b32.xlu0 %v514, 3
      %v955 = vpop.permute.xlu0 %954
      %956 = vrot.lane.b32.xlu0 %v516, 3
      %v957 = vpop.permute.xlu0 %956
      %958 = vrot.lane.b32.xlu0 %v519, 3
      %v959 = vpop.permute.xlu0 %958
      %960 = vrot.lane.b32.xlu0 %v521, 3
      %v961 = vpop.permute.xlu0 %960
      %962 = vrot.lane.b32.xlu0 %v524, 3
      %v963 = vpop.permute.xlu0 %962
      %964 = vrot.lane.b32.xlu0 %v526, 3
      %v965 = vpop.permute.xlu0 %964
      %966 = vrot.lane.b32.xlu0 %v529, 3
      %v967 = vpop.permute.xlu0 %966
      %968 = vrot.lane.b32.xlu0 %v531, 3
      %v969 = vpop.permute.xlu0 %968
      %970 = vrot.lane.b32.xlu0 %v534, 3
      %v971 = vpop.permute.xlu0 %970
      %972 = vrot.lane.b32.xlu0 %v536, 3
      %v973 = vpop.permute.xlu0 %972
      %1006 = vrot.lane.b32.xlu0 %v540, 6
      %v1007 = vpop.permute.xlu0 %1006
      %1008 = vrot.lane.b32.xlu0 %v542, 6
      %v1009 = vpop.permute.xlu0 %1008
      %1010 = vrot.lane.b32.xlu0 %v545, 6
      %v1011 = vpop.permute.xlu0 %1010
      %1012 = vrot.lane.b32.xlu0 %v547, 6
      %v1013 = vpop.permute.xlu0 %1012
      %1014 = vrot.lane.b32.xlu0 %v550, 6
      %v1015 = vpop.permute.xlu0 %1014
      %1016 = vrot.lane.b32.xlu0 %v552, 6
      %v1017 = vpop.permute.xlu0 %1016
      %1018 = vrot.lane.b32.xlu0 %v555, 6
      %v1019 = vpop.permute.xlu0 %1018
      %1020 = vrot.lane.b32.xlu0 %v557, 6
      %v1021 = vpop.permute.xlu0 %1020
      %1022 = vrot.lane.b32.xlu0 %v560, 6
      %v1023 = vpop.permute.xlu0 %1022
      %1024 = vrot.lane.b32.xlu0 %v562, 6
      %v1025 = vpop.permute.xlu0 %1024
      %1026 = vrot.lane.b32.xlu0 %v565, 6
      %v1027 = vpop.permute.xlu0 %1026
      %1028 = vrot.lane.b32.xlu0 %v567, 6
      %v1029 = vpop.permute.xlu0 %1028
      %1030 = vrot.lane.b32.xlu0 %v570, 6
      %v1031 = vpop.permute.xlu0 %1030
      %1032 = vrot.lane.b32.xlu0 %v572, 6
      %v1033 = vpop.permute.xlu0 %1032
      %1034 = vrot.lane.b32.xlu0 %v575, 6
      %v1035 = vpop.permute.xlu0 %1034
      %1036 = vrot.lane.b32.xlu0 %v577, 6
      %v1037 = vpop.permute.xlu0 %1036
      %1038 = vrot.lane.b32.xlu0 %v580, 6
      %v1039 = vpop.permute.xlu0 %1038
      %1040 = vrot.lane.b32.xlu0 %v582, 6
      %v1041 = vpop.permute.xlu0 %1040
      %1042 = vrot.lane.b32.xlu0 %v585, 6
      %v1043 = vpop.permute.xlu0 %1042
      %1044 = vrot.lane.b32.xlu0 %v587, 6
      %v1045 = vpop.permute.xlu0 %1044
      %1046 = vrot.lane.b32.xlu0 %v590, 6
      %v1047 = vpop.permute.xlu0 %1046
      %1048 = vrot.lane.b32.xlu0 %v592, 6
      %v1049 = vpop.permute.xlu0 %1048
      %1050 = vrot.lane.b32.xlu0 %v595, 6
      %v1051 = vpop.permute.xlu0 %1050
      %1052 = vrot.lane.b32.xlu0 %v597, 6
      %v1053 = vpop.permute.xlu0 %1052
      %1054 = vrot.lane.b32.xlu0 %v600, 6
      %v1055 = vpop.permute.xlu0 %1054
      %1056 = vrot.lane.b32.xlu0 %v602, 6
      %v1057 = vpop.permute.xlu0 %1056
      %1058 = vrot.lane.b32.xlu0 %v605, 6
      %v1059 = vpop.permute.xlu0 %1058
      %1060 = vrot.lane.b32.xlu0 %v607, 6
      %v1061 = vpop.permute.xlu0 %1060
      %1062 = vrot.lane.b32.xlu0 %v610, 6
      %v1063 = vpop.permute.xlu0 %1062
      %1064 = vrot.lane.b32.xlu0 %v612, 6
      %v1065 = vpop.permute.xlu0 %1064
      %1066 = vrot.lane.b32.xlu0 %v615, 6
      %v1067 = vpop.permute.xlu0 %1066
      %1068 = vrot.lane.b32.xlu0 %v617, 6
      %v1069 = vpop.permute.xlu0 %1068
      %1102 = vrot.lane.b32.xlu0 %v303, 9
      %v1103 = vpop.permute.xlu0 %1102
      %1104 = vrot.lane.b32.xlu0 %v304, 9
      %v1105 = vpop.permute.xlu0 %1104
      %1106 = vrot.lane.b32.xlu0 %v306, 9
      %v1107 = vpop.permute.xlu0 %1106
      %1108 = vrot.lane.b32.xlu0 %v307, 9
      %v1109 = vpop.permute.xlu0 %1108
      %1110 = vrot.lane.b32.xlu0 %v309, 9
      %v1111 = vpop.permute.xlu0 %1110
      %1112 = vrot.lane.b32.xlu0 %v310, 9
      %v1113 = vpop.permute.xlu0 %1112
      %1114 = vrot.lane.b32.xlu0 %v312, 9
      %v1115 = vpop.permute.xlu0 %1114
      %1116 = vrot.lane.b32.xlu0 %v313, 9
      %v1117 = vpop.permute.xlu0 %1116
      %1118 = vrot.lane.b32.xlu0 %v315, 9
      %v1119 = vpop.permute.xlu0 %1118
      %1120 = vrot.lane.b32.xlu0 %v316, 9
      %v1121 = vpop.permute.xlu0 %1120
      %1122 = vrot.lane.b32.xlu0 %v318, 9
      %v1123 = vpop.permute.xlu0 %1122
      %1124 = vrot.lane.b32.xlu0 %v319, 9
      %v1125 = vpop.permute.xlu0 %1124
      %1126 = vrot.lane.b32.xlu0 %v321, 9
      %v1127 = vpop.permute.xlu0 %1126
      %1128 = vrot.lane.b32.xlu0 %v322, 9
      %v1129 = vpop.permute.xlu0 %1128
      %1130 = vrot.lane.b32.xlu0 %v324, 9
      %v1131 = vpop.permute.xlu0 %1130
      %1132 = vrot.lane.b32.xlu0 %v325, 9
      %v1133 = vpop.permute.xlu0 %1132
      %1134 = vrot.lane.b32.xlu0 %v327, 9
      %v1135 = vpop.permute.xlu0 %1134
      %1136 = vrot.lane.b32.xlu0 %v328, 9
      %v1137 = vpop.permute.xlu0 %1136
      %1138 = vrot.lane.b32.xlu0 %v330, 9
      %v1139 = vpop.permute.xlu0 %1138
      %1140 = vrot.lane.b32.xlu0 %v331, 9
      %v1141 = vpop.permute.xlu0 %1140
      %1142 = vrot.lane.b32.xlu0 %v333, 9
      %v1143 = vpop.permute.xlu0 %1142
      %1144 = vrot.lane.b32.xlu0 %v334, 9
      %v1145 = vpop.permute.xlu0 %1144
      %1146 = vrot.lane.b32.xlu0 %v336, 9
      %v1147 = vpop.permute.xlu0 %1146
      %1148 = vrot.lane.b32.xlu0 %v337, 9
      %v1149 = vpop.permute.xlu0 %1148
      %1150 = vrot.lane.b32.xlu0 %v339, 9
      %v1151 = vpop.permute.xlu0 %1150
      %1152 = vrot.lane.b32.xlu0 %v340, 9
      %v1153 = vpop.permute.xlu0 %1152
      %1154 = vrot.lane.b32.xlu0 %v342, 9
      %v1155 = vpop.permute.xlu0 %1154
      %1156 = vrot.lane.b32.xlu0 %v343, 9
      %v1157 = vpop.permute.xlu0 %1156
      %1158 = vrot.lane.b32.xlu0 %v345, 9
      %v1159 = vpop.permute.xlu0 %1158
      %1160 = vrot.lane.b32.xlu0 %v346, 9
      %v1161 = vpop.permute.xlu0 %1160
      %1162 = vrot.lane.b32.xlu0 %v348, 9
      %v1163 = vpop.permute.xlu0 %1162
      %1164 = vrot.lane.b32.xlu0 %v349, 9
      %v1165 = vpop.permute.xlu0 %1164
      %1198 = vrot.lane.b32.xlu0 %v464, 12
      %v1199 = vpop.permute.xlu0 %1198
      %1200 = vrot.lane.b32.xlu0 %v466, 12
      %v1201 = vpop.permute.xlu0 %1200
      %1202 = vrot.lane.b32.xlu0 %v469, 12
      %v1203 = vpop.permute.xlu0 %1202
      %1204 = vrot.lane.b32.xlu0 %v471, 12
      %v1205 = vpop.permute.xlu0 %1204
      %1206 = vrot.lane.b32.xlu0 %v474, 12
      %v1207 = vpop.permute.xlu0 %1206
      %1208 = vrot.lane.b32.xlu0 %v476, 12
      %v1209 = vpop.permute.xlu0 %1208
      %1210 = vrot.lane.b32.xlu0 %v479, 12
      %v1211 = vpop.permute.xlu0 %1210
      %1212 = vrot.lane.b32.xlu0 %v481, 12
      %v1213 = vpop.permute.xlu0 %1212
      %1214 = vrot.lane.b32.xlu0 %v484, 12
      %v1215 = vpop.permute.xlu0 %1214
      %1216 = vrot.lane.b32.xlu0 %v486, 12
      %v1217 = vpop.permute.xlu0 %1216
      %1218 = vrot.lane.b32.xlu0 %v489, 12
      %v1219 = vpop.permute.xlu0 %1218
      %1220 = vrot.lane.b32.xlu0 %v491, 12
      %v1221 = vpop.permute.xlu0 %1220
      %1222 = vrot.lane.b32.xlu0 %v494, 12
      %v1223 = vpop.permute.xlu0 %1222
      %1224 = vrot.lane.b32.xlu0 %v496, 12
      %v1225 = vpop.permute.xlu0 %1224
      %1226 = vrot.lane.b32.xlu0 %v499, 12
      %v1227 = vpop.permute.xlu0 %1226
      %1228 = vrot.lane.b32.xlu0 %v501, 12
      %v1229 = vpop.permute.xlu0 %1228
      %1230 = vrot.lane.b32.xlu0 %v504, 12
      %v1231 = vpop.permute.xlu0 %1230
      %1232 = vrot.lane.b32.xlu0 %v506, 12
      %v1233 = vpop.permute.xlu0 %1232
      %1234 = vrot.lane.b32.xlu0 %v509, 12
      %v1235 = vpop.permute.xlu0 %1234
      %1236 = vrot.lane.b32.xlu0 %v511, 12
      %v1237 = vpop.permute.xlu0 %1236
      %1238 = vrot.lane.b32.xlu0 %v514, 12
      %v1239 = vpop.permute.xlu0 %1238
      %1240 = vrot.lane.b32.xlu0 %v516, 12
      %v1241 = vpop.permute.xlu0 %1240
      %1242 = vrot.lane.b32.xlu0 %v519, 12
      %v1243 = vpop.permute.xlu0 %1242
      %1244 = vrot.lane.b32.xlu0 %v521, 12
      %v1245 = vpop.permute.xlu0 %1244
      %1246 = vrot.lane.b32.xlu0 %v524, 12
      %v1247 = vpop.permute.xlu0 %1246
      %1248 = vrot.lane.b32.xlu0 %v526, 12
      %v1249 = vpop.permute.xlu0 %1248
      %1250 = vrot.lane.b32.xlu0 %v529, 12
      %v1251 = vpop.permute.xlu0 %1250
      %1252 = vrot.lane.b32.xlu0 %v531, 12
      %v1253 = vpop.permute.xlu0 %1252
      %1254 = vrot.lane.b32.xlu0 %v534, 12
      %v1255 = vpop.permute.xlu0 %1254
      %1256 = vrot.lane.b32.xlu0 %v536, 12
      %v1257 = vpop.permute.xlu0 %1256
      %1258 = vrot.lane.b32.xlu0 %v623, 12
      %v1259 = vpop.permute.xlu0 %1258
      %1260 = vrot.lane.b32.xlu0 %v625, 12
      %v1261 = vpop.permute.xlu0 %1260
      %1294 = vrot.lane.b32.xlu0 %v545, 15
      %v1295 = vpop.permute.xlu0 %1294
      %1296 = vrot.lane.b32.xlu0 %v547, 15
      %v1297 = vpop.permute.xlu0 %1296
      %1298 = vrot.lane.b32.xlu0 %v550, 15
      %v1299 = vpop.permute.xlu0 %1298
      %1300 = vrot.lane.b32.xlu0 %v552, 15
      %v1301 = vpop.permute.xlu0 %1300
      %1302 = vrot.lane.b32.xlu0 %v555, 15
      %v1303 = vpop.permute.xlu0 %1302
      %1304 = vrot.lane.b32.xlu0 %v557, 15
      %v1305 = vpop.permute.xlu0 %1304
      %1306 = vrot.lane.b32.xlu0 %v560, 15
      %v1307 = vpop.permute.xlu0 %1306
      %1308 = vrot.lane.b32.xlu0 %v562, 15
      %v1309 = vpop.permute.xlu0 %1308
      %1310 = vrot.lane.b32.xlu0 %v565, 15
      %v1311 = vpop.permute.xlu0 %1310
      %1312 = vrot.lane.b32.xlu0 %v567, 15
      %v1313 = vpop.permute.xlu0 %1312
      %1314 = vrot.lane.b32.xlu0 %v570, 15
      %v1315 = vpop.permute.xlu0 %1314
      %1316 = vrot.lane.b32.xlu0 %v572, 15
      %v1317 = vpop.permute.xlu0 %1316
      %1318 = vrot.lane.b32.xlu0 %v575, 15
      %v1319 = vpop.permute.xlu0 %1318
      %1320 = vrot.lane.b32.xlu0 %v577, 15
      %v1321 = vpop.permute.xlu0 %1320
      %1322 = vrot.lane.b32.xlu0 %v580, 15
      %v1323 = vpop.permute.xlu0 %1322
      %1324 = vrot.lane.b32.xlu0 %v582, 15
      %v1325 = vpop.permute.xlu0 %1324
      %1326 = vrot.lane.b32.xlu0 %v585, 15
      %v1327 = vpop.permute.xlu0 %1326
      %1328 = vrot.lane.b32.xlu0 %v587, 15
      %v1329 = vpop.permute.xlu0 %1328
      %1330 = vrot.lane.b32.xlu0 %v590, 15
      %v1331 = vpop.permute.xlu0 %1330
      %1332 = vrot.lane.b32.xlu0 %v592, 15
      %v1333 = vpop.permute.xlu0 %1332
      %1334 = vrot.lane.b32.xlu0 %v595, 15
      %v1335 = vpop.permute.xlu0 %1334
      %1336 = vrot.lane.b32.xlu0 %v597, 15
      %v1337 = vpop.permute.xlu0 %1336
      %1338 = vrot.lane.b32.xlu0 %v600, 15
      %v1339 = vpop.permute.xlu0 %1338
      %1340 = vrot.lane.b32.xlu0 %v602, 15
      %v1341 = vpop.permute.xlu0 %1340
      %1342 = vrot.lane.b32.xlu0 %v605, 15
      %v1343 = vpop.permute.xlu0 %1342
      %1344 = vrot.lane.b32.xlu0 %v607, 15
      %v1345 = vpop.permute.xlu0 %1344
      %1346 = vrot.lane.b32.xlu0 %v610, 15
      %v1347 = vpop.permute.xlu0 %1346
      %1348 = vrot.lane.b32.xlu0 %v612, 15
      %v1349 = vpop.permute.xlu0 %1348
      %1350 = vrot.lane.b32.xlu0 %v615, 15
      %v1351 = vpop.permute.xlu0 %1350
      %1352 = vrot.lane.b32.xlu0 %v617, 15
      %v1353 = vpop.permute.xlu0 %1352
      %1354 = vrot.lane.b32.xlu0 %v628, 15
      %v1355 = vpop.permute.xlu0 %1354
      %1356 = vrot.lane.b32.xlu0 %v630, 15
      %v1357 = vpop.permute.xlu0 %1356
      %1390 = vrot.lane.b32.xlu0 %v306, 18
      %v1391 = vpop.permute.xlu0 %1390
      %1392 = vrot.lane.b32.xlu0 %v307, 18
      %v1393 = vpop.permute.xlu0 %1392
      %1394 = vrot.lane.b32.xlu0 %v309, 18
      %v1395 = vpop.permute.xlu0 %1394
      %1396 = vrot.lane.b32.xlu0 %v310, 18
      %v1397 = vpop.permute.xlu0 %1396
      %1398 = vrot.lane.b32.xlu0 %v312, 18
      %v1399 = vpop.permute.xlu0 %1398
      %1400 = vrot.lane.b32.xlu0 %v313, 18
      %v1401 = vpop.permute.xlu0 %1400
      %1402 = vrot.lane.b32.xlu0 %v315, 18
      %v1403 = vpop.permute.xlu0 %1402
      %1404 = vrot.lane.b32.xlu0 %v316, 18
      %v1405 = vpop.permute.xlu0 %1404
      %1406 = vrot.lane.b32.xlu0 %v318, 18
      %v1407 = vpop.permute.xlu0 %1406
      %1408 = vrot.lane.b32.xlu0 %v319, 18
      %v1409 = vpop.permute.xlu0 %1408
      %1410 = vrot.lane.b32.xlu0 %v321, 18
      %v1411 = vpop.permute.xlu0 %1410
      %1412 = vrot.lane.b32.xlu0 %v322, 18
      %v1413 = vpop.permute.xlu0 %1412
      %1414 = vrot.lane.b32.xlu0 %v324, 18
      %v1415 = vpop.permute.xlu0 %1414
      %1416 = vrot.lane.b32.xlu0 %v325, 18
      %v1417 = vpop.permute.xlu0 %1416
      %1418 = vrot.lane.b32.xlu0 %v327, 18
      %v1419 = vpop.permute.xlu0 %1418
      %1420 = vrot.lane.b32.xlu0 %v328, 18
      %v1421 = vpop.permute.xlu0 %1420
      %1422 = vrot.lane.b32.xlu0 %v330, 18
      %v1423 = vpop.permute.xlu0 %1422
      %1424 = vrot.lane.b32.xlu0 %v331, 18
      %v1425 = vpop.permute.xlu0 %1424
      %1426 = vrot.lane.b32.xlu0 %v333, 18
      %v1427 = vpop.permute.xlu0 %1426
      %1428 = vrot.lane.b32.xlu0 %v334, 18
      %v1429 = vpop.permute.xlu0 %1428
      %1430 = vrot.lane.b32.xlu0 %v336, 18
      %v1431 = vpop.permute.xlu0 %1430
      %1432 = vrot.lane.b32.xlu0 %v337, 18
      %v1433 = vpop.permute.xlu0 %1432
      %1434 = vrot.lane.b32.xlu0 %v339, 18
      %v1435 = vpop.permute.xlu0 %1434
      %1436 = vrot.lane.b32.xlu0 %v340, 18
      %v1437 = vpop.permute.xlu0 %1436
      %1438 = vrot.lane.b32.xlu0 %v342, 18
      %v1439 = vpop.permute.xlu0 %1438
      %1440 = vrot.lane.b32.xlu0 %v343, 18
      %v1441 = vpop.permute.xlu0 %1440
      %1442 = vrot.lane.b32.xlu0 %v345, 18
      %v1443 = vpop.permute.xlu0 %1442
      %1444 = vrot.lane.b32.xlu0 %v346, 18
      %v1445 = vpop.permute.xlu0 %1444
      %1446 = vrot.lane.b32.xlu0 %v348, 18
      %v1447 = vpop.permute.xlu0 %1446
      %1448 = vrot.lane.b32.xlu0 %v349, 18
      %v1449 = vpop.permute.xlu0 %1448
      %1450 = vrot.lane.b32.xlu0 %v351, 18
      %v1451 = vpop.permute.xlu0 %1450
      %1452 = vrot.lane.b32.xlu0 %v352, 18
      %v1453 = vpop.permute.xlu0 %1452
      %1486 = vrot.lane.b32.xlu0 %v469, 21
      %v1487 = vpop.permute.xlu0 %1486
      %1488 = vrot.lane.b32.xlu0 %v471, 21
      %v1489 = vpop.permute.xlu0 %1488
      %1490 = vrot.lane.b32.xlu0 %v474, 21
      %v1491 = vpop.permute.xlu0 %1490
      %1492 = vrot.lane.b32.xlu0 %v476, 21
      %v1493 = vpop.permute.xlu0 %1492
      %1494 = vrot.lane.b32.xlu0 %v479, 21
      %v1495 = vpop.permute.xlu0 %1494
      %1496 = vrot.lane.b32.xlu0 %v481, 21
      %v1497 = vpop.permute.xlu0 %1496
      %1498 = vrot.lane.b32.xlu0 %v484, 21
      %v1499 = vpop.permute.xlu0 %1498
      %1500 = vrot.lane.b32.xlu0 %v486, 21
      %v1501 = vpop.permute.xlu0 %1500
      %1502 = vrot.lane.b32.xlu0 %v489, 21
      %v1503 = vpop.permute.xlu0 %1502
      %1504 = vrot.lane.b32.xlu0 %v491, 21
      %v1505 = vpop.permute.xlu0 %1504
      %1506 = vrot.lane.b32.xlu0 %v494, 21
      %v1507 = vpop.permute.xlu0 %1506
      %1508 = vrot.lane.b32.xlu0 %v496, 21
      %v1509 = vpop.permute.xlu0 %1508
      %1510 = vrot.lane.b32.xlu0 %v499, 21
      %v1511 = vpop.permute.xlu0 %1510
      %1512 = vrot.lane.b32.xlu0 %v501, 21
      %v1513 = vpop.permute.xlu0 %1512
      %1514 = vrot.lane.b32.xlu0 %v504, 21
      %v1515 = vpop.permute.xlu0 %1514
      %1516 = vrot.lane.b32.xlu0 %v506, 21
      %v1517 = vpop.permute.xlu0 %1516
      %1518 = vrot.lane.b32.xlu0 %v509, 21
      %v1519 = vpop.permute.xlu0 %1518
      %1520 = vrot.lane.b32.xlu0 %v511, 21
      %v1521 = vpop.permute.xlu0 %1520
      %1522 = vrot.lane.b32.xlu0 %v514, 21
      %v1523 = vpop.permute.xlu0 %1522
      %1524 = vrot.lane.b32.xlu0 %v516, 21
      %v1525 = vpop.permute.xlu0 %1524
      %1526 = vrot.lane.b32.xlu0 %v519, 21
      %v1527 = vpop.permute.xlu0 %1526
      %1528 = vrot.lane.b32.xlu0 %v521, 21
      %v1529 = vpop.permute.xlu0 %1528
      %1530 = vrot.lane.b32.xlu0 %v524, 21
      %v1531 = vpop.permute.xlu0 %1530
      %1532 = vrot.lane.b32.xlu0 %v526, 21
      %v1533 = vpop.permute.xlu0 %1532
      %1534 = vrot.lane.b32.xlu0 %v529, 21
      %v1535 = vpop.permute.xlu0 %1534
      %1536 = vrot.lane.b32.xlu0 %v531, 21
      %v1537 = vpop.permute.xlu0 %1536
      %1538 = vrot.lane.b32.xlu0 %v534, 21
      %v1539 = vpop.permute.xlu0 %1538
      %1540 = vrot.lane.b32.xlu0 %v536, 21
      %v1541 = vpop.permute.xlu0 %1540
      %1542 = vrot.lane.b32.xlu0 %v623, 21
      %v1543 = vpop.permute.xlu0 %1542
      %1544 = vrot.lane.b32.xlu0 %v625, 21
      %v1545 = vpop.permute.xlu0 %1544
      %1546 = vrot.lane.b32.xlu0 %v636, 21
      %v1547 = vpop.permute.xlu0 %1546
      %1548 = vrot.lane.b32.xlu0 %v638, 21
      %v1549 = vpop.permute.xlu0 %1548
      %1582 = vrot.lane.b32.xlu0 %v550, 24
      %v1583 = vpop.permute.xlu0 %1582
      %1584 = vrot.lane.b32.xlu0 %v552, 24
      %v1585 = vpop.permute.xlu0 %1584
      %1586 = vrot.lane.b32.xlu0 %v555, 24
      %v1587 = vpop.permute.xlu0 %1586
      %1588 = vrot.lane.b32.xlu0 %v557, 24
      %v1589 = vpop.permute.xlu0 %1588
      %1590 = vrot.lane.b32.xlu0 %v560, 24
      %v1591 = vpop.permute.xlu0 %1590
      %1592 = vrot.lane.b32.xlu0 %v562, 24
      %v1593 = vpop.permute.xlu0 %1592
      %1594 = vrot.lane.b32.xlu0 %v565, 24
      %v1595 = vpop.permute.xlu0 %1594
      %1596 = vrot.lane.b32.xlu0 %v567, 24
      %v1597 = vpop.permute.xlu0 %1596
      %1598 = vrot.lane.b32.xlu0 %v570, 24
      %v1599 = vpop.permute.xlu0 %1598
      %1600 = vrot.lane.b32.xlu0 %v572, 24
      %v1601 = vpop.permute.xlu0 %1600
      %1602 = vrot.lane.b32.xlu0 %v575, 24
      %v1603 = vpop.permute.xlu0 %1602
      %1604 = vrot.lane.b32.xlu0 %v577, 24
      %v1605 = vpop.permute.xlu0 %1604
      %1606 = vrot.lane.b32.xlu0 %v580, 24
      %v1607 = vpop.permute.xlu0 %1606
      %1608 = vrot.lane.b32.xlu0 %v582, 24
      %v1609 = vpop.permute.xlu0 %1608
      %1610 = vrot.lane.b32.xlu0 %v585, 24
      %v1611 = vpop.permute.xlu0 %1610
      %1612 = vrot.lane.b32.xlu0 %v587, 24
      %v1613 = vpop.permute.xlu0 %1612
      %1614 = vrot.lane.b32.xlu0 %v590, 24
      %v1615 = vpop.permute.xlu0 %1614
      %1616 = vrot.lane.b32.xlu0 %v592, 24
      %v1617 = vpop.permute.xlu0 %1616
      %1618 = vrot.lane.b32.xlu0 %v595, 24
      %v1619 = vpop.permute.xlu0 %1618
      %1620 = vrot.lane.b32.xlu0 %v597, 24
      %v1621 = vpop.permute.xlu0 %1620
      %1622 = vrot.lane.b32.xlu0 %v600, 24
      %v1623 = vpop.permute.xlu0 %1622
      %1624 = vrot.lane.b32.xlu0 %v602, 24
      %v1625 = vpop.permute.xlu0 %1624
      %1626 = vrot.lane.b32.xlu0 %v605, 24
      %v1627 = vpop.permute.xlu0 %1626
      %1628 = vrot.lane.b32.xlu0 %v607, 24
      %v1629 = vpop.permute.xlu0 %1628
      %1630 = vrot.lane.b32.xlu0 %v610, 24
      %v1631 = vpop.permute.xlu0 %1630
      %1632 = vrot.lane.b32.xlu0 %v612, 24
      %v1633 = vpop.permute.xlu0 %1632
      %1634 = vrot.lane.b32.xlu0 %v615, 24
      %v1635 = vpop.permute.xlu0 %1634
      %1636 = vrot.lane.b32.xlu0 %v617, 24
      %v1637 = vpop.permute.xlu0 %1636
      %1638 = vrot.lane.b32.xlu0 %v628, 24
      %v1639 = vpop.permute.xlu0 %1638
      %1640 = vrot.lane.b32.xlu0 %v630, 24
      %v1641 = vpop.permute.xlu0 %1640
      %1642 = vrot.lane.b32.xlu0 %v641, 24
      %v1643 = vpop.permute.xlu0 %1642
      %1644 = vrot.lane.b32.xlu0 %v643, 24
      %v1645 = vpop.permute.xlu0 %1644
      %1678 = vrot.lane.b32.xlu0 %v354, 27
      %v1679 = vpop.permute.xlu0 %1678
      %1680 = vrot.lane.b32.xlu0 %v355, 27
      %v1681 = vpop.permute.xlu0 %1680
      %1682 = vrot.lane.b32.xlu0 %v357, 27
      %v1683 = vpop.permute.xlu0 %1682
      %1684 = vrot.lane.b32.xlu0 %v358, 27
      %v1685 = vpop.permute.xlu0 %1684
      %1686 = vrot.lane.b32.xlu0 %v360, 27
      %v1687 = vpop.permute.xlu0 %1686
      %1688 = vrot.lane.b32.xlu0 %v361, 27
      %v1689 = vpop.permute.xlu0 %1688
      %1690 = vrot.lane.b32.xlu0 %v363, 27
      %v1691 = vpop.permute.xlu0 %1690
      %1692 = vrot.lane.b32.xlu0 %v364, 27
      %v1693 = vpop.permute.xlu0 %1692
      %1694 = vrot.lane.b32.xlu0 %v366, 27
      %v1695 = vpop.permute.xlu0 %1694
      %1696 = vrot.lane.b32.xlu0 %v367, 27
      %v1697 = vpop.permute.xlu0 %1696
      %1698 = vrot.lane.b32.xlu0 %v369, 27
      %v1699 = vpop.permute.xlu0 %1698
      %1700 = vrot.lane.b32.xlu0 %v370, 27
      %v1701 = vpop.permute.xlu0 %1700
      %1702 = vrot.lane.b32.xlu0 %v372, 27
      %v1703 = vpop.permute.xlu0 %1702
      %1704 = vrot.lane.b32.xlu0 %v373, 27
      %v1705 = vpop.permute.xlu0 %1704
      %1706 = vrot.lane.b32.xlu0 %v375, 27
      %v1707 = vpop.permute.xlu0 %1706
      %1708 = vrot.lane.b32.xlu0 %v376, 27
      %v1709 = vpop.permute.xlu0 %1708
      %1710 = vrot.lane.b32.xlu0 %v378, 27
      %v1711 = vpop.permute.xlu0 %1710
      %1712 = vrot.lane.b32.xlu0 %v379, 27
      %v1713 = vpop.permute.xlu0 %1712
      %1714 = vrot.lane.b32.xlu0 %v381, 27
      %v1715 = vpop.permute.xlu0 %1714
      %1716 = vrot.lane.b32.xlu0 %v382, 27
      %v1717 = vpop.permute.xlu0 %1716
      %1718 = vrot.lane.b32.xlu0 %v384, 27
      %v1719 = vpop.permute.xlu0 %1718
      %1720 = vrot.lane.b32.xlu0 %v385, 27
      %v1721 = vpop.permute.xlu0 %1720
      %1722 = vrot.lane.b32.xlu0 %v387, 27
      %v1723 = vpop.permute.xlu0 %1722
      %1724 = vrot.lane.b32.xlu0 %v388, 27
      %v1725 = vpop.permute.xlu0 %1724
      %1726 = vrot.lane.b32.xlu0 %v390, 27
      %v1727 = vpop.permute.xlu0 %1726
      %1728 = vrot.lane.b32.xlu0 %v391, 27
      %v1729 = vpop.permute.xlu0 %1728
      %1730 = vrot.lane.b32.xlu0 %v393, 27
      %v1731 = vpop.permute.xlu0 %1730
      %1732 = vrot.lane.b32.xlu0 %v394, 27
      %v1733 = vpop.permute.xlu0 %1732
      %1734 = vrot.lane.b32.xlu0 %v396, 27
      %v1735 = vpop.permute.xlu0 %1734
      %1736 = vrot.lane.b32.xlu0 %v397, 27
      %v1737 = vpop.permute.xlu0 %1736
      %1738 = vrot.lane.b32.xlu0 %v399, 27
      %v1739 = vpop.permute.xlu0 %1738
      %1740 = vrot.lane.b32.xlu0 %v400, 27
      %v1741 = vpop.permute.xlu0 %1740
      %1774 = vrot.lane.b32.xlu0 %v694, 43
      %v1775 = vpop.permute.xlu0 %1774
      %1776 = vrot.lane.b32.xlu0 %v696, 43
      %v1777 = vpop.permute.xlu0 %1776
      %1778 = vrot.lane.b32.xlu0 %v699, 43
      %v1779 = vpop.permute.xlu0 %1778
      %1780 = vrot.lane.b32.xlu0 %v701, 43
      %v1781 = vpop.permute.xlu0 %1780
      %1782 = vrot.lane.b32.xlu0 %v704, 43
      %v1783 = vpop.permute.xlu0 %1782
      %1784 = vrot.lane.b32.xlu0 %v706, 43
      %v1785 = vpop.permute.xlu0 %1784
      %1786 = vrot.lane.b32.xlu0 %v709, 43
      %v1787 = vpop.permute.xlu0 %1786
      %1788 = vrot.lane.b32.xlu0 %v711, 43
      %v1789 = vpop.permute.xlu0 %1788
      %1790 = vrot.lane.b32.xlu0 %v714, 43
      %v1791 = vpop.permute.xlu0 %1790
      %1792 = vrot.lane.b32.xlu0 %v716, 43
      %v1793 = vpop.permute.xlu0 %1792
      %1794 = vrot.lane.b32.xlu0 %v719, 43
      %v1795 = vpop.permute.xlu0 %1794
      %1796 = vrot.lane.b32.xlu0 %v721, 43
      %v1797 = vpop.permute.xlu0 %1796
      %1798 = vrot.lane.b32.xlu0 %v724, 43
      %v1799 = vpop.permute.xlu0 %1798
      %1800 = vrot.lane.b32.xlu0 %v726, 43
      %v1801 = vpop.permute.xlu0 %1800
      %1802 = vrot.lane.b32.xlu0 %v729, 43
      %v1803 = vpop.permute.xlu0 %1802
      %1804 = vrot.lane.b32.xlu0 %v731, 43
      %v1805 = vpop.permute.xlu0 %1804
      %1806 = vrot.lane.b32.xlu0 %v734, 43
      %v1807 = vpop.permute.xlu0 %1806
      %1808 = vrot.lane.b32.xlu0 %v736, 43
      %v1809 = vpop.permute.xlu0 %1808
      %1810 = vrot.lane.b32.xlu0 %v739, 43
      %v1811 = vpop.permute.xlu0 %1810
      %1812 = vrot.lane.b32.xlu0 %v741, 43
      %v1813 = vpop.permute.xlu0 %1812
      %1814 = vrot.lane.b32.xlu0 %v744, 43
      %v1815 = vpop.permute.xlu0 %1814
      %1816 = vrot.lane.b32.xlu0 %v746, 43
      %v1817 = vpop.permute.xlu0 %1816
      %1818 = vrot.lane.b32.xlu0 %v749, 43
      %v1819 = vpop.permute.xlu0 %1818
      %1820 = vrot.lane.b32.xlu0 %v751, 43
      %v1821 = vpop.permute.xlu0 %1820
      %1822 = vrot.lane.b32.xlu0 %v754, 43
      %v1823 = vpop.permute.xlu0 %1822
      %1824 = vrot.lane.b32.xlu0 %v756, 43
      %v1825 = vpop.permute.xlu0 %1824
      %1826 = vrot.lane.b32.xlu0 %v759, 43
      %v1827 = vpop.permute.xlu0 %1826
      %1828 = vrot.lane.b32.xlu0 %v761, 43
      %v1829 = vpop.permute.xlu0 %1828
      %1830 = vrot.lane.b32.xlu0 %v764, 43
      %v1831 = vpop.permute.xlu0 %1830
      %1832 = vrot.lane.b32.xlu0 %v766, 43
      %v1833 = vpop.permute.xlu0 %1832
      %1834 = vrot.lane.b32.xlu0 %v769, 43
      %v1835 = vpop.permute.xlu0 %1834
      %1836 = vrot.lane.b32.xlu0 %v771, 43
      %v1837 = vpop.permute.xlu0 %1836
      %1870 = vrot.lane.b32.xlu0 %v774, 59
      %v1871 = vpop.permute.xlu0 %1870
      %1872 = vrot.lane.b32.xlu0 %v776, 59
      %v1873 = vpop.permute.xlu0 %1872
      %1874 = vrot.lane.b32.xlu0 %v779, 59
      %v1875 = vpop.permute.xlu0 %1874
      %1876 = vrot.lane.b32.xlu0 %v781, 59
      %v1877 = vpop.permute.xlu0 %1876
      %1878 = vrot.lane.b32.xlu0 %v784, 59
      %v1879 = vpop.permute.xlu0 %1878
      %1880 = vrot.lane.b32.xlu0 %v786, 59
      %v1881 = vpop.permute.xlu0 %1880
      %1882 = vrot.lane.b32.xlu0 %v789, 59
      %v1883 = vpop.permute.xlu0 %1882
      %1884 = vrot.lane.b32.xlu0 %v791, 59
      %v1885 = vpop.permute.xlu0 %1884
      %1886 = vrot.lane.b32.xlu0 %v794, 59
      %v1887 = vpop.permute.xlu0 %1886
      %1888 = vrot.lane.b32.xlu0 %v796, 59
      %v1889 = vpop.permute.xlu0 %1888
      %1890 = vrot.lane.b32.xlu0 %v799, 59
      %v1891 = vpop.permute.xlu0 %1890
      %1892 = vrot.lane.b32.xlu0 %v801, 59
      %v1893 = vpop.permute.xlu0 %1892
      %1894 = vrot.lane.b32.xlu0 %v804, 59
      %v1895 = vpop.permute.xlu0 %1894
      %1896 = vrot.lane.b32.xlu0 %v806, 59
      %v1897 = vpop.permute.xlu0 %1896
      %1898 = vrot.lane.b32.xlu0 %v809, 59
      %v1899 = vpop.permute.xlu0 %1898
      %1900 = vrot.lane.b32.xlu0 %v811, 59
      %v1901 = vpop.permute.xlu0 %1900
      %1902 = vrot.lane.b32.xlu0 %v814, 59
      %v1903 = vpop.permute.xlu0 %1902
      %1904 = vrot.lane.b32.xlu0 %v816, 59
      %v1905 = vpop.permute.xlu0 %1904
      %1906 = vrot.lane.b32.xlu0 %v819, 59
      %v1907 = vpop.permute.xlu0 %1906
      %1908 = vrot.lane.b32.xlu0 %v821, 59
      %v1909 = vpop.permute.xlu0 %1908
      %1910 = vrot.lane.b32.xlu0 %v824, 59
      %v1911 = vpop.permute.xlu0 %1910
      %1912 = vrot.lane.b32.xlu0 %v826, 59
      %v1913 = vpop.permute.xlu0 %1912
      %1914 = vrot.lane.b32.xlu0 %v829, 59
      %v1915 = vpop.permute.xlu0 %1914
      %1916 = vrot.lane.b32.xlu0 %v831, 59
      %v1917 = vpop.permute.xlu0 %1916
      %1918 = vrot.lane.b32.xlu0 %v834, 59
      %v1919 = vpop.permute.xlu0 %1918
      %1920 = vrot.lane.b32.xlu0 %v836, 59
      %v1921 = vpop.permute.xlu0 %1920
      %1922 = vrot.lane.b32.xlu0 %v839, 59
      %v1923 = vpop.permute.xlu0 %1922
      %1924 = vrot.lane.b32.xlu0 %v841, 59
      %v1925 = vpop.permute.xlu0 %1924
      %1926 = vrot.lane.b32.xlu0 %v844, 59
      %v1927 = vpop.permute.xlu0 %1926
      %1928 = vrot.lane.b32.xlu0 %v846, 59
      %v1929 = vpop.permute.xlu0 %1928
      %1930 = vrot.lane.b32.xlu0 %v849, 59
      %v1931 = vpop.permute.xlu0 %1930
      %1932 = vrot.lane.b32.xlu0 %v851, 59
      %v1933 = vpop.permute.xlu0 %1932
      %1966 = vrot.lane.b32.xlu0 %v357, 75
      %v1967 = vpop.permute.xlu0 %1966
      %1968 = vrot.lane.b32.xlu0 %v358, 75
      %v1969 = vpop.permute.xlu0 %1968
      %1970 = vrot.lane.b32.xlu0 %v360, 75
      %v1971 = vpop.permute.xlu0 %1970
      %1972 = vrot.lane.b32.xlu0 %v361, 75
      %v1973 = vpop.permute.xlu0 %1972
      %1974 = vrot.lane.b32.xlu0 %v363, 75
      %v1975 = vpop.permute.xlu0 %1974
      %1976 = vrot.lane.b32.xlu0 %v364, 75
      %v1977 = vpop.permute.xlu0 %1976
      %1978 = vrot.lane.b32.xlu0 %v366, 75
      %v1979 = vpop.permute.xlu0 %1978
      %1980 = vrot.lane.b32.xlu0 %v367, 75
      %v1981 = vpop.permute.xlu0 %1980
      %1982 = vrot.lane.b32.xlu0 %v369, 75
      %v1983 = vpop.permute.xlu0 %1982
      %1984 = vrot.lane.b32.xlu0 %v370, 75
      %v1985 = vpop.permute.xlu0 %1984
      %1986 = vrot.lane.b32.xlu0 %v372, 75
      %v1987 = vpop.permute.xlu0 %1986
      %1988 = vrot.lane.b32.xlu0 %v373, 75
      %v1989 = vpop.permute.xlu0 %1988
      %1990 = vrot.lane.b32.xlu0 %v375, 75
      %v1991 = vpop.permute.xlu0 %1990
      %1992 = vrot.lane.b32.xlu0 %v376, 75
      %v1993 = vpop.permute.xlu0 %1992
      %1994 = vrot.lane.b32.xlu0 %v378, 75
      %v1995 = vpop.permute.xlu0 %1994
      %1996 = vrot.lane.b32.xlu0 %v379, 75
      %v1997 = vpop.permute.xlu0 %1996
      %1998 = vrot.lane.b32.xlu0 %v381, 75
      %v1999 = vpop.permute.xlu0 %1998
      %2000 = vrot.lane.b32.xlu0 %v382, 75
      %v2001 = vpop.permute.xlu0 %2000
      %2002 = vrot.lane.b32.xlu0 %v384, 75
      %v2003 = vpop.permute.xlu0 %2002
      %2004 = vrot.lane.b32.xlu0 %v385, 75
      %v2005 = vpop.permute.xlu0 %2004
      %2006 = vrot.lane.b32.xlu0 %v387, 75
      %v2007 = vpop.permute.xlu0 %2006
      %2008 = vrot.lane.b32.xlu0 %v388, 75
      %v2009 = vpop.permute.xlu0 %2008
      %2010 = vrot.lane.b32.xlu0 %v390, 75
      %v2011 = vpop.permute.xlu0 %2010
      %2012 = vrot.lane.b32.xlu0 %v391, 75
      %v2013 = vpop.permute.xlu0 %2012
      %2014 = vrot.lane.b32.xlu0 %v393, 75
      %v2015 = vpop.permute.xlu0 %2014
      %2016 = vrot.lane.b32.xlu0 %v394, 75
      %v2017 = vpop.permute.xlu0 %2016
      %2018 = vrot.lane.b32.xlu0 %v396, 75
      %v2019 = vpop.permute.xlu0 %2018
      %2020 = vrot.lane.b32.xlu0 %v397, 75
      %v2021 = vpop.permute.xlu0 %2020
      %2022 = vrot.lane.b32.xlu0 %v399, 75
      %v2023 = vpop.permute.xlu0 %2022
      %2024 = vrot.lane.b32.xlu0 %v400, 75
      %v2025 = vpop.permute.xlu0 %2024
      %2026 = vrot.lane.b32.xlu0 %v402, 75
      %v2027 = vpop.permute.xlu0 %2026
      %2028 = vrot.lane.b32.xlu0 %v403, 75
      %v2029 = vpop.permute.xlu0 %2028
      %2062 = vrot.lane.b32.xlu0 %v699, 91
      %v2063 = vpop.permute.xlu0 %2062
      %2064 = vrot.lane.b32.xlu0 %v701, 91
      %v2065 = vpop.permute.xlu0 %2064
      %2066 = vrot.lane.b32.xlu0 %v704, 91
      %v2067 = vpop.permute.xlu0 %2066
      %2068 = vrot.lane.b32.xlu0 %v706, 91
      %v2069 = vpop.permute.xlu0 %2068
      %2070 = vrot.lane.b32.xlu0 %v709, 91
      %v2071 = vpop.permute.xlu0 %2070
      %2072 = vrot.lane.b32.xlu0 %v711, 91
      %v2073 = vpop.permute.xlu0 %2072
      %2074 = vrot.lane.b32.xlu0 %v714, 91
      %v2075 = vpop.permute.xlu0 %2074
      %2076 = vrot.lane.b32.xlu0 %v716, 91
      %v2077 = vpop.permute.xlu0 %2076
      %2078 = vrot.lane.b32.xlu0 %v719, 91
      %v2079 = vpop.permute.xlu0 %2078
      %2080 = vrot.lane.b32.xlu0 %v721, 91
      %v2081 = vpop.permute.xlu0 %2080
      %2082 = vrot.lane.b32.xlu0 %v724, 91
      %v2083 = vpop.permute.xlu0 %2082
      %2084 = vrot.lane.b32.xlu0 %v726, 91
      %v2085 = vpop.permute.xlu0 %2084
      %2086 = vrot.lane.b32.xlu0 %v729, 91
      %v2087 = vpop.permute.xlu0 %2086
      %2088 = vrot.lane.b32.xlu0 %v731, 91
      %v2089 = vpop.permute.xlu0 %2088
      %2090 = vrot.lane.b32.xlu0 %v734, 91
      %v2091 = vpop.permute.xlu0 %2090
      %2092 = vrot.lane.b32.xlu0 %v736, 91
      %v2093 = vpop.permute.xlu0 %2092
      %2094 = vrot.lane.b32.xlu0 %v739, 91
      %v2095 = vpop.permute.xlu0 %2094
      %2096 = vrot.lane.b32.xlu0 %v741, 91
      %v2097 = vpop.permute.xlu0 %2096
      %2098 = vrot.lane.b32.xlu0 %v744, 91
      %v2099 = vpop.permute.xlu0 %2098
      %2100 = vrot.lane.b32.xlu0 %v746, 91
      %v2101 = vpop.permute.xlu0 %2100
      %2102 = vrot.lane.b32.xlu0 %v749, 91
      %v2103 = vpop.permute.xlu0 %2102
      %2104 = vrot.lane.b32.xlu0 %v751, 91
      %v2105 = vpop.permute.xlu0 %2104
      %2106 = vrot.lane.b32.xlu0 %v754, 91
      %v2107 = vpop.permute.xlu0 %2106
      %2108 = vrot.lane.b32.xlu0 %v756, 91
      %v2109 = vpop.permute.xlu0 %2108
      %2110 = vrot.lane.b32.xlu0 %v759, 91
      %v2111 = vpop.permute.xlu0 %2110
      %2112 = vrot.lane.b32.xlu0 %v761, 91
      %v2113 = vpop.permute.xlu0 %2112
      %2114 = vrot.lane.b32.xlu0 %v764, 91
      %v2115 = vpop.permute.xlu0 %2114
      %2116 = vrot.lane.b32.xlu0 %v766, 91
      %v2117 = vpop.permute.xlu0 %2116
      %2118 = vrot.lane.b32.xlu0 %v769, 91
      %v2119 = vpop.permute.xlu0 %2118
      %2120 = vrot.lane.b32.xlu0 %v771, 91
      %v2121 = vpop.permute.xlu0 %2120
      %2122 = vrot.lane.b32.xlu0 %v857, 91
      %v2123 = vpop.permute.xlu0 %2122
      %2124 = vrot.lane.b32.xlu0 %v859, 91
      %v2125 = vpop.permute.xlu0 %2124
      %2158 = vrot.lane.b32.xlu0 %v779, 107
      %v2159 = vpop.permute.xlu0 %2158
      %2160 = vrot.lane.b32.xlu0 %v781, 107
      %v2161 = vpop.permute.xlu0 %2160
      %2162 = vrot.lane.b32.xlu0 %v784, 107
      %v2163 = vpop.permute.xlu0 %2162
      %2164 = vrot.lane.b32.xlu0 %v786, 107
      %v2165 = vpop.permute.xlu0 %2164
      %2166 = vrot.lane.b32.xlu0 %v789, 107
      %v2167 = vpop.permute.xlu0 %2166
      %2168 = vrot.lane.b32.xlu0 %v791, 107
      %v2169 = vpop.permute.xlu0 %2168
      %2170 = vrot.lane.b32.xlu0 %v794, 107
      %v2171 = vpop.permute.xlu0 %2170
      %2172 = vrot.lane.b32.xlu0 %v796, 107
      %v2173 = vpop.permute.xlu0 %2172
      %2174 = vrot.lane.b32.xlu0 %v799, 107
      %v2175 = vpop.permute.xlu0 %2174
      %2176 = vrot.lane.b32.xlu0 %v801, 107
      %v2177 = vpop.permute.xlu0 %2176
      %2178 = vrot.lane.b32.xlu0 %v804, 107
      %v2179 = vpop.permute.xlu0 %2178
      %2180 = vrot.lane.b32.xlu0 %v806, 107
      %v2181 = vpop.permute.xlu0 %2180
      %2182 = vrot.lane.b32.xlu0 %v809, 107
      %v2183 = vpop.permute.xlu0 %2182
      %2184 = vrot.lane.b32.xlu0 %v811, 107
      %v2185 = vpop.permute.xlu0 %2184
      %2186 = vrot.lane.b32.xlu0 %v814, 107
      %v2187 = vpop.permute.xlu0 %2186
      %2188 = vrot.lane.b32.xlu0 %v816, 107
      %v2189 = vpop.permute.xlu0 %2188
      %2190 = vrot.lane.b32.xlu0 %v819, 107
      %v2191 = vpop.permute.xlu0 %2190
      %2192 = vrot.lane.b32.xlu0 %v821, 107
      %v2193 = vpop.permute.xlu0 %2192
      %2194 = vrot.lane.b32.xlu0 %v824, 107
      %v2195 = vpop.permute.xlu0 %2194
      %2196 = vrot.lane.b32.xlu0 %v826, 107
      %v2197 = vpop.permute.xlu0 %2196
      %2198 = vrot.lane.b32.xlu0 %v829, 107
      %v2199 = vpop.permute.xlu0 %2198
      %2200 = vrot.lane.b32.xlu0 %v831, 107
      %v2201 = vpop.permute.xlu0 %2200
      %2202 = vrot.lane.b32.xlu0 %v834, 107
      %v2203 = vpop.permute.xlu0 %2202
      %2204 = vrot.lane.b32.xlu0 %v836, 107
      %v2205 = vpop.permute.xlu0 %2204
      %2206 = vrot.lane.b32.xlu0 %v839, 107
      %v2207 = vpop.permute.xlu0 %2206
      %2208 = vrot.lane.b32.xlu0 %v841, 107
      %v2209 = vpop.permute.xlu0 %2208
      %2210 = vrot.lane.b32.xlu0 %v844, 107
      %v2211 = vpop.permute.xlu0 %2210
      %2212 = vrot.lane.b32.xlu0 %v846, 107
      %v2213 = vpop.permute.xlu0 %2212
      %2214 = vrot.lane.b32.xlu0 %v849, 107
      %v2215 = vpop.permute.xlu0 %2214
      %2216 = vrot.lane.b32.xlu0 %v851, 107
      %v2217 = vpop.permute.xlu0 %2216
      %2218 = vrot.lane.b32.xlu0 %v862, 107
      %v2219 = vpop.permute.xlu0 %2218
      %2220 = vrot.lane.b32.xlu0 %v864, 107
      %v2221 = vpop.permute.xlu0 %2220
      %2254 = vrot.lane.b32.xlu0 %v360, 123
      %v2255 = vpop.permute.xlu0 %2254
      %2256 = vrot.lane.b32.xlu0 %v361, 123
      %v2257 = vpop.permute.xlu0 %2256
      %2258 = vrot.lane.b32.xlu0 %v363, 123
      %v2259 = vpop.permute.xlu0 %2258
      %2260 = vrot.lane.b32.xlu0 %v364, 123
      %v2261 = vpop.permute.xlu0 %2260
      %2262 = vrot.lane.b32.xlu0 %v366, 123
      %v2263 = vpop.permute.xlu0 %2262
      %2264 = vrot.lane.b32.xlu0 %v367, 123
      %v2265 = vpop.permute.xlu0 %2264
      %2266 = vrot.lane.b32.xlu0 %v369, 123
      %v2267 = vpop.permute.xlu0 %2266
      %2268 = vrot.lane.b32.xlu0 %v370, 123
      %v2269 = vpop.permute.xlu0 %2268
      %2270 = vrot.lane.b32.xlu0 %v372, 123
      %v2271 = vpop.permute.xlu0 %2270
      %2272 = vrot.lane.b32.xlu0 %v373, 123
      %v2273 = vpop.permute.xlu0 %2272
      %2274 = vrot.lane.b32.xlu0 %v375, 123
      %v2275 = vpop.permute.xlu0 %2274
      %2276 = vrot.lane.b32.xlu0 %v376, 123
      %v2277 = vpop.permute.xlu0 %2276
      %2278 = vrot.lane.b32.xlu0 %v378, 123
      %v2279 = vpop.permute.xlu0 %2278
      %2280 = vrot.lane.b32.xlu0 %v379, 123
      %v2281 = vpop.permute.xlu0 %2280
      %2282 = vrot.lane.b32.xlu0 %v381, 123
      %v2283 = vpop.permute.xlu0 %2282
      %2284 = vrot.lane.b32.xlu0 %v382, 123
      %v2285 = vpop.permute.xlu0 %2284
      %2286 = vrot.lane.b32.xlu0 %v384, 123
      %v2287 = vpop.permute.xlu0 %2286
      %2288 = vrot.lane.b32.xlu0 %v385, 123
      %v2289 = vpop.permute.xlu0 %2288
      %2290 = vrot.lane.b32.xlu0 %v387, 123
      %v2291 = vpop.permute.xlu0 %2290
      %2292 = vrot.lane.b32.xlu0 %v388, 123
      %v2293 = vpop.permute.xlu0 %2292
      %2294 = vrot.lane.b32.xlu0 %v390, 123
      %v2295 = vpop.permute.xlu0 %2294
      %2296 = vrot.lane.b32.xlu0 %v391, 123
      %v2297 = vpop.permute.xlu0 %2296
      %2298 = vrot.lane.b32.xlu0 %v393, 123
      %v2299 = vpop.permute.xlu0 %2298
      %2300 = vrot.lane.b32.xlu0 %v394, 123
      %v2301 = vpop.permute.xlu0 %2300
      %2302 = vrot.lane.b32.xlu0 %v396, 123
      %v2303 = vpop.permute.xlu0 %2302
      %2304 = vrot.lane.b32.xlu0 %v397, 123
      %v2305 = vpop.permute.xlu0 %2304
      %2306 = vrot.lane.b32.xlu0 %v399, 123
      %v2307 = vpop.permute.xlu0 %2306
      %2308 = vrot.lane.b32.xlu0 %v400, 123
      %v2309 = vpop.permute.xlu0 %2308
      %2310 = vrot.lane.b32.xlu0 %v402, 123
      %v2311 = vpop.permute.xlu0 %2310
      %2312 = vrot.lane.b32.xlu0 %v403, 123
      %v2313 = vpop.permute.xlu0 %2312
      %2314 = vrot.lane.b32.xlu0 %v405, 123
      %v2315 = vpop.permute.xlu0 %2314
      %2316 = vrot.lane.b32.xlu0 %v406, 123
      %v2317 = vpop.permute.xlu0 %2316
      %vm2350 = vcmask 23552
      %v2351 = vsel %vm2350, %v300, %v911
      %v2352 = vsel %vm2350, %v301, %v913
      %v2353 = vsel %vm2350, %v303, %v915
      %v2354 = vsel %vm2350, %v304, %v917
      %v2355 = vsel %vm2350, %v306, %v919
      %v2356 = vsel %vm2350, %v307, %v921
      %v2357 = vsel %vm2350, %v309, %v923
      %v2358 = vsel %vm2350, %v310, %v925
      %v2359 = vsel %vm2350, %v312, %v927
      %v2360 = vsel %vm2350, %v313, %v929
      %v2361 = vsel %vm2350, %v315, %v931
      %v2362 = vsel %vm2350, %v316, %v933
      %v2363 = vsel %vm2350, %v318, %v935
      %v2364 = vsel %vm2350, %v319, %v937
      %v2365 = vsel %vm2350, %v321, %v939
      %v2366 = vsel %vm2350, %v322, %v941
      %v2367 = vsel %vm2350, %v324, %v943
      %v2368 = vsel %vm2350, %v325, %v945
      %v2369 = vsel %vm2350, %v327, %v947
      %v2370 = vsel %vm2350, %v328, %v949
      %v2371 = vsel %vm2350, %v330, %v951
      %v2372 = vsel %vm2350, %v331, %v953
      %v2373 = vsel %vm2350, %v333, %v955
      %v2374 = vsel %vm2350, %v334, %v957
      %v2375 = vsel %vm2350, %v336, %v959
      %v2376 = vsel %vm2350, %v337, %v961
      %v2377 = vsel %vm2350, %v339, %v963
      %v2378 = vsel %vm2350, %v340, %v965
      %v2379 = vsel %vm2350, %v342, %v967
      %v2380 = vsel %vm2350, %v343, %v969
      %v2381 = vsel %vm2350, %v345, %v971
      %v2382 = vsel %vm2350, %v346, %v973
      %vm2383 = vcmask 48128
      %v2384 = vsel %vm2383, %v2351, %v1007
      %v2385 = vsel %vm2383, %v2352, %v1009
      %v2386 = vsel %vm2383, %v2353, %v1011
      %v2387 = vsel %vm2383, %v2354, %v1013
      %v2388 = vsel %vm2383, %v2355, %v1015
      %v2389 = vsel %vm2383, %v2356, %v1017
      %v2390 = vsel %vm2383, %v2357, %v1019
      %v2391 = vsel %vm2383, %v2358, %v1021
      %v2392 = vsel %vm2383, %v2359, %v1023
      %v2393 = vsel %vm2383, %v2360, %v1025
      %v2394 = vsel %vm2383, %v2361, %v1027
      %v2395 = vsel %vm2383, %v2362, %v1029
      %v2396 = vsel %vm2383, %v2363, %v1031
      %v2397 = vsel %vm2383, %v2364, %v1033
      %v2398 = vsel %vm2383, %v2365, %v1035
      %v2399 = vsel %vm2383, %v2366, %v1037
      %v2400 = vsel %vm2383, %v2367, %v1039
      %v2401 = vsel %vm2383, %v2368, %v1041
      %v2402 = vsel %vm2383, %v2369, %v1043
      %v2403 = vsel %vm2383, %v2370, %v1045
      %v2404 = vsel %vm2383, %v2371, %v1047
      %v2405 = vsel %vm2383, %v2372, %v1049
      %v2406 = vsel %vm2383, %v2373, %v1051
      %v2407 = vsel %vm2383, %v2374, %v1053
      %v2408 = vsel %vm2383, %v2375, %v1055
      %v2409 = vsel %vm2383, %v2376, %v1057
      %v2410 = vsel %vm2383, %v2377, %v1059
      %v2411 = vsel %vm2383, %v2378, %v1061
      %v2412 = vsel %vm2383, %v2379, %v1063
      %v2413 = vsel %vm2383, %v2380, %v1065
      %v2414 = vsel %vm2383, %v2381, %v1067
      %v2415 = vsel %vm2383, %v2382, %v1069
      %vm2416 = vcmask 72704
      %v2417 = vsel %vm2416, %v2384, %v1103
      %v2418 = vsel %vm2416, %v2385, %v1105
      %v2419 = vsel %vm2416, %v2386, %v1107
      %v2420 = vsel %vm2416, %v2387, %v1109
      %v2421 = vsel %vm2416, %v2388, %v1111
      %v2422 = vsel %vm2416, %v2389, %v1113
      %v2423 = vsel %vm2416, %v2390, %v1115
      %v2424 = vsel %vm2416, %v2391, %v1117
      %v2425 = vsel %vm2416, %v2392, %v1119
      %v2426 = vsel %vm2416, %v2393, %v1121
      %v2427 = vsel %vm2416, %v2394, %v1123
      %v2428 = vsel %vm2416, %v2395, %v1125
      %v2429 = vsel %vm2416, %v2396, %v1127
      %v2430 = vsel %vm2416, %v2397, %v1129
      %v2431 = vsel %vm2416, %v2398, %v1131
      %v2432 = vsel %vm2416, %v2399, %v1133
      %v2433 = vsel %vm2416, %v2400, %v1135
      %v2434 = vsel %vm2416, %v2401, %v1137
      %v2435 = vsel %vm2416, %v2402, %v1139
      %v2436 = vsel %vm2416, %v2403, %v1141
      %v2437 = vsel %vm2416, %v2404, %v1143
      %v2438 = vsel %vm2416, %v2405, %v1145
      %v2439 = vsel %vm2416, %v2406, %v1147
      %v2440 = vsel %vm2416, %v2407, %v1149
      %v2441 = vsel %vm2416, %v2408, %v1151
      %v2442 = vsel %vm2416, %v2409, %v1153
      %v2443 = vsel %vm2416, %v2410, %v1155
      %v2444 = vsel %vm2416, %v2411, %v1157
      %v2445 = vsel %vm2416, %v2412, %v1159
      %v2446 = vsel %vm2416, %v2413, %v1161
      %v2447 = vsel %vm2416, %v2414, %v1163
      %v2448 = vsel %vm2416, %v2415, %v1165
      %vm2449 = vcmask 97280
      %v2450 = vsel %vm2449, %v2417, %v1199
      %v2451 = vsel %vm2449, %v2418, %v1201
      %v2452 = vsel %vm2449, %v2419, %v1203
      %v2453 = vsel %vm2449, %v2420, %v1205
      %v2454 = vsel %vm2449, %v2421, %v1207
      %v2455 = vsel %vm2449, %v2422, %v1209
      %v2456 = vsel %vm2449, %v2423, %v1211
      %v2457 = vsel %vm2449, %v2424, %v1213
      %v2458 = vsel %vm2449, %v2425, %v1215
      %v2459 = vsel %vm2449, %v2426, %v1217
      %v2460 = vsel %vm2449, %v2427, %v1219
      %v2461 = vsel %vm2449, %v2428, %v1221
      %v2462 = vsel %vm2449, %v2429, %v1223
      %v2463 = vsel %vm2449, %v2430, %v1225
      %v2464 = vsel %vm2449, %v2431, %v1227
      %v2465 = vsel %vm2449, %v2432, %v1229
      %v2466 = vsel %vm2449, %v2433, %v1231
      %v2467 = vsel %vm2449, %v2434, %v1233
      %v2468 = vsel %vm2449, %v2435, %v1235
      %v2469 = vsel %vm2449, %v2436, %v1237
      %v2470 = vsel %vm2449, %v2437, %v1239
      %v2471 = vsel %vm2449, %v2438, %v1241
      %v2472 = vsel %vm2449, %v2439, %v1243
      %v2473 = vsel %vm2449, %v2440, %v1245
      %v2474 = vsel %vm2449, %v2441, %v1247
      %v2475 = vsel %vm2449, %v2442, %v1249
      %v2476 = vsel %vm2449, %v2443, %v1251
      %v2477 = vsel %vm2449, %v2444, %v1253
      %v2478 = vsel %vm2449, %v2445, %v1255
      %v2479 = vsel %vm2449, %v2446, %v1257
      %v2480 = vsel %vm2449, %v2447, %v1259
      %v2481 = vsel %vm2449, %v2448, %v1261
      %vm2482 = vcmask 121856
      %v2483 = vsel %vm2482, %v2450, %v1295
      %v2484 = vsel %vm2482, %v2451, %v1297
      %v2485 = vsel %vm2482, %v2452, %v1299
      %v2486 = vsel %vm2482, %v2453, %v1301
      %v2487 = vsel %vm2482, %v2454, %v1303
      %v2488 = vsel %vm2482, %v2455, %v1305
      %v2489 = vsel %vm2482, %v2456, %v1307
      %v2490 = vsel %vm2482, %v2457, %v1309
      %v2491 = vsel %vm2482, %v2458, %v1311
      %v2492 = vsel %vm2482, %v2459, %v1313
      %v2493 = vsel %vm2482, %v2460, %v1315
      %v2494 = vsel %vm2482, %v2461, %v1317
      %v2495 = vsel %vm2482, %v2462, %v1319
      %v2496 = vsel %vm2482, %v2463, %v1321
      %v2497 = vsel %vm2482, %v2464, %v1323
      %v2498 = vsel %vm2482, %v2465, %v1325
      %v2499 = vsel %vm2482, %v2466, %v1327
      %v2500 = vsel %vm2482, %v2467, %v1329
      %v2501 = vsel %vm2482, %v2468, %v1331
      %v2502 = vsel %vm2482, %v2469, %v1333
      %v2503 = vsel %vm2482, %v2470, %v1335
      %v2504 = vsel %vm2482, %v2471, %v1337
      %v2505 = vsel %vm2482, %v2472, %v1339
      %v2506 = vsel %vm2482, %v2473, %v1341
      %v2507 = vsel %vm2482, %v2474, %v1343
      %v2508 = vsel %vm2482, %v2475, %v1345
      %v2509 = vsel %vm2482, %v2476, %v1347
      %v2510 = vsel %vm2482, %v2477, %v1349
      %v2511 = vsel %vm2482, %v2478, %v1351
      %v2512 = vsel %vm2482, %v2479, %v1353
      %v2513 = vsel %vm2482, %v2480, %v1355
      %v2514 = vsel %vm2482, %v2481, %v1357
      %vm2515 = vcmask 146432
      %v2516 = vsel %vm2515, %v2483, %v1391
      %v2517 = vsel %vm2515, %v2484, %v1393
      %v2518 = vsel %vm2515, %v2485, %v1395
      %v2519 = vsel %vm2515, %v2486, %v1397
      %v2520 = vsel %vm2515, %v2487, %v1399
      %v2521 = vsel %vm2515, %v2488, %v1401
      %v2522 = vsel %vm2515, %v2489, %v1403
      %v2523 = vsel %vm2515, %v2490, %v1405
      %v2524 = vsel %vm2515, %v2491, %v1407
      %v2525 = vsel %vm2515, %v2492, %v1409
      %v2526 = vsel %vm2515, %v2493, %v1411
      %v2527 = vsel %vm2515, %v2494, %v1413
      %v2528 = vsel %vm2515, %v2495, %v1415
      %v2529 = vsel %vm2515, %v2496, %v1417
      %v2530 = vsel %vm2515, %v2497, %v1419
      %v2531 = vsel %vm2515, %v2498, %v1421
      %v2532 = vsel %vm2515, %v2499, %v1423
      %v2533 = vsel %vm2515, %v2500, %v1425
      %v2534 = vsel %vm2515, %v2501, %v1427
      %v2535 = vsel %vm2515, %v2502, %v1429
      %v2536 = vsel %vm2515, %v2503, %v1431
      %v2537 = vsel %vm2515, %v2504, %v1433
      %v2538 = vsel %vm2515, %v2505, %v1435
      %v2539 = vsel %vm2515, %v2506, %v1437
      %v2540 = vsel %vm2515, %v2507, %v1439
      %v2541 = vsel %vm2515, %v2508, %v1441
      %v2542 = vsel %vm2515, %v2509, %v1443
      %v2543 = vsel %vm2515, %v2510, %v1445
      %v2544 = vsel %vm2515, %v2511, %v1447
      %v2545 = vsel %vm2515, %v2512, %v1449
      %v2546 = vsel %vm2515, %v2513, %v1451
      %v2547 = vsel %vm2515, %v2514, %v1453
      %vm2548 = vcmask 171008
      %v2549 = vsel %vm2548, %v2516, %v1487
      %v2550 = vsel %vm2548, %v2517, %v1489
      %v2551 = vsel %vm2548, %v2518, %v1491
      %v2552 = vsel %vm2548, %v2519, %v1493
      %v2553 = vsel %vm2548, %v2520, %v1495
      %v2554 = vsel %vm2548, %v2521, %v1497
      %v2555 = vsel %vm2548, %v2522, %v1499
      %v2556 = vsel %vm2548, %v2523, %v1501
      %v2557 = vsel %vm2548, %v2524, %v1503
      %v2558 = vsel %vm2548, %v2525, %v1505
      %v2559 = vsel %vm2548, %v2526, %v1507
      %v2560 = vsel %vm2548, %v2527, %v1509
      %v2561 = vsel %vm2548, %v2528, %v1511
      %v2562 = vsel %vm2548, %v2529, %v1513
      %v2563 = vsel %vm2548, %v2530, %v1515
      %v2564 = vsel %vm2548, %v2531, %v1517
      %v2565 = vsel %vm2548, %v2532, %v1519
      %v2566 = vsel %vm2548, %v2533, %v1521
      %v2567 = vsel %vm2548, %v2534, %v1523
      %v2568 = vsel %vm2548, %v2535, %v1525
      %v2569 = vsel %vm2548, %v2536, %v1527
      %v2570 = vsel %vm2548, %v2537, %v1529
      %v2571 = vsel %vm2548, %v2538, %v1531
      %v2572 = vsel %vm2548, %v2539, %v1533
      %v2573 = vsel %vm2548, %v2540, %v1535
      %v2574 = vsel %vm2548, %v2541, %v1537
      %v2575 = vsel %vm2548, %v2542, %v1539
      %v2576 = vsel %vm2548, %v2543, %v1541
      %v2577 = vsel %vm2548, %v2544, %v1543
      %v2578 = vsel %vm2548, %v2545, %v1545
      %v2579 = vsel %vm2548, %v2546, %v1547
      %v2580 = vsel %vm2548, %v2547, %v1549
      %vm2581 = vcmask 195584
      %v2582 = vsel %vm2581, %v2549, %v1583
      %v2583 = vsel %vm2581, %v2550, %v1585
      %v2584 = vsel %vm2581, %v2551, %v1587
      %v2585 = vsel %vm2581, %v2552, %v1589
      %v2586 = vsel %vm2581, %v2553, %v1591
      %v2587 = vsel %vm2581, %v2554, %v1593
      %v2588 = vsel %vm2581, %v2555, %v1595
      %v2589 = vsel %vm2581, %v2556, %v1597
      %v2590 = vsel %vm2581, %v2557, %v1599
      %v2591 = vsel %vm2581, %v2558, %v1601
      %v2592 = vsel %vm2581, %v2559, %v1603
      %v2593 = vsel %vm2581, %v2560, %v1605
      %v2594 = vsel %vm2581, %v2561, %v1607
      %v2595 = vsel %vm2581, %v2562, %v1609
      %v2596 = vsel %vm2581, %v2563, %v1611
      %v2597 = vsel %vm2581, %v2564, %v1613
      %v2598 = vsel %vm2581, %v2565, %v1615
      %v2599 = vsel %vm2581, %v2566, %v1617
      %v2600 = vsel %vm2581, %v2567, %v1619
      %v2601 = vsel %vm2581, %v2568, %v1621
      %v2602 = vsel %vm2581, %v2569, %v1623
      %v2603 = vsel %vm2581, %v2570, %v1625
      %v2604 = vsel %vm2581, %v2571, %v1627
      %v2605 = vsel %vm2581, %v2572, %v1629
      %v2606 = vsel %vm2581, %v2573, %v1631
      %v2607 = vsel %vm2581, %v2574, %v1633
      %v2608 = vsel %vm2581, %v2575, %v1635
      %v2609 = vsel %vm2581, %v2576, %v1637
      %v2610 = vsel %vm2581, %v2577, %v1639
      %v2611 = vsel %vm2581, %v2578, %v1641
      %v2612 = vsel %vm2581, %v2579, %v1643
      %v2613 = vsel %vm2581, %v2580, %v1645
      %vm2614 = vcmask 220160
      %v2615 = vsel %vm2614, %v2582, %v1679
      %v2616 = vsel %vm2614, %v2583, %v1681
      %v2617 = vsel %vm2614, %v2584, %v1683
      %v2618 = vsel %vm2614, %v2585, %v1685
      %v2619 = vsel %vm2614, %v2586, %v1687
      %v2620 = vsel %vm2614, %v2587, %v1689
      %v2621 = vsel %vm2614, %v2588, %v1691
      %v2622 = vsel %vm2614, %v2589, %v1693
      %v2623 = vsel %vm2614, %v2590, %v1695
      %v2624 = vsel %vm2614, %v2591, %v1697
      %v2625 = vsel %vm2614, %v2592, %v1699
      %v2626 = vsel %vm2614, %v2593, %v1701
      %v2627 = vsel %vm2614, %v2594, %v1703
      %v2628 = vsel %vm2614, %v2595, %v1705
      %v2629 = vsel %vm2614, %v2596, %v1707
      %v2630 = vsel %vm2614, %v2597, %v1709
      %v2631 = vsel %vm2614, %v2598, %v1711
      %v2632 = vsel %vm2614, %v2599, %v1713
      %v2633 = vsel %vm2614, %v2600, %v1715
      %v2634 = vsel %vm2614, %v2601, %v1717
      %v2635 = vsel %vm2614, %v2602, %v1719
      %v2636 = vsel %vm2614, %v2603, %v1721
      %v2637 = vsel %vm2614, %v2604, %v1723
      %v2638 = vsel %vm2614, %v2605, %v1725
      %v2639 = vsel %vm2614, %v2606, %v1727
      %v2640 = vsel %vm2614, %v2607, %v1729
      %v2641 = vsel %vm2614, %v2608, %v1731
      %v2642 = vsel %vm2614, %v2609, %v1733
      %v2643 = vsel %vm2614, %v2610, %v1735
      %v2644 = vsel %vm2614, %v2611, %v1737
      %v2645 = vsel %vm2614, %v2612, %v1739
      %v2646 = vsel %vm2614, %v2613, %v1741
      %vm2647 = vcmask 351232
      %v2648 = vsel %vm2647, %v2615, %v1775
      %v2649 = vsel %vm2647, %v2616, %v1777
      %v2650 = vsel %vm2647, %v2617, %v1779
      %v2651 = vsel %vm2647, %v2618, %v1781
      %v2652 = vsel %vm2647, %v2619, %v1783
      %v2653 = vsel %vm2647, %v2620, %v1785
      %v2654 = vsel %vm2647, %v2621, %v1787
      %v2655 = vsel %vm2647, %v2622, %v1789
      %v2656 = vsel %vm2647, %v2623, %v1791
      %v2657 = vsel %vm2647, %v2624, %v1793
      %v2658 = vsel %vm2647, %v2625, %v1795
      %v2659 = vsel %vm2647, %v2626, %v1797
      %v2660 = vsel %vm2647, %v2627, %v1799
      %v2661 = vsel %vm2647, %v2628, %v1801
      %v2662 = vsel %vm2647, %v2629, %v1803
      %v2663 = vsel %vm2647, %v2630, %v1805
      %v2664 = vsel %vm2647, %v2631, %v1807
      %v2665 = vsel %vm2647, %v2632, %v1809
      %v2666 = vsel %vm2647, %v2633, %v1811
      %v2667 = vsel %vm2647, %v2634, %v1813
      %v2668 = vsel %vm2647, %v2635, %v1815
      %v2669 = vsel %vm2647, %v2636, %v1817
      %v2670 = vsel %vm2647, %v2637, %v1819
      %v2671 = vsel %vm2647, %v2638, %v1821
      %v2672 = vsel %vm2647, %v2639, %v1823
      %v2673 = vsel %vm2647, %v2640, %v1825
      %v2674 = vsel %vm2647, %v2641, %v1827
      %v2675 = vsel %vm2647, %v2642, %v1829
      %v2676 = vsel %vm2647, %v2643, %v1831
      %v2677 = vsel %vm2647, %v2644, %v1833
      %v2678 = vsel %vm2647, %v2645, %v1835
      %v2679 = vsel %vm2647, %v2646, %v1837
      %vm2680 = vcmask 482304
      %v2681 = vsel %vm2680, %v2648, %v1871
      %v2682 = vsel %vm2680, %v2649, %v1873
      %v2683 = vsel %vm2680, %v2650, %v1875
      %v2684 = vsel %vm2680, %v2651, %v1877
      %v2685 = vsel %vm2680, %v2652, %v1879
      %v2686 = vsel %vm2680, %v2653, %v1881
      %v2687 = vsel %vm2680, %v2654, %v1883
      %v2688 = vsel %vm2680, %v2655, %v1885
      %v2689 = vsel %vm2680, %v2656, %v1887
      %v2690 = vsel %vm2680, %v2657, %v1889
      %v2691 = vsel %vm2680, %v2658, %v1891
      %v2692 = vsel %vm2680, %v2659, %v1893
      %v2693 = vsel %vm2680, %v2660, %v1895
      %v2694 = vsel %vm2680, %v2661, %v1897
      %v2695 = vsel %vm2680, %v2662, %v1899
      %v2696 = vsel %vm2680, %v2663, %v1901
      %v2697 = vsel %vm2680, %v2664, %v1903
      %v2698 = vsel %vm2680, %v2665, %v1905
      %v2699 = vsel %vm2680, %v2666, %v1907
      %v2700 = vsel %vm2680, %v2667, %v1909
      %v2701 = vsel %vm2680, %v2668, %v1911
      %v2702 = vsel %vm2680, %v2669, %v1913
      %v2703 = vsel %vm2680, %v2670, %v1915
      %v2704 = vsel %vm2680, %v2671, %v1917
      %v2705 = vsel %vm2680, %v2672, %v1919
      %v2706 = vsel %vm2680, %v2673, %v1921
      %v2707 = vsel %vm2680, %v2674, %v1923
      %v2708 = vsel %vm2680, %v2675, %v1925
      %v2709 = vsel %vm2680, %v2676, %v1927
      %v2710 = vsel %vm2680, %v2677, %v1929
      %v2711 = vsel %vm2680, %v2678, %v1931
      %v2712 = vsel %vm2680, %v2679, %v1933
      %vm2713 = vcmask 613376
      %v2714 = vsel %vm2713, %v2681, %v1967
      %v2715 = vsel %vm2713, %v2682, %v1969
      %v2716 = vsel %vm2713, %v2683, %v1971
      %v2717 = vsel %vm2713, %v2684, %v1973
      %v2718 = vsel %vm2713, %v2685, %v1975
      %v2719 = vsel %vm2713, %v2686, %v1977
      %v2720 = vsel %vm2713, %v2687, %v1979
      %v2721 = vsel %vm2713, %v2688, %v1981
      %v2722 = vsel %vm2713, %v2689, %v1983
      %v2723 = vsel %vm2713, %v2690, %v1985
      %v2724 = vsel %vm2713, %v2691, %v1987
      %v2725 = vsel %vm2713, %v2692, %v1989
      %v2726 = vsel %vm2713, %v2693, %v1991
      %v2727 = vsel %vm2713, %v2694, %v1993
      %v2728 = vsel %vm2713, %v2695, %v1995
      %v2729 = vsel %vm2713, %v2696, %v1997
      %v2730 = vsel %vm2713, %v2697, %v1999
      %v2731 = vsel %vm2713, %v2698, %v2001
      %v2732 = vsel %vm2713, %v2699, %v2003
      %v2733 = vsel %vm2713, %v2700, %v2005
      %v2734 = vsel %vm2713, %v2701, %v2007
      %v2735 = vsel %vm2713, %v2702, %v2009
      %v2736 = vsel %vm2713, %v2703, %v2011
      %v2737 = vsel %vm2713, %v2704, %v2013
      %v2738 = vsel %vm2713, %v2705, %v2015
      %v2739 = vsel %vm2713, %v2706, %v2017
      %v2740 = vsel %vm2713, %v2707, %v2019
      %v2741 = vsel %vm2713, %v2708, %v2021
      %v2742 = vsel %vm2713, %v2709, %v2023
      %v2743 = vsel %vm2713, %v2710, %v2025
      %v2744 = vsel %vm2713, %v2711, %v2027
      %v2745 = vsel %vm2713, %v2712, %v2029
      %vm2746 = vcmask 744448
      %v2747 = vsel %vm2746, %v2714, %v2063
      %v2748 = vsel %vm2746, %v2715, %v2065
      %v2749 = vsel %vm2746, %v2716, %v2067
      %v2750 = vsel %vm2746, %v2717, %v2069
      %v2751 = vsel %vm2746, %v2718, %v2071
      %v2752 = vsel %vm2746, %v2719, %v2073
      %v2753 = vsel %vm2746, %v2720, %v2075
      %v2754 = vsel %vm2746, %v2721, %v2077
      %v2755 = vsel %vm2746, %v2722, %v2079
      %v2756 = vsel %vm2746, %v2723, %v2081
      %v2757 = vsel %vm2746, %v2724, %v2083
      %v2758 = vsel %vm2746, %v2725, %v2085
      %v2759 = vsel %vm2746, %v2726, %v2087
      %v2760 = vsel %vm2746, %v2727, %v2089
      %v2761 = vsel %vm2746, %v2728, %v2091
      %v2762 = vsel %vm2746, %v2729, %v2093
      %v2763 = vsel %vm2746, %v2730, %v2095
      %v2764 = vsel %vm2746, %v2731, %v2097
      %v2765 = vsel %vm2746, %v2732, %v2099
      %v2766 = vsel %vm2746, %v2733, %v2101
      %v2767 = vsel %vm2746, %v2734, %v2103
      %v2768 = vsel %vm2746, %v2735, %v2105
      %v2769 = vsel %vm2746, %v2736, %v2107
      %v2770 = vsel %vm2746, %v2737, %v2109
      %v2771 = vsel %vm2746, %v2738, %v2111
      %v2772 = vsel %vm2746, %v2739, %v2113
      %v2773 = vsel %vm2746, %v2740, %v2115
      %v2774 = vsel %vm2746, %v2741, %v2117
      %v2775 = vsel %vm2746, %v2742, %v2119
      %v2776 = vsel %vm2746, %v2743, %v2121
      %v2777 = vsel %vm2746, %v2744, %v2123
      %v2778 = vsel %vm2746, %v2745, %v2125
      %vm2779 = vcmask 875520
      %v2780 = vsel %vm2779, %v2747, %v2159
      %v2781 = vsel %vm2779, %v2748, %v2161
      %v2782 = vsel %vm2779, %v2749, %v2163
      %v2783 = vsel %vm2779, %v2750, %v2165
      %v2784 = vsel %vm2779, %v2751, %v2167
      %v2785 = vsel %vm2779, %v2752, %v2169
      %v2786 = vsel %vm2779, %v2753, %v2171
      %v2787 = vsel %vm2779, %v2754, %v2173
      %v2788 = vsel %vm2779, %v2755, %v2175
      %v2789 = vsel %vm2779, %v2756, %v2177
      %v2790 = vsel %vm2779, %v2757, %v2179
      %v2791 = vsel %vm2779, %v2758, %v2181
      %v2792 = vsel %vm2779, %v2759, %v2183
      %v2793 = vsel %vm2779, %v2760, %v2185
      %v2794 = vsel %vm2779, %v2761, %v2187
      %v2795 = vsel %vm2779, %v2762, %v2189
      %v2796 = vsel %vm2779, %v2763, %v2191
      %v2797 = vsel %vm2779, %v2764, %v2193
      %v2798 = vsel %vm2779, %v2765, %v2195
      %v2799 = vsel %vm2779, %v2766, %v2197
      %v2800 = vsel %vm2779, %v2767, %v2199
      %v2801 = vsel %vm2779, %v2768, %v2201
      %v2802 = vsel %vm2779, %v2769, %v2203
      %v2803 = vsel %vm2779, %v2770, %v2205
      %v2804 = vsel %vm2779, %v2771, %v2207
      %v2805 = vsel %vm2779, %v2772, %v2209
      %v2806 = vsel %vm2779, %v2773, %v2211
      %v2807 = vsel %vm2779, %v2774, %v2213
      %v2808 = vsel %vm2779, %v2775, %v2215
      %v2809 = vsel %vm2779, %v2776, %v2217
      %v2810 = vsel %vm2779, %v2777, %v2219
      %v2811 = vsel %vm2779, %v2778, %v2221
      %vm2812 = vcmask 1006592
      %v2813 = vsel %vm2812, %v2780, %v2255
      %v2814 = vsel %vm2812, %v2781, %v2257
      %v2815 = vsel %vm2812, %v2782, %v2259
      %v2816 = vsel %vm2812, %v2783, %v2261
      %v2817 = vsel %vm2812, %v2784, %v2263
      %v2818 = vsel %vm2812, %v2785, %v2265
      %v2819 = vsel %vm2812, %v2786, %v2267
      %v2820 = vsel %vm2812, %v2787, %v2269
      %v2821 = vsel %vm2812, %v2788, %v2271
      %v2822 = vsel %vm2812, %v2789, %v2273
      %v2823 = vsel %vm2812, %v2790, %v2275
      %v2824 = vsel %vm2812, %v2791, %v2277
      %v2825 = vsel %vm2812, %v2792, %v2279
      %v2826 = vsel %vm2812, %v2793, %v2281
      %v2827 = vsel %vm2812, %v2794, %v2283
      %v2828 = vsel %vm2812, %v2795, %v2285
      %v2829 = vsel %vm2812, %v2796, %v2287
      %v2830 = vsel %vm2812, %v2797, %v2289
      %v2831 = vsel %vm2812, %v2798, %v2291
      %v2832 = vsel %vm2812, %v2799, %v2293
      %v2833 = vsel %vm2812, %v2800, %v2295
      %v2834 = vsel %vm2812, %v2801, %v2297
      %v2835 = vsel %vm2812, %v2802, %v2299
      %v2836 = vsel %vm2812, %v2803, %v2301
      %v2837 = vsel %vm2812, %v2804, %v2303
      %v2838 = vsel %vm2812, %v2805, %v2305
      %v2839 = vsel %vm2812, %v2806, %v2307
      %v2840 = vsel %vm2812, %v2807, %v2309
      %v2841 = vsel %vm2812, %v2808, %v2311
      %v2842 = vsel %vm2812, %v2809, %v2313
      %v2843 = vsel %vm2812, %v2810, %v2315
      %v2844 = vsel %vm2812, %v2811, %v2317
      %2845 = vrot.lane.b32.xlu0 %v784, 16
      %v2846 = vpop.permute.xlu0 %2845
      %2847 = vrot.lane.b32.xlu0 %v786, 16
      %v2848 = vpop.permute.xlu0 %2847
      %2849 = vrot.lane.b32.xlu0 %v789, 16
      %v2850 = vpop.permute.xlu0 %2849
      %2851 = vrot.lane.b32.xlu0 %v791, 16
      %v2852 = vpop.permute.xlu0 %2851
      %2853 = vrot.lane.b32.xlu0 %v794, 16
      %v2854 = vpop.permute.xlu0 %2853
      %2855 = vrot.lane.b32.xlu0 %v796, 16
      %v2856 = vpop.permute.xlu0 %2855
      %2857 = vrot.lane.b32.xlu0 %v799, 16
      %v2858 = vpop.permute.xlu0 %2857
      %2859 = vrot.lane.b32.xlu0 %v801, 16
      %v2860 = vpop.permute.xlu0 %2859
      %2861 = vrot.lane.b32.xlu0 %v804, 16
      %v2862 = vpop.permute.xlu0 %2861
      %2863 = vrot.lane.b32.xlu0 %v806, 16
      %v2864 = vpop.permute.xlu0 %2863
      %2865 = vrot.lane.b32.xlu0 %v809, 16
      %v2866 = vpop.permute.xlu0 %2865
      %2867 = vrot.lane.b32.xlu0 %v811, 16
      %v2868 = vpop.permute.xlu0 %2867
      %2869 = vrot.lane.b32.xlu0 %v814, 16
      %v2870 = vpop.permute.xlu0 %2869
      %2871 = vrot.lane.b32.xlu0 %v816, 16
      %v2872 = vpop.permute.xlu0 %2871
      %2873 = vrot.lane.b32.xlu0 %v819, 16
      %v2874 = vpop.permute.xlu0 %2873
      %2875 = vrot.lane.b32.xlu0 %v821, 16
      %v2876 = vpop.permute.xlu0 %2875
      %2877 = vrot.lane.b32.xlu0 %v824, 16
      %v2878 = vpop.permute.xlu0 %2877
      %2879 = vrot.lane.b32.xlu0 %v826, 16
      %v2880 = vpop.permute.xlu0 %2879
      %2881 = vrot.lane.b32.xlu0 %v829, 16
      %v2882 = vpop.permute.xlu0 %2881
      %2883 = vrot.lane.b32.xlu0 %v831, 16
      %v2884 = vpop.permute.xlu0 %2883
      %2885 = vrot.lane.b32.xlu0 %v834, 16
      %v2886 = vpop.permute.xlu0 %2885
      %2887 = vrot.lane.b32.xlu0 %v836, 16
      %v2888 = vpop.permute.xlu0 %2887
      %2889 = vrot.lane.b32.xlu0 %v839, 16
      %v2890 = vpop.permute.xlu0 %2889
      %2891 = vrot.lane.b32.xlu0 %v841, 16
      %v2892 = vpop.permute.xlu0 %2891
      %2893 = vrot.lane.b32.xlu0 %v844, 16
      %v2894 = vpop.permute.xlu0 %2893
      %2895 = vrot.lane.b32.xlu0 %v846, 16
      %v2896 = vpop.permute.xlu0 %2895
      %2897 = vrot.lane.b32.xlu0 %v849, 16
      %v2898 = vpop.permute.xlu0 %2897
      %2899 = vrot.lane.b32.xlu0 %v851, 16
      %v2900 = vpop.permute.xlu0 %2899
      %2901 = vrot.lane.b32.xlu0 %v862, 16
      %v2902 = vpop.permute.xlu0 %2901
      %2903 = vrot.lane.b32.xlu0 %v864, 16
      %v2904 = vpop.permute.xlu0 %2903
      %2905 = vrot.lane.b32.xlu0 %v907, 16
      %v2906 = vpop.permute.xlu0 %2905
      %2907 = vrot.lane.b32.xlu0 %v909, 16
      %v2908 = vpop.permute.xlu0 %2907
      %vm2941 = vcmask 130048
      %v2942 = vsel %vm2941, %v704, %v2846
      %v2943 = vsel %vm2941, %v706, %v2848
      %v2944 = vsel %vm2941, %v709, %v2850
      %v2945 = vsel %vm2941, %v711, %v2852
      %v2946 = vsel %vm2941, %v714, %v2854
      %v2947 = vsel %vm2941, %v716, %v2856
      %v2948 = vsel %vm2941, %v719, %v2858
      %v2949 = vsel %vm2941, %v721, %v2860
      %v2950 = vsel %vm2941, %v724, %v2862
      %v2951 = vsel %vm2941, %v726, %v2864
      %v2952 = vsel %vm2941, %v729, %v2866
      %v2953 = vsel %vm2941, %v731, %v2868
      %v2954 = vsel %vm2941, %v734, %v2870
      %v2955 = vsel %vm2941, %v736, %v2872
      %v2956 = vsel %vm2941, %v739, %v2874
      %v2957 = vsel %vm2941, %v741, %v2876
      %v2958 = vsel %vm2941, %v744, %v2878
      %v2959 = vsel %vm2941, %v746, %v2880
      %v2960 = vsel %vm2941, %v749, %v2882
      %v2961 = vsel %vm2941, %v751, %v2884
      %v2962 = vsel %vm2941, %v754, %v2886
      %v2963 = vsel %vm2941, %v756, %v2888
      %v2964 = vsel %vm2941, %v759, %v2890
      %v2965 = vsel %vm2941, %v761, %v2892
      %v2966 = vsel %vm2941, %v764, %v2894
      %v2967 = vsel %vm2941, %v766, %v2896
      %v2968 = vsel %vm2941, %v769, %v2898
      %v2969 = vsel %vm2941, %v771, %v2900
      %v2970 = vsel %vm2941, %v857, %v2902
      %v2971 = vsel %vm2941, %v859, %v2904
      %v2972 = vsel %vm2941, %v870, %v2906
      %v2973 = vsel %vm2941, %v872, %v2908
      %3006 = vrot.lane.b32.xlu0 %v2942, 11
      %v3007 = vpop.permute.xlu0 %3006
      %3008 = vrot.lane.b32.xlu0 %v2943, 11
      %v3009 = vpop.permute.xlu0 %3008
      %3010 = vrot.lane.b32.xlu0 %v2944, 11
      %v3011 = vpop.permute.xlu0 %3010
      %3012 = vrot.lane.b32.xlu0 %v2945, 11
      %v3013 = vpop.permute.xlu0 %3012
      %3014 = vrot.lane.b32.xlu0 %v2946, 11
      %v3015 = vpop.permute.xlu0 %3014
      %3016 = vrot.lane.b32.xlu0 %v2947, 11
      %v3017 = vpop.permute.xlu0 %3016
      %3018 = vrot.lane.b32.xlu0 %v2948, 11
      %v3019 = vpop.permute.xlu0 %3018
      %3020 = vrot.lane.b32.xlu0 %v2949, 11
      %v3021 = vpop.permute.xlu0 %3020
      %3022 = vrot.lane.b32.xlu0 %v2950, 11
      %v3023 = vpop.permute.xlu0 %3022
      %3024 = vrot.lane.b32.xlu0 %v2951, 11
      %v3025 = vpop.permute.xlu0 %3024
      %3026 = vrot.lane.b32.xlu0 %v2952, 11
      %v3027 = vpop.permute.xlu0 %3026
      %3028 = vrot.lane.b32.xlu0 %v2953, 11
      %v3029 = vpop.permute.xlu0 %3028
      %3030 = vrot.lane.b32.xlu0 %v2954, 11
      %v3031 = vpop.permute.xlu0 %3030
      %3032 = vrot.lane.b32.xlu0 %v2955, 11
      %v3033 = vpop.permute.xlu0 %3032
      %3034 = vrot.lane.b32.xlu0 %v2956, 11
      %v3035 = vpop.permute.xlu0 %3034
      %3036 = vrot.lane.b32.xlu0 %v2957, 11
      %v3037 = vpop.permute.xlu0 %3036
      %3038 = vrot.lane.b32.xlu0 %v2958, 11
      %v3039 = vpop.permute.xlu0 %3038
      %3040 = vrot.lane.b32.xlu0 %v2959, 11
      %v3041 = vpop.permute.xlu0 %3040
      %3042 = vrot.lane.b32.xlu0 %v2960, 11
      %v3043 = vpop.permute.xlu0 %3042
      %3044 = vrot.lane.b32.xlu0 %v2961, 11
      %v3045 = vpop.permute.xlu0 %3044
      %3046 = vrot.lane.b32.xlu0 %v2962, 11
      %v3047 = vpop.permute.xlu0 %3046
      %3048 = vrot.lane.b32.xlu0 %v2963, 11
      %v3049 = vpop.permute.xlu0 %3048
      %3050 = vrot.lane.b32.xlu0 %v2964, 11
      %v3051 = vpop.permute.xlu0 %3050
      %3052 = vrot.lane.b32.xlu0 %v2965, 11
      %v3053 = vpop.permute.xlu0 %3052
      %3054 = vrot.lane.b32.xlu0 %v2966, 11
      %v3055 = vpop.permute.xlu0 %3054
      %3056 = vrot.lane.b32.xlu0 %v2967, 11
      %v3057 = vpop.permute.xlu0 %3056
      %3058 = vrot.lane.b32.xlu0 %v2968, 11
      %v3059 = vpop.permute.xlu0 %3058
      %3060 = vrot.lane.b32.xlu0 %v2969, 11
      %v3061 = vpop.permute.xlu0 %3060
      %3062 = vrot.lane.b32.xlu0 %v2970, 11
      %v3063 = vpop.permute.xlu0 %3062
      %3064 = vrot.lane.b32.xlu0 %v2971, 11
      %v3065 = vpop.permute.xlu0 %3064
      %3066 = vrot.lane.b32.xlu0 %v2972, 11
      %v3067 = vpop.permute.xlu0 %3066
      %3068 = vrot.lane.b32.xlu0 %v2973, 11
      %v3069 = vpop.permute.xlu0 %3068
      %vm3102 = vcmask 89088
      %v3103 = vsel %vm3102, %v2255, %v3007
      %v3104 = vsel %vm3102, %v2257, %v3009
      %v3105 = vsel %vm3102, %v2259, %v3011
      %v3106 = vsel %vm3102, %v2261, %v3013
      %v3107 = vsel %vm3102, %v2263, %v3015
      %v3108 = vsel %vm3102, %v2265, %v3017
      %v3109 = vsel %vm3102, %v2267, %v3019
      %v3110 = vsel %vm3102, %v2269, %v3021
      %v3111 = vsel %vm3102, %v2271, %v3023
      %v3112 = vsel %vm3102, %v2273, %v3025
      %v3113 = vsel %vm3102, %v2275, %v3027
      %v3114 = vsel %vm3102, %v2277, %v3029
      %v3115 = vsel %vm3102, %v2279, %v3031
      %v3116 = vsel %vm3102, %v2281, %v3033
      %v3117 = vsel %vm3102, %v2283, %v3035
      %v3118 = vsel %vm3102, %v2285, %v3037
      %v3119 = vsel %vm3102, %v2287, %v3039
      %v3120 = vsel %vm3102, %v2289, %v3041
      %v3121 = vsel %vm3102, %v2291, %v3043
      %v3122 = vsel %vm3102, %v2293, %v3045
      %v3123 = vsel %vm3102, %v2295, %v3047
      %v3124 = vsel %vm3102, %v2297, %v3049
      %v3125 = vsel %vm3102, %v2299, %v3051
      %v3126 = vsel %vm3102, %v2301, %v3053
      %v3127 = vsel %vm3102, %v2303, %v3055
      %v3128 = vsel %vm3102, %v2305, %v3057
      %v3129 = vsel %vm3102, %v2307, %v3059
      %v3130 = vsel %vm3102, %v2309, %v3061
      %v3131 = vsel %vm3102, %v2311, %v3063
      %v3132 = vsel %vm3102, %v2313, %v3065
      %v3133 = vsel %vm3102, %v2315, %v3067
      %v3134 = vsel %vm3102, %v2317, %v3069
      %v3135 = vpack.c.bf16 %v2814, %v2813
      %v3136 = vpack.c.bf16 %v3104, %v3103
      %v3137 = vpack.c.bf16 %v2816, %v2815
      %v3138 = vpack.c.bf16 %v3106, %v3105
      %v3139 = vpack.c.bf16 %v2818, %v2817
      %v3140 = vpack.c.bf16 %v3108, %v3107
      %v3141 = vpack.c.bf16 %v2820, %v2819
      %v3142 = vpack.c.bf16 %v3110, %v3109
      %v3143 = vpack.c.bf16 %v2822, %v2821
      %v3144 = vpack.c.bf16 %v3112, %v3111
      %v3145 = vpack.c.bf16 %v2824, %v2823
      %v3146 = vpack.c.bf16 %v3114, %v3113
      %v3147 = vpack.c.bf16 %v2826, %v2825
      %v3148 = vpack.c.bf16 %v3116, %v3115
      %v3149 = vpack.c.bf16 %v2828, %v2827
      %v3150 = vpack.c.bf16 %v3118, %v3117
      %v3151 = vpack.c.bf16 %v2830, %v2829
      %v3152 = vpack.c.bf16 %v3120, %v3119
      %v3153 = vpack.c.bf16 %v2832, %v2831
      %v3154 = vpack.c.bf16 %v3122, %v3121
      %v3155 = vpack.c.bf16 %v2834, %v2833
      %v3156 = vpack.c.bf16 %v3124, %v3123
      %v3157 = vpack.c.bf16 %v2836, %v2835
      %v3158 = vpack.c.bf16 %v3126, %v3125
      %v3159 = vpack.c.bf16 %v2838, %v2837
      %v3160 = vpack.c.bf16 %v3128, %v3127
      %v3161 = vpack.c.bf16 %v2840, %v2839
      %v3162 = vpack.c.bf16 %v3130, %v3129
      %v3163 = vpack.c.bf16 %v2842, %v2841
      %v3164 = vpack.c.bf16 %v3132, %v3131
      %v3165 = vpack.c.bf16 %v2844, %v2843
      %v3166 = vpack.c.bf16 %v3134, %v3133
      %v3167 = vld [vmem:[%s1] sm:$0xf]
      %v3168 = vld [vmem:[%s1 + $0x4] sm:$0xf]
      %v3169 = vld [vmem:[%s1 + $0x8] sm:$0xf]
      %v3170 = vld [vmem:[%s1 + $0xc] sm:$0xf]
      %v3171 = vld [vmem:[%s1 + $0x10] sm:$0xf]
      %v3172 = vld [vmem:[%s1 + $0x14] sm:$0xf]
      %v3173 = vld [vmem:[%s1 + $0x18] sm:$0xf]
      %v3174 = vld [vmem:[%s1 + $0x1c] sm:$0xf]
      %v3175 = vld [vmem:[%s1 + $0x20] sm:$0xf]
      %v3176 = vld [vmem:[%s1 + $0x24] sm:$0xf]
      %v3177 = vld [vmem:[%s1 + $0x28] sm:$0xf]
      %v3178 = vld [vmem:[%s1 + $0x2c] sm:$0xf]
      %v3179 = vld [vmem:[%s1 + $0x30] sm:$0xf]
      %v3180 = vld [vmem:[%s1 + $0x34] sm:$0xf]
      %v3181 = vld [vmem:[%s1 + $0x38] sm:$0xf]
      %v3182 = vld [vmem:[%s1 + $0x3c] sm:$0xf]
      %v3183 = vld [vmem:[%s1 + $0x40] sm:$0xf]
      %v3184 = vld [vmem:[%s1 + $0x44] sm:$0xf]
      %v3185 = vld [vmem:[%s1 + $0x48] sm:$0xf]
      %v3186 = vld [vmem:[%s1 + $0x4c] sm:$0xf]
      %v3187 = vld [vmem:[%s1 + $0x50] sm:$0xf]
      %v3188 = vld [vmem:[%s1 + $0x54] sm:$0x3]
      %v3189 = vld [vmem:[%s2] sm:$0x1]
      %v3191 = vlaneseq
      %v3192 = vshrl.u32 %v3191, 7
      %v3193 = vsub.s32 0, %v3192
      %v3194 = vrot.slane %v3189, %v3193
      %v3218 = vunpack.c.l.b16 %v3167
      %v3219 = vunpack.c.l.b16 %v3168
      %v3220 = vunpack.c.l.b16 %v3169
      %v3221 = vunpack.c.l.b16 %v3170
      %v3222 = vunpack.c.l.b16 %v3171
      %v3223 = vunpack.c.l.b16 %v3172
      %v3224 = vunpack.c.l.b16 %v3173
      %v3225 = vunpack.c.l.b16 %v3174
      %v3226 = vunpack.c.l.b16 %v3175
      %v3227 = vunpack.c.l.b16 %v3176
      %v3228 = vunpack.c.l.b16 %v3177
      %v3229 = vunpack.c.l.b16 %v3178
      %v3230 = vunpack.c.l.b16 %v3179
      %v3231 = vunpack.c.l.b16 %v3180
      %v3232 = vunpack.c.l.b16 %v3181
      %v3233 = vunpack.c.l.b16 %v3182
      %v3234 = vunpack.c.l.b16 %v3183
      %v3235 = vunpack.c.l.b16 %v3184
      %v3236 = vunpack.c.l.b16 %v3185
      %v3237 = vunpack.c.l.b16 %v3186
      %v3238 = vunpack.c.l.b16 %v3187
      %v3239 = vunpack.c.l.b16 %v3188
      %v3240 = vpack.c.b16 %v3219, %v3218
      %v3241 = vpack.c.b16 %v3221, %v3220
      %v3242 = vpack.c.b16 %v3223, %v3222
      %v3243 = vpack.c.b16 %v3225, %v3224
      %v3244 = vpack.c.b16 %v3227, %v3226
      %v3245 = vpack.c.b16 %v3229, %v3228
      %v3246 = vpack.c.b16 %v3231, %v3230
      %v3247 = vpack.c.b16 %v3233, %v3232
      %v3248 = vpack.c.b16 %v3235, %v3234
      %v3249 = vpack.c.b16 %v3237, %v3236
      %v3250 = vpack.c.b16 %v3239, %v3238
      %v3262 = vsel %vm2647, %v3136, 0
      %v3265 = vsel %vm2647, %v3138, 0
      %v3268 = vsel %vm2647, %v3140, 0
      %v3271 = vsel %vm2647, %v3142, 0
      %v3274 = vsel %vm2647, %v3144, 0
      %v3277 = vsel %vm2647, %v3146, 0
      %v3280 = vsel %vm2647, %v3148, 0
      %v3283 = vsel %vm2647, %v3150, 0
      %v3286 = vsel %vm2647, %v3152, 0
      %v3289 = vsel %vm2647, %v3154, 0
      %v3292 = vsel %vm2647, %v3156, 0
      %v3295 = vsel %vm2647, %v3158, 0
      %v3298 = vsel %vm2647, %v3160, 0
      %v3301 = vsel %vm2647, %v3162, 0
      %v3304 = vsel %vm2647, %v3164, 0
      %v3307 = vsel %vm2647, %v3166, 0
      %vm3309 = vcmask 1044480
      %v3310 = vsel %vm3309, 4294967295, 65535
      %v3311 = vsel %vm537, %v3310, 0
      %v3313 = vand.u32 %v3250, %v3311
      %3315 = vmatprep.subr.bf16.mxu0 0
      %3316 = vmatpush1.bf16.msra.mxu0 %v3240
      %3317 = vmatprep.subr.bf16.mxu0 0
      %3318 = vmatpush1.bf16.msra.mxu0 %v3241
      %3319 = vmatprep.subr.bf16.mxu0 0
      %3320 = vmatpush1.bf16.msra.mxu0 %v3242
      %3321 = vmatprep.subr.bf16.mxu0 0
      %3322 = vmatpush1.bf16.msra.mxu0 %v3243
      %3323 = vmatprep.subr.bf16.mxu0 0
      %3324 = vmatpush1.bf16.msra.mxu0 %v3244
      %3325 = vmatprep.subr.bf16.mxu0 0
      %3326 = vmatpush1.bf16.msra.mxu0 %v3245
      %3327 = vmatprep.subr.bf16.mxu0 0
      %3328 = vmatpush1.bf16.msra.mxu0 %v3246
      %3329 = vmatprep.subr.bf16.mxu0 0
      %3330 = vmatpush1.bf16.msra.mxu0 %v3247
      %3331 = vmatprep.subr.bf16.mxu0 0
      %3332 = vmatpush1.bf16.msra.mxu0 %v3248
      %3333 = vmatprep.subr.bf16.mxu0 0
      %3334 = vmatpush1.bf16.msra.mxu0 %v3249
      %3335 = vmatprep.subr.bf16.mxu0 0
      %3336 = vmatpush1.bf16.msra.mxu0 %v3313
      %3337 = vmatprep.subr.bf16.mxu0 0
      %3338 = vmatpush1.bf16.msra.mxu0 0
      %3339 = vmatprep.subr.bf16.mxu0 0
      %3340 = vmatpush1.bf16.msra.mxu0 0
      %3341 = vmatprep.subr.bf16.mxu0 0
      %3342 = vmatpush1.bf16.msra.mxu0 0
      %3343 = vmatprep.subr.bf16.mxu0 0
      %3344 = vmatpush1.bf16.msra.mxu0 0
      %3345 = vmatprep.subr.bf16.mxu0 0
      %3346 = vmatpush1.bf16.msra.mxu0 0
      %3347 = vmatprep.mubr.bf16.mxu0 %v3262
      %3348 = vmatmul.mubr.bf16.gmra.mrb[0].mxu0 %v3135
      %v3349 = vpop.f32.mrb[0].mxu0
      %v3350 = vadd.f32 %v3194, %v3349
      %v3351 = vpop.f32.mrb[0].mxu0
      %v3352 = vpop.f32.mrb[0].mxu0
      %v3353 = vadd.f32 %v3194, %v3352
      %v3354 = vpop.f32.mrb[0].mxu0
      %3355 = vmatprep.mubr.bf16.mxu0 %v3265
      %3356 = vmatmul.mubr.bf16.gmra.mrb[0].mxu0 %v3137
      %v3357 = vpop.f32.mrb[0].mxu0
      %v3358 = vadd.f32 %v3194, %v3357
      %v3359 = vpop.f32.mrb[0].mxu0
      %v3360 = vpop.f32.mrb[0].mxu0
      %v3361 = vadd.f32 %v3194, %v3360
      %v3362 = vpop.f32.mrb[0].mxu0
      %3363 = vmatprep.mubr.bf16.mxu0 %v3268
      %3364 = vmatmul.mubr.bf16.gmra.mrb[0].mxu0 %v3139
      %v3365 = vpop.f32.mrb[0].mxu0
      %v3366 = vadd.f32 %v3194, %v3365
      %v3367 = vpop.f32.mrb[0].mxu0
      %v3368 = vpop.f32.mrb[0].mxu0
      %v3369 = vadd.f32 %v3194, %v3368
      %v3370 = vpop.f32.mrb[0].mxu0
      %3371 = vmatprep.mubr.bf16.mxu0 %v3271
      %3372 = vmatmul.mubr.bf16.gmra.mrb[0].mxu0 %v3141
      %v3373 = vpop.f32.mrb[0].mxu0
      %v3374 = vadd.f32 %v3194, %v3373
      %v3375 = vpop.f32.mrb[0].mxu0
      %v3376 = vpop.f32.mrb[0].mxu0
      %v3377 = vadd.f32 %v3194, %v3376
      %v3378 = vpop.f32.mrb[0].mxu0
      %3379 = vmatprep.mubr.bf16.mxu0 %v3274
      %3380 = vmatmul.mubr.bf16.gmra.mrb[0].mxu0 %v3143
      %v3381 = vpop.f32.mrb[0].mxu0
      %v3382 = vadd.f32 %v3194, %v3381
      %v3383 = vpop.f32.mrb[0].mxu0
      %v3384 = vpop.f32.mrb[0].mxu0
      %v3385 = vadd.f32 %v3194, %v3384
      %v3386 = vpop.f32.mrb[0].mxu0
      %3387 = vmatprep.mubr.bf16.mxu0 %v3277
      %3388 = vmatmul.mubr.bf16.gmra.mrb[0].mxu0 %v3145
      %v3389 = vpop.f32.mrb[0].mxu0
      %v3390 = vadd.f32 %v3194, %v3389
      %v3391 = vpop.f32.mrb[0].mxu0
      %v3392 = vpop.f32.mrb[0].mxu0
      %v3393 = vadd.f32 %v3194, %v3392
      %v3394 = vpop.f32.mrb[0].mxu0
      %3395 = vmatprep.mubr.bf16.mxu0 %v3280
      %3396 = vmatmul.mubr.bf16.gmra.mrb[0].mxu0 %v3147
      %v3397 = vpop.f32.mrb[0].mxu0
      %v3398 = vadd.f32 %v3194, %v3397
      %v3399 = vpop.f32.mrb[0].mxu0
      %v3400 = vpop.f32.mrb[0].mxu0
      %v3401 = vadd.f32 %v3194, %v3400
      %v3402 = vpop.f32.mrb[0].mxu0
      %3403 = vmatprep.mubr.bf16.mxu0 %v3283
      %3404 = vmatmul.mubr.bf16.gmra.mrb[0].mxu0 %v3149
      %v3405 = vpop.f32.mrb[0].mxu0
      %v3406 = vadd.f32 %v3194, %v3405
      %v3407 = vpop.f32.mrb[0].mxu0
      %v3408 = vpop.f32.mrb[0].mxu0
      %v3409 = vadd.f32 %v3194, %v3408
      %v3410 = vpop.f32.mrb[0].mxu0
      %3411 = vmatprep.mubr.bf16.mxu0 %v3286
      %3412 = vmatmul.mubr.bf16.gmra.mrb[0].mxu0 %v3151
      %v3413 = vpop.f32.mrb[0].mxu0
      %v3414 = vadd.f32 %v3194, %v3413
      %v3415 = vpop.f32.mrb[0].mxu0
      %v3416 = vpop.f32.mrb[0].mxu0
      %v3417 = vadd.f32 %v3194, %v3416
      %v3418 = vpop.f32.mrb[0].mxu0
      %3419 = vmatprep.mubr.bf16.mxu0 %v3289
      %3420 = vmatmul.mubr.bf16.gmra.mrb[0].mxu0 %v3153
      %v3421 = vpop.f32.mrb[0].mxu0
      %v3422 = vadd.f32 %v3194, %v3421
      %v3423 = vpop.f32.mrb[0].mxu0
      %v3424 = vpop.f32.mrb[0].mxu0
      %v3425 = vadd.f32 %v3194, %v3424
      %v3426 = vpop.f32.mrb[0].mxu0
      %3427 = vmatprep.mubr.bf16.mxu0 %v3292
      %3428 = vmatmul.mubr.bf16.gmra.mrb[0].mxu0 %v3155
      %v3429 = vpop.f32.mrb[0].mxu0
      %v3430 = vadd.f32 %v3194, %v3429
      %v3431 = vpop.f32.mrb[0].mxu0
      %v3432 = vpop.f32.mrb[0].mxu0
      %v3433 = vadd.f32 %v3194, %v3432
      %v3434 = vpop.f32.mrb[0].mxu0
      %3435 = vmatprep.mubr.bf16.mxu0 %v3295
      %3436 = vmatmul.mubr.bf16.gmra.mrb[0].mxu0 %v3157
      %v3437 = vpop.f32.mrb[0].mxu0
      %v3438 = vadd.f32 %v3194, %v3437
      %v3439 = vpop.f32.mrb[0].mxu0
      %v3440 = vpop.f32.mrb[0].mxu0
      %v3441 = vadd.f32 %v3194, %v3440
      %v3442 = vpop.f32.mrb[0].mxu0
      %3443 = vmatprep.mubr.bf16.mxu0 %v3298
      %3444 = vmatmul.mubr.bf16.gmra.mrb[0].mxu0 %v3159
      %v3445 = vpop.f32.mrb[0].mxu0
      %v3446 = vadd.f32 %v3194, %v3445
      %v3447 = vpop.f32.mrb[0].mxu0
      %v3448 = vpop.f32.mrb[0].mxu0
      %v3449 = vadd.f32 %v3194, %v3448
      %v3450 = vpop.f32.mrb[0].mxu0
      %3451 = vmatprep.mubr.bf16.mxu0 %v3301
      %3452 = vmatmul.mubr.bf16.gmra.mrb[0].mxu0 %v3161
      %v3453 = vpop.f32.mrb[0].mxu0
      %v3454 = vadd.f32 %v3194, %v3453
      %v3455 = vpop.f32.mrb[0].mxu0
      %v3456 = vpop.f32.mrb[0].mxu0
      %v3457 = vadd.f32 %v3194, %v3456
      %v3458 = vpop.f32.mrb[0].mxu0
      %3459 = vmatprep.mubr.bf16.mxu0 %v3304
      %3460 = vmatmul.mubr.bf16.gmra.mrb[0].mxu0 %v3163
      %v3461 = vpop.f32.mrb[0].mxu0
      %v3462 = vadd.f32 %v3194, %v3461
      %v3463 = vpop.f32.mrb[0].mxu0
      %v3464 = vpop.f32.mrb[0].mxu0
      %v3465 = vadd.f32 %v3194, %v3464
      %v3466 = vpop.f32.mrb[0].mxu0
      %3467 = vmatprep.mubr.bf16.mxu0 %v3307
      %3468 = vmatmul.mubr.bf16.gmra.mrb[0].mxu0 %v3165
      %v3469 = vpop.f32.mrb[0].mxu0
      %v3470 = vadd.f32 %v3194, %v3469
      %v3471 = vpop.f32.mrb[0].mxu0
      %v3472 = vpop.f32.mrb[0].mxu0
      %v3473 = vadd.f32 %v3194, %v3472
      %v3474 = vpop.f32.mrb[0].mxu0
      %3475 = vdwg.mxu0
      %v3476 = vld [vmem:[#allocation3] sm:$0xff]
      %v3477 = vld [vmem:[#allocation3 + $0x8] sm:$0xff]
      %v3478 = vld [vmem:[#allocation3 + $0x10] sm:$0xff]
      %v3479 = vld [vmem:[#allocation3 + $0x18] sm:$0xff]
      %v3480 = vld [vmem:[#allocation3 + $0x20] sm:$0xff]
      %v3481 = vld [vmem:[#allocation3 + $0x28] sm:$0xff]
      %v3482 = vld [vmem:[#allocation3 + $0x30] sm:$0xff]
      %v3483 = vld [vmem:[#allocation3 + $0x38] sm:$0xff]
      %v3484 = vld [vmem:[#allocation3 + $0x40] sm:$0xff]
      %v3485 = vld [vmem:[#allocation3 + $0x48] sm:$0xff]
      %v3486 = vld [vmem:[#allocation3 + $0x50] sm:$0xff]
      %v3487 = vld [vmem:[#allocation3 + $0x58] sm:$0xff]
      %v3488 = vld [vmem:[#allocation3 + $0x60] sm:$0xff]
      %v3489 = vld [vmem:[#allocation3 + $0x68] sm:$0xff]
      %v3490 = vld [vmem:[#allocation3 + $0x70] sm:$0xff]
      %v3491 = vld [vmem:[#allocation3 + $0x78] sm:$0xff]
      %v3492 = vld [vmem:[#allocation3 + $0x80] sm:$0xff]
      %v3493 = vld [vmem:[#allocation3 + $0x88] sm:$0xff]
      %v3494 = vld [vmem:[#allocation3 + $0x90] sm:$0xff]
      %v3495 = vld [vmem:[#allocation3 + $0x98] sm:$0xff]
      %v3496 = vld [vmem:[#allocation3 + $0xa0] sm:$0xff]
      %v3497 = vld [vmem:[#allocation3 + $0xa8] sm:$0xff]
      %v3498 = vld [vmem:[#allocation3 + $0xb0] sm:$0xff]
      %v3499 = vld [vmem:[#allocation3 + $0xb8] sm:$0xff]
      %v3500 = vld [vmem:[#allocation3 + $0xc0] sm:$0xff]
      %v3501 = vld [vmem:[#allocation3 + $0xc8] sm:$0xff]
      %v3502 = vld [vmem:[#allocation3 + $0xd0] sm:$0xff]
      %v3503 = vld [vmem:[#allocation3 + $0xd8] sm:$0xff]
      %v3504 = vld [vmem:[#allocation3 + $0xe0] sm:$0xff]
      %v3505 = vld [vmem:[#allocation3 + $0xe8] sm:$0xff]
      %v3506 = vld [vmem:[#allocation3 + $0xf0] sm:$0xff]
      %v3507 = vld [vmem:[#allocation3 + $0xf8] sm:$0xff]
      %v3508 = vsub.f32 0.0, %v3350
      %v3509 = vsub.f32 0.0, %v3353
      %v3510 = vsub.f32 0.0, %v3358
      %v3511 = vsub.f32 0.0, %v3361
      %v3512 = vsub.f32 0.0, %v3366
      %v3513 = vsub.f32 0.0, %v3369
      %v3514 = vsub.f32 0.0, %v3374
      %v3515 = vsub.f32 0.0, %v3377
      %v3516 = vsub.f32 0.0, %v3382
      %v3517 = vsub.f32 0.0, %v3385
      %v3518 = vsub.f32 0.0, %v3390
      %v3519 = vsub.f32 0.0, %v3393
      %v3520 = vsub.f32 0.0, %v3398
      %v3521 = vsub.f32 0.0, %v3401
      %v3522 = vsub.f32 0.0, %v3406
      %v3523 = vsub.f32 0.0, %v3409
      %v3524 = vsub.f32 0.0, %v3414
      %v3525 = vsub.f32 0.0, %v3417
      %v3526 = vsub.f32 0.0, %v3422
      %v3527 = vsub.f32 0.0, %v3425
      %v3528 = vsub.f32 0.0, %v3430
      %v3529 = vsub.f32 0.0, %v3433
      %v3530 = vsub.f32 0.0, %v3438
      %v3531 = vsub.f32 0.0, %v3441
      %v3532 = vsub.f32 0.0, %v3446
      %v3533 = vsub.f32 0.0, %v3449
      %v3534 = vsub.f32 0.0, %v3454
      %v3535 = vsub.f32 0.0, %v3457
      %v3536 = vsub.f32 0.0, %v3462
      %v3537 = vsub.f32 0.0, %v3465
      %v3538 = vsub.f32 0.0, %v3470
      %v3539 = vsub.f32 0.0, %v3473
      %v3540 = vmul.f32 %v3508, 1.442695
      %v3541 = vpow.pop %v3540
      %v3542 = vmul.f32 %v3509, 1.442695
      %v3543 = vpow.pop %v3542
      %v3544 = vmul.f32 %v3510, 1.442695
      %v3545 = vpow.pop %v3544
      %v3546 = vmul.f32 %v3511, 1.442695
      %v3547 = vpow.pop %v3546
      %v3548 = vmul.f32 %v3512, 1.442695
      %v3549 = vpow.pop %v3548
      %v3550 = vmul.f32 %v3513, 1.442695
      %v3551 = vpow.pop %v3550
      %v3552 = vmul.f32 %v3514, 1.442695
      %v3553 = vpow.pop %v3552
      %v3554 = vmul.f32 %v3515, 1.442695
      %v3555 = vpow.pop %v3554
      %v3556 = vmul.f32 %v3516, 1.442695
      %v3557 = vpow.pop %v3556
      %v3558 = vmul.f32 %v3517, 1.442695
      %v3559 = vpow.pop %v3558
      %v3560 = vmul.f32 %v3518, 1.442695
      %v3561 = vpow.pop %v3560
      %v3562 = vmul.f32 %v3519, 1.442695
      %v3563 = vpow.pop %v3562
      %v3564 = vmul.f32 %v3520, 1.442695
      %v3565 = vpow.pop %v3564
      %v3566 = vmul.f32 %v3521, 1.442695
      %v3567 = vpow.pop %v3566
      %v3568 = vmul.f32 %v3522, 1.442695
      %v3569 = vpow.pop %v3568
      %v3570 = vmul.f32 %v3523, 1.442695
      %v3571 = vpow.pop %v3570
      %v3572 = vmul.f32 %v3524, 1.442695
      %v3573 = vpow.pop %v3572
      %v3574 = vmul.f32 %v3525, 1.442695
      %v3575 = vpow.pop %v3574
      %v3576 = vmul.f32 %v3526, 1.442695
      %v3577 = vpow.pop %v3576
      %v3578 = vmul.f32 %v3527, 1.442695
      %v3579 = vpow.pop %v3578
      %v3580 = vmul.f32 %v3528, 1.442695
      %v3581 = vpow.pop %v3580
      %v3582 = vmul.f32 %v3529, 1.442695
      %v3583 = vpow.pop %v3582
      %v3584 = vmul.f32 %v3530, 1.442695
      %v3585 = vpow.pop %v3584
      %v3586 = vmul.f32 %v3531, 1.442695
      %v3587 = vpow.pop %v3586
      %v3588 = vmul.f32 %v3532, 1.442695
      %v3589 = vpow.pop %v3588
      %v3590 = vmul.f32 %v3533, 1.442695
      %v3591 = vpow.pop %v3590
      %v3592 = vmul.f32 %v3534, 1.442695
      %v3593 = vpow.pop %v3592
      %v3594 = vmul.f32 %v3535, 1.442695
      %v3595 = vpow.pop %v3594
      %v3596 = vmul.f32 %v3536, 1.442695
      %v3597 = vpow.pop %v3596
      %v3598 = vmul.f32 %v3537, 1.442695
      %v3599 = vpow.pop %v3598
      %v3600 = vmul.f32 %v3538, 1.442695
      %v3601 = vpow.pop %v3600
      %v3602 = vmul.f32 %v3539, 1.442695
      %v3603 = vpow.pop %v3602
      %v3604 = vadd.f32 %v3541, 1.0
      %v3605 = vadd.f32 %v3543, 1.0
      %v3606 = vadd.f32 %v3545, 1.0
      %v3607 = vadd.f32 %v3547, 1.0
      %v3608 = vadd.f32 %v3549, 1.0
      %v3609 = vadd.f32 %v3551, 1.0
      %v3610 = vadd.f32 %v3553, 1.0
      %v3611 = vadd.f32 %v3555, 1.0
      %v3612 = vadd.f32 %v3557, 1.0
      %v3613 = vadd.f32 %v3559, 1.0
      %v3614 = vadd.f32 %v3561, 1.0
      %v3615 = vadd.f32 %v3563, 1.0
      %v3616 = vadd.f32 %v3565, 1.0
      %v3617 = vadd.f32 %v3567, 1.0
      %v3618 = vadd.f32 %v3569, 1.0
      %v3619 = vadd.f32 %v3571, 1.0
      %v3620 = vadd.f32 %v3573, 1.0
      %v3621 = vadd.f32 %v3575, 1.0
      %v3622 = vadd.f32 %v3577, 1.0
      %v3623 = vadd.f32 %v3579, 1.0
      %v3624 = vadd.f32 %v3581, 1.0
      %v3625 = vadd.f32 %v3583, 1.0
      %v3626 = vadd.f32 %v3585, 1.0
      %v3627 = vadd.f32 %v3587, 1.0
      %v3628 = vadd.f32 %v3589, 1.0
      %v3629 = vadd.f32 %v3591, 1.0
      %v3630 = vadd.f32 %v3593, 1.0
      %v3631 = vadd.f32 %v3595, 1.0
      %v3632 = vadd.f32 %v3597, 1.0
      %v3633 = vadd.f32 %v3599, 1.0
      %v3634 = vadd.f32 %v3601, 1.0
      %v3635 = vadd.f32 %v3603, 1.0
      %v3636 = vrcp.pop %v3604
      %v3637 = vrcp.pop %v3605
      %v3638 = vrcp.pop %v3606
      %v3639 = vrcp.pop %v3607
      %v3640 = vrcp.pop %v3608
      %v3641 = vrcp.pop %v3609
      %v3642 = vrcp.pop %v3610
      %v3643 = vrcp.pop %v3611
      %v3644 = vrcp.pop %v3612
      %v3645 = vrcp.pop %v3613
      %v3646 = vrcp.pop %v3614
      %v3647 = vrcp.pop %v3615
      %v3648 = vrcp.pop %v3616
      %v3649 = vrcp.pop %v3617
      %v3650 = vrcp.pop %v3618
      %v3651 = vrcp.pop %v3619
      %v3652 = vrcp.pop %v3620
      %v3653 = vrcp.pop %v3621
      %v3654 = vrcp.pop %v3622
      %v3655 = vrcp.pop %v3623
      %v3656 = vrcp.pop %v3624
      %v3657 = vrcp.pop %v3625
      %v3658 = vrcp.pop %v3626
      %v3659 = vrcp.pop %v3627
      %v3660 = vrcp.pop %v3628
      %v3661 = vrcp.pop %v3629
      %v3662 = vrcp.pop %v3630
      %v3663 = vrcp.pop %v3631
      %v3664 = vrcp.pop %v3632
      %v3665 = vrcp.pop %v3633
      %v3666 = vrcp.pop %v3634
      %v3667 = vrcp.pop %v3635
      %3700 = vrot.lane.b32.xlu0 %v3476, 16
      %v3701 = vpop.permute.xlu0 %3700
      %3702 = vrot.lane.b32.xlu0 %v3477, 16
      %v3703 = vpop.permute.xlu0 %3702
      %3704 = vrot.lane.b32.xlu0 %v3478, 16
      %v3705 = vpop.permute.xlu0 %3704
      %3706 = vrot.lane.b32.xlu0 %v3479, 16
      %v3707 = vpop.permute.xlu0 %3706
      %3708 = vrot.lane.b32.xlu0 %v3480, 16
      %v3709 = vpop.permute.xlu0 %3708
      %3710 = vrot.lane.b32.xlu0 %v3481, 16
      %v3711 = vpop.permute.xlu0 %3710
      %3712 = vrot.lane.b32.xlu0 %v3482, 16
      %v3713 = vpop.permute.xlu0 %3712
      %3714 = vrot.lane.b32.xlu0 %v3483, 16
      %v3715 = vpop.permute.xlu0 %3714
      %3716 = vrot.lane.b32.xlu0 %v3484, 16
      %v3717 = vpop.permute.xlu0 %3716
      %3718 = vrot.lane.b32.xlu0 %v3485, 16
      %v3719 = vpop.permute.xlu0 %3718
      %3720 = vrot.lane.b32.xlu0 %v3486, 16
      %v3721 = vpop.permute.xlu0 %3720
      %3722 = vrot.lane.b32.xlu0 %v3487, 16
      %v3723 = vpop.permute.xlu0 %3722
      %3724 = vrot.lane.b32.xlu0 %v3488, 16
      %v3725 = vpop.permute.xlu0 %3724
      %3726 = vrot.lane.b32.xlu0 %v3489, 16
      %v3727 = vpop.permute.xlu0 %3726
      %3728 = vrot.lane.b32.xlu0 %v3490, 16
      %v3729 = vpop.permute.xlu0 %3728
      %3730 = vrot.lane.b32.xlu0 %v3491, 16
      %v3731 = vpop.permute.xlu0 %3730
      %3732 = vrot.lane.b32.xlu0 %v3492, 16
      %v3733 = vpop.permute.xlu0 %3732
      %3734 = vrot.lane.b32.xlu0 %v3493, 16
      %v3735 = vpop.permute.xlu0 %3734
      %3736 = vrot.lane.b32.xlu0 %v3494, 16
      %v3737 = vpop.permute.xlu0 %3736
      %3738 = vrot.lane.b32.xlu0 %v3495, 16
      %v3739 = vpop.permute.xlu0 %3738
      %3740 = vrot.lane.b32.xlu0 %v3496, 16
      %v3741 = vpop.permute.xlu0 %3740
      %3742 = vrot.lane.b32.xlu0 %v3497, 16
      %v3743 = vpop.permute.xlu0 %3742
      %3744 = vrot.lane.b32.xlu0 %v3498, 16
      %v3745 = vpop.permute.xlu0 %3744
      %3746 = vrot.lane.b32.xlu0 %v3499, 16
      %v3747 = vpop.permute.xlu0 %3746
      %3748 = vrot.lane.b32.xlu0 %v3500, 16
      %v3749 = vpop.permute.xlu0 %3748
      %3750 = vrot.lane.b32.xlu0 %v3501, 16
      %v3751 = vpop.permute.xlu0 %3750
      %3752 = vrot.lane.b32.xlu0 %v3502, 16
      %v3753 = vpop.permute.xlu0 %3752
      %3754 = vrot.lane.b32.xlu0 %v3503, 16
      %v3755 = vpop.permute.xlu0 %3754
      %3756 = vrot.lane.b32.xlu0 %v3504, 16
      %v3757 = vpop.permute.xlu0 %3756
      %3758 = vrot.lane.b32.xlu0 %v3505, 16
      %v3759 = vpop.permute.xlu0 %3758
      %3760 = vrot.lane.b32.xlu0 %v3506, 16
      %v3761 = vpop.permute.xlu0 %3760
      %3762 = vrot.lane.b32.xlu0 %v3507, 16
      %v3763 = vpop.permute.xlu0 %3762
      %v3796 = vmul.f32 %v3636, %v3701
      %v3797 = vmul.f32 %v3637, %v3703
      %v3798 = vmul.f32 %v3638, %v3705
      %v3799 = vmul.f32 %v3639, %v3707
      %v3800 = vmul.f32 %v3640, %v3709
      %v3801 = vmul.f32 %v3641, %v3711
      %v3802 = vmul.f32 %v3642, %v3713
      %v3803 = vmul.f32 %v3643, %v3715
      %v3804 = vmul.f32 %v3644, %v3717
      %v3805 = vmul.f32 %v3645, %v3719
      %v3806 = vmul.f32 %v3646, %v3721
      %v3807 = vmul.f32 %v3647, %v3723
      %v3808 = vmul.f32 %v3648, %v3725
      %v3809 = vmul.f32 %v3649, %v3727
      %v3810 = vmul.f32 %v3650, %v3729
      %v3811 = vmul.f32 %v3651, %v3731
      %v3812 = vmul.f32 %v3652, %v3733
      %v3813 = vmul.f32 %v3653, %v3735
      %v3814 = vmul.f32 %v3654, %v3737
      %v3815 = vmul.f32 %v3655, %v3739
      %v3816 = vmul.f32 %v3656, %v3741
      %v3817 = vmul.f32 %v3657, %v3743
      %v3818 = vmul.f32 %v3658, %v3745
      %v3819 = vmul.f32 %v3659, %v3747
      %v3820 = vmul.f32 %v3660, %v3749
      %v3821 = vmul.f32 %v3661, %v3751
      %v3822 = vmul.f32 %v3662, %v3753
      %v3823 = vmul.f32 %v3663, %v3755
      %v3824 = vmul.f32 %v3664, %v3757
      %v3825 = vmul.f32 %v3665, %v3759
      %v3826 = vmul.f32 %v3666, %v3761
      %v3827 = vmul.f32 %v3667, %v3763
      %v3828 = vtanh.pop %v3350
      %v3829 = vtanh.pop %v3353
      %v3830 = vtanh.pop %v3358
      %v3831 = vtanh.pop %v3361
      %v3832 = vtanh.pop %v3366
      %v3833 = vtanh.pop %v3369
      %v3834 = vtanh.pop %v3374
      %v3835 = vtanh.pop %v3377
      %v3836 = vtanh.pop %v3382
      %v3837 = vtanh.pop %v3385
      %v3838 = vtanh.pop %v3390
      %v3839 = vtanh.pop %v3393
      %v3840 = vtanh.pop %v3398
      %v3841 = vtanh.pop %v3401
      %v3842 = vtanh.pop %v3406
      %v3843 = vtanh.pop %v3409
      %v3844 = vtanh.pop %v3414
      %v3845 = vtanh.pop %v3417
      %v3846 = vtanh.pop %v3422
      %v3847 = vtanh.pop %v3425
      %v3848 = vtanh.pop %v3430
      %v3849 = vtanh.pop %v3433
      %v3850 = vtanh.pop %v3438
      %v3851 = vtanh.pop %v3441
      %v3852 = vtanh.pop %v3446
      %v3853 = vtanh.pop %v3449
      %v3854 = vtanh.pop %v3454
      %v3855 = vtanh.pop %v3457
      %v3856 = vtanh.pop %v3462
      %v3857 = vtanh.pop %v3465
      %v3858 = vtanh.pop %v3470
      %v3859 = vtanh.pop %v3473
      %3892 = vrot.lane.b32.xlu0 %v3828, 96
      %v3893 = vpop.permute.xlu0 %3892
      %3894 = vrot.lane.b32.xlu0 %v3829, 96
      %v3895 = vpop.permute.xlu0 %3894
      %3896 = vrot.lane.b32.xlu0 %v3830, 96
      %v3897 = vpop.permute.xlu0 %3896
      %3898 = vrot.lane.b32.xlu0 %v3831, 96
      %v3899 = vpop.permute.xlu0 %3898
      %3900 = vrot.lane.b32.xlu0 %v3832, 96
      %v3901 = vpop.permute.xlu0 %3900
      %3902 = vrot.lane.b32.xlu0 %v3833, 96
      %v3903 = vpop.permute.xlu0 %3902
      %3904 = vrot.lane.b32.xlu0 %v3834, 96
      %v3905 = vpop.permute.xlu0 %3904
      %3906 = vrot.lane.b32.xlu0 %v3835, 96
      %v3907 = vpop.permute.xlu0 %3906
      %3908 = vrot.lane.b32.xlu0 %v3836, 96
      %v3909 = vpop.permute.xlu0 %3908
      %3910 = vrot.lane.b32.xlu0 %v3837, 96
      %v3911 = vpop.permute.xlu0 %3910
      %3912 = vrot.lane.b32.xlu0 %v3838, 96
      %v3913 = vpop.permute.xlu0 %3912
      %3914 = vrot.lane.b32.xlu0 %v3839, 96
      %v3915 = vpop.permute.xlu0 %3914
      %3916 = vrot.lane.b32.xlu0 %v3840, 96
      %v3917 = vpop.permute.xlu0 %3916
      %3918 = vrot.lane.b32.xlu0 %v3841, 96
      %v3919 = vpop.permute.xlu0 %3918
      %3920 = vrot.lane.b32.xlu0 %v3842, 96
      %v3921 = vpop.permute.xlu0 %3920
      %3922 = vrot.lane.b32.xlu0 %v3843, 96
      %v3923 = vpop.permute.xlu0 %3922
      %3924 = vrot.lane.b32.xlu0 %v3844, 96
      %v3925 = vpop.permute.xlu0 %3924
      %3926 = vrot.lane.b32.xlu0 %v3845, 96
      %v3927 = vpop.permute.xlu0 %3926
      %3928 = vrot.lane.b32.xlu0 %v3846, 96
      %v3929 = vpop.permute.xlu0 %3928
      %3930 = vrot.lane.b32.xlu0 %v3847, 96
      %v3931 = vpop.permute.xlu0 %3930
      %3932 = vrot.lane.b32.xlu0 %v3848, 96
      %v3933 = vpop.permute.xlu0 %3932
      %3934 = vrot.lane.b32.xlu0 %v3849, 96
      %v3935 = vpop.permute.xlu0 %3934
      %3936 = vrot.lane.b32.xlu0 %v3850, 96
      %v3937 = vpop.permute.xlu0 %3936
      %3938 = vrot.lane.b32.xlu0 %v3851, 96
      %v3939 = vpop.permute.xlu0 %3938
      %3940 = vrot.lane.b32.xlu0 %v3852, 96
      %v3941 = vpop.permute.xlu0 %3940
      %3942 = vrot.lane.b32.xlu0 %v3853, 96
      %v3943 = vpop.permute.xlu0 %3942
      %3944 = vrot.lane.b32.xlu0 %v3854, 96
      %v3945 = vpop.permute.xlu0 %3944
      %3946 = vrot.lane.b32.xlu0 %v3855, 96
      %v3947 = vpop.permute.xlu0 %3946
      %3948 = vrot.lane.b32.xlu0 %v3856, 96
      %v3949 = vpop.permute.xlu0 %3948
      %3950 = vrot.lane.b32.xlu0 %v3857, 96
      %v3951 = vpop.permute.xlu0 %3950
      %3952 = vrot.lane.b32.xlu0 %v3858, 96
      %v3953 = vpop.permute.xlu0 %3952
      %3954 = vrot.lane.b32.xlu0 %v3859, 96
      %v3955 = vpop.permute.xlu0 %3954
      %v3988 = vmul.f32 %v3636, %v3893
      %v3989 = vmul.f32 %v3637, %v3895
      %v3990 = vmul.f32 %v3638, %v3897
      %v3991 = vmul.f32 %v3639, %v3899
      %v3992 = vmul.f32 %v3640, %v3901
      %v3993 = vmul.f32 %v3641, %v3903
      %v3994 = vmul.f32 %v3642, %v3905
      %v3995 = vmul.f32 %v3643, %v3907
      %v3996 = vmul.f32 %v3644, %v3909
      %v3997 = vmul.f32 %v3645, %v3911
      %v3998 = vmul.f32 %v3646, %v3913
      %v3999 = vmul.f32 %v3647, %v3915
      %v4000 = vmul.f32 %v3648, %v3917
      %v4001 = vmul.f32 %v3649, %v3919
      %v4002 = vmul.f32 %v3650, %v3921
      %v4003 = vmul.f32 %v3651, %v3923
      %v4004 = vmul.f32 %v3652, %v3925
      %v4005 = vmul.f32 %v3653, %v3927
      %v4006 = vmul.f32 %v3654, %v3929
      %v4007 = vmul.f32 %v3655, %v3931
      %v4008 = vmul.f32 %v3656, %v3933
      %v4009 = vmul.f32 %v3657, %v3935
      %v4010 = vmul.f32 %v3658, %v3937
      %v4011 = vmul.f32 %v3659, %v3939
      %v4012 = vmul.f32 %v3660, %v3941
      %v4013 = vmul.f32 %v3661, %v3943
      %v4014 = vmul.f32 %v3662, %v3945
      %v4015 = vmul.f32 %v3663, %v3947
      %v4016 = vmul.f32 %v3664, %v3949
      %v4017 = vmul.f32 %v3665, %v3951
      %v4018 = vmul.f32 %v3666, %v3953
      %v4019 = vmul.f32 %v3667, %v3955
      %4052 = vrot.lane.b32.xlu0 %v3988, 16
      %v4053 = vpop.permute.xlu0 %4052
      %4054 = vrot.lane.b32.xlu0 %v3989, 16
      %v4055 = vpop.permute.xlu0 %4054
      %4056 = vrot.lane.b32.xlu0 %v3990, 16
      %v4057 = vpop.permute.xlu0 %4056
      %4058 = vrot.lane.b32.xlu0 %v3991, 16
      %v4059 = vpop.permute.xlu0 %4058
      %4060 = vrot.lane.b32.xlu0 %v3992, 16
      %v4061 = vpop.permute.xlu0 %4060
      %4062 = vrot.lane.b32.xlu0 %v3993, 16
      %v4063 = vpop.permute.xlu0 %4062
      %4064 = vrot.lane.b32.xlu0 %v3994, 16
      %v4065 = vpop.permute.xlu0 %4064
      %4066 = vrot.lane.b32.xlu0 %v3995, 16
      %v4067 = vpop.permute.xlu0 %4066
      %4068 = vrot.lane.b32.xlu0 %v3996, 16
      %v4069 = vpop.permute.xlu0 %4068
      %4070 = vrot.lane.b32.xlu0 %v3997, 16
      %v4071 = vpop.permute.xlu0 %4070
      %4072 = vrot.lane.b32.xlu0 %v3998, 16
      %v4073 = vpop.permute.xlu0 %4072
      %4074 = vrot.lane.b32.xlu0 %v3999, 16
      %v4075 = vpop.permute.xlu0 %4074
      %4076 = vrot.lane.b32.xlu0 %v4000, 16
      %v4077 = vpop.permute.xlu0 %4076
      %4078 = vrot.lane.b32.xlu0 %v4001, 16
      %v4079 = vpop.permute.xlu0 %4078
      %4080 = vrot.lane.b32.xlu0 %v4002, 16
      %v4081 = vpop.permute.xlu0 %4080
      %4082 = vrot.lane.b32.xlu0 %v4003, 16
      %v4083 = vpop.permute.xlu0 %4082
      %4084 = vrot.lane.b32.xlu0 %v4004, 16
      %v4085 = vpop.permute.xlu0 %4084
      %4086 = vrot.lane.b32.xlu0 %v4005, 16
      %v4087 = vpop.permute.xlu0 %4086
      %4088 = vrot.lane.b32.xlu0 %v4006, 16
      %v4089 = vpop.permute.xlu0 %4088
      %4090 = vrot.lane.b32.xlu0 %v4007, 16
      %v4091 = vpop.permute.xlu0 %4090
      %4092 = vrot.lane.b32.xlu0 %v4008, 16
      %v4093 = vpop.permute.xlu0 %4092
      %4094 = vrot.lane.b32.xlu0 %v4009, 16
      %v4095 = vpop.permute.xlu0 %4094
      %4096 = vrot.lane.b32.xlu0 %v4010, 16
      %v4097 = vpop.permute.xlu0 %4096
      %4098 = vrot.lane.b32.xlu0 %v4011, 16
      %v4099 = vpop.permute.xlu0 %4098
      %4100 = vrot.lane.b32.xlu0 %v4012, 16
      %v4101 = vpop.permute.xlu0 %4100
      %4102 = vrot.lane.b32.xlu0 %v4013, 16
      %v4103 = vpop.permute.xlu0 %4102
      %4104 = vrot.lane.b32.xlu0 %v4014, 16
      %v4105 = vpop.permute.xlu0 %4104
      %4106 = vrot.lane.b32.xlu0 %v4015, 16
      %v4107 = vpop.permute.xlu0 %4106
      %4108 = vrot.lane.b32.xlu0 %v4016, 16
      %v4109 = vpop.permute.xlu0 %4108
      %4110 = vrot.lane.b32.xlu0 %v4017, 16
      %v4111 = vpop.permute.xlu0 %4110
      %4112 = vrot.lane.b32.xlu0 %v4018, 16
      %v4113 = vpop.permute.xlu0 %4112
      %4114 = vrot.lane.b32.xlu0 %v4019, 16
      %v4115 = vpop.permute.xlu0 %4114
      %v4148 = vadd.f32 %v3796, %v4053
      %v4149 = vadd.f32 %v3797, %v4055
      %v4150 = vadd.f32 %v3798, %v4057
      %v4151 = vadd.f32 %v3799, %v4059
      %v4152 = vadd.f32 %v3800, %v4061
      %v4153 = vadd.f32 %v3801, %v4063
      %v4154 = vadd.f32 %v3802, %v4065
      %v4155 = vadd.f32 %v3803, %v4067
      %v4156 = vadd.f32 %v3804, %v4069
      %v4157 = vadd.f32 %v3805, %v4071
      %v4158 = vadd.f32 %v3806, %v4073
      %v4159 = vadd.f32 %v3807, %v4075
      %v4160 = vadd.f32 %v3808, %v4077
      %v4161 = vadd.f32 %v3809, %v4079
      %v4162 = vadd.f32 %v3810, %v4081
      %v4163 = vadd.f32 %v3811, %v4083
      %v4164 = vadd.f32 %v3812, %v4085
      %v4165 = vadd.f32 %v3813, %v4087
      %v4166 = vadd.f32 %v3814, %v4089
      %v4167 = vadd.f32 %v3815, %v4091
      %v4168 = vadd.f32 %v3816, %v4093
      %v4169 = vadd.f32 %v3817, %v4095
      %v4170 = vadd.f32 %v3818, %v4097
      %v4171 = vadd.f32 %v3819, %v4099
      %v4172 = vadd.f32 %v3820, %v4101
      %v4173 = vadd.f32 %v3821, %v4103
      %v4174 = vadd.f32 %v3822, %v4105
      %v4175 = vadd.f32 %v3823, %v4107
      %v4176 = vadd.f32 %v3824, %v4109
      %v4177 = vadd.f32 %v3825, %v4111
      %v4178 = vadd.f32 %v3826, %v4113
      %v4179 = vadd.f32 %v3827, %v4115
      %v4180 = vtanh.pop %v4148
      %v4181 = vtanh.pop %v4149
      %v4182 = vtanh.pop %v4150
      %v4183 = vtanh.pop %v4151
      %v4184 = vtanh.pop %v4152
      %v4185 = vtanh.pop %v4153
      %v4186 = vtanh.pop %v4154
      %v4187 = vtanh.pop %v4155
      %v4188 = vtanh.pop %v4156
      %v4189 = vtanh.pop %v4157
      %v4190 = vtanh.pop %v4158
      %v4191 = vtanh.pop %v4159
      %v4192 = vtanh.pop %v4160
      %v4193 = vtanh.pop %v4161
      %v4194 = vtanh.pop %v4162
      %v4195 = vtanh.pop %v4163
      %v4196 = vtanh.pop %v4164
      %v4197 = vtanh.pop %v4165
      %v4198 = vtanh.pop %v4166
      %v4199 = vtanh.pop %v4167
      %v4200 = vtanh.pop %v4168
      %v4201 = vtanh.pop %v4169
      %v4202 = vtanh.pop %v4170
      %v4203 = vtanh.pop %v4171
      %v4204 = vtanh.pop %v4172
      %v4205 = vtanh.pop %v4173
      %v4206 = vtanh.pop %v4174
      %v4207 = vtanh.pop %v4175
      %v4208 = vtanh.pop %v4176
      %v4209 = vtanh.pop %v4177
      %v4210 = vtanh.pop %v4178
      %v4211 = vtanh.pop %v4179
      %4244 = vrot.lane.b32.xlu0 %v4180, 32
      %v4245 = vpop.permute.xlu0 %4244
      %4246 = vrot.lane.b32.xlu0 %v4181, 32
      %v4247 = vpop.permute.xlu0 %4246
      %4248 = vrot.lane.b32.xlu0 %v4182, 32
      %v4249 = vpop.permute.xlu0 %4248
      %4250 = vrot.lane.b32.xlu0 %v4183, 32
      %v4251 = vpop.permute.xlu0 %4250
      %4252 = vrot.lane.b32.xlu0 %v4184, 32
      %v4253 = vpop.permute.xlu0 %4252
      %4254 = vrot.lane.b32.xlu0 %v4185, 32
      %v4255 = vpop.permute.xlu0 %4254
      %4256 = vrot.lane.b32.xlu0 %v4186, 32
      %v4257 = vpop.permute.xlu0 %4256
      %4258 = vrot.lane.b32.xlu0 %v4187, 32
      %v4259 = vpop.permute.xlu0 %4258
      %4260 = vrot.lane.b32.xlu0 %v4188, 32
      %v4261 = vpop.permute.xlu0 %4260
      %4262 = vrot.lane.b32.xlu0 %v4189, 32
      %v4263 = vpop.permute.xlu0 %4262
      %4264 = vrot.lane.b32.xlu0 %v4190, 32
      %v4265 = vpop.permute.xlu0 %4264
      %4266 = vrot.lane.b32.xlu0 %v4191, 32
      %v4267 = vpop.permute.xlu0 %4266
      %4268 = vrot.lane.b32.xlu0 %v4192, 32
      %v4269 = vpop.permute.xlu0 %4268
      %4270 = vrot.lane.b32.xlu0 %v4193, 32
      %v4271 = vpop.permute.xlu0 %4270
      %4272 = vrot.lane.b32.xlu0 %v4194, 32
      %v4273 = vpop.permute.xlu0 %4272
      %4274 = vrot.lane.b32.xlu0 %v4195, 32
      %v4275 = vpop.permute.xlu0 %4274
      %4276 = vrot.lane.b32.xlu0 %v4196, 32
      %v4277 = vpop.permute.xlu0 %4276
      %4278 = vrot.lane.b32.xlu0 %v4197, 32
      %v4279 = vpop.permute.xlu0 %4278
      %4280 = vrot.lane.b32.xlu0 %v4198, 32
      %v4281 = vpop.permute.xlu0 %4280
      %4282 = vrot.lane.b32.xlu0 %v4199, 32
      %v4283 = vpop.permute.xlu0 %4282
      %4284 = vrot.lane.b32.xlu0 %v4200, 32
      %v4285 = vpop.permute.xlu0 %4284
      %4286 = vrot.lane.b32.xlu0 %v4201, 32
      %v4287 = vpop.permute.xlu0 %4286
      %4288 = vrot.lane.b32.xlu0 %v4202, 32
      %v4289 = vpop.permute.xlu0 %4288
      %4290 = vrot.lane.b32.xlu0 %v4203, 32
      %v4291 = vpop.permute.xlu0 %4290
      %4292 = vrot.lane.b32.xlu0 %v4204, 32
      %v4293 = vpop.permute.xlu0 %4292
      %4294 = vrot.lane.b32.xlu0 %v4205, 32
      %v4295 = vpop.permute.xlu0 %4294
      %4296 = vrot.lane.b32.xlu0 %v4206, 32
      %v4297 = vpop.permute.xlu0 %4296
      %4298 = vrot.lane.b32.xlu0 %v4207, 32
      %v4299 = vpop.permute.xlu0 %4298
      %4300 = vrot.lane.b32.xlu0 %v4208, 32
      %v4301 = vpop.permute.xlu0 %4300
      %4302 = vrot.lane.b32.xlu0 %v4209, 32
      %v4303 = vpop.permute.xlu0 %4302
      %4304 = vrot.lane.b32.xlu0 %v4210, 32
      %v4305 = vpop.permute.xlu0 %4304
      %4306 = vrot.lane.b32.xlu0 %v4211, 32
      %v4307 = vpop.permute.xlu0 %4306
      %v4340 = vmul.f32 %v3636, %v4245
      %v4341 = vmul.f32 %v3637, %v4247
      %v4342 = vmul.f32 %v3638, %v4249
      %v4343 = vmul.f32 %v3639, %v4251
      %v4344 = vmul.f32 %v3640, %v4253
      %v4345 = vmul.f32 %v3641, %v4255
      %v4346 = vmul.f32 %v3642, %v4257
      %v4347 = vmul.f32 %v3643, %v4259
      %v4348 = vmul.f32 %v3644, %v4261
      %v4349 = vmul.f32 %v3645, %v4263
      %v4350 = vmul.f32 %v3646, %v4265
      %v4351 = vmul.f32 %v3647, %v4267
      %v4352 = vmul.f32 %v3648, %v4269
      %v4353 = vmul.f32 %v3649, %v4271
      %v4354 = vmul.f32 %v3650, %v4273
      %v4355 = vmul.f32 %v3651, %v4275
      %v4356 = vmul.f32 %v3652, %v4277
      %v4357 = vmul.f32 %v3653, %v4279
      %v4358 = vmul.f32 %v3654, %v4281
      %v4359 = vmul.f32 %v3655, %v4283
      %v4360 = vmul.f32 %v3656, %v4285
      %v4361 = vmul.f32 %v3657, %v4287
      %v4362 = vmul.f32 %v3658, %v4289
      %v4363 = vmul.f32 %v3659, %v4291
      %v4364 = vmul.f32 %v3660, %v4293
      %v4365 = vmul.f32 %v3661, %v4295
      %v4366 = vmul.f32 %v3662, %v4297
      %v4367 = vmul.f32 %v3663, %v4299
      %v4368 = vmul.f32 %v3664, %v4301
      %v4369 = vmul.f32 %v3665, %v4303
      %v4370 = vmul.f32 %v3666, %v4305
      %v4371 = vmul.f32 %v3667, %v4307
      %4404 = vrot.lane.b32.xlu0 %v4148, 112
      %v4405 = vpop.permute.xlu0 %4404
      %4406 = vrot.lane.b32.xlu0 %v4149, 112
      %v4407 = vpop.permute.xlu0 %4406
      %4408 = vrot.lane.b32.xlu0 %v4150, 112
      %v4409 = vpop.permute.xlu0 %4408
      %4410 = vrot.lane.b32.xlu0 %v4151, 112
      %v4411 = vpop.permute.xlu0 %4410
      %4412 = vrot.lane.b32.xlu0 %v4152, 112
      %v4413 = vpop.permute.xlu0 %4412
      %4414 = vrot.lane.b32.xlu0 %v4153, 112
      %v4415 = vpop.permute.xlu0 %4414
      %4416 = vrot.lane.b32.xlu0 %v4154, 112
      %v4417 = vpop.permute.xlu0 %4416
      %4418 = vrot.lane.b32.xlu0 %v4155, 112
      %v4419 = vpop.permute.xlu0 %4418
      %4420 = vrot.lane.b32.xlu0 %v4156, 112
      %v4421 = vpop.permute.xlu0 %4420
      %4422 = vrot.lane.b32.xlu0 %v4157, 112
      %v4423 = vpop.permute.xlu0 %4422
      %4424 = vrot.lane.b32.xlu0 %v4158, 112
      %v4425 = vpop.permute.xlu0 %4424
      %4426 = vrot.lane.b32.xlu0 %v4159, 112
      %v4427 = vpop.permute.xlu0 %4426
      %4428 = vrot.lane.b32.xlu0 %v4160, 112
      %v4429 = vpop.permute.xlu0 %4428
      %4430 = vrot.lane.b32.xlu0 %v4161, 112
      %v4431 = vpop.permute.xlu0 %4430
      %4432 = vrot.lane.b32.xlu0 %v4162, 112
      %v4433 = vpop.permute.xlu0 %4432
      %4434 = vrot.lane.b32.xlu0 %v4163, 112
      %v4435 = vpop.permute.xlu0 %4434
      %4436 = vrot.lane.b32.xlu0 %v4164, 112
      %v4437 = vpop.permute.xlu0 %4436
      %4438 = vrot.lane.b32.xlu0 %v4165, 112
      %v4439 = vpop.permute.xlu0 %4438
      %4440 = vrot.lane.b32.xlu0 %v4166, 112
      %v4441 = vpop.permute.xlu0 %4440
      %4442 = vrot.lane.b32.xlu0 %v4167, 112
      %v4443 = vpop.permute.xlu0 %4442
      %4444 = vrot.lane.b32.xlu0 %v4168, 112
      %v4445 = vpop.permute.xlu0 %4444
      %4446 = vrot.lane.b32.xlu0 %v4169, 112
      %v4447 = vpop.permute.xlu0 %4446
      %4448 = vrot.lane.b32.xlu0 %v4170, 112
      %v4449 = vpop.permute.xlu0 %4448
      %4450 = vrot.lane.b32.xlu0 %v4171, 112
      %v4451 = vpop.permute.xlu0 %4450
      %4452 = vrot.lane.b32.xlu0 %v4172, 112
      %v4453 = vpop.permute.xlu0 %4452
      %4454 = vrot.lane.b32.xlu0 %v4173, 112
      %v4455 = vpop.permute.xlu0 %4454
      %4456 = vrot.lane.b32.xlu0 %v4174, 112
      %v4457 = vpop.permute.xlu0 %4456
      %4458 = vrot.lane.b32.xlu0 %v4175, 112
      %v4459 = vpop.permute.xlu0 %4458
      %4460 = vrot.lane.b32.xlu0 %v4176, 112
      %v4461 = vpop.permute.xlu0 %4460
      %4462 = vrot.lane.b32.xlu0 %v4177, 112
      %v4463 = vpop.permute.xlu0 %4462
      %4464 = vrot.lane.b32.xlu0 %v4178, 112
      %v4465 = vpop.permute.xlu0 %4464
      %4466 = vrot.lane.b32.xlu0 %v4179, 112
      %v4467 = vpop.permute.xlu0 %4466
      %4500 = vst.msk [vmem:[#allocation3] sm:$0xff] %vm2941, %v4405
      %4501 = vst.msk [vmem:[#allocation3 + $0x8] sm:$0xff] %vm2941, %v4407
      %4502 = vst.msk [vmem:[#allocation3 + $0x10] sm:$0xff] %vm2941, %v4409
      %4503 = vst.msk [vmem:[#allocation3 + $0x18] sm:$0xff] %vm2941, %v4411
      %4504 = vst.msk [vmem:[#allocation3 + $0x20] sm:$0xff] %vm2941, %v4413
      %4505 = vst.msk [vmem:[#allocation3 + $0x28] sm:$0xff] %vm2941, %v4415
      %4506 = vst.msk [vmem:[#allocation3 + $0x30] sm:$0xff] %vm2941, %v4417
      %4507 = vst.msk [vmem:[#allocation3 + $0x38] sm:$0xff] %vm2941, %v4419
      %4508 = vst.msk [vmem:[#allocation3 + $0x40] sm:$0xff] %vm2941, %v4421
      %4509 = vst.msk [vmem:[#allocation3 + $0x48] sm:$0xff] %vm2941, %v4423
      %4510 = vst.msk [vmem:[#allocation3 + $0x50] sm:$0xff] %vm2941, %v4425
      %4511 = vst.msk [vmem:[#allocation3 + $0x58] sm:$0xff] %vm2941, %v4427
      %4512 = vst.msk [vmem:[#allocation3 + $0x60] sm:$0xff] %vm2941, %v4429
      %4513 = vst.msk [vmem:[#allocation3 + $0x68] sm:$0xff] %vm2941, %v4431
      %4514 = vst.msk [vmem:[#allocation3 + $0x70] sm:$0xff] %vm2941, %v4433
      %4515 = vst.msk [vmem:[#allocation3 + $0x78] sm:$0xff] %vm2941, %v4435
      %4516 = vst.msk [vmem:[#allocation3 + $0x80] sm:$0xff] %vm2941, %v4437
      %4517 = vst.msk [vmem:[#allocation3 + $0x88] sm:$0xff] %vm2941, %v4439
      %4518 = vst.msk [vmem:[#allocation3 + $0x90] sm:$0xff] %vm2941, %v4441
      %4519 = vst.msk [vmem:[#allocation3 + $0x98] sm:$0xff] %vm2941, %v4443
      %4520 = vst.msk [vmem:[#allocation3 + $0xa0] sm:$0xff] %vm2941, %v4445
      %4521 = vst.msk [vmem:[#allocation3 + $0xa8] sm:$0xff] %vm2941, %v4447
      %4522 = vst.msk [vmem:[#allocation3 + $0xb0] sm:$0xff] %vm2941, %v4449
      %4523 = vst.msk [vmem:[#allocation3 + $0xb8] sm:$0xff] %vm2941, %v4451
      %4524 = vst.msk [vmem:[#allocation3 + $0xc0] sm:$0xff] %vm2941, %v4453
      %4525 = vst.msk [vmem:[#allocation3 + $0xc8] sm:$0xff] %vm2941, %v4455
      %4526 = vst.msk [vmem:[#allocation3 + $0xd0] sm:$0xff] %vm2941, %v4457
      %4527 = vst.msk [vmem:[#allocation3 + $0xd8] sm:$0xff] %vm2941, %v4459
      %4528 = vst.msk [vmem:[#allocation3 + $0xe0] sm:$0xff] %vm2941, %v4461
      %4529 = vst.msk [vmem:[#allocation3 + $0xe8] sm:$0xff] %vm2941, %v4463
      %4530 = vst.msk [vmem:[#allocation3 + $0xf0] sm:$0xff] %vm2941, %v4465
      %4531 = vst.msk [vmem:[#allocation3 + $0xf8] sm:$0xff] %vm2941, %v4467
      %4564 = vrot.lane.b32.xlu0 %v4340, 80
      %v4565 = vpop.permute.xlu0 %4564
      %4566 = vrot.lane.b32.xlu0 %v4341, 80
      %v4567 = vpop.permute.xlu0 %4566
      %4568 = vrot.lane.b32.xlu0 %v4342, 80
      %v4569 = vpop.permute.xlu0 %4568
      %4570 = vrot.lane.b32.xlu0 %v4343, 80
      %v4571 = vpop.permute.xlu0 %4570
      %4572 = vrot.lane.b32.xlu0 %v4344, 80
      %v4573 = vpop.permute.xlu0 %4572
      %4574 = vrot.lane.b32.xlu0 %v4345, 80
      %v4575 = vpop.permute.xlu0 %4574
      %4576 = vrot.lane.b32.xlu0 %v4346, 80
      %v4577 = vpop.permute.xlu0 %4576
      %4578 = vrot.lane.b32.xlu0 %v4347, 80
      %v4579 = vpop.permute.xlu0 %4578
      %4580 = vrot.lane.b32.xlu0 %v4348, 80
      %v4581 = vpop.permute.xlu0 %4580
      %4582 = vrot.lane.b32.xlu0 %v4349, 80
      %v4583 = vpop.permute.xlu0 %4582
      %4584 = vrot.lane.b32.xlu0 %v4350, 80
      %v4585 = vpop.permute.xlu0 %4584
      %4586 = vrot.lane.b32.xlu0 %v4351, 80
      %v4587 = vpop.permute.xlu0 %4586
      %4588 = vrot.lane.b32.xlu0 %v4352, 80
      %v4589 = vpop.permute.xlu0 %4588
      %4590 = vrot.lane.b32.xlu0 %v4353, 80
      %v4591 = vpop.permute.xlu0 %4590
      %4592 = vrot.lane.b32.xlu0 %v4354, 80
      %v4593 = vpop.permute.xlu0 %4592
      %4594 = vrot.lane.b32.xlu0 %v4355, 80
      %v4595 = vpop.permute.xlu0 %4594
      %4596 = vrot.lane.b32.xlu0 %v4356, 80
      %v4597 = vpop.permute.xlu0 %4596
      %4598 = vrot.lane.b32.xlu0 %v4357, 80
      %v4599 = vpop.permute.xlu0 %4598
      %4600 = vrot.lane.b32.xlu0 %v4358, 80
      %v4601 = vpop.permute.xlu0 %4600
      %4602 = vrot.lane.b32.xlu0 %v4359, 80
      %v4603 = vpop.permute.xlu0 %4602
      %4604 = vrot.lane.b32.xlu0 %v4360, 80
      %v4605 = vpop.permute.xlu0 %4604
      %4606 = vrot.lane.b32.xlu0 %v4361, 80
      %v4607 = vpop.permute.xlu0 %4606
      %4608 = vrot.lane.b32.xlu0 %v4362, 80
      %v4609 = vpop.permute.xlu0 %4608
      %4610 = vrot.lane.b32.xlu0 %v4363, 80
      %v4611 = vpop.permute.xlu0 %4610
      %4612 = vrot.lane.b32.xlu0 %v4364, 80
      %v4613 = vpop.permute.xlu0 %4612
      %4614 = vrot.lane.b32.xlu0 %v4365, 80
      %v4615 = vpop.permute.xlu0 %4614
      %4616 = vrot.lane.b32.xlu0 %v4366, 80
      %v4617 = vpop.permute.xlu0 %4616
      %4618 = vrot.lane.b32.xlu0 %v4367, 80
      %v4619 = vpop.permute.xlu0 %4618
      %4620 = vrot.lane.b32.xlu0 %v4368, 80
      %v4621 = vpop.permute.xlu0 %4620
      %4622 = vrot.lane.b32.xlu0 %v4369, 80
      %v4623 = vpop.permute.xlu0 %4622
      %4624 = vrot.lane.b32.xlu0 %v4370, 80
      %v4625 = vpop.permute.xlu0 %4624
      %4626 = vrot.lane.b32.xlu0 %v4371, 80
      %v4627 = vpop.permute.xlu0 %4626
      %s4660 = scalar_lea.vmem [#allocation2], 24
      %4661 = vst.msk [vmem:[%s4660 + $0x1] sm:$0xff] %vm2941, %v4565
      %4662 = vst.msk [vmem:[%s4660 + $0x9] sm:$0xff] %vm2941, %v4567
      %4663 = vst.msk [vmem:[%s4660 + $0x19] sm:$0xff] %vm2941, %v4569
      %4664 = vst.msk [vmem:[%s4660 + $0x21] sm:$0xff] %vm2941, %v4571
      %4665 = vst.msk [vmem:[%s4660 + $0x31] sm:$0xff] %vm2941, %v4573
      %4666 = vst.msk [vmem:[%s4660 + $0x39] sm:$0xff] %vm2941, %v4575
      %4667 = vst.msk [vmem:[%s4660 + $0x49] sm:$0xff] %vm2941, %v4577
      %4668 = vst.msk [vmem:[%s4660 + $0x51] sm:$0xff] %vm2941, %v4579
      %4669 = vst.msk [vmem:[%s4660 + $0x61] sm:$0xff] %vm2941, %v4581
      %4670 = vst.msk [vmem:[%s4660 + $0x69] sm:$0xff] %vm2941, %v4583
      %4671 = vst.msk [vmem:[%s4660 + $0x79] sm:$0xff] %vm2941, %v4585
      %4672 = vst.msk [vmem:[%s4660 + $0x81] sm:$0xff] %vm2941, %v4587
      %4673 = vst.msk [vmem:[%s4660 + $0x91] sm:$0xff] %vm2941, %v4589
      %4674 = vst.msk [vmem:[%s4660 + $0x99] sm:$0xff] %vm2941, %v4591
      %4675 = vst.msk [vmem:[%s4660 + $0xa9] sm:$0xff] %vm2941, %v4593
      %4676 = vst.msk [vmem:[%s4660 + $0xb1] sm:$0xff] %vm2941, %v4595
      %4677 = vst.msk [vmem:[%s4660 + $0xc1] sm:$0xff] %vm2941, %v4597
      %4678 = vst.msk [vmem:[%s4660 + $0xc9] sm:$0xff] %vm2941, %v4599
      %4679 = vst.msk [vmem:[%s4660 + $0xd9] sm:$0xff] %vm2941, %v4601
      %4680 = vst.msk [vmem:[%s4660 + $0xe1] sm:$0xff] %vm2941, %v4603
      %4681 = vst.msk [vmem:[%s4660 + $0xf1] sm:$0xff] %vm2941, %v4605
      %4682 = vst.msk [vmem:[%s4660 + $0xf9] sm:$0xff] %vm2941, %v4607
      %4683 = vst.msk [vmem:[%s4660 + $0x109] sm:$0xff] %vm2941, %v4609
      %4684 = vst.msk [vmem:[%s4660 + $0x111] sm:$0xff] %vm2941, %v4611
      %4685 = vst.msk [vmem:[%s4660 + $0x121] sm:$0xff] %vm2941, %v4613
      %4686 = vst.msk [vmem:[%s4660 + $0x129] sm:$0xff] %vm2941, %v4615
      %4687 = vst.msk [vmem:[%s4660 + $0x139] sm:$0xff] %vm2941, %v4617
      %4688 = vst.msk [vmem:[%s4660 + $0x141] sm:$0xff] %vm2941, %v4619
      %4689 = vst.msk [vmem:[%s4660 + $0x151] sm:$0xff] %vm2941, %v4621
      %4690 = vst.msk [vmem:[%s4660 + $0x159] sm:$0xff] %vm2941, %v4623
      %4691 = vst.msk [vmem:[%s4660 + $0x169] sm:$0xff] %vm2941, %v4625
      %4692 = vst.msk [vmem:[%s4660 + $0x171] sm:$0xff] %vm2941, %v4627
      %v4693 = vld [vmem:[#allocation2] sm:$0xff]
      %v4694 = vld [vmem:[#allocation2 + $0x8] sm:$0xff]
      %v4695 = vld [vmem:[#allocation2 + $0x10] sm:$0x3]
      %v4696 = vld [vmem:[#allocation2 + $0x18] sm:$0xff]
      %v4697 = vld [vmem:[#allocation2 + $0x20] sm:$0xff]
      %v4698 = vld [vmem:[#allocation2 + $0x28] sm:$0x3]
      %v4699 = vld [vmem:[#allocation2 + $0x30] sm:$0xff]
      %v4700 = vld [vmem:[#allocation2 + $0x38] sm:$0xff]
      %v4701 = vld [vmem:[#allocation2 + $0x40] sm:$0x3]
      %v4702 = vld [vmem:[#allocation2 + $0x48] sm:$0xff]
      %v4703 = vld [vmem:[#allocation2 + $0x50] sm:$0xff]
      %v4704 = vld [vmem:[#allocation2 + $0x58] sm:$0x3]
      %v4705 = vld [vmem:[#allocation2 + $0x60] sm:$0xff]
      %v4706 = vld [vmem:[#allocation2 + $0x68] sm:$0xff]
      %v4707 = vld [vmem:[#allocation2 + $0x70] sm:$0x3]
      %v4708 = vld [vmem:[#allocation2 + $0x78] sm:$0xff]
      %v4709 = vld [vmem:[#allocation2 + $0x80] sm:$0xff]
      %v4710 = vld [vmem:[#allocation2 + $0x88] sm:$0x3]
      %v4711 = vld [vmem:[#allocation2 + $0x90] sm:$0xff]
      %v4712 = vld [vmem:[#allocation2 + $0x98] sm:$0xff]
      %v4713 = vld [vmem:[#allocation2 + $0xa0] sm:$0x3]
      %v4714 = vld [vmem:[#allocation2 + $0xa8] sm:$0xff]
      %v4715 = vld [vmem:[#allocation2 + $0xb0] sm:$0xff]
      %v4716 = vld [vmem:[#allocation2 + $0xb8] sm:$0x3]
      %v4717 = vld [vmem:[#allocation2 + $0xc0] sm:$0xff]
      %v4718 = vld [vmem:[#allocation2 + $0xc8] sm:$0xff]
      %v4719 = vld [vmem:[#allocation2 + $0xd0] sm:$0x3]
      %v4720 = vld [vmem:[#allocation2 + $0xd8] sm:$0xff]
      %v4721 = vld [vmem:[#allocation2 + $0xe0] sm:$0xff]
      %v4722 = vld [vmem:[#allocation2 + $0xe8] sm:$0x3]
      %v4723 = vld [vmem:[#allocation2 + $0xf0] sm:$0xff]
      %v4724 = vld [vmem:[#allocation2 + $0xf8] sm:$0xff]
      %v4725 = vld [vmem:[#allocation2 + $0x100] sm:$0x3]
      %v4726 = vld [vmem:[#allocation2 + $0x108] sm:$0xff]
      %v4727 = vld [vmem:[#allocation2 + $0x110] sm:$0xff]
      %v4728 = vld [vmem:[#allocation2 + $0x118] sm:$0x3]
      %v4729 = vld [vmem:[#allocation2 + $0x120] sm:$0xff]
      %v4730 = vld [vmem:[#allocation2 + $0x128] sm:$0xff]
      %v4731 = vld [vmem:[#allocation2 + $0x130] sm:$0x3]
      %v4732 = vld [vmem:[#allocation2 + $0x138] sm:$0xff]
      %v4733 = vld [vmem:[#allocation2 + $0x140] sm:$0xff]
      %v4734 = vld [vmem:[#allocation2 + $0x148] sm:$0x3]
      %v4735 = vld [vmem:[#allocation2 + $0x150] sm:$0xff]
      %v4736 = vld [vmem:[#allocation2 + $0x158] sm:$0xff]
      %v4737 = vld [vmem:[#allocation2 + $0x160] sm:$0x3]
      %v4738 = vld [vmem:[#allocation2 + $0x168] sm:$0xff]
      %v4739 = vld [vmem:[#allocation2 + $0x170] sm:$0xff]
      %v4740 = vld [vmem:[#allocation2 + $0x178] sm:$0x3]
      %v4741 = vld [vmem:[#allocation2 + $0x180] sm:$0xff]
      %v4742 = vld [vmem:[#allocation2 + $0x188] sm:$0xff]
      %v4743 = vld [vmem:[#allocation2 + $0x190] sm:$0x3]
      %v4744 = vld [vmem:[#allocation2 + $0x198] sm:$0xff]
      %v4745 = vld [vmem:[#allocation2 + $0x1a0] sm:$0xff]
      %v4746 = vld [vmem:[#allocation2 + $0x1a8] sm:$0x3]
      %4747 = vst.msk [vmem:[%s206] sm:$0xff] %vm2941, %v4693
      %4748 = vst.msk [vmem:[%s206 + $0x8] sm:$0xff] %vm2941, %v4694
      %vm4749 = vcmask 123904
      %4750 = vst.msk [vmem:[%s206 + $0x10] sm:$0x3] %vm4749, %v4695
      %4751 = vst.msk [vmem:[%s206 + $0x18] sm:$0xff] %vm2941, %v4696
      %4752 = vst.msk [vmem:[%s206 + $0x20] sm:$0xff] %vm2941, %v4697
      %4753 = vst.msk [vmem:[%s206 + $0x28] sm:$0x3] %vm4749, %v4698
      %4754 = vst.msk [vmem:[%s206 + $0x30] sm:$0xff] %vm2941, %v4699
      %4755 = vst.msk [vmem:[%s206 + $0x38] sm:$0xff] %vm2941, %v4700
      %4756 = vst.msk [vmem:[%s206 + $0x40] sm:$0x3] %vm4749, %v4701
      %4757 = vst.msk [vmem:[%s206 + $0x48] sm:$0xff] %vm2941, %v4702
      %4758 = vst.msk [vmem:[%s206 + $0x50] sm:$0xff] %vm2941, %v4703
      %4759 = vst.msk [vmem:[%s206 + $0x58] sm:$0x3] %vm4749, %v4704
      %4760 = vst.msk [vmem:[%s206 + $0x60] sm:$0xff] %vm2941, %v4705
      %4761 = vst.msk [vmem:[%s206 + $0x68] sm:$0xff] %vm2941, %v4706
      %4762 = vst.msk [vmem:[%s206 + $0x70] sm:$0x3] %vm4749, %v4707
      %4763 = vst.msk [vmem:[%s206 + $0x78] sm:$0xff] %vm2941, %v4708
      %4764 = vst.msk [vmem:[%s206 + $0x80] sm:$0xff] %vm2941, %v4709
      %4765 = vst.msk [vmem:[%s206 + $0x88] sm:$0x3] %vm4749, %v4710
      %4766 = vst.msk [vmem:[%s206 + $0x90] sm:$0xff] %vm2941, %v4711
      %4767 = vst.msk [vmem:[%s206 + $0x98] sm:$0xff] %vm2941, %v4712
      %4768 = vst.msk [vmem:[%s206 + $0xa0] sm:$0x3] %vm4749, %v4713
      %4769 = vst.msk [vmem:[%s206 + $0xa8] sm:$0xff] %vm2941, %v4714
      %4770 = vst.msk [vmem:[%s206 + $0xb0] sm:$0xff] %vm2941, %v4715
      %4771 = vst.msk [vmem:[%s206 + $0xb8] sm:$0x3] %vm4749, %v4716
      %4772 = vst.msk [vmem:[%s206 + $0xc0] sm:$0xff] %vm2941, %v4717
      %4773 = vst.msk [vmem:[%s206 + $0xc8] sm:$0xff] %vm2941, %v4718
      %4774 = vst.msk [vmem:[%s206 + $0xd0] sm:$0x3] %vm4749, %v4719
      %4775 = vst.msk [vmem:[%s206 + $0xd8] sm:$0xff] %vm2941, %v4720
      %4776 = vst.msk [vmem:[%s206 + $0xe0] sm:$0xff] %vm2941, %v4721
      %4777 = vst.msk [vmem:[%s206 + $0xe8] sm:$0x3] %vm4749, %v4722
      %4778 = vst.msk [vmem:[%s206 + $0xf0] sm:$0xff] %vm2941, %v4723
      %4779 = vst.msk [vmem:[%s206 + $0xf8] sm:$0xff] %vm2941, %v4724
      %4780 = vst.msk [vmem:[%s206 + $0x100] sm:$0x3] %vm4749, %v4725
      %4781 = vst.msk [vmem:[%s206 + $0x108] sm:$0xff] %vm2941, %v4726
      %4782 = vst.msk [vmem:[%s206 + $0x110] sm:$0xff] %vm2941, %v4727
      %4783 = vst.msk [vmem:[%s206 + $0x118] sm:$0x3] %vm4749, %v4728
      %4784 = vst.msk [vmem:[%s206 + $0x120] sm:$0xff] %vm2941, %v4729
      %4785 = vst.msk [vmem:[%s206 + $0x128] sm:$0xff] %vm2941, %v4730
      %4786 = vst.msk [vmem:[%s206 + $0x130] sm:$0x3] %vm4749, %v4731
      %4787 = vst.msk [vmem:[%s206 + $0x138] sm:$0xff] %vm2941, %v4732
      %4788 = vst.msk [vmem:[%s206 + $0x140] sm:$0xff] %vm2941, %v4733
      %4789 = vst.msk [vmem:[%s206 + $0x148] sm:$0x3] %vm4749, %v4734
      %4790 = vst.msk [vmem:[%s206 + $0x150] sm:$0xff] %vm2941, %v4735
      %4791 = vst.msk [vmem:[%s206 + $0x158] sm:$0xff] %vm2941, %v4736
      %4792 = vst.msk [vmem:[%s206 + $0x160] sm:$0x3] %vm4749, %v4737
      %4793 = vst.msk [vmem:[%s206 + $0x168] sm:$0xff] %vm2941, %v4738
      %4794 = vst.msk [vmem:[%s206 + $0x170] sm:$0xff] %vm2941, %v4739
      %4795 = vst.msk [vmem:[%s206 + $0x178] sm:$0x3] %vm4749, %v4740
      %4796 = vst.msk [vmem:[%s206 + $0x180] sm:$0xff] %vm2941, %v4741
      %4797 = vst.msk [vmem:[%s206 + $0x188] sm:$0xff] %vm2941, %v4742
      %4798 = vst.msk [vmem:[%s206 + $0x190] sm:$0x3] %vm4749, %v4743
      %4799 = vst.msk [vmem:[%s206 + $0x198] sm:$0xff] %vm2941, %v4744
      %4800 = vst.msk [vmem:[%s206 + $0x1a0] sm:$0xff] %vm2941, %v4745
      %4801 = vst.msk [vmem:[%s206 + $0x1a8] sm:$0x3] %vm4749, %v4746
      %p4802 = scmp.lt.s32.totalorder %s19, 3
      %s4803 = scalar_select %p4802, %s19, 3
      %p4804 = scmp.lt.s32.totalorder %s18, 1
      %s4805 = scalar_select %p4804, %s18, 1
      %s4806 = smul.addr %s4805, 54
      %s4807 = smul.addr %s4803, 108
      %s4808 = sadd.s32 %s4806, %s4807
      %s4809 = smul.addr %s4808, 8
      %s4810 = scalar_lea.vmem %s3, %s4809
      // Predicated region
      $region37: #{_lambda_.3} parent=31 // pred_check
        %p4811 = pneg %p116
      $region38: #{_lambda_.3} parent=31 // pred_check_branch
        %4813 = sbr.rel (%p4811) target = $region40
      $region39: #{_lambda_.3} parent=31 // pred_region
        _
      $region40: #{_lambda_.3} parent=31 // pred_fallthru
        _
    $region32: #{_lambda_.3} parent=5 // pred_fallthru
      _
    %p4814 = scmp.le.s32.totalorder 2, %s9
    // Predicated region
    $region41: #{_lambda_.3} parent=5 // pred_check
      %p4815 = pneg %p4814
    $region42: #{_lambda_.3} parent=5 // pred_check_branch
      %4817 = sbr.rel (%p4815) target = $region44
    $region43: #{_lambda_.3} parent=5 // pred_region
      %s4818 = ssub.s32 %s9, 2
      // Predicated region
      $region45: #{_lambda_.3} parent=43 // pred_check
        %p4819 = pneg %p122
      $region46: #{_lambda_.3} parent=43 // pred_check_branch
        %4821 = sbr.rel (%p4819) target = $region48
      $region47: #{_lambda_.3} parent=43 // pred_region
        %p4822 = scmp.lt.s32.totalorder %s21, 3
        %s4823 = scalar_select %p4822, %s21, 3
        %p4824 = scmp.lt.s32.totalorder %s20, 1
        %s4825 = scalar_select %p4824, %s20, 1
        %s4826 = smul.addr %s4825, 54
        %s4827 = smul.addr %s4823, 108
        %s4828 = sadd.s32 %s4826, %s4827
        %s4829 = smul.addr %s4828, 8
        %s4830 = scalar_lea.vmem %s3, %s4829
      $region48: #{_lambda_.3} parent=43 // pred_fallthru
        _
    $region44: #{_lambda_.3} parent=5 // pred_fallthru
      _
  $region6: #{_lambda_.3} parent=0 // loop_footer
    %s13 = sadd.s32 1, %s9
  $region7: #{_lambda_.3} parent=0 // loop_footer_branch
    %8 = sbr.rel target = $region3
  $region8: #{_lambda_.3} parent=0 // loop_exit
    _

// kernel: _lambda_.4
$region0: #{_lambda_.4}
  #allocation0 [shape = 'u32[]', space=smem, size = 0x4, offset = 0x4, fixed_abs, tag = 'smem constant byte address 0x4 - core index']
  #allocation1 [shape = 'u32[144,128]{1,0:T(1,128)}', space=vmem, size = 0x12000, scoped, tag = 'internal scratch']
  #allocation2 [shape = 'f32[18,18,32]{2,1,0:T(8,128)}', space=vmem, size = 0x36000, scoped, tag = 'scratch operand']
  #allocation3 [shape = 'f32[256,32]{1,0:T(8,128)}', space=vmem, size = 0x20000, scoped, tag = 'scratch operand']
  %s0 = inlined_call_operand.vmem [shape: f32[4,2,18,18,16], index: 0, kind: input, shape index: {}]
  %s1 = inlined_call_operand.vmem [shape: bf16[432,128], index: 1, kind: input, shape index: {}]
  %s2 = inlined_call_operand.vmem [shape: f32[1,128], index: 2, kind: input, shape index: {}]
  %s3 = inlined_call_operand.vmem [shape: f32[4,2,18,18,32], index: 3, kind: output, shape index: {}]
  %s4 = sld [smem:[#allocation0]]
  $region49: #{_lambda_.4} parent=0
    _
  %s6 = ssub.s32 1, %s4
  %s7 = scalar_select 0, %s6, %s4
  loop: start=0, step=1, limit=10
  $region2: #{_lambda_.4} parent=0 // loop_pre_header
    _
  $region3: #{_lambda_.4} parent=0 // loop_header
    %s9 = sphi 0, %s13
    %p10 = scmp.ge.s32.totalorder %s9, 10
    %s16 = sphi 0, %s28
    %s17 = sphi 0, %s24
    %s18 = sphi 0, %s16
    %s19 = sphi 0, %s17
    %s20 = sphi 0, %s18
    %s21 = sphi 0, %s19
    %s33 = sphi 0, %s35
    %s36 = sphi 0, %s33
    %s37 = sphi 0, %s36
    %s53 = sphi 0, %s37
    %s57 = sphi 0, %s57
    %s59 = sphi 0, %s57
    %s60 = sphi 0, %s59
    %s74 = sphi 0, %s60
    %s78 = sphi 0, %s78
    %s80 = sphi 0, %s78
    %s81 = sphi 0, %s80
    %s95 = sphi 0, %s81
    %s103 = sphi 0, %s105
    %s106 = sphi 0, %s103
    %s107 = sphi 0, %s106
    %s123 = sphi 0, %s107
  $region4: #{_lambda_.4} parent=0 // loop_header_branch
    %12 = sbr.rel (%p10) target = $region8
  $region5: #{_lambda_.4} parent=0 // loop_body
    %s14 = ssub.s32 %s9, 1
    %s15 = ssub.s32 %s9, 2
    %s22 = sadd.s32 1, %s17
    %p23 = scmp.ge.s32.totalorder %s22, 4
    %s24 = scalar_select %p23, 0, %s22
    %s25 = sadd.s32 1, %s16
    %s26 = scalar_select %p23, %s25, %s16
    %p27 = scmp.ge.s32.totalorder %s26, 2
    %s28 = scalar_select %p27, 0, %s26
    %s29 = ssub.s32 %s17, %s24
    %s30 = ssub.s32 %s16, %s28
    %s31 = sor.u32 %s29, %s30
    %p32 = scmp.eq.s32.totalorder %s31, 0
    %s34 = sadd.s32 %s33, 1
    %s35 = scalar_select %p32, %s33, %s34
    %p38 = pneg %p32
    %p39 = scmp.eq.s32.totalorder %s9, 7
    %p40 = por %p38, %p39
    %p41 = scmp.ne.s32.totalorder %s33, %s36
    %p42 = scmp.eq.s32.totalorder %s9, 0
    %p43 = por %p41, %p42
    %p44 = scmp.ne.s32.totalorder %s33, %s36
    %p45 = scmp.eq.s32.totalorder %s14, 7
    %p46 = por %p44, %p45
    %p47 = scmp.ne.s32.totalorder %s36, %s37
    %p48 = scmp.eq.s32.totalorder %s14, 0
    %p49 = por %p47, %p48
    %p50 = scmp.ne.s32.totalorder %s36, %s37
    %p51 = scmp.eq.s32.totalorder %s15, 7
    %p52 = por %p50, %p51
    %p54 = scmp.ne.s32.totalorder %s37, %s53
    %p55 = scmp.eq.s32.totalorder %s15, 0
    %p56 = por %p54, %p55
    %s58 = sadd.s32 %s57, 1
    %p61 = scmp.eq.s32.totalorder %s9, 7
    %p62 = scmp.ne.s32.totalorder %s57, %s59
    %p63 = scmp.eq.s32.totalorder %s9, 0
    %p64 = por %p62, %p63
    %p65 = scmp.ne.s32.totalorder %s57, %s59
    %p66 = scmp.eq.s32.totalorder %s14, 7
    %p67 = por %p65, %p66
    %p68 = scmp.ne.s32.totalorder %s59, %s60
    %p69 = scmp.eq.s32.totalorder %s14, 0
    %p70 = por %p68, %p69
    %p71 = scmp.ne.s32.totalorder %s59, %s60
    %p72 = scmp.eq.s32.totalorder %s15, 7
    %p73 = por %p71, %p72
    %p75 = scmp.ne.s32.totalorder %s60, %s74
    %p76 = scmp.eq.s32.totalorder %s15, 0
    %p77 = por %p75, %p76
    %s79 = sadd.s32 %s78, 1
    %p82 = scmp.eq.s32.totalorder %s9, 7
    %p83 = scmp.ne.s32.totalorder %s78, %s80
    %p84 = scmp.eq.s32.totalorder %s9, 0
    %p85 = por %p83, %p84
    %p86 = scmp.ne.s32.totalorder %s78, %s80
    %p87 = scmp.eq.s32.totalorder %s14, 7
    %p88 = por %p86, %p87
    %p89 = scmp.ne.s32.totalorder %s80, %s81
    %p90 = scmp.eq.s32.totalorder %s14, 0
    %p91 = por %p89, %p90
    %p92 = scmp.ne.s32.totalorder %s80, %s81
    %p93 = scmp.eq.s32.totalorder %s15, 7
    %p94 = por %p92, %p93
    %p96 = scmp.ne.s32.totalorder %s81, %s95
    %p97 = scmp.eq.s32.totalorder %s15, 0
    %p98 = por %p96, %p97
    %s99 = ssub.s32 %s17, %s24
    %s100 = ssub.s32 %s16, %s28
    %s101 = sor.u32 %s99, %s100
    %p102 = scmp.eq.s32.totalorder %s101, 0
    %s104 = sadd.s32 %s103, 1
    %s105 = scalar_select %p102, %s103, %s104
    %p108 = pneg %p102
    %p109 = scmp.eq.s32.totalorder %s9, 7
    %p110 = por %p108, %p109
    %p111 = scmp.ne.s32.totalorder %s103, %s106
    %p112 = scmp.eq.s32.totalorder %s9, 0
    %p113 = por %p111, %p112
    %p114 = scmp.ne.s32.totalorder %s103, %s106
    %p115 = scmp.eq.s32.totalorder %s14, 7
    %p116 = por %p114, %p115
    %p117 = scmp.ne.s32.totalorder %s106, %s107
    %p118 = scmp.eq.s32.totalorder %s14, 0
    %p119 = por %p117, %p118
    %p120 = scmp.ne.s32.totalorder %s106, %s107
    %p121 = scmp.eq.s32.totalorder %s15, 7
    %p122 = por %p120, %p121
    %p124 = scmp.ne.s32.totalorder %s107, %s123
    %p125 = scmp.eq.s32.totalorder %s15, 0
    %p126 = por %p124, %p125
    %p127 = scmp.le.s32.totalorder 1, %s9
    %p128 = scmp.lt.s32.totalorder %s9, 9
    %p129 = pnand %p127, %p128
    %p130 = pneg %p129
    // Predicated region
    $region9: #{_lambda_.4} parent=5 // pred_check
      _
    $region10: #{_lambda_.4} parent=5 // pred_check_branch
      %132 = sbr.rel (%p129) target = $region12
    $region11: #{_lambda_.4} parent=5 // pred_region
      %s133 = ssub.s32 %s9, 1
      // Predicated region
      $region13: #{_lambda_.4} parent=11 // pred_check
        %p134 = pneg %p70
      $region14: #{_lambda_.4} parent=11 // pred_check_branch
        %136 = sbr.rel (%p134) target = $region16
      $region15: #{_lambda_.4} parent=11 // pred_region
        _
      $region16: #{_lambda_.4} parent=11 // pred_fallthru
        _
      // Predicated region
      $region17: #{_lambda_.4} parent=11 // pred_check
        %p137 = pneg %p91
      $region18: #{_lambda_.4} parent=11 // pred_check_branch
        %139 = sbr.rel (%p137) target = $region20
      $region19: #{_lambda_.4} parent=11 // pred_region
        _
      $region20: #{_lambda_.4} parent=11 // pred_fallthru
        _
    $region12: #{_lambda_.4} parent=5 // pred_fallthru
      _
    %p140 = scmp.lt.s32.totalorder %s9, 8
    // Predicated region
    $region21: #{_lambda_.4} parent=5 // pred_check
      %p141 = pneg %p140
    $region22: #{_lambda_.4} parent=5 // pred_check_branch
      %143 = sbr.rel (%p141) target = $region24
    $region23: #{_lambda_.4} parent=5 // pred_region
      // Predicated region
      $region25: #{_lambda_.4} parent=23 // pred_check
        %p144 = pneg %p43
      $region26: #{_lambda_.4} parent=23 // pred_check_branch
        %146 = sbr.rel (%p144) target = $region28
      $region27: #{_lambda_.4} parent=23 // pred_region
        %p147 = scmp.lt.s32.totalorder %s17, 3
        %s148 = scalar_select %p147, %s17, 3
        %p149 = scmp.lt.s32.totalorder %s16, 1
        %s150 = scalar_select %p149, %s16, 1
        %s151 = smul.addr %s150, 54
        %s152 = smul.addr %s148, 108
        %s153 = sadd.s32 %s151, %s152
        %s154 = smul.addr %s153, 8
        %s155 = scalar_lea.vmem %s0, %s154
      $region28: #{_lambda_.4} parent=23 // pred_fallthru
        _
    $region24: #{_lambda_.4} parent=5 // pred_fallthru
      _
    %p156 = scmp.le.s32.totalorder 1, %s9
    %p157 = scmp.lt.s32.totalorder %s9, 9
    %p158 = pnand %p156, %p157
    %p159 = pneg %p158
    // Predicated region
    $region29: #{_lambda_.4} parent=5 // pred_check
      _
    $region30: #{_lambda_.4} parent=5 // pred_check_branch
      %161 = sbr.rel (%p158) target = $region32
    $region31: #{_lambda_.4} parent=5 // pred_region
      %s162 = ssub.s32 %s9, 1
      %p163 = scmp.lt.s32.totalorder %s19, 3
      %s164 = scalar_select %p163, %s19, 3
      %p165 = scmp.lt.s32.totalorder %s18, 1
      %s166 = scalar_select %p165, %s18, 1
      %s167 = smul.addr %s166, 54
      %s168 = smul.addr %s164, 108
      %s169 = sadd.s32 %s167, %s168
      %s170 = smul.addr %s169, 8
      %s171 = scalar_lea.vmem %s0, %s170
      %p172 = pneg %p49
      %p173 = pneg %p46
      %p174 = pneg %p70
      %p175 = pneg %p67
      %p176 = pneg %p91
      %p177 = pneg %p88
      %p178 = pneg %p119
      %p179 = pneg %p116
      %p180 = scmp.lt.s32.totalorder %s19, 3
      %s181 = scalar_select %p180, %s19, 3
      %p182 = scmp.lt.s32.totalorder %s18, 1
      %s183 = scalar_select %p182, %s18, 1
      %s184 = smul.addr %s183, 54
      %s185 = smul.addr %s181, 108
      %s186 = sadd.s32 %s184, %s185
      %s187 = smul.addr %s186, 8
      %s188 = scalar_lea.vmem %s3, %s187
      %p189 = scmp.lt.s32.totalorder %s19, 3
      %s190 = scalar_select %p189, %s19, 3
      %p191 = scmp.lt.s32.totalorder %s18, 1
      %s192 = scalar_select %p191, %s18, 1
      %s193 = smul.addr %s192, 54
      %s194 = smul.addr %s190, 108
      %s195 = sadd.s32 %s193, %s194
      %s196 = smul.addr %s195, 8
      %s197 = scalar_lea.vmem %s0, %s196
      %p198 = scmp.lt.s32.totalorder %s19, 3
      %s199 = scalar_select %p198, %s19, 3
      %p200 = scmp.lt.s32.totalorder %s18, 1
      %s201 = scalar_select %p200, %s18, 1
      %s202 = smul.addr %s201, 54
      %s203 = smul.addr %s199, 108
      %s204 = sadd.s32 %s202, %s203
      %s205 = smul.addr %s204, 8
      %s206 = scalar_lea.vmem %s3, %s205
      %p208 = scmp.eq.s32.totalorder %s19, 0
      // Predicated region
      $region33: #{_lambda_.4} parent=31 // pred_check
        %p209 = pneg %p208
      $region34: #{_lambda_.4} parent=31 // pred_check_branch
        %211 = sbr.rel (%p209) target = $region36
      $region35: #{_lambda_.4} parent=31 // pred_region
        %vm212 = vcmask 261120
        %213 = vst.msk [vmem:[#allocation2] sm:$0xff] %vm212, 0.0
        %214 = vst.msk [vmem:[#allocation2 + $0x8] sm:$0xff] %vm212, 0.0
        %vm215 = vcmask 254976
        %216 = vst.msk [vmem:[#allocation2 + $0x10] sm:$0x3] %vm215, 0.0
        %217 = vst.msk [vmem:[#allocation2 + $0x18] sm:$0xff] %vm212, 0.0
        %218 = vst.msk [vmem:[#allocation2 + $0x20] sm:$0xff] %vm212, 0.0
        %219 = vst.msk [vmem:[#allocation2 + $0x28] sm:$0x3] %vm215, 0.0
        %220 = vst.msk [vmem:[#allocation2 + $0x30] sm:$0xff] %vm212, 0.0
        %221 = vst.msk [vmem:[#allocation2 + $0x38] sm:$0xff] %vm212, 0.0
        %222 = vst.msk [vmem:[#allocation2 + $0x40] sm:$0x3] %vm215, 0.0
        %223 = vst.msk [vmem:[#allocation2 + $0x48] sm:$0xff] %vm212, 0.0
        %224 = vst.msk [vmem:[#allocation2 + $0x50] sm:$0xff] %vm212, 0.0
        %225 = vst.msk [vmem:[#allocation2 + $0x58] sm:$0x3] %vm215, 0.0
        %226 = vst.msk [vmem:[#allocation2 + $0x60] sm:$0xff] %vm212, 0.0
        %227 = vst.msk [vmem:[#allocation2 + $0x68] sm:$0xff] %vm212, 0.0
        %228 = vst.msk [vmem:[#allocation2 + $0x70] sm:$0x3] %vm215, 0.0
        %229 = vst.msk [vmem:[#allocation2 + $0x78] sm:$0xff] %vm212, 0.0
        %230 = vst.msk [vmem:[#allocation2 + $0x80] sm:$0xff] %vm212, 0.0
        %231 = vst.msk [vmem:[#allocation2 + $0x88] sm:$0x3] %vm215, 0.0
        %232 = vst.msk [vmem:[#allocation2 + $0x90] sm:$0xff] %vm212, 0.0
        %233 = vst.msk [vmem:[#allocation2 + $0x98] sm:$0xff] %vm212, 0.0
        %234 = vst.msk [vmem:[#allocation2 + $0xa0] sm:$0x3] %vm215, 0.0
        %235 = vst.msk [vmem:[#allocation2 + $0xa8] sm:$0xff] %vm212, 0.0
        %236 = vst.msk [vmem:[#allocation2 + $0xb0] sm:$0xff] %vm212, 0.0
        %237 = vst.msk [vmem:[#allocation2 + $0xb8] sm:$0x3] %vm215, 0.0
        %238 = vst.msk [vmem:[#allocation2 + $0xc0] sm:$0xff] %vm212, 0.0
        %239 = vst.msk [vmem:[#allocation2 + $0xc8] sm:$0xff] %vm212, 0.0
        %240 = vst.msk [vmem:[#allocation2 + $0xd0] sm:$0x3] %vm215, 0.0
        %241 = vst.msk [vmem:[#allocation2 + $0xd8] sm:$0xff] %vm212, 0.0
        %242 = vst.msk [vmem:[#allocation2 + $0xe0] sm:$0xff] %vm212, 0.0
        %243 = vst.msk [vmem:[#allocation2 + $0xe8] sm:$0x3] %vm215, 0.0
        %244 = vst.msk [vmem:[#allocation2 + $0xf0] sm:$0xff] %vm212, 0.0
        %245 = vst.msk [vmem:[#allocation2 + $0xf8] sm:$0xff] %vm212, 0.0
        %246 = vst.msk [vmem:[#allocation2 + $0x100] sm:$0x3] %vm215, 0.0
        %247 = vst.msk [vmem:[#allocation2 + $0x108] sm:$0xff] %vm212, 0.0
        %248 = vst.msk [vmem:[#allocation2 + $0x110] sm:$0xff] %vm212, 0.0
        %249 = vst.msk [vmem:[#allocation2 + $0x118] sm:$0x3] %vm215, 0.0
        %250 = vst.msk [vmem:[#allocation2 + $0x120] sm:$0xff] %vm212, 0.0
        %251 = vst.msk [vmem:[#allocation2 + $0x128] sm:$0xff] %vm212, 0.0
        %252 = vst.msk [vmem:[#allocation2 + $0x130] sm:$0x3] %vm215, 0.0
        %253 = vst.msk [vmem:[#allocation2 + $0x138] sm:$0xff] %vm212, 0.0
        %254 = vst.msk [vmem:[#allocation2 + $0x140] sm:$0xff] %vm212, 0.0
        %255 = vst.msk [vmem:[#allocation2 + $0x148] sm:$0x3] %vm215, 0.0
        %256 = vst.msk [vmem:[#allocation2 + $0x150] sm:$0xff] %vm212, 0.0
        %257 = vst.msk [vmem:[#allocation2 + $0x158] sm:$0xff] %vm212, 0.0
        %258 = vst.msk [vmem:[#allocation2 + $0x160] sm:$0x3] %vm215, 0.0
        %259 = vst.msk [vmem:[#allocation2 + $0x168] sm:$0xff] %vm212, 0.0
        %260 = vst.msk [vmem:[#allocation2 + $0x170] sm:$0xff] %vm212, 0.0
        %261 = vst.msk [vmem:[#allocation2 + $0x178] sm:$0x3] %vm215, 0.0
        %262 = vst.msk [vmem:[#allocation2 + $0x180] sm:$0xff] %vm212, 0.0
        %263 = vst.msk [vmem:[#allocation2 + $0x188] sm:$0xff] %vm212, 0.0
        %264 = vst.msk [vmem:[#allocation2 + $0x190] sm:$0x3] %vm215, 0.0
        %265 = vst.msk [vmem:[#allocation2 + $0x198] sm:$0xff] %vm212, 0.0
        %266 = vst.msk [vmem:[#allocation2 + $0x1a0] sm:$0xff] %vm212, 0.0
        %267 = vst.msk [vmem:[#allocation2 + $0x1a8] sm:$0x3] %vm215, 0.0
        %268 = vst.msk [vmem:[#allocation3] sm:$0xff] %vm212, 0.0
        %269 = vst.msk [vmem:[#allocation3 + $0x8] sm:$0xff] %vm212, 0.0
        %270 = vst.msk [vmem:[#allocation3 + $0x10] sm:$0xff] %vm212, 0.0
        %271 = vst.msk [vmem:[#allocation3 + $0x18] sm:$0xff] %vm212, 0.0
        %272 = vst.msk [vmem:[#allocation3 + $0x20] sm:$0xff] %vm212, 0.0
        %273 = vst.msk [vmem:[#allocation3 + $0x28] sm:$0xff] %vm212, 0.0
        %274 = vst.msk [vmem:[#allocation3 + $0x30] sm:$0xff] %vm212, 0.0
        %275 = vst.msk [vmem:[#allocation3 + $0x38] sm:$0xff] %vm212, 0.0
        %276 = vst.msk [vmem:[#allocation3 + $0x40] sm:$0xff] %vm212, 0.0
        %277 = vst.msk [vmem:[#allocation3 + $0x48] sm:$0xff] %vm212, 0.0
        %278 = vst.msk [vmem:[#allocation3 + $0x50] sm:$0xff] %vm212, 0.0
        %279 = vst.msk [vmem:[#allocation3 + $0x58] sm:$0xff] %vm212, 0.0
        %280 = vst.msk [vmem:[#allocation3 + $0x60] sm:$0xff] %vm212, 0.0
        %281 = vst.msk [vmem:[#allocation3 + $0x68] sm:$0xff] %vm212, 0.0
        %282 = vst.msk [vmem:[#allocation3 + $0x70] sm:$0xff] %vm212, 0.0
        %283 = vst.msk [vmem:[#allocation3 + $0x78] sm:$0xff] %vm212, 0.0
        %284 = vst.msk [vmem:[#allocation3 + $0x80] sm:$0xff] %vm212, 0.0
        %285 = vst.msk [vmem:[#allocation3 + $0x88] sm:$0xff] %vm212, 0.0
        %286 = vst.msk [vmem:[#allocation3 + $0x90] sm:$0xff] %vm212, 0.0
        %287 = vst.msk [vmem:[#allocation3 + $0x98] sm:$0xff] %vm212, 0.0
        %288 = vst.msk [vmem:[#allocation3 + $0xa0] sm:$0xff] %vm212, 0.0
        %289 = vst.msk [vmem:[#allocation3 + $0xa8] sm:$0xff] %vm212, 0.0
        %290 = vst.msk [vmem:[#allocation3 + $0xb0] sm:$0xff] %vm212, 0.0
        %291 = vst.msk [vmem:[#allocation3 + $0xb8] sm:$0xff] %vm212, 0.0
        %292 = vst.msk [vmem:[#allocation3 + $0xc0] sm:$0xff] %vm212, 0.0
        %293 = vst.msk [vmem:[#allocation3 + $0xc8] sm:$0xff] %vm212, 0.0
        %294 = vst.msk [vmem:[#allocation3 + $0xd0] sm:$0xff] %vm212, 0.0
        %295 = vst.msk [vmem:[#allocation3 + $0xd8] sm:$0xff] %vm212, 0.0
        %296 = vst.msk [vmem:[#allocation3 + $0xe0] sm:$0xff] %vm212, 0.0
        %297 = vst.msk [vmem:[#allocation3 + $0xe8] sm:$0xff] %vm212, 0.0
        %298 = vst.msk [vmem:[#allocation3 + $0xf0] sm:$0xff] %vm212, 0.0
        %299 = vst.msk [vmem:[#allocation3 + $0xf8] sm:$0xff] %vm212, 0.0
      $region36: #{_lambda_.4} parent=31 // pred_fallthru
        _
      %v300 = vld [vmem:[%s197] sm:$0xff]
      %v301 = vld [vmem:[%s197 + $0x8] sm:$0xff]
      %v302 = vld [vmem:[%s197 + $0x10] sm:$0x3]
      %v303 = vld [vmem:[%s197 + $0x18] sm:$0xff]
      %v304 = vld [vmem:[%s197 + $0x20] sm:$0xff]
      %v305 = vld [vmem:[%s197 + $0x28] sm:$0x3]
      %v306 = vld [vmem:[%s197 + $0x30] sm:$0xff]
      %v307 = vld [vmem:[%s197 + $0x38] sm:$0xff]
      %v308 = vld [vmem:[%s197 + $0x40] sm:$0x3]
      %v309 = vld [vmem:[%s197 + $0x48] sm:$0xff]
      %v310 = vld [vmem:[%s197 + $0x50] sm:$0xff]
      %v311 = vld [vmem:[%s197 + $0x58] sm:$0x3]
      %v312 = vld [vmem:[%s197 + $0x60] sm:$0xff]
      %v313 = vld [vmem:[%s197 + $0x68] sm:$0xff]
      %v314 = vld [vmem:[%s197 + $0x70] sm:$0x3]
      %v315 = vld [vmem:[%s197 + $0x78] sm:$0xff]
      %v316 = vld [vmem:[%s197 + $0x80] sm:$0xff]
      %v317 = vld [vmem:[%s197 + $0x88] sm:$0x3]
      %v318 = vld [vmem:[%s197 + $0x90] sm:$0xff]
      %v319 = vld [vmem:[%s197 + $0x98] sm:$0xff]
      %v320 = vld [vmem:[%s197 + $0xa0] sm:$0x3]
      %v321 = vld [vmem:[%s197 + $0xa8] sm:$0xff]
      %v322 = vld [vmem:[%s197 + $0xb0] sm:$0xff]
      %v323 = vld [vmem:[%s197 + $0xb8] sm:$0x3]
      %v324 = vld [vmem:[%s197 + $0xc0] sm:$0xff]
      %v325 = vld [vmem:[%s197 + $0xc8] sm:$0xff]
      %v326 = vld [vmem:[%s197 + $0xd0] sm:$0x3]
      %v327 = vld [vmem:[%s197 + $0xd8] sm:$0xff]
      %v328 = vld [vmem:[%s197 + $0xe0] sm:$0xff]
      %v329 = vld [vmem:[%s197 + $0xe8] sm:$0x3]
      %v330 = vld [vmem:[%s197 + $0xf0] sm:$0xff]
      %v331 = vld [vmem:[%s197 + $0xf8] sm:$0xff]
      %v332 = vld [vmem:[%s197 + $0x100] sm:$0x3]
      %v333 = vld [vmem:[%s197 + $0x108] sm:$0xff]
      %v334 = vld [vmem:[%s197 + $0x110] sm:$0xff]
      %v335 = vld [vmem:[%s197 + $0x118] sm:$0x3]
      %v336 = vld [vmem:[%s197 + $0x120] sm:$0xff]
      %v337 = vld [vmem:[%s197 + $0x128] sm:$0xff]
      %v338 = vld [vmem:[%s197 + $0x130] sm:$0x3]
      %v339 = vld [vmem:[%s197 + $0x138] sm:$0xff]
      %v340 = vld [vmem:[%s197 + $0x140] sm:$0xff]
      %v341 = vld [vmem:[%s197 + $0x148] sm:$0x3]
      %v342 = vld [vmem:[%s197 + $0x150] sm:$0xff]
      %v343 = vld [vmem:[%s197 + $0x158] sm:$0xff]
      %v344 = vld [vmem:[%s197 + $0x160] sm:$0x3]
      %v345 = vld [vmem:[%s197 + $0x168] sm:$0xff]
      %v346 = vld [vmem:[%s197 + $0x170] sm:$0xff]
      %v347 = vld [vmem:[%s197 + $0x178] sm:$0x3]
      %v348 = vld [vmem:[%s197 + $0x180] sm:$0xff]
      %v349 = vld [vmem:[%s197 + $0x188] sm:$0xff]
      %v350 = vld [vmem:[%s197 + $0x190] sm:$0x3]
      %v351 = vld [vmem:[%s197 + $0x198] sm:$0xff]
      %v352 = vld [vmem:[%s197 + $0x1a0] sm:$0xff]
      %v353 = vld [vmem:[%s197 + $0x1a8] sm:$0x3]
      %v354 = vld [vmem:[#allocation2] sm:$0xff]
      %v355 = vld [vmem:[#allocation2 + $0x8] sm:$0xff]
      %v356 = vld [vmem:[#allocation2 + $0x10] sm:$0x3]
      %v357 = vld [vmem:[#allocation2 + $0x18] sm:$0xff]
      %v358 = vld [vmem:[#allocation2 + $0x20] sm:$0xff]
      %v359 = vld [vmem:[#allocation2 + $0x28] sm:$0x3]
      %v360 = vld [vmem:[#allocation2 + $0x30] sm:$0xff]
      %v361 = vld [vmem:[#allocation2 + $0x38] sm:$0xff]
      %v362 = vld [vmem:[#allocation2 + $0x40] sm:$0x3]
      %v363 = vld [vmem:[#allocation2 + $0x48] sm:$0xff]
      %v364 = vld [vmem:[#allocation2 + $0x50] sm:$0xff]
      %v365 = vld [vmem:[#allocation2 + $0x58] sm:$0x3]
      %v366 = vld [vmem:[#allocation2 + $0x60] sm:$0xff]
      %v367 = vld [vmem:[#allocation2 + $0x68] sm:$0xff]
      %v368 = vld [vmem:[#allocation2 + $0x70] sm:$0x3]
      %v369 = vld [vmem:[#allocation2 + $0x78] sm:$0xff]
      %v370 = vld [vmem:[#allocation2 + $0x80] sm:$0xff]
      %v371 = vld [vmem:[#allocation2 + $0x88] sm:$0x3]
      %v372 = vld [vmem:[#allocation2 + $0x90] sm:$0xff]
      %v373 = vld [vmem:[#allocation2 + $0x98] sm:$0xff]
      %v374 = vld [vmem:[#allocation2 + $0xa0] sm:$0x3]
      %v375 = vld [vmem:[#allocation2 + $0xa8] sm:$0xff]
      %v376 = vld [vmem:[#allocation2 + $0xb0] sm:$0xff]
      %v377 = vld [vmem:[#allocation2 + $0xb8] sm:$0x3]
      %v378 = vld [vmem:[#allocation2 + $0xc0] sm:$0xff]
      %v379 = vld [vmem:[#allocation2 + $0xc8] sm:$0xff]
      %v380 = vld [vmem:[#allocation2 + $0xd0] sm:$0x3]
      %v381 = vld [vmem:[#allocation2 + $0xd8] sm:$0xff]
      %v382 = vld [vmem:[#allocation2 + $0xe0] sm:$0xff]
      %v383 = vld [vmem:[#allocation2 + $0xe8] sm:$0x3]
      %v384 = vld [vmem:[#allocation2 + $0xf0] sm:$0xff]
      %v385 = vld [vmem:[#allocation2 + $0xf8] sm:$0xff]
      %v386 = vld [vmem:[#allocation2 + $0x100] sm:$0x3]
      %v387 = vld [vmem:[#allocation2 + $0x108] sm:$0xff]
      %v388 = vld [vmem:[#allocation2 + $0x110] sm:$0xff]
      %v389 = vld [vmem:[#allocation2 + $0x118] sm:$0x3]
      %v390 = vld [vmem:[#allocation2 + $0x120] sm:$0xff]
      %v391 = vld [vmem:[#allocation2 + $0x128] sm:$0xff]
      %v392 = vld [vmem:[#allocation2 + $0x130] sm:$0x3]
      %v393 = vld [vmem:[#allocation2 + $0x138] sm:$0xff]
      %v394 = vld [vmem:[#allocation2 + $0x140] sm:$0xff]
      %v395 = vld [vmem:[#allocation2 + $0x148] sm:$0x3]
      %v396 = vld [vmem:[#allocation2 + $0x150] sm:$0xff]
      %v397 = vld [vmem:[#allocation2 + $0x158] sm:$0xff]
      %v398 = vld [vmem:[#allocation2 + $0x160] sm:$0x3]
      %v399 = vld [vmem:[#allocation2 + $0x168] sm:$0xff]
      %v400 = vld [vmem:[#allocation2 + $0x170] sm:$0xff]
      %v401 = vld [vmem:[#allocation2 + $0x178] sm:$0x3]
      %v402 = vld [vmem:[#allocation2 + $0x180] sm:$0xff]
      %v403 = vld [vmem:[#allocation2 + $0x188] sm:$0xff]
      %v404 = vld [vmem:[#allocation2 + $0x190] sm:$0x3]
      %v405 = vld [vmem:[#allocation2 + $0x198] sm:$0xff]
      %v406 = vld [vmem:[#allocation2 + $0x1a0] sm:$0xff]
      %v407 = vld [vmem:[#allocation2 + $0x1a8] sm:$0x3]
      %vm456 = vcmask 1046528
      %v457 = vrot.slane %v300, 1
      %v458 = vrot.slane %v301, 1
      %v459 = vsel %vm456, %v457, %v458
      %v460 = vrot.slane %v302, 1
      %v461 = vsel %vm456, %v458, %v460
      %v462 = vrot.slane %v303, 1
      %v463 = vrot.slane %v304, 1
      %v464 = vsel %vm456, %v462, %v463
      %v465 = vrot.slane %v305, 1
      %v466 = vsel %vm456, %v463, %v465
      %v467 = vrot.slane %v306, 1
      %v468 = vrot.slane %v307, 1
      %v469 = vsel %vm456, %v467, %v468
      %v470 = vrot.slane %v308, 1
      %v471 = vsel %vm456, %v468, %v470
      %v472 = vrot.slane %v309, 1
      %v473 = vrot.slane %v310, 1
      %v474 = vsel %vm456, %v472, %v473
      %v475 = vrot.slane %v311, 1
      %v476 = vsel %vm456, %v473, %v475
      %v477 = vrot.slane %v312, 1
      %v478 = vrot.slane %v313, 1
      %v479 = vsel %vm456, %v477, %v478
      %v480 = vrot.slane %v314, 1
      %v481 = vsel %vm456, %v478, %v480
      %v482 = vrot.slane %v315, 1
      %v483 = vrot.slane %v316, 1
      %v484 = vsel %vm456, %v482, %v483
      %v485 = vrot.slane %v317, 1
      %v486 = vsel %vm456, %v483, %v485
      %v487 = vrot.slane %v318, 1
      %v488 = vrot.slane %v319, 1
      %v489 = vsel %vm456, %v487, %v488
      %v490 = vrot.slane %v320, 1
      %v491 = vsel %vm456, %v488, %v490
      %v492 = vrot.slane %v321, 1
      %v493 = vrot.slane %v322, 1
      %v494 = vsel %vm456, %v492, %v493
      %v495 = vrot.slane %v323, 1
      %v496 = vsel %vm456, %v493, %v495
      %v497 = vrot.slane %v324, 1
      %v498 = vrot.slane %v325, 1
      %v499 = vsel %vm456, %v497, %v498
      %v500 = vrot.slane %v326, 1
      %v501 = vsel %vm456, %v498, %v500
      %v502 = vrot.slane %v327, 1
      %v503 = vrot.slane %v328, 1
      %v504 = vsel %vm456, %v502, %v503
      %v505 = vrot.slane %v329, 1
      %v506 = vsel %vm456, %v503, %v505
      %v507 = vrot.slane %v330, 1
      %v508 = vrot.slane %v331, 1
      %v509 = vsel %vm456, %v507, %v508
      %v510 = vrot.slane %v332, 1
      %v511 = vsel %vm456, %v508, %v510
      %v512 = vrot.slane %v333, 1
      %v513 = vrot.slane %v334, 1
      %v514 = vsel %vm456, %v512, %v513
      %v515 = vrot.slane %v335, 1
      %v516 = vsel %vm456, %v513, %v515
      %v517 = vrot.slane %v336, 1
      %v518 = vrot.slane %v337, 1
      %v519 = vsel %vm456, %v517, %v518
      %v520 = vrot.slane %v338, 1
      %v521 = vsel %vm456, %v518, %v520
      %v522 = vrot.slane %v339, 1
      %v523 = vrot.slane %v340, 1
      %v524 = vsel %vm456, %v522, %v523
      %v525 = vrot.slane %v341, 1
      %v526 = vsel %vm456, %v523, %v525
      %v527 = vrot.slane %v342, 1
      %v528 = vrot.slane %v343, 1
      %v529 = vsel %vm456, %v527, %v528
      %v530 = vrot.slane %v344, 1
      %v531 = vsel %vm456, %v528, %v530
      %v532 = vrot.slane %v345, 1
      %v533 = vrot.slane %v346, 1
      %v534 = vsel %vm456, %v532, %v533
      %v535 = vrot.slane %v347, 1
      %v536 = vsel %vm456, %v533, %v535
      %vm537 = vcmask 1045504
      %v538 = vrot.slane %v300, 2
      %v539 = vrot.slane %v301, 2
      %v540 = vsel %vm537, %v538, %v539
      %v541 = vrot.slane %v302, 2
      %v542 = vsel %vm537, %v539, %v541
      %v543 = vrot.slane %v303, 2
      %v544 = vrot.slane %v304, 2
      %v545 = vsel %vm537, %v543, %v544
      %v546 = vrot.slane %v305, 2
      %v547 = vsel %vm537, %v544, %v546
      %v548 = vrot.slane %v306, 2
      %v549 = vrot.slane %v307, 2
      %v550 = vsel %vm537, %v548, %v549
      %v551 = vrot.slane %v308, 2
      %v552 = vsel %vm537, %v549, %v551
      %v553 = vrot.slane %v309, 2
      %v554 = vrot.slane %v310, 2
      %v555 = vsel %vm537, %v553, %v554
      %v556 = vrot.slane %v311, 2
      %v557 = vsel %vm537, %v554, %v556
      %v558 = vrot.slane %v312, 2
      %v559 = vrot.slane %v313, 2
      %v560 = vsel %vm537, %v558, %v559
      %v561 = vrot.slane %v314, 2
      %v562 = vsel %vm537, %v559, %v561
      %v563 = vrot.slane %v315, 2
      %v564 = vrot.slane %v316, 2
      %v565 = vsel %vm537, %v563, %v564
      %v566 = vrot.slane %v317, 2
      %v567 = vsel %vm537, %v564, %v566
      %v568 = vrot.slane %v318, 2
      %v569 = vrot.slane %v319, 2
      %v570 = vsel %vm537, %v568, %v569
      %v571 = vrot.slane %v320, 2
      %v572 = vsel %vm537, %v569, %v571
      %v573 = vrot.slane %v321, 2
      %v574 = vrot.slane %v322, 2
      %v575 = vsel %vm537, %v573, %v574
      %v576 = vrot.slane %v323, 2
      %v577 = vsel %vm537, %v574, %v576
      %v578 = vrot.slane %v324, 2
      %v579 = vrot.slane %v325, 2
      %v580 = vsel %vm537, %v578, %v579
      %v581 = vrot.slane %v326, 2
      %v582 = vsel %vm537, %v579, %v581
      %v583 = vrot.slane %v327, 2
      %v584 = vrot.slane %v328, 2
      %v585 = vsel %vm537, %v583, %v584
      %v586 = vrot.slane %v329, 2
      %v587 = vsel %vm537, %v584, %v586
      %v588 = vrot.slane %v330, 2
      %v589 = vrot.slane %v331, 2
      %v590 = vsel %vm537, %v588, %v589
      %v591 = vrot.slane %v332, 2
      %v592 = vsel %vm537, %v589, %v591
      %v593 = vrot.slane %v333, 2
      %v594 = vrot.slane %v334, 2
      %v595 = vsel %vm537, %v593, %v594
      %v596 = vrot.slane %v335, 2
      %v597 = vsel %vm537, %v594, %v596
      %v598 = vrot.slane %v336, 2
      %v599 = vrot.slane %v337, 2
      %v600 = vsel %vm537, %v598, %v599
      %v601 = vrot.slane %v338, 2
      %v602 = vsel %vm537, %v599, %v601
      %v603 = vrot.slane %v339, 2
      %v604 = vrot.slane %v340, 2
      %v605 = vsel %vm537, %v603, %v604
      %v606 = vrot.slane %v341, 2
      %v607 = vsel %vm537, %v604, %v606
      %v608 = vrot.slane %v342, 2
      %v609 = vrot.slane %v343, 2
      %v610 = vsel %vm537, %v608, %v609
      %v611 = vrot.slane %v344, 2
      %v612 = vsel %vm537, %v609, %v611
      %v613 = vrot.slane %v345, 2
      %v614 = vrot.slane %v346, 2
      %v615 = vsel %vm537, %v613, %v614
      %v616 = vrot.slane %v347, 2
      %v617 = vsel %vm537, %v614, %v616
      %v621 = vrot.slane %v348, 1
      %v622 = vrot.slane %v349, 1
      %v623 = vsel %vm456, %v621, %v622
      %v624 = vrot.slane %v350, 1
      %v625 = vsel %vm456, %v622, %v624
      %v626 = vrot.slane %v348, 2
      %v627 = vrot.slane %v349, 2
      %v628 = vsel %vm537, %v626, %v627
      %v629 = vrot.slane %v350, 2
      %v630 = vsel %vm537, %v627, %v629
      %v634 = vrot.slane %v351, 1
      %v635 = vrot.slane %v352, 1
      %v636 = vsel %vm456, %v634, %v635
      %v637 = vrot.slane %v353, 1
      %v638 = vsel %vm456, %v635, %v637
      %v639 = vrot.slane %v351, 2
      %v640 = vrot.slane %v352, 2
      %v641 = vsel %vm537, %v639, %v640
      %v642 = vrot.slane %v353, 2
      %v643 = vsel %vm537, %v640, %v642
      %v724 = vrot.slane %v354, 1
      %v725 = vrot.slane %v355, 1
      %v726 = vsel %vm456, %v724, %v725
      %v727 = vrot.slane %v356, 1
      %v728 = vsel %vm456, %v725, %v727
      %v729 = vrot.slane %v357, 1
      %v730 = vrot.slane %v358, 1
      %v731 = vsel %vm456, %v729, %v730
      %v732 = vrot.slane %v359, 1
      %v733 = vsel %vm456, %v730, %v732
      %v734 = vrot.slane %v360, 1
      %v735 = vrot.slane %v361, 1
      %v736 = vsel %vm456, %v734, %v735
      %v737 = vrot.slane %v362, 1
      %v738 = vsel %vm456, %v735, %v737
      %v739 = vrot.slane %v363, 1
      %v740 = vrot.slane %v364, 1
      %v741 = vsel %vm456, %v739, %v740
      %v742 = vrot.slane %v365, 1
      %v743 = vsel %vm456, %v740, %v742
      %v744 = vrot.slane %v366, 1
      %v745 = vrot.slane %v367, 1
      %v746 = vsel %vm456, %v744, %v745
      %v747 = vrot.slane %v368, 1
      %v748 = vsel %vm456, %v745, %v747
      %v749 = vrot.slane %v369, 1
      %v750 = vrot.slane %v370, 1
      %v751 = vsel %vm456, %v749, %v750
      %v752 = vrot.slane %v371, 1
      %v753 = vsel %vm456, %v750, %v752
      %v754 = vrot.slane %v372, 1
      %v755 = vrot.slane %v373, 1
      %v756 = vsel %vm456, %v754, %v755
      %v757 = vrot.slane %v374, 1
      %v758 = vsel %vm456, %v755, %v757
      %v759 = vrot.slane %v375, 1
      %v760 = vrot.slane %v376, 1
      %v761 = vsel %vm456, %v759, %v760
      %v762 = vrot.slane %v377, 1
      %v763 = vsel %vm456, %v760, %v762
      %v764 = vrot.slane %v378, 1
      %v765 = vrot.slane %v379, 1
      %v766 = vsel %vm456, %v764, %v765
      %v767 = vrot.slane %v380, 1
      %v768 = vsel %vm456, %v765, %v767
      %v769 = vrot.slane %v381, 1
      %v770 = vrot.slane %v382, 1
      %v771 = vsel %vm456, %v769, %v770
      %v772 = vrot.slane %v383, 1
      %v773 = vsel %vm456, %v770, %v772
      %v774 = vrot.slane %v384, 1
      %v775 = vrot.slane %v385, 1
      %v776 = vsel %vm456, %v774, %v775
      %v777 = vrot.slane %v386, 1
      %v778 = vsel %vm456, %v775, %v777
      %v779 = vrot.slane %v387, 1
      %v780 = vrot.slane %v388, 1
      %v781 = vsel %vm456, %v779, %v780
      %v782 = vrot.slane %v389, 1
      %v783 = vsel %vm456, %v780, %v782
      %v784 = vrot.slane %v390, 1
      %v785 = vrot.slane %v391, 1
      %v786 = vsel %vm456, %v784, %v785
      %v787 = vrot.slane %v392, 1
      %v788 = vsel %vm456, %v785, %v787
      %v789 = vrot.slane %v393, 1
      %v790 = vrot.slane %v394, 1
      %v791 = vsel %vm456, %v789, %v790
      %v792 = vrot.slane %v395, 1
      %v793 = vsel %vm456, %v790, %v792
      %v794 = vrot.slane %v396, 1
      %v795 = vrot.slane %v397, 1
      %v796 = vsel %vm456, %v794, %v795
      %v797 = vrot.slane %v398, 1
      %v798 = vsel %vm456, %v795, %v797
      %v799 = vrot.slane %v399, 1
      %v800 = vrot.slane %v400, 1
      %v801 = vsel %vm456, %v799, %v800
      %v802 = vrot.slane %v401, 1
      %v803 = vsel %vm456, %v800, %v802
      %v804 = vrot.slane %v354, 2
      %v805 = vrot.slane %v355, 2
      %v806 = vsel %vm537, %v804, %v805
      %v807 = vrot.slane %v356, 2
      %v808 = vsel %vm537, %v805, %v807
      %v809 = vrot.slane %v357, 2
      %v810 = vrot.slane %v358, 2
      %v811 = vsel %vm537, %v809, %v810
      %v812 = vrot.slane %v359, 2
      %v813 = vsel %vm537, %v810, %v812
      %v814 = vrot.slane %v360, 2
      %v815 = vrot.slane %v361, 2
      %v816 = vsel %vm537, %v814, %v815
      %v817 = vrot.slane %v362, 2
      %v818 = vsel %vm537, %v815, %v817
      %v819 = vrot.slane %v363, 2
      %v820 = vrot.slane %v364, 2
      %v821 = vsel %vm537, %v819, %v820
      %v822 = vrot.slane %v365, 2
      %v823 = vsel %vm537, %v820, %v822
      %v824 = vrot.slane %v366, 2
      %v825 = vrot.slane %v367, 2
      %v826 = vsel %vm537, %v824, %v825
      %v827 = vrot.slane %v368, 2
      %v828 = vsel %vm537, %v825, %v827
      %v829 = vrot.slane %v369, 2
      %v830 = vrot.slane %v370, 2
      %v831 = vsel %vm537, %v829, %v830
      %v832 = vrot.slane %v371, 2
      %v833 = vsel %vm537, %v830, %v832
      %v834 = vrot.slane %v372, 2
      %v835 = vrot.slane %v373, 2
      %v836 = vsel %vm537, %v834, %v835
      %v837 = vrot.slane %v374, 2
      %v838 = vsel %vm537, %v835, %v837
      %v839 = vrot.slane %v375, 2
      %v840 = vrot.slane %v376, 2
      %v841 = vsel %vm537, %v839, %v840
      %v842 = vrot.slane %v377, 2
      %v843 = vsel %vm537, %v840, %v842
      %v844 = vrot.slane %v378, 2
      %v845 = vrot.slane %v379, 2
      %v846 = vsel %vm537, %v844, %v845
      %v847 = vrot.slane %v380, 2
      %v848 = vsel %vm537, %v845, %v847
      %v849 = vrot.slane %v381, 2
      %v850 = vrot.slane %v382, 2
      %v851 = vsel %vm537, %v849, %v850
      %v852 = vrot.slane %v383, 2
      %v853 = vsel %vm537, %v850, %v852
      %v854 = vrot.slane %v384, 2
      %v855 = vrot.slane %v385, 2
      %v856 = vsel %vm537, %v854, %v855
      %v857 = vrot.slane %v386, 2
      %v858 = vsel %vm537, %v855, %v857
      %v859 = vrot.slane %v387, 2
      %v860 = vrot.slane %v388, 2
      %v861 = vsel %vm537, %v859, %v860
      %v862 = vrot.slane %v389, 2
      %v863 = vsel %vm537, %v860, %v862
      %v864 = vrot.slane %v390, 2
      %v865 = vrot.slane %v391, 2
      %v866 = vsel %vm537, %v864, %v865
      %v867 = vrot.slane %v392, 2
      %v868 = vsel %vm537, %v865, %v867
      %v869 = vrot.slane %v393, 2
      %v870 = vrot.slane %v394, 2
      %v871 = vsel %vm537, %v869, %v870
      %v872 = vrot.slane %v395, 2
      %v873 = vsel %vm537, %v870, %v872
      %v874 = vrot.slane %v396, 2
      %v875 = vrot.slane %v397, 2
      %v876 = vsel %vm537, %v874, %v875
      %v877 = vrot.slane %v398, 2
      %v878 = vsel %vm537, %v875, %v877
      %v879 = vrot.slane %v399, 2
      %v880 = vrot.slane %v400, 2
      %v881 = vsel %vm537, %v879, %v880
      %v882 = vrot.slane %v401, 2
      %v883 = vsel %vm537, %v880, %v882
      %v887 = vrot.slane %v402, 1
      %v888 = vrot.slane %v403, 1
      %v889 = vsel %vm456, %v887, %v888
      %v890 = vrot.slane %v404, 1
      %v891 = vsel %vm456, %v888, %v890
      %v892 = vrot.slane %v402, 2
      %v893 = vrot.slane %v403, 2
      %v894 = vsel %vm537, %v892, %v893
      %v895 = vrot.slane %v404, 2
      %v896 = vsel %vm537, %v893, %v895
      %v900 = vrot.slane %v405, 1
      %v901 = vrot.slane %v406, 1
      %v902 = vsel %vm456, %v900, %v901
      %v903 = vrot.slane %v407, 1
      %v904 = vsel %vm456, %v901, %v903
      %v937 = vrot.slane %v405, 2
      %v938 = vrot.slane %v406, 2
      %v939 = vsel %vm537, %v937, %v938
      %v940 = vrot.slane %v407, 2
      %v941 = vsel %vm537, %v938, %v940
      %942 = vrot.lane.b32.xlu0 %v459, 16
      %v943 = vpop.permute.xlu0 %942
      %944 = vrot.lane.b32.xlu0 %v461, 16
      %v945 = vpop.permute.xlu0 %944
      %946 = vrot.lane.b32.xlu0 %v464, 16
      %v947 = vpop.permute.xlu0 %946
      %948 = vrot.lane.b32.xlu0 %v466, 16
      %v949 = vpop.permute.xlu0 %948
      %950 = vrot.lane.b32.xlu0 %v469, 16
      %v951 = vpop.permute.xlu0 %950
      %952 = vrot.lane.b32.xlu0 %v471, 16
      %v953 = vpop.permute.xlu0 %952
      %954 = vrot.lane.b32.xlu0 %v474, 16
      %v955 = vpop.permute.xlu0 %954
      %956 = vrot.lane.b32.xlu0 %v476, 16
      %v957 = vpop.permute.xlu0 %956
      %958 = vrot.lane.b32.xlu0 %v479, 16
      %v959 = vpop.permute.xlu0 %958
      %960 = vrot.lane.b32.xlu0 %v481, 16
      %v961 = vpop.permute.xlu0 %960
      %962 = vrot.lane.b32.xlu0 %v484, 16
      %v963 = vpop.permute.xlu0 %962
      %964 = vrot.lane.b32.xlu0 %v486, 16
      %v965 = vpop.permute.xlu0 %964
      %966 = vrot.lane.b32.xlu0 %v489, 16
      %v967 = vpop.permute.xlu0 %966
      %968 = vrot.lane.b32.xlu0 %v491, 16
      %v969 = vpop.permute.xlu0 %968
      %970 = vrot.lane.b32.xlu0 %v494, 16
      %v971 = vpop.permute.xlu0 %970
      %972 = vrot.lane.b32.xlu0 %v496, 16
      %v973 = vpop.permute.xlu0 %972
      %974 = vrot.lane.b32.xlu0 %v499, 16
      %v975 = vpop.permute.xlu0 %974
      %976 = vrot.lane.b32.xlu0 %v501, 16
      %v977 = vpop.permute.xlu0 %976
      %978 = vrot.lane.b32.xlu0 %v504, 16
      %v979 = vpop.permute.xlu0 %978
      %980 = vrot.lane.b32.xlu0 %v506, 16
      %v981 = vpop.permute.xlu0 %980
      %982 = vrot.lane.b32.xlu0 %v509, 16
      %v983 = vpop.permute.xlu0 %982
      %984 = vrot.lane.b32.xlu0 %v511, 16
      %v985 = vpop.permute.xlu0 %984
      %986 = vrot.lane.b32.xlu0 %v514, 16
      %v987 = vpop.permute.xlu0 %986
      %988 = vrot.lane.b32.xlu0 %v516, 16
      %v989 = vpop.permute.xlu0 %988
      %990 = vrot.lane.b32.xlu0 %v519, 16
      %v991 = vpop.permute.xlu0 %990
      %992 = vrot.lane.b32.xlu0 %v521, 16
      %v993 = vpop.permute.xlu0 %992
      %994 = vrot.lane.b32.xlu0 %v524, 16
      %v995 = vpop.permute.xlu0 %994
      %996 = vrot.lane.b32.xlu0 %v526, 16
      %v997 = vpop.permute.xlu0 %996
      %998 = vrot.lane.b32.xlu0 %v529, 16
      %v999 = vpop.permute.xlu0 %998
      %1000 = vrot.lane.b32.xlu0 %v531, 16
      %v1001 = vpop.permute.xlu0 %1000
      %1002 = vrot.lane.b32.xlu0 %v534, 16
      %v1003 = vpop.permute.xlu0 %1002
      %1004 = vrot.lane.b32.xlu0 %v536, 16
      %v1005 = vpop.permute.xlu0 %1004
      %1038 = vrot.lane.b32.xlu0 %v540, 32
      %v1039 = vpop.permute.xlu0 %1038
      %1040 = vrot.lane.b32.xlu0 %v542, 32
      %v1041 = vpop.permute.xlu0 %1040
      %1042 = vrot.lane.b32.xlu0 %v545, 32
      %v1043 = vpop.permute.xlu0 %1042
      %1044 = vrot.lane.b32.xlu0 %v547, 32
      %v1045 = vpop.permute.xlu0 %1044
      %1046 = vrot.lane.b32.xlu0 %v550, 32
      %v1047 = vpop.permute.xlu0 %1046
      %1048 = vrot.lane.b32.xlu0 %v552, 32
      %v1049 = vpop.permute.xlu0 %1048
      %1050 = vrot.lane.b32.xlu0 %v555, 32
      %v1051 = vpop.permute.xlu0 %1050
      %1052 = vrot.lane.b32.xlu0 %v557, 32
      %v1053 = vpop.permute.xlu0 %1052
      %1054 = vrot.lane.b32.xlu0 %v560, 32
      %v1055 = vpop.permute.xlu0 %1054
      %1056 = vrot.lane.b32.xlu0 %v562, 32
      %v1057 = vpop.permute.xlu0 %1056
      %1058 = vrot.lane.b32.xlu0 %v565, 32
      %v1059 = vpop.permute.xlu0 %1058
      %1060 = vrot.lane.b32.xlu0 %v567, 32
      %v1061 = vpop.permute.xlu0 %1060
      %1062 = vrot.lane.b32.xlu0 %v570, 32
      %v1063 = vpop.permute.xlu0 %1062
      %1064 = vrot.lane.b32.xlu0 %v572, 32
      %v1065 = vpop.permute.xlu0 %1064
      %1066 = vrot.lane.b32.xlu0 %v575, 32
      %v1067 = vpop.permute.xlu0 %1066
      %1068 = vrot.lane.b32.xlu0 %v577, 32
      %v1069 = vpop.permute.xlu0 %1068
      %1070 = vrot.lane.b32.xlu0 %v580, 32
      %v1071 = vpop.permute.xlu0 %1070
      %1072 = vrot.lane.b32.xlu0 %v582, 32
      %v1073 = vpop.permute.xlu0 %1072
      %1074 = vrot.lane.b32.xlu0 %v585, 32
      %v1075 = vpop.permute.xlu0 %1074
      %1076 = vrot.lane.b32.xlu0 %v587, 32
      %v1077 = vpop.permute.xlu0 %1076
      %1078 = vrot.lane.b32.xlu0 %v590, 32
      %v1079 = vpop.permute.xlu0 %1078
      %1080 = vrot.lane.b32.xlu0 %v592, 32
      %v1081 = vpop.permute.xlu0 %1080
      %1082 = vrot.lane.b32.xlu0 %v595, 32
      %v1083 = vpop.permute.xlu0 %1082
      %1084 = vrot.lane.b32.xlu0 %v597, 32
      %v1085 = vpop.permute.xlu0 %1084
      %1086 = vrot.lane.b32.xlu0 %v600, 32
      %v1087 = vpop.permute.xlu0 %1086
      %1088 = vrot.lane.b32.xlu0 %v602, 32
      %v1089 = vpop.permute.xlu0 %1088
      %1090 = vrot.lane.b32.xlu0 %v605, 32
      %v1091 = vpop.permute.xlu0 %1090
      %1092 = vrot.lane.b32.xlu0 %v607, 32
      %v1093 = vpop.permute.xlu0 %1092
      %1094 = vrot.lane.b32.xlu0 %v610, 32
      %v1095 = vpop.permute.xlu0 %1094
      %1096 = vrot.lane.b32.xlu0 %v612, 32
      %v1097 = vpop.permute.xlu0 %1096
      %1098 = vrot.lane.b32.xlu0 %v615, 32
      %v1099 = vpop.permute.xlu0 %1098
      %1100 = vrot.lane.b32.xlu0 %v617, 32
      %v1101 = vpop.permute.xlu0 %1100
      %1134 = vrot.lane.b32.xlu0 %v303, 48
      %v1135 = vpop.permute.xlu0 %1134
      %1136 = vrot.lane.b32.xlu0 %v304, 48
      %v1137 = vpop.permute.xlu0 %1136
      %1138 = vrot.lane.b32.xlu0 %v306, 48
      %v1139 = vpop.permute.xlu0 %1138
      %1140 = vrot.lane.b32.xlu0 %v307, 48
      %v1141 = vpop.permute.xlu0 %1140
      %1142 = vrot.lane.b32.xlu0 %v309, 48
      %v1143 = vpop.permute.xlu0 %1142
      %1144 = vrot.lane.b32.xlu0 %v310, 48
      %v1145 = vpop.permute.xlu0 %1144
      %1146 = vrot.lane.b32.xlu0 %v312, 48
      %v1147 = vpop.permute.xlu0 %1146
      %1148 = vrot.lane.b32.xlu0 %v313, 48
      %v1149 = vpop.permute.xlu0 %1148
      %1150 = vrot.lane.b32.xlu0 %v315, 48
      %v1151 = vpop.permute.xlu0 %1150
      %1152 = vrot.lane.b32.xlu0 %v316, 48
      %v1153 = vpop.permute.xlu0 %1152
      %1154 = vrot.lane.b32.xlu0 %v318, 48
      %v1155 = vpop.permute.xlu0 %1154
      %1156 = vrot.lane.b32.xlu0 %v319, 48
      %v1157 = vpop.permute.xlu0 %1156
      %1158 = vrot.lane.b32.xlu0 %v321, 48
      %v1159 = vpop.permute.xlu0 %1158
      %1160 = vrot.lane.b32.xlu0 %v322, 48
      %v1161 = vpop.permute.xlu0 %1160
      %1162 = vrot.lane.b32.xlu0 %v324, 48
      %v1163 = vpop.permute.xlu0 %1162
      %1164 = vrot.lane.b32.xlu0 %v325, 48
      %v1165 = vpop.permute.xlu0 %1164
      %1166 = vrot.lane.b32.xlu0 %v327, 48
      %v1167 = vpop.permute.xlu0 %1166
      %1168 = vrot.lane.b32.xlu0 %v328, 48
      %v1169 = vpop.permute.xlu0 %1168
      %1170 = vrot.lane.b32.xlu0 %v330, 48
      %v1171 = vpop.permute.xlu0 %1170
      %1172 = vrot.lane.b32.xlu0 %v331, 48
      %v1173 = vpop.permute.xlu0 %1172
      %1174 = vrot.lane.b32.xlu0 %v333, 48
      %v1175 = vpop.permute.xlu0 %1174
      %1176 = vrot.lane.b32.xlu0 %v334, 48
      %v1177 = vpop.permute.xlu0 %1176
      %1178 = vrot.lane.b32.xlu0 %v336, 48
      %v1179 = vpop.permute.xlu0 %1178
      %1180 = vrot.lane.b32.xlu0 %v337, 48
      %v1181 = vpop.permute.xlu0 %1180
      %1182 = vrot.lane.b32.xlu0 %v339, 48
      %v1183 = vpop.permute.xlu0 %1182
      %1184 = vrot.lane.b32.xlu0 %v340, 48
      %v1185 = vpop.permute.xlu0 %1184
      %1186 = vrot.lane.b32.xlu0 %v342, 48
      %v1187 = vpop.permute.xlu0 %1186
      %1188 = vrot.lane.b32.xlu0 %v343, 48
      %v1189 = vpop.permute.xlu0 %1188
      %1190 = vrot.lane.b32.xlu0 %v345, 48
      %v1191 = vpop.permute.xlu0 %1190
      %1192 = vrot.lane.b32.xlu0 %v346, 48
      %v1193 = vpop.permute.xlu0 %1192
      %1194 = vrot.lane.b32.xlu0 %v348, 48
      %v1195 = vpop.permute.xlu0 %1194
      %1196 = vrot.lane.b32.xlu0 %v349, 48
      %v1197 = vpop.permute.xlu0 %1196
      %1230 = vrot.lane.b32.xlu0 %v464, 64
      %v1231 = vpop.permute.xlu0 %1230
      %1232 = vrot.lane.b32.xlu0 %v466, 64
      %v1233 = vpop.permute.xlu0 %1232
      %1234 = vrot.lane.b32.xlu0 %v469, 64
      %v1235 = vpop.permute.xlu0 %1234
      %1236 = vrot.lane.b32.xlu0 %v471, 64
      %v1237 = vpop.permute.xlu0 %1236
      %1238 = vrot.lane.b32.xlu0 %v474, 64
      %v1239 = vpop.permute.xlu0 %1238
      %1240 = vrot.lane.b32.xlu0 %v476, 64
      %v1241 = vpop.permute.xlu0 %1240
      %1242 = vrot.lane.b32.xlu0 %v479, 64
      %v1243 = vpop.permute.xlu0 %1242
      %1244 = vrot.lane.b32.xlu0 %v481, 64
      %v1245 = vpop.permute.xlu0 %1244
      %1246 = vrot.lane.b32.xlu0 %v484, 64
      %v1247 = vpop.permute.xlu0 %1246
      %1248 = vrot.lane.b32.xlu0 %v486, 64
      %v1249 = vpop.permute.xlu0 %1248
      %1250 = vrot.lane.b32.xlu0 %v489, 64
      %v1251 = vpop.permute.xlu0 %1250
      %1252 = vrot.lane.b32.xlu0 %v491, 64
      %v1253 = vpop.permute.xlu0 %1252
      %1254 = vrot.lane.b32.xlu0 %v494, 64
      %v1255 = vpop.permute.xlu0 %1254
      %1256 = vrot.lane.b32.xlu0 %v496, 64
      %v1257 = vpop.permute.xlu0 %1256
      %1258 = vrot.lane.b32.xlu0 %v499, 64
      %v1259 = vpop.permute.xlu0 %1258
      %1260 = vrot.lane.b32.xlu0 %v501, 64
      %v1261 = vpop.permute.xlu0 %1260
      %1262 = vrot.lane.b32.xlu0 %v504, 64
      %v1263 = vpop.permute.xlu0 %1262
      %1264 = vrot.lane.b32.xlu0 %v506, 64
      %v1265 = vpop.permute.xlu0 %1264
      %1266 = vrot.lane.b32.xlu0 %v509, 64
      %v1267 = vpop.permute.xlu0 %1266
      %1268 = vrot.lane.b32.xlu0 %v511, 64
      %v1269 = vpop.permute.xlu0 %1268
      %1270 = vrot.lane.b32.xlu0 %v514, 64
      %v1271 = vpop.permute.xlu0 %1270
      %1272 = vrot.lane.b32.xlu0 %v516, 64
      %v1273 = vpop.permute.xlu0 %1272
      %1274 = vrot.lane.b32.xlu0 %v519, 64
      %v1275 = vpop.permute.xlu0 %1274
      %1276 = vrot.lane.b32.xlu0 %v521, 64
      %v1277 = vpop.permute.xlu0 %1276
      %1278 = vrot.lane.b32.xlu0 %v524, 64
      %v1279 = vpop.permute.xlu0 %1278
      %1280 = vrot.lane.b32.xlu0 %v526, 64
      %v1281 = vpop.permute.xlu0 %1280
      %1282 = vrot.lane.b32.xlu0 %v529, 64
      %v1283 = vpop.permute.xlu0 %1282
      %1284 = vrot.lane.b32.xlu0 %v531, 64
      %v1285 = vpop.permute.xlu0 %1284
      %1286 = vrot.lane.b32.xlu0 %v534, 64
      %v1287 = vpop.permute.xlu0 %1286
      %1288 = vrot.lane.b32.xlu0 %v536, 64
      %v1289 = vpop.permute.xlu0 %1288
      %1290 = vrot.lane.b32.xlu0 %v623, 64
      %v1291 = vpop.permute.xlu0 %1290
      %1292 = vrot.lane.b32.xlu0 %v625, 64
      %v1293 = vpop.permute.xlu0 %1292
      %1326 = vrot.lane.b32.xlu0 %v545, 80
      %v1327 = vpop.permute.xlu0 %1326
      %1328 = vrot.lane.b32.xlu0 %v547, 80
      %v1329 = vpop.permute.xlu0 %1328
      %1330 = vrot.lane.b32.xlu0 %v550, 80
      %v1331 = vpop.permute.xlu0 %1330
      %1332 = vrot.lane.b32.xlu0 %v552, 80
      %v1333 = vpop.permute.xlu0 %1332
      %1334 = vrot.lane.b32.xlu0 %v555, 80
      %v1335 = vpop.permute.xlu0 %1334
      %1336 = vrot.lane.b32.xlu0 %v557, 80
      %v1337 = vpop.permute.xlu0 %1336
      %1338 = vrot.lane.b32.xlu0 %v560, 80
      %v1339 = vpop.permute.xlu0 %1338
      %1340 = vrot.lane.b32.xlu0 %v562, 80
      %v1341 = vpop.permute.xlu0 %1340
      %1342 = vrot.lane.b32.xlu0 %v565, 80
      %v1343 = vpop.permute.xlu0 %1342
      %1344 = vrot.lane.b32.xlu0 %v567, 80
      %v1345 = vpop.permute.xlu0 %1344
      %1346 = vrot.lane.b32.xlu0 %v570, 80
      %v1347 = vpop.permute.xlu0 %1346
      %1348 = vrot.lane.b32.xlu0 %v572, 80
      %v1349 = vpop.permute.xlu0 %1348
      %1350 = vrot.lane.b32.xlu0 %v575, 80
      %v1351 = vpop.permute.xlu0 %1350
      %1352 = vrot.lane.b32.xlu0 %v577, 80
      %v1353 = vpop.permute.xlu0 %1352
      %1354 = vrot.lane.b32.xlu0 %v580, 80
      %v1355 = vpop.permute.xlu0 %1354
      %1356 = vrot.lane.b32.xlu0 %v582, 80
      %v1357 = vpop.permute.xlu0 %1356
      %1358 = vrot.lane.b32.xlu0 %v585, 80
      %v1359 = vpop.permute.xlu0 %1358
      %1360 = vrot.lane.b32.xlu0 %v587, 80
      %v1361 = vpop.permute.xlu0 %1360
      %1362 = vrot.lane.b32.xlu0 %v590, 80
      %v1363 = vpop.permute.xlu0 %1362
      %1364 = vrot.lane.b32.xlu0 %v592, 80
      %v1365 = vpop.permute.xlu0 %1364
      %1366 = vrot.lane.b32.xlu0 %v595, 80
      %v1367 = vpop.permute.xlu0 %1366
      %1368 = vrot.lane.b32.xlu0 %v597, 80
      %v1369 = vpop.permute.xlu0 %1368
      %1370 = vrot.lane.b32.xlu0 %v600, 80
      %v1371 = vpop.permute.xlu0 %1370
      %1372 = vrot.lane.b32.xlu0 %v602, 80
      %v1373 = vpop.permute.xlu0 %1372
      %1374 = vrot.lane.b32.xlu0 %v605, 80
      %v1375 = vpop.permute.xlu0 %1374
      %1376 = vrot.lane.b32.xlu0 %v607, 80
      %v1377 = vpop.permute.xlu0 %1376
      %1378 = vrot.lane.b32.xlu0 %v610, 80
      %v1379 = vpop.permute.xlu0 %1378
      %1380 = vrot.lane.b32.xlu0 %v612, 80
      %v1381 = vpop.permute.xlu0 %1380
      %1382 = vrot.lane.b32.xlu0 %v615, 80
      %v1383 = vpop.permute.xlu0 %1382
      %1384 = vrot.lane.b32.xlu0 %v617, 80
      %v1385 = vpop.permute.xlu0 %1384
      %1386 = vrot.lane.b32.xlu0 %v628, 80
      %v1387 = vpop.permute.xlu0 %1386
      %1388 = vrot.lane.b32.xlu0 %v630, 80
      %v1389 = vpop.permute.xlu0 %1388
      %1422 = vrot.lane.b32.xlu0 %v306, 96
      %v1423 = vpop.permute.xlu0 %1422
      %1424 = vrot.lane.b32.xlu0 %v307, 96
      %v1425 = vpop.permute.xlu0 %1424
      %1426 = vrot.lane.b32.xlu0 %v309, 96
      %v1427 = vpop.permute.xlu0 %1426
      %1428 = vrot.lane.b32.xlu0 %v310, 96
      %v1429 = vpop.permute.xlu0 %1428
      %1430 = vrot.lane.b32.xlu0 %v312, 96
      %v1431 = vpop.permute.xlu0 %1430
      %1432 = vrot.lane.b32.xlu0 %v313, 96
      %v1433 = vpop.permute.xlu0 %1432
      %1434 = vrot.lane.b32.xlu0 %v315, 96
      %v1435 = vpop.permute.xlu0 %1434
      %1436 = vrot.lane.b32.xlu0 %v316, 96
      %v1437 = vpop.permute.xlu0 %1436
      %1438 = vrot.lane.b32.xlu0 %v318, 96
      %v1439 = vpop.permute.xlu0 %1438
      %1440 = vrot.lane.b32.xlu0 %v319, 96
      %v1441 = vpop.permute.xlu0 %1440
      %1442 = vrot.lane.b32.xlu0 %v321, 96
      %v1443 = vpop.permute.xlu0 %1442
      %1444 = vrot.lane.b32.xlu0 %v322, 96
      %v1445 = vpop.permute.xlu0 %1444
      %1446 = vrot.lane.b32.xlu0 %v324, 96
      %v1447 = vpop.permute.xlu0 %1446
      %1448 = vrot.lane.b32.xlu0 %v325, 96
      %v1449 = vpop.permute.xlu0 %1448
      %1450 = vrot.lane.b32.xlu0 %v327, 96
      %v1451 = vpop.permute.xlu0 %1450
      %1452 = vrot.lane.b32.xlu0 %v328, 96
      %v1453 = vpop.permute.xlu0 %1452
      %1454 = vrot.lane.b32.xlu0 %v330, 96
      %v1455 = vpop.permute.xlu0 %1454
      %1456 = vrot.lane.b32.xlu0 %v331, 96
      %v1457 = vpop.permute.xlu0 %1456
      %1458 = vrot.lane.b32.xlu0 %v333, 96
      %v1459 = vpop.permute.xlu0 %1458
      %1460 = vrot.lane.b32.xlu0 %v334, 96
      %v1461 = vpop.permute.xlu0 %1460
      %1462 = vrot.lane.b32.xlu0 %v336, 96
      %v1463 = vpop.permute.xlu0 %1462
      %1464 = vrot.lane.b32.xlu0 %v337, 96
      %v1465 = vpop.permute.xlu0 %1464
      %1466 = vrot.lane.b32.xlu0 %v339, 96
      %v1467 = vpop.permute.xlu0 %1466
      %1468 = vrot.lane.b32.xlu0 %v340, 96
      %v1469 = vpop.permute.xlu0 %1468
      %1470 = vrot.lane.b32.xlu0 %v342, 96
      %v1471 = vpop.permute.xlu0 %1470
      %1472 = vrot.lane.b32.xlu0 %v343, 96
      %v1473 = vpop.permute.xlu0 %1472
      %1474 = vrot.lane.b32.xlu0 %v345, 96
      %v1475 = vpop.permute.xlu0 %1474
      %1476 = vrot.lane.b32.xlu0 %v346, 96
      %v1477 = vpop.permute.xlu0 %1476
      %1478 = vrot.lane.b32.xlu0 %v348, 96
      %v1479 = vpop.permute.xlu0 %1478
      %1480 = vrot.lane.b32.xlu0 %v349, 96
      %v1481 = vpop.permute.xlu0 %1480
      %1482 = vrot.lane.b32.xlu0 %v351, 96
      %v1483 = vpop.permute.xlu0 %1482
      %1484 = vrot.lane.b32.xlu0 %v352, 96
      %v1485 = vpop.permute.xlu0 %1484
      %1518 = vrot.lane.b32.xlu0 %v469, 112
      %v1519 = vpop.permute.xlu0 %1518
      %1520 = vrot.lane.b32.xlu0 %v471, 112
      %v1521 = vpop.permute.xlu0 %1520
      %1522 = vrot.lane.b32.xlu0 %v474, 112
      %v1523 = vpop.permute.xlu0 %1522
      %1524 = vrot.lane.b32.xlu0 %v476, 112
      %v1525 = vpop.permute.xlu0 %1524
      %1526 = vrot.lane.b32.xlu0 %v479, 112
      %v1527 = vpop.permute.xlu0 %1526
      %1528 = vrot.lane.b32.xlu0 %v481, 112
      %v1529 = vpop.permute.xlu0 %1528
      %1530 = vrot.lane.b32.xlu0 %v484, 112
      %v1531 = vpop.permute.xlu0 %1530
      %1532 = vrot.lane.b32.xlu0 %v486, 112
      %v1533 = vpop.permute.xlu0 %1532
      %1534 = vrot.lane.b32.xlu0 %v489, 112
      %v1535 = vpop.permute.xlu0 %1534
      %1536 = vrot.lane.b32.xlu0 %v491, 112
      %v1537 = vpop.permute.xlu0 %1536
      %1538 = vrot.lane.b32.xlu0 %v494, 112
      %v1539 = vpop.permute.xlu0 %1538
      %1540 = vrot.lane.b32.xlu0 %v496, 112
      %v1541 = vpop.permute.xlu0 %1540
      %1542 = vrot.lane.b32.xlu0 %v499, 112
      %v1543 = vpop.permute.xlu0 %1542
      %1544 = vrot.lane.b32.xlu0 %v501, 112
      %v1545 = vpop.permute.xlu0 %1544
      %1546 = vrot.lane.b32.xlu0 %v504, 112
      %v1547 = vpop.permute.xlu0 %1546
      %1548 = vrot.lane.b32.xlu0 %v506, 112
      %v1549 = vpop.permute.xlu0 %1548
      %1550 = vrot.lane.b32.xlu0 %v509, 112
      %v1551 = vpop.permute.xlu0 %1550
      %1552 = vrot.lane.b32.xlu0 %v511, 112
      %v1553 = vpop.permute.xlu0 %1552
      %1554 = vrot.lane.b32.xlu0 %v514, 112
      %v1555 = vpop.permute.xlu0 %1554
      %1556 = vrot.lane.b32.xlu0 %v516, 112
      %v1557 = vpop.permute.xlu0 %1556
      %1558 = vrot.lane.b32.xlu0 %v519, 112
      %v1559 = vpop.permute.xlu0 %1558
      %1560 = vrot.lane.b32.xlu0 %v521, 112
      %v1561 = vpop.permute.xlu0 %1560
      %1562 = vrot.lane.b32.xlu0 %v524, 112
      %v1563 = vpop.permute.xlu0 %1562
      %1564 = vrot.lane.b32.xlu0 %v526, 112
      %v1565 = vpop.permute.xlu0 %1564
      %1566 = vrot.lane.b32.xlu0 %v529, 112
      %v1567 = vpop.permute.xlu0 %1566
      %1568 = vrot.lane.b32.xlu0 %v531, 112
      %v1569 = vpop.permute.xlu0 %1568
      %1570 = vrot.lane.b32.xlu0 %v534, 112
      %v1571 = vpop.permute.xlu0 %1570
      %1572 = vrot.lane.b32.xlu0 %v536, 112
      %v1573 = vpop.permute.xlu0 %1572
      %1574 = vrot.lane.b32.xlu0 %v623, 112
      %v1575 = vpop.permute.xlu0 %1574
      %1576 = vrot.lane.b32.xlu0 %v625, 112
      %v1577 = vpop.permute.xlu0 %1576
      %1578 = vrot.lane.b32.xlu0 %v636, 112
      %v1579 = vpop.permute.xlu0 %1578
      %1580 = vrot.lane.b32.xlu0 %v638, 112
      %v1581 = vpop.permute.xlu0 %1580
      %1614 = vrot.lane.b32.xlu0 %v354, 16
      %v1615 = vpop.permute.xlu0 %1614
      %1616 = vrot.lane.b32.xlu0 %v355, 16
      %v1617 = vpop.permute.xlu0 %1616
      %1618 = vrot.lane.b32.xlu0 %v357, 16
      %v1619 = vpop.permute.xlu0 %1618
      %1620 = vrot.lane.b32.xlu0 %v358, 16
      %v1621 = vpop.permute.xlu0 %1620
      %1622 = vrot.lane.b32.xlu0 %v360, 16
      %v1623 = vpop.permute.xlu0 %1622
      %1624 = vrot.lane.b32.xlu0 %v361, 16
      %v1625 = vpop.permute.xlu0 %1624
      %1626 = vrot.lane.b32.xlu0 %v363, 16
      %v1627 = vpop.permute.xlu0 %1626
      %1628 = vrot.lane.b32.xlu0 %v364, 16
      %v1629 = vpop.permute.xlu0 %1628
      %1630 = vrot.lane.b32.xlu0 %v366, 16
      %v1631 = vpop.permute.xlu0 %1630
      %1632 = vrot.lane.b32.xlu0 %v367, 16
      %v1633 = vpop.permute.xlu0 %1632
      %1634 = vrot.lane.b32.xlu0 %v369, 16
      %v1635 = vpop.permute.xlu0 %1634
      %1636 = vrot.lane.b32.xlu0 %v370, 16
      %v1637 = vpop.permute.xlu0 %1636
      %1638 = vrot.lane.b32.xlu0 %v372, 16
      %v1639 = vpop.permute.xlu0 %1638
      %1640 = vrot.lane.b32.xlu0 %v373, 16
      %v1641 = vpop.permute.xlu0 %1640
      %1642 = vrot.lane.b32.xlu0 %v375, 16
      %v1643 = vpop.permute.xlu0 %1642
      %1644 = vrot.lane.b32.xlu0 %v376, 16
      %v1645 = vpop.permute.xlu0 %1644
      %1646 = vrot.lane.b32.xlu0 %v378, 16
      %v1647 = vpop.permute.xlu0 %1646
      %1648 = vrot.lane.b32.xlu0 %v379, 16
      %v1649 = vpop.permute.xlu0 %1648
      %1650 = vrot.lane.b32.xlu0 %v381, 16
      %v1651 = vpop.permute.xlu0 %1650
      %1652 = vrot.lane.b32.xlu0 %v382, 16
      %v1653 = vpop.permute.xlu0 %1652
      %1654 = vrot.lane.b32.xlu0 %v384, 16
      %v1655 = vpop.permute.xlu0 %1654
      %1656 = vrot.lane.b32.xlu0 %v385, 16
      %v1657 = vpop.permute.xlu0 %1656
      %1658 = vrot.lane.b32.xlu0 %v387, 16
      %v1659 = vpop.permute.xlu0 %1658
      %1660 = vrot.lane.b32.xlu0 %v388, 16
      %v1661 = vpop.permute.xlu0 %1660
      %1662 = vrot.lane.b32.xlu0 %v390, 16
      %v1663 = vpop.permute.xlu0 %1662
      %1664 = vrot.lane.b32.xlu0 %v391, 16
      %v1665 = vpop.permute.xlu0 %1664
      %1666 = vrot.lane.b32.xlu0 %v393, 16
      %v1667 = vpop.permute.xlu0 %1666
      %1668 = vrot.lane.b32.xlu0 %v394, 16
      %v1669 = vpop.permute.xlu0 %1668
      %1670 = vrot.lane.b32.xlu0 %v396, 16
      %v1671 = vpop.permute.xlu0 %1670
      %1672 = vrot.lane.b32.xlu0 %v397, 16
      %v1673 = vpop.permute.xlu0 %1672
      %1674 = vrot.lane.b32.xlu0 %v399, 16
      %v1675 = vpop.permute.xlu0 %1674
      %1676 = vrot.lane.b32.xlu0 %v400, 16
      %v1677 = vpop.permute.xlu0 %1676
      %1710 = vrot.lane.b32.xlu0 %v726, 48
      %v1711 = vpop.permute.xlu0 %1710
      %1712 = vrot.lane.b32.xlu0 %v728, 48
      %v1713 = vpop.permute.xlu0 %1712
      %1714 = vrot.lane.b32.xlu0 %v731, 48
      %v1715 = vpop.permute.xlu0 %1714
      %1716 = vrot.lane.b32.xlu0 %v733, 48
      %v1717 = vpop.permute.xlu0 %1716
      %1718 = vrot.lane.b32.xlu0 %v736, 48
      %v1719 = vpop.permute.xlu0 %1718
      %1720 = vrot.lane.b32.xlu0 %v738, 48
      %v1721 = vpop.permute.xlu0 %1720
      %1722 = vrot.lane.b32.xlu0 %v741, 48
      %v1723 = vpop.permute.xlu0 %1722
      %1724 = vrot.lane.b32.xlu0 %v743, 48
      %v1725 = vpop.permute.xlu0 %1724
      %1726 = vrot.lane.b32.xlu0 %v746, 48
      %v1727 = vpop.permute.xlu0 %1726
      %1728 = vrot.lane.b32.xlu0 %v748, 48
      %v1729 = vpop.permute.xlu0 %1728
      %1730 = vrot.lane.b32.xlu0 %v751, 48
      %v1731 = vpop.permute.xlu0 %1730
      %1732 = vrot.lane.b32.xlu0 %v753, 48
      %v1733 = vpop.permute.xlu0 %1732
      %1734 = vrot.lane.b32.xlu0 %v756, 48
      %v1735 = vpop.permute.xlu0 %1734
      %1736 = vrot.lane.b32.xlu0 %v758, 48
      %v1737 = vpop.permute.xlu0 %1736
      %1738 = vrot.lane.b32.xlu0 %v761, 48
      %v1739 = vpop.permute.xlu0 %1738
      %1740 = vrot.lane.b32.xlu0 %v763, 48
      %v1741 = vpop.permute.xlu0 %1740
      %1742 = vrot.lane.b32.xlu0 %v766, 48
      %v1743 = vpop.permute.xlu0 %1742
      %1744 = vrot.lane.b32.xlu0 %v768, 48
      %v1745 = vpop.permute.xlu0 %1744
      %1746 = vrot.lane.b32.xlu0 %v771, 48
      %v1747 = vpop.permute.xlu0 %1746
      %1748 = vrot.lane.b32.xlu0 %v773, 48
      %v1749 = vpop.permute.xlu0 %1748
      %1750 = vrot.lane.b32.xlu0 %v776, 48
      %v1751 = vpop.permute.xlu0 %1750
      %1752 = vrot.lane.b32.xlu0 %v778, 48
      %v1753 = vpop.permute.xlu0 %1752
      %1754 = vrot.lane.b32.xlu0 %v781, 48
      %v1755 = vpop.permute.xlu0 %1754
      %1756 = vrot.lane.b32.xlu0 %v783, 48
      %v1757 = vpop.permute.xlu0 %1756
      %1758 = vrot.lane.b32.xlu0 %v786, 48
      %v1759 = vpop.permute.xlu0 %1758
      %1760 = vrot.lane.b32.xlu0 %v788, 48
      %v1761 = vpop.permute.xlu0 %1760
      %1762 = vrot.lane.b32.xlu0 %v791, 48
      %v1763 = vpop.permute.xlu0 %1762
      %1764 = vrot.lane.b32.xlu0 %v793, 48
      %v1765 = vpop.permute.xlu0 %1764
      %1766 = vrot.lane.b32.xlu0 %v796, 48
      %v1767 = vpop.permute.xlu0 %1766
      %1768 = vrot.lane.b32.xlu0 %v798, 48
      %v1769 = vpop.permute.xlu0 %1768
      %1770 = vrot.lane.b32.xlu0 %v801, 48
      %v1771 = vpop.permute.xlu0 %1770
      %1772 = vrot.lane.b32.xlu0 %v803, 48
      %v1773 = vpop.permute.xlu0 %1772
      %1806 = vrot.lane.b32.xlu0 %v806, 80
      %v1807 = vpop.permute.xlu0 %1806
      %1808 = vrot.lane.b32.xlu0 %v808, 80
      %v1809 = vpop.permute.xlu0 %1808
      %1810 = vrot.lane.b32.xlu0 %v811, 80
      %v1811 = vpop.permute.xlu0 %1810
      %1812 = vrot.lane.b32.xlu0 %v813, 80
      %v1813 = vpop.permute.xlu0 %1812
      %1814 = vrot.lane.b32.xlu0 %v816, 80
      %v1815 = vpop.permute.xlu0 %1814
      %1816 = vrot.lane.b32.xlu0 %v818, 80
      %v1817 = vpop.permute.xlu0 %1816
      %1818 = vrot.lane.b32.xlu0 %v821, 80
      %v1819 = vpop.permute.xlu0 %1818
      %1820 = vrot.lane.b32.xlu0 %v823, 80
      %v1821 = vpop.permute.xlu0 %1820
      %1822 = vrot.lane.b32.xlu0 %v826, 80
      %v1823 = vpop.permute.xlu0 %1822
      %1824 = vrot.lane.b32.xlu0 %v828, 80
      %v1825 = vpop.permute.xlu0 %1824
      %1826 = vrot.lane.b32.xlu0 %v831, 80
      %v1827 = vpop.permute.xlu0 %1826
      %1828 = vrot.lane.b32.xlu0 %v833, 80
      %v1829 = vpop.permute.xlu0 %1828
      %1830 = vrot.lane.b32.xlu0 %v836, 80
      %v1831 = vpop.permute.xlu0 %1830
      %1832 = vrot.lane.b32.xlu0 %v838, 80
      %v1833 = vpop.permute.xlu0 %1832
      %1834 = vrot.lane.b32.xlu0 %v841, 80
      %v1835 = vpop.permute.xlu0 %1834
      %1836 = vrot.lane.b32.xlu0 %v843, 80
      %v1837 = vpop.permute.xlu0 %1836
      %1838 = vrot.lane.b32.xlu0 %v846, 80
      %v1839 = vpop.permute.xlu0 %1838
      %1840 = vrot.lane.b32.xlu0 %v848, 80
      %v1841 = vpop.permute.xlu0 %1840
      %1842 = vrot.lane.b32.xlu0 %v851, 80
      %v1843 = vpop.permute.xlu0 %1842
      %1844 = vrot.lane.b32.xlu0 %v853, 80
      %v1845 = vpop.permute.xlu0 %1844
      %1846 = vrot.lane.b32.xlu0 %v856, 80
      %v1847 = vpop.permute.xlu0 %1846
      %1848 = vrot.lane.b32.xlu0 %v858, 80
      %v1849 = vpop.permute.xlu0 %1848
      %1850 = vrot.lane.b32.xlu0 %v861, 80
      %v1851 = vpop.permute.xlu0 %1850
      %1852 = vrot.lane.b32.xlu0 %v863, 80
      %v1853 = vpop.permute.xlu0 %1852
      %1854 = vrot.lane.b32.xlu0 %v866, 80
      %v1855 = vpop.permute.xlu0 %1854
      %1856 = vrot.lane.b32.xlu0 %v868, 80
      %v1857 = vpop.permute.xlu0 %1856
      %1858 = vrot.lane.b32.xlu0 %v871, 80
      %v1859 = vpop.permute.xlu0 %1858
      %1860 = vrot.lane.b32.xlu0 %v873, 80
      %v1861 = vpop.permute.xlu0 %1860
      %1862 = vrot.lane.b32.xlu0 %v876, 80
      %v1863 = vpop.permute.xlu0 %1862
      %1864 = vrot.lane.b32.xlu0 %v878, 80
      %v1865 = vpop.permute.xlu0 %1864
      %1866 = vrot.lane.b32.xlu0 %v881, 80
      %v1867 = vpop.permute.xlu0 %1866
      %1868 = vrot.lane.b32.xlu0 %v883, 80
      %v1869 = vpop.permute.xlu0 %1868
      %1902 = vrot.lane.b32.xlu0 %v357, 112
      %v1903 = vpop.permute.xlu0 %1902
      %1904 = vrot.lane.b32.xlu0 %v358, 112
      %v1905 = vpop.permute.xlu0 %1904
      %1906 = vrot.lane.b32.xlu0 %v360, 112
      %v1907 = vpop.permute.xlu0 %1906
      %1908 = vrot.lane.b32.xlu0 %v361, 112
      %v1909 = vpop.permute.xlu0 %1908
      %1910 = vrot.lane.b32.xlu0 %v363, 112
      %v1911 = vpop.permute.xlu0 %1910
      %1912 = vrot.lane.b32.xlu0 %v364, 112
      %v1913 = vpop.permute.xlu0 %1912
      %1914 = vrot.lane.b32.xlu0 %v366, 112
      %v1915 = vpop.permute.xlu0 %1914
      %1916 = vrot.lane.b32.xlu0 %v367, 112
      %v1917 = vpop.permute.xlu0 %1916
      %1918 = vrot.lane.b32.xlu0 %v369, 112
      %v1919 = vpop.permute.xlu0 %1918
      %1920 = vrot.lane.b32.xlu0 %v370, 112
      %v1921 = vpop.permute.xlu0 %1920
      %1922 = vrot.lane.b32.xlu0 %v372, 112
      %v1923 = vpop.permute.xlu0 %1922
      %1924 = vrot.lane.b32.xlu0 %v373, 112
      %v1925 = vpop.permute.xlu0 %1924
      %1926 = vrot.lane.b32.xlu0 %v375, 112
      %v1927 = vpop.permute.xlu0 %1926
      %1928 = vrot.lane.b32.xlu0 %v376, 112
      %v1929 = vpop.permute.xlu0 %1928
      %1930 = vrot.lane.b32.xlu0 %v378, 112
      %v1931 = vpop.permute.xlu0 %1930
      %1932 = vrot.lane.b32.xlu0 %v379, 112
      %v1933 = vpop.permute.xlu0 %1932
      %1934 = vrot.lane.b32.xlu0 %v381, 112
      %v1935 = vpop.permute.xlu0 %1934
      %1936 = vrot.lane.b32.xlu0 %v382, 112
      %v1937 = vpop.permute.xlu0 %1936
      %1938 = vrot.lane.b32.xlu0 %v384, 112
      %v1939 = vpop.permute.xlu0 %1938
      %1940 = vrot.lane.b32.xlu0 %v385, 112
      %v1941 = vpop.permute.xlu0 %1940
      %1942 = vrot.lane.b32.xlu0 %v387, 112
      %v1943 = vpop.permute.xlu0 %1942
      %1944 = vrot.lane.b32.xlu0 %v388, 112
      %v1945 = vpop.permute.xlu0 %1944
      %1946 = vrot.lane.b32.xlu0 %v390, 112
      %v1947 = vpop.permute.xlu0 %1946
      %1948 = vrot.lane.b32.xlu0 %v391, 112
      %v1949 = vpop.permute.xlu0 %1948
      %1950 = vrot.lane.b32.xlu0 %v393, 112
      %v1951 = vpop.permute.xlu0 %1950
      %1952 = vrot.lane.b32.xlu0 %v394, 112
      %v1953 = vpop.permute.xlu0 %1952
      %1954 = vrot.lane.b32.xlu0 %v396, 112
      %v1955 = vpop.permute.xlu0 %1954
      %1956 = vrot.lane.b32.xlu0 %v397, 112
      %v1957 = vpop.permute.xlu0 %1956
      %1958 = vrot.lane.b32.xlu0 %v399, 112
      %v1959 = vpop.permute.xlu0 %1958
      %1960 = vrot.lane.b32.xlu0 %v400, 112
      %v1961 = vpop.permute.xlu0 %1960
      %1962 = vrot.lane.b32.xlu0 %v402, 112
      %v1963 = vpop.permute.xlu0 %1962
      %1964 = vrot.lane.b32.xlu0 %v403, 112
      %v1965 = vpop.permute.xlu0 %1964
      %1998 = vrot.lane.b32.xlu0 %v731, 16
      %v1999 = vpop.permute.xlu0 %1998
      %2000 = vrot.lane.b32.xlu0 %v733, 16
      %v2001 = vpop.permute.xlu0 %2000
      %2002 = vrot.lane.b32.xlu0 %v736, 16
      %v2003 = vpop.permute.xlu0 %2002
      %2004 = vrot.lane.b32.xlu0 %v738, 16
      %v2005 = vpop.permute.xlu0 %2004
      %2006 = vrot.lane.b32.xlu0 %v741, 16
      %v2007 = vpop.permute.xlu0 %2006
      %2008 = vrot.lane.b32.xlu0 %v743, 16
      %v2009 = vpop.permute.xlu0 %2008
      %2010 = vrot.lane.b32.xlu0 %v746, 16
      %v2011 = vpop.permute.xlu0 %2010
      %2012 = vrot.lane.b32.xlu0 %v748, 16
      %v2013 = vpop.permute.xlu0 %2012
      %2014 = vrot.lane.b32.xlu0 %v751, 16
      %v2015 = vpop.permute.xlu0 %2014
      %2016 = vrot.lane.b32.xlu0 %v753, 16
      %v2017 = vpop.permute.xlu0 %2016
      %2018 = vrot.lane.b32.xlu0 %v756, 16
      %v2019 = vpop.permute.xlu0 %2018
      %2020 = vrot.lane.b32.xlu0 %v758, 16
      %v2021 = vpop.permute.xlu0 %2020
      %2022 = vrot.lane.b32.xlu0 %v761, 16
      %v2023 = vpop.permute.xlu0 %2022
      %2024 = vrot.lane.b32.xlu0 %v763, 16
      %v2025 = vpop.permute.xlu0 %2024
      %2026 = vrot.lane.b32.xlu0 %v766, 16
      %v2027 = vpop.permute.xlu0 %2026
      %2028 = vrot.lane.b32.xlu0 %v768, 16
      %v2029 = vpop.permute.xlu0 %2028
      %2030 = vrot.lane.b32.xlu0 %v771, 16
      %v2031 = vpop.permute.xlu0 %2030
      %2032 = vrot.lane.b32.xlu0 %v773, 16
      %v2033 = vpop.permute.xlu0 %2032
      %2034 = vrot.lane.b32.xlu0 %v776, 16
      %v2035 = vpop.permute.xlu0 %2034
      %2036 = vrot.lane.b32.xlu0 %v778, 16
      %v2037 = vpop.permute.xlu0 %2036
      %2038 = vrot.lane.b32.xlu0 %v781, 16
      %v2039 = vpop.permute.xlu0 %2038
      %2040 = vrot.lane.b32.xlu0 %v783, 16
      %v2041 = vpop.permute.xlu0 %2040
      %2042 = vrot.lane.b32.xlu0 %v786, 16
      %v2043 = vpop.permute.xlu0 %2042
      %2044 = vrot.lane.b32.xlu0 %v788, 16
      %v2045 = vpop.permute.xlu0 %2044
      %2046 = vrot.lane.b32.xlu0 %v791, 16
      %v2047 = vpop.permute.xlu0 %2046
      %2048 = vrot.lane.b32.xlu0 %v793, 16
      %v2049 = vpop.permute.xlu0 %2048
      %2050 = vrot.lane.b32.xlu0 %v796, 16
      %v2051 = vpop.permute.xlu0 %2050
      %2052 = vrot.lane.b32.xlu0 %v798, 16
      %v2053 = vpop.permute.xlu0 %2052
      %2054 = vrot.lane.b32.xlu0 %v801, 16
      %v2055 = vpop.permute.xlu0 %2054
      %2056 = vrot.lane.b32.xlu0 %v803, 16
      %v2057 = vpop.permute.xlu0 %2056
      %2058 = vrot.lane.b32.xlu0 %v889, 16
      %v2059 = vpop.permute.xlu0 %2058
      %2060 = vrot.lane.b32.xlu0 %v891, 16
      %v2061 = vpop.permute.xlu0 %2060
      %2094 = vrot.lane.b32.xlu0 %v811, 48
      %v2095 = vpop.permute.xlu0 %2094
      %2096 = vrot.lane.b32.xlu0 %v813, 48
      %v2097 = vpop.permute.xlu0 %2096
      %2098 = vrot.lane.b32.xlu0 %v816, 48
      %v2099 = vpop.permute.xlu0 %2098
      %2100 = vrot.lane.b32.xlu0 %v818, 48
      %v2101 = vpop.permute.xlu0 %2100
      %2102 = vrot.lane.b32.xlu0 %v821, 48
      %v2103 = vpop.permute.xlu0 %2102
      %2104 = vrot.lane.b32.xlu0 %v823, 48
      %v2105 = vpop.permute.xlu0 %2104
      %2106 = vrot.lane.b32.xlu0 %v826, 48
      %v2107 = vpop.permute.xlu0 %2106
      %2108 = vrot.lane.b32.xlu0 %v828, 48
      %v2109 = vpop.permute.xlu0 %2108
      %2110 = vrot.lane.b32.xlu0 %v831, 48
      %v2111 = vpop.permute.xlu0 %2110
      %2112 = vrot.lane.b32.xlu0 %v833, 48
      %v2113 = vpop.permute.xlu0 %2112
      %2114 = vrot.lane.b32.xlu0 %v836, 48
      %v2115 = vpop.permute.xlu0 %2114
      %2116 = vrot.lane.b32.xlu0 %v838, 48
      %v2117 = vpop.permute.xlu0 %2116
      %2118 = vrot.lane.b32.xlu0 %v841, 48
      %v2119 = vpop.permute.xlu0 %2118
      %2120 = vrot.lane.b32.xlu0 %v843, 48
      %v2121 = vpop.permute.xlu0 %2120
      %2122 = vrot.lane.b32.xlu0 %v846, 48
      %v2123 = vpop.permute.xlu0 %2122
      %2124 = vrot.lane.b32.xlu0 %v848, 48
      %v2125 = vpop.permute.xlu0 %2124
      %2126 = vrot.lane.b32.xlu0 %v851, 48
      %v2127 = vpop.permute.xlu0 %2126
      %2128 = vrot.lane.b32.xlu0 %v853, 48
      %v2129 = vpop.permute.xlu0 %2128
      %2130 = vrot.lane.b32.xlu0 %v856, 48
      %v2131 = vpop.permute.xlu0 %2130
      %2132 = vrot.lane.b32.xlu0 %v858, 48
      %v2133 = vpop.permute.xlu0 %2132
      %2134 = vrot.lane.b32.xlu0 %v861, 48
      %v2135 = vpop.permute.xlu0 %2134
      %2136 = vrot.lane.b32.xlu0 %v863, 48
      %v2137 = vpop.permute.xlu0 %2136
      %2138 = vrot.lane.b32.xlu0 %v866, 48
      %v2139 = vpop.permute.xlu0 %2138
      %2140 = vrot.lane.b32.xlu0 %v868, 48
      %v2141 = vpop.permute.xlu0 %2140
      %2142 = vrot.lane.b32.xlu0 %v871, 48
      %v2143 = vpop.permute.xlu0 %2142
      %2144 = vrot.lane.b32.xlu0 %v873, 48
      %v2145 = vpop.permute.xlu0 %2144
      %2146 = vrot.lane.b32.xlu0 %v876, 48
      %v2147 = vpop.permute.xlu0 %2146
      %2148 = vrot.lane.b32.xlu0 %v878, 48
      %v2149 = vpop.permute.xlu0 %2148
      %2150 = vrot.lane.b32.xlu0 %v881, 48
      %v2151 = vpop.permute.xlu0 %2150
      %2152 = vrot.lane.b32.xlu0 %v883, 48
      %v2153 = vpop.permute.xlu0 %2152
      %2154 = vrot.lane.b32.xlu0 %v894, 48
      %v2155 = vpop.permute.xlu0 %2154
      %2156 = vrot.lane.b32.xlu0 %v896, 48
      %v2157 = vpop.permute.xlu0 %2156
      %2190 = vrot.lane.b32.xlu0 %v360, 80
      %v2191 = vpop.permute.xlu0 %2190
      %2192 = vrot.lane.b32.xlu0 %v361, 80
      %v2193 = vpop.permute.xlu0 %2192
      %2194 = vrot.lane.b32.xlu0 %v363, 80
      %v2195 = vpop.permute.xlu0 %2194
      %2196 = vrot.lane.b32.xlu0 %v364, 80
      %v2197 = vpop.permute.xlu0 %2196
      %2198 = vrot.lane.b32.xlu0 %v366, 80
      %v2199 = vpop.permute.xlu0 %2198
      %2200 = vrot.lane.b32.xlu0 %v367, 80
      %v2201 = vpop.permute.xlu0 %2200
      %2202 = vrot.lane.b32.xlu0 %v369, 80
      %v2203 = vpop.permute.xlu0 %2202
      %2204 = vrot.lane.b32.xlu0 %v370, 80
      %v2205 = vpop.permute.xlu0 %2204
      %2206 = vrot.lane.b32.xlu0 %v372, 80
      %v2207 = vpop.permute.xlu0 %2206
      %2208 = vrot.lane.b32.xlu0 %v373, 80
      %v2209 = vpop.permute.xlu0 %2208
      %2210 = vrot.lane.b32.xlu0 %v375, 80
      %v2211 = vpop.permute.xlu0 %2210
      %2212 = vrot.lane.b32.xlu0 %v376, 80
      %v2213 = vpop.permute.xlu0 %2212
      %2214 = vrot.lane.b32.xlu0 %v378, 80
      %v2215 = vpop.permute.xlu0 %2214
      %2216 = vrot.lane.b32.xlu0 %v379, 80
      %v2217 = vpop.permute.xlu0 %2216
      %2218 = vrot.lane.b32.xlu0 %v381, 80
      %v2219 = vpop.permute.xlu0 %2218
      %2220 = vrot.lane.b32.xlu0 %v382, 80
      %v2221 = vpop.permute.xlu0 %2220
      %2222 = vrot.lane.b32.xlu0 %v384, 80
      %v2223 = vpop.permute.xlu0 %2222
      %2224 = vrot.lane.b32.xlu0 %v385, 80
      %v2225 = vpop.permute.xlu0 %2224
      %2226 = vrot.lane.b32.xlu0 %v387, 80
      %v2227 = vpop.permute.xlu0 %2226
      %2228 = vrot.lane.b32.xlu0 %v388, 80
      %v2229 = vpop.permute.xlu0 %2228
      %2230 = vrot.lane.b32.xlu0 %v390, 80
      %v2231 = vpop.permute.xlu0 %2230
      %2232 = vrot.lane.b32.xlu0 %v391, 80
      %v2233 = vpop.permute.xlu0 %2232
      %2234 = vrot.lane.b32.xlu0 %v393, 80
      %v2235 = vpop.permute.xlu0 %2234
      %2236 = vrot.lane.b32.xlu0 %v394, 80
      %v2237 = vpop.permute.xlu0 %2236
      %2238 = vrot.lane.b32.xlu0 %v396, 80
      %v2239 = vpop.permute.xlu0 %2238
      %2240 = vrot.lane.b32.xlu0 %v397, 80
      %v2241 = vpop.permute.xlu0 %2240
      %2242 = vrot.lane.b32.xlu0 %v399, 80
      %v2243 = vpop.permute.xlu0 %2242
      %2244 = vrot.lane.b32.xlu0 %v400, 80
      %v2245 = vpop.permute.xlu0 %2244
      %2246 = vrot.lane.b32.xlu0 %v402, 80
      %v2247 = vpop.permute.xlu0 %2246
      %2248 = vrot.lane.b32.xlu0 %v403, 80
      %v2249 = vpop.permute.xlu0 %2248
      %2250 = vrot.lane.b32.xlu0 %v405, 80
      %v2251 = vpop.permute.xlu0 %2250
      %2252 = vrot.lane.b32.xlu0 %v406, 80
      %v2253 = vpop.permute.xlu0 %2252
      %vm2286 = vcmask 130048
      %v2287 = vsel %vm2286, %v300, %v943
      %v2288 = vsel %vm2286, %v301, %v945
      %v2289 = vsel %vm2286, %v303, %v947
      %v2290 = vsel %vm2286, %v304, %v949
      %v2291 = vsel %vm2286, %v306, %v951
      %v2292 = vsel %vm2286, %v307, %v953
      %v2293 = vsel %vm2286, %v309, %v955
      %v2294 = vsel %vm2286, %v310, %v957
      %v2295 = vsel %vm2286, %v312, %v959
      %v2296 = vsel %vm2286, %v313, %v961
      %v2297 = vsel %vm2286, %v315, %v963
      %v2298 = vsel %vm2286, %v316, %v965
      %v2299 = vsel %vm2286, %v318, %v967
      %v2300 = vsel %vm2286, %v319, %v969
      %v2301 = vsel %vm2286, %v321, %v971
      %v2302 = vsel %vm2286, %v322, %v973
      %v2303 = vsel %vm2286, %v324, %v975
      %v2304 = vsel %vm2286, %v325, %v977
      %v2305 = vsel %vm2286, %v327, %v979
      %v2306 = vsel %vm2286, %v328, %v981
      %v2307 = vsel %vm2286, %v330, %v983
      %v2308 = vsel %vm2286, %v331, %v985
      %v2309 = vsel %vm2286, %v333, %v987
      %v2310 = vsel %vm2286, %v334, %v989
      %v2311 = vsel %vm2286, %v336, %v991
      %v2312 = vsel %vm2286, %v337, %v993
      %v2313 = vsel %vm2286, %v339, %v995
      %v2314 = vsel %vm2286, %v340, %v997
      %v2315 = vsel %vm2286, %v342, %v999
      %v2316 = vsel %vm2286, %v343, %v1001
      %v2317 = vsel %vm2286, %v345, %v1003
      %v2318 = vsel %vm2286, %v346, %v1005
      %vm2319 = vcmask 261120
      %v2320 = vsel %vm2319, %v2287, %v1039
      %v2321 = vsel %vm2319, %v2288, %v1041
      %v2322 = vsel %vm2319, %v2289, %v1043
      %v2323 = vsel %vm2319, %v2290, %v1045
      %v2324 = vsel %vm2319, %v2291, %v1047
      %v2325 = vsel %vm2319, %v2292, %v1049
      %v2326 = vsel %vm2319, %v2293, %v1051
      %v2327 = vsel %vm2319, %v2294, %v1053
      %v2328 = vsel %vm2319, %v2295, %v1055
      %v2329 = vsel %vm2319, %v2296, %v1057
      %v2330 = vsel %vm2319, %v2297, %v1059
      %v2331 = vsel %vm2319, %v2298, %v1061
      %v2332 = vsel %vm2319, %v2299, %v1063
      %v2333 = vsel %vm2319, %v2300, %v1065
      %v2334 = vsel %vm2319, %v2301, %v1067
      %v2335 = vsel %vm2319, %v2302, %v1069
      %v2336 = vsel %vm2319, %v2303, %v1071
      %v2337 = vsel %vm2319, %v2304, %v1073
      %v2338 = vsel %vm2319, %v2305, %v1075
      %v2339 = vsel %vm2319, %v2306, %v1077
      %v2340 = vsel %vm2319, %v2307, %v1079
      %v2341 = vsel %vm2319, %v2308, %v1081
      %v2342 = vsel %vm2319, %v2309, %v1083
      %v2343 = vsel %vm2319, %v2310, %v1085
      %v2344 = vsel %vm2319, %v2311, %v1087
      %v2345 = vsel %vm2319, %v2312, %v1089
      %v2346 = vsel %vm2319, %v2313, %v1091
      %v2347 = vsel %vm2319, %v2314, %v1093
      %v2348 = vsel %vm2319, %v2315, %v1095
      %v2349 = vsel %vm2319, %v2316, %v1097
      %v2350 = vsel %vm2319, %v2317, %v1099
      %v2351 = vsel %vm2319, %v2318, %v1101
      %vm2352 = vcmask 392192
      %v2353 = vsel %vm2352, %v2320, %v1135
      %v2354 = vsel %vm2352, %v2321, %v1137
      %v2355 = vsel %vm2352, %v2322, %v1139
      %v2356 = vsel %vm2352, %v2323, %v1141
      %v2357 = vsel %vm2352, %v2324, %v1143
      %v2358 = vsel %vm2352, %v2325, %v1145
      %v2359 = vsel %vm2352, %v2326, %v1147
      %v2360 = vsel %vm2352, %v2327, %v1149
      %v2361 = vsel %vm2352, %v2328, %v1151
      %v2362 = vsel %vm2352, %v2329, %v1153
      %v2363 = vsel %vm2352, %v2330, %v1155
      %v2364 = vsel %vm2352, %v2331, %v1157
      %v2365 = vsel %vm2352, %v2332, %v1159
      %v2366 = vsel %vm2352, %v2333, %v1161
      %v2367 = vsel %vm2352, %v2334, %v1163
      %v2368 = vsel %vm2352, %v2335, %v1165
      %v2369 = vsel %vm2352, %v2336, %v1167
      %v2370 = vsel %vm2352, %v2337, %v1169
      %v2371 = vsel %vm2352, %v2338, %v1171
      %v2372 = vsel %vm2352, %v2339, %v1173
      %v2373 = vsel %vm2352, %v2340, %v1175
      %v2374 = vsel %vm2352, %v2341, %v1177
      %v2375 = vsel %vm2352, %v2342, %v1179
      %v2376 = vsel %vm2352, %v2343, %v1181
      %v2377 = vsel %vm2352, %v2344, %v1183
      %v2378 = vsel %vm2352, %v2345, %v1185
      %v2379 = vsel %vm2352, %v2346, %v1187
      %v2380 = vsel %vm2352, %v2347, %v1189
      %v2381 = vsel %vm2352, %v2348, %v1191
      %v2382 = vsel %vm2352, %v2349, %v1193
      %v2383 = vsel %vm2352, %v2350, %v1195
      %v2384 = vsel %vm2352, %v2351, %v1197
      %vm2385 = vcmask 523264
      %v2386 = vsel %vm2385, %v2353, %v1231
      %v2387 = vsel %vm2385, %v2354, %v1233
      %v2388 = vsel %vm2385, %v2355, %v1235
      %v2389 = vsel %vm2385, %v2356, %v1237
      %v2390 = vsel %vm2385, %v2357, %v1239
      %v2391 = vsel %vm2385, %v2358, %v1241
      %v2392 = vsel %vm2385, %v2359, %v1243
      %v2393 = vsel %vm2385, %v2360, %v1245
      %v2394 = vsel %vm2385, %v2361, %v1247
      %v2395 = vsel %vm2385, %v2362, %v1249
      %v2396 = vsel %vm2385, %v2363, %v1251
      %v2397 = vsel %vm2385, %v2364, %v1253
      %v2398 = vsel %vm2385, %v2365, %v1255
      %v2399 = vsel %vm2385, %v2366, %v1257
      %v2400 = vsel %vm2385, %v2367, %v1259
      %v2401 = vsel %vm2385, %v2368, %v1261
      %v2402 = vsel %vm2385, %v2369, %v1263
      %v2403 = vsel %vm2385, %v2370, %v1265
      %v2404 = vsel %vm2385, %v2371, %v1267
      %v2405 = vsel %vm2385, %v2372, %v1269
      %v2406 = vsel %vm2385, %v2373, %v1271
      %v2407 = vsel %vm2385, %v2374, %v1273
      %v2408 = vsel %vm2385, %v2375, %v1275
      %v2409 = vsel %vm2385, %v2376, %v1277
      %v2410 = vsel %vm2385, %v2377, %v1279
      %v2411 = vsel %vm2385, %v2378, %v1281
      %v2412 = vsel %vm2385, %v2379, %v1283
      %v2413 = vsel %vm2385, %v2380, %v1285
      %v2414 = vsel %vm2385, %v2381, %v1287
      %v2415 = vsel %vm2385, %v2382, %v1289
      %v2416 = vsel %vm2385, %v2383, %v1291
      %v2417 = vsel %vm2385, %v2384, %v1293
      %vm2418 = vcmask 654336
      %v2419 = vsel %vm2418, %v2386, %v1327
      %v2420 = vsel %vm2418, %v2387, %v1329
      %v2421 = vsel %vm2418, %v2388, %v1331
      %v2422 = vsel %vm2418, %v2389, %v1333
      %v2423 = vsel %vm2418, %v2390, %v1335
      %v2424 = vsel %vm2418, %v2391, %v1337
      %v2425 = vsel %vm2418, %v2392, %v1339
      %v2426 = vsel %vm2418, %v2393, %v1341
      %v2427 = vsel %vm2418, %v2394, %v1343
      %v2428 = vsel %vm2418, %v2395, %v1345
      %v2429 = vsel %vm2418, %v2396, %v1347
      %v2430 = vsel %vm2418, %v2397, %v1349
      %v2431 = vsel %vm2418, %v2398, %v1351
      %v2432 = vsel %vm2418, %v2399, %v1353
      %v2433 = vsel %vm2418, %v2400, %v1355
      %v2434 = vsel %vm2418, %v2401, %v1357
      %v2435 = vsel %vm2418, %v2402, %v1359
      %v2436 = vsel %vm2418, %v2403, %v1361
      %v2437 = vsel %vm2418, %v2404, %v1363
      %v2438 = vsel %vm2418, %v2405, %v1365
      %v2439 = vsel %vm2418, %v2406, %v1367
      %v2440 = vsel %vm2418, %v2407, %v1369
      %v2441 = vsel %vm2418, %v2408, %v1371
      %v2442 = vsel %vm2418, %v2409, %v1373
      %v2443 = vsel %vm2418, %v2410, %v1375
      %v2444 = vsel %vm2418, %v2411, %v1377
      %v2445 = vsel %vm2418, %v2412, %v1379
      %v2446 = vsel %vm2418, %v2413, %v1381
      %v2447 = vsel %vm2418, %v2414, %v1383
      %v2448 = vsel %vm2418, %v2415, %v1385
      %v2449 = vsel %vm2418, %v2416, %v1387
      %v2450 = vsel %vm2418, %v2417, %v1389
      %vm2451 = vcmask 785408
      %v2452 = vsel %vm2451, %v2419, %v1423
      %v2453 = vsel %vm2451, %v2420, %v1425
      %v2454 = vsel %vm2451, %v2421, %v1427
      %v2455 = vsel %vm2451, %v2422, %v1429
      %v2456 = vsel %vm2451, %v2423, %v1431
      %v2457 = vsel %vm2451, %v2424, %v1433
      %v2458 = vsel %vm2451, %v2425, %v1435
      %v2459 = vsel %vm2451, %v2426, %v1437
      %v2460 = vsel %vm2451, %v2427, %v1439
      %v2461 = vsel %vm2451, %v2428, %v1441
      %v2462 = vsel %vm2451, %v2429, %v1443
      %v2463 = vsel %vm2451, %v2430, %v1445
      %v2464 = vsel %vm2451, %v2431, %v1447
      %v2465 = vsel %vm2451, %v2432, %v1449
      %v2466 = vsel %vm2451, %v2433, %v1451
      %v2467 = vsel %vm2451, %v2434, %v1453
      %v2468 = vsel %vm2451, %v2435, %v1455
      %v2469 = vsel %vm2451, %v2436, %v1457
      %v2470 = vsel %vm2451, %v2437, %v1459
      %v2471 = vsel %vm2451, %v2438, %v1461
      %v2472 = vsel %vm2451, %v2439, %v1463
      %v2473 = vsel %vm2451, %v2440, %v1465
      %v2474 = vsel %vm2451, %v2441, %v1467
      %v2475 = vsel %vm2451, %v2442, %v1469
      %v2476 = vsel %vm2451, %v2443, %v1471
      %v2477 = vsel %vm2451, %v2444, %v1473
      %v2478 = vsel %vm2451, %v2445, %v1475
      %v2479 = vsel %vm2451, %v2446, %v1477
      %v2480 = vsel %vm2451, %v2447, %v1479
      %v2481 = vsel %vm2451, %v2448, %v1481
      %v2482 = vsel %vm2451, %v2449, %v1483
      %v2483 = vsel %vm2451, %v2450, %v1485
      %vm2484 = vcmask 916480
      %v2485 = vsel %vm2484, %v2452, %v1519
      %v2486 = vsel %vm2484, %v2453, %v1521
      %v2487 = vsel %vm2484, %v2454, %v1523
      %v2488 = vsel %vm2484, %v2455, %v1525
      %v2489 = vsel %vm2484, %v2456, %v1527
      %v2490 = vsel %vm2484, %v2457, %v1529
      %v2491 = vsel %vm2484, %v2458, %v1531
      %v2492 = vsel %vm2484, %v2459, %v1533
      %v2493 = vsel %vm2484, %v2460, %v1535
      %v2494 = vsel %vm2484, %v2461, %v1537
      %v2495 = vsel %vm2484, %v2462, %v1539
      %v2496 = vsel %vm2484, %v2463, %v1541
      %v2497 = vsel %vm2484, %v2464, %v1543
      %v2498 = vsel %vm2484, %v2465, %v1545
      %v2499 = vsel %vm2484, %v2466, %v1547
      %v2500 = vsel %vm2484, %v2467, %v1549
      %v2501 = vsel %vm2484, %v2468, %v1551
      %v2502 = vsel %vm2484, %v2469, %v1553
      %v2503 = vsel %vm2484, %v2470, %v1555
      %v2504 = vsel %vm2484, %v2471, %v1557
      %v2505 = vsel %vm2484, %v2472, %v1559
      %v2506 = vsel %vm2484, %v2473, %v1561
      %v2507 = vsel %vm2484, %v2474, %v1563
      %v2508 = vsel %vm2484, %v2475, %v1565
      %v2509 = vsel %vm2484, %v2476, %v1567
      %v2510 = vsel %vm2484, %v2477, %v1569
      %v2511 = vsel %vm2484, %v2478, %v1571
      %v2512 = vsel %vm2484, %v2479, %v1573
      %v2513 = vsel %vm2484, %v2480, %v1575
      %v2514 = vsel %vm2484, %v2481, %v1577
      %v2515 = vsel %vm2484, %v2482, %v1579
      %v2516 = vsel %vm2484, %v2483, %v1581
      %v2517 = vsel %vm2286, %v550, %v1615
      %v2518 = vsel %vm2286, %v552, %v1617
      %v2519 = vsel %vm2286, %v555, %v1619
      %v2520 = vsel %vm2286, %v557, %v1621
      %v2521 = vsel %vm2286, %v560, %v1623
      %v2522 = vsel %vm2286, %v562, %v1625
      %v2523 = vsel %vm2286, %v565, %v1627
      %v2524 = vsel %vm2286, %v567, %v1629
      %v2525 = vsel %vm2286, %v570, %v1631
      %v2526 = vsel %vm2286, %v572, %v1633
      %v2527 = vsel %vm2286, %v575, %v1635
      %v2528 = vsel %vm2286, %v577, %v1637
      %v2529 = vsel %vm2286, %v580, %v1639
      %v2530 = vsel %vm2286, %v582, %v1641
      %v2531 = vsel %vm2286, %v585, %v1643
      %v2532 = vsel %vm2286, %v587, %v1645
      %v2533 = vsel %vm2286, %v590, %v1647
      %v2534 = vsel %vm2286, %v592, %v1649
      %v2535 = vsel %vm2286, %v595, %v1651
      %v2536 = vsel %vm2286, %v597, %v1653
      %v2537 = vsel %vm2286, %v600, %v1655
      %v2538 = vsel %vm2286, %v602, %v1657
      %v2539 = vsel %vm2286, %v605, %v1659
      %v2540 = vsel %vm2286, %v607, %v1661
      %v2541 = vsel %vm2286, %v610, %v1663
      %v2542 = vsel %vm2286, %v612, %v1665
      %v2543 = vsel %vm2286, %v615, %v1667
      %v2544 = vsel %vm2286, %v617, %v1669
      %v2545 = vsel %vm2286, %v628, %v1671
      %v2546 = vsel %vm2286, %v630, %v1673
      %v2547 = vsel %vm2286, %v641, %v1675
      %v2548 = vsel %vm2286, %v643, %v1677
      %v2549 = vsel %vm2352, %v2517, %v1711
      %v2550 = vsel %vm2352, %v2518, %v1713
      %v2551 = vsel %vm2352, %v2519, %v1715
      %v2552 = vsel %vm2352, %v2520, %v1717
      %v2553 = vsel %vm2352, %v2521, %v1719
      %v2554 = vsel %vm2352, %v2522, %v1721
      %v2555 = vsel %vm2352, %v2523, %v1723
      %v2556 = vsel %vm2352, %v2524, %v1725
      %v2557 = vsel %vm2352, %v2525, %v1727
      %v2558 = vsel %vm2352, %v2526, %v1729
      %v2559 = vsel %vm2352, %v2527, %v1731
      %v2560 = vsel %vm2352, %v2528, %v1733
      %v2561 = vsel %vm2352, %v2529, %v1735
      %v2562 = vsel %vm2352, %v2530, %v1737
      %v2563 = vsel %vm2352, %v2531, %v1739
      %v2564 = vsel %vm2352, %v2532, %v1741
      %v2565 = vsel %vm2352, %v2533, %v1743
      %v2566 = vsel %vm2352, %v2534, %v1745
      %v2567 = vsel %vm2352, %v2535, %v1747
      %v2568 = vsel %vm2352, %v2536, %v1749
      %v2569 = vsel %vm2352, %v2537, %v1751
      %v2570 = vsel %vm2352, %v2538, %v1753
      %v2571 = vsel %vm2352, %v2539, %v1755
      %v2572 = vsel %vm2352, %v2540, %v1757
      %v2573 = vsel %vm2352, %v2541, %v1759
      %v2574 = vsel %vm2352, %v2542, %v1761
      %v2575 = vsel %vm2352, %v2543, %v1763
      %v2576 = vsel %vm2352, %v2544, %v1765
      %v2577 = vsel %vm2352, %v2545, %v1767
      %v2578 = vsel %vm2352, %v2546, %v1769
      %v2579 = vsel %vm2352, %v2547, %v1771
      %v2580 = vsel %vm2352, %v2548, %v1773
      %v2581 = vsel %vm2418, %v2549, %v1807
      %v2582 = vsel %vm2418, %v2550, %v1809
      %v2583 = vsel %vm2418, %v2551, %v1811
      %v2584 = vsel %vm2418, %v2552, %v1813
      %v2585 = vsel %vm2418, %v2553, %v1815
      %v2586 = vsel %vm2418, %v2554, %v1817
      %v2587 = vsel %vm2418, %v2555, %v1819
      %v2588 = vsel %vm2418, %v2556, %v1821
      %v2589 = vsel %vm2418, %v2557, %v1823
      %v2590 = vsel %vm2418, %v2558, %v1825
      %v2591 = vsel %vm2418, %v2559, %v1827
      %v2592 = vsel %vm2418, %v2560, %v1829
      %v2593 = vsel %vm2418, %v2561, %v1831
      %v2594 = vsel %vm2418, %v2562, %v1833
      %v2595 = vsel %vm2418, %v2563, %v1835
      %v2596 = vsel %vm2418, %v2564, %v1837
      %v2597 = vsel %vm2418, %v2565, %v1839
      %v2598 = vsel %vm2418, %v2566, %v1841
      %v2599 = vsel %vm2418, %v2567, %v1843
      %v2600 = vsel %vm2418, %v2568, %v1845
      %v2601 = vsel %vm2418, %v2569, %v1847
      %v2602 = vsel %vm2418, %v2570, %v1849
      %v2603 = vsel %vm2418, %v2571, %v1851
      %v2604 = vsel %vm2418, %v2572, %v1853
      %v2605 = vsel %vm2418, %v2573, %v1855
      %v2606 = vsel %vm2418, %v2574, %v1857
      %v2607 = vsel %vm2418, %v2575, %v1859
      %v2608 = vsel %vm2418, %v2576, %v1861
      %v2609 = vsel %vm2418, %v2577, %v1863
      %v2610 = vsel %vm2418, %v2578, %v1865
      %v2611 = vsel %vm2418, %v2579, %v1867
      %v2612 = vsel %vm2418, %v2580, %v1869
      %v2613 = vsel %vm2484, %v2581, %v1903
      %v2614 = vsel %vm2484, %v2582, %v1905
      %v2615 = vsel %vm2484, %v2583, %v1907
      %v2616 = vsel %vm2484, %v2584, %v1909
      %v2617 = vsel %vm2484, %v2585, %v1911
      %v2618 = vsel %vm2484, %v2586, %v1913
      %v2619 = vsel %vm2484, %v2587, %v1915
      %v2620 = vsel %vm2484, %v2588, %v1917
      %v2621 = vsel %vm2484, %v2589, %v1919
      %v2622 = vsel %vm2484, %v2590, %v1921
      %v2623 = vsel %vm2484, %v2591, %v1923
      %v2624 = vsel %vm2484, %v2592, %v1925
      %v2625 = vsel %vm2484, %v2593, %v1927
      %v2626 = vsel %vm2484, %v2594, %v1929
      %v2627 = vsel %vm2484, %v2595, %v1931
      %v2628 = vsel %vm2484, %v2596, %v1933
      %v2629 = vsel %vm2484, %v2597, %v1935
      %v2630 = vsel %vm2484, %v2598, %v1937
      %v2631 = vsel %vm2484, %v2599, %v1939
      %v2632 = vsel %vm2484, %v2600, %v1941
      %v2633 = vsel %vm2484, %v2601, %v1943
      %v2634 = vsel %vm2484, %v2602, %v1945
      %v2635 = vsel %vm2484, %v2603, %v1947
      %v2636 = vsel %vm2484, %v2604, %v1949
      %v2637 = vsel %vm2484, %v2605, %v1951
      %v2638 = vsel %vm2484, %v2606, %v1953
      %v2639 = vsel %vm2484, %v2607, %v1955
      %v2640 = vsel %vm2484, %v2608, %v1957
      %v2641 = vsel %vm2484, %v2609, %v1959
      %v2642 = vsel %vm2484, %v2610, %v1961
      %v2643 = vsel %vm2484, %v2611, %v1963
      %v2644 = vsel %vm2484, %v2612, %v1965
      %v2645 = vsel %vm2286, %v1903, %v1999
      %v2646 = vsel %vm2286, %v1905, %v2001
      %v2647 = vsel %vm2286, %v1907, %v2003
      %v2648 = vsel %vm2286, %v1909, %v2005
      %v2649 = vsel %vm2286, %v1911, %v2007
      %v2650 = vsel %vm2286, %v1913, %v2009
      %v2651 = vsel %vm2286, %v1915, %v2011
      %v2652 = vsel %vm2286, %v1917, %v2013
      %v2653 = vsel %vm2286, %v1919, %v2015
      %v2654 = vsel %vm2286, %v1921, %v2017
      %v2655 = vsel %vm2286, %v1923, %v2019
      %v2656 = vsel %vm2286, %v1925, %v2021
      %v2657 = vsel %vm2286, %v1927, %v2023
      %v2658 = vsel %vm2286, %v1929, %v2025
      %v2659 = vsel %vm2286, %v1931, %v2027
      %v2660 = vsel %vm2286, %v1933, %v2029
      %v2661 = vsel %vm2286, %v1935, %v2031
      %v2662 = vsel %vm2286, %v1937, %v2033
      %v2663 = vsel %vm2286, %v1939, %v2035
      %v2664 = vsel %vm2286, %v1941, %v2037
      %v2665 = vsel %vm2286, %v1943, %v2039
      %v2666 = vsel %vm2286, %v1945, %v2041
      %v2667 = vsel %vm2286, %v1947, %v2043
      %v2668 = vsel %vm2286, %v1949, %v2045
      %v2669 = vsel %vm2286, %v1951, %v2047
      %v2670 = vsel %vm2286, %v1953, %v2049
      %v2671 = vsel %vm2286, %v1955, %v2051
      %v2672 = vsel %vm2286, %v1957, %v2053
      %v2673 = vsel %vm2286, %v1959, %v2055
      %v2674 = vsel %vm2286, %v1961, %v2057
      %v2675 = vsel %vm2286, %v1963, %v2059
      %v2676 = vsel %vm2286, %v1965, %v2061
      %v2677 = vsel %vm2352, %v2645, %v2095
      %v2678 = vsel %vm2352, %v2646, %v2097
      %v2679 = vsel %vm2352, %v2647, %v2099
      %v2680 = vsel %vm2352, %v2648, %v2101
      %v2681 = vsel %vm2352, %v2649, %v2103
      %v2682 = vsel %vm2352, %v2650, %v2105
      %v2683 = vsel %vm2352, %v2651, %v2107
      %v2684 = vsel %vm2352, %v2652, %v2109
      %v2685 = vsel %vm2352, %v2653, %v2111
      %v2686 = vsel %vm2352, %v2654, %v2113
      %v2687 = vsel %vm2352, %v2655, %v2115
      %v2688 = vsel %vm2352, %v2656, %v2117
      %v2689 = vsel %vm2352, %v2657, %v2119
      %v2690 = vsel %vm2352, %v2658, %v2121
      %v2691 = vsel %vm2352, %v2659, %v2123
      %v2692 = vsel %vm2352, %v2660, %v2125
      %v2693 = vsel %vm2352, %v2661, %v2127
      %v2694 = vsel %vm2352, %v2662, %v2129
      %v2695 = vsel %vm2352, %v2663, %v2131
      %v2696 = vsel %vm2352, %v2664, %v2133
      %v2697 = vsel %vm2352, %v2665, %v2135
      %v2698 = vsel %vm2352, %v2666, %v2137
      %v2699 = vsel %vm2352, %v2667, %v2139
      %v2700 = vsel %vm2352, %v2668, %v2141
      %v2701 = vsel %vm2352, %v2669, %v2143
      %v2702 = vsel %vm2352, %v2670, %v2145
      %v2703 = vsel %vm2352, %v2671, %v2147
      %v2704 = vsel %vm2352, %v2672, %v2149
      %v2705 = vsel %vm2352, %v2673, %v2151
      %v2706 = vsel %vm2352, %v2674, %v2153
      %v2707 = vsel %vm2352, %v2675, %v2155
      %v2708 = vsel %vm2352, %v2676, %v2157
      %v2709 = vsel %vm2418, %v2677, %v2191
      %v2710 = vsel %vm2418, %v2678, %v2193
      %v2711 = vsel %vm2418, %v2679, %v2195
      %v2712 = vsel %vm2418, %v2680, %v2197
      %v2713 = vsel %vm2418, %v2681, %v2199
      %v2714 = vsel %vm2418, %v2682, %v2201
      %v2715 = vsel %vm2418, %v2683, %v2203
      %v2716 = vsel %vm2418, %v2684, %v2205
      %v2717 = vsel %vm2418, %v2685, %v2207
      %v2718 = vsel %vm2418, %v2686, %v2209
      %v2719 = vsel %vm2418, %v2687, %v2211
      %v2720 = vsel %vm2418, %v2688, %v2213
      %v2721 = vsel %vm2418, %v2689, %v2215
      %v2722 = vsel %vm2418, %v2690, %v2217
      %v2723 = vsel %vm2418, %v2691, %v2219
      %v2724 = vsel %vm2418, %v2692, %v2221
      %v2725 = vsel %vm2418, %v2693, %v2223
      %v2726 = vsel %vm2418, %v2694, %v2225
      %v2727 = vsel %vm2418, %v2695, %v2227
      %v2728 = vsel %vm2418, %v2696, %v2229
      %v2729 = vsel %vm2418, %v2697, %v2231
      %v2730 = vsel %vm2418, %v2698, %v2233
      %v2731 = vsel %vm2418, %v2699, %v2235
      %v2732 = vsel %vm2418, %v2700, %v2237
      %v2733 = vsel %vm2418, %v2701, %v2239
      %v2734 = vsel %vm2418, %v2702, %v2241
      %v2735 = vsel %vm2418, %v2703, %v2243
      %v2736 = vsel %vm2418, %v2704, %v2245
      %v2737 = vsel %vm2418, %v2705, %v2247
      %v2738 = vsel %vm2418, %v2706, %v2249
      %v2739 = vsel %vm2418, %v2707, %v2251
      %v2740 = vsel %vm2418, %v2708, %v2253
      %2741 = vrot.lane.b32.xlu0 %v816, 32
      %v2742 = vpop.permute.xlu0 %2741
      %2743 = vrot.lane.b32.xlu0 %v818, 32
      %v2744 = vpop.permute.xlu0 %2743
      %2745 = vrot.lane.b32.xlu0 %v821, 32
      %v2746 = vpop.permute.xlu0 %2745
      %2747 = vrot.lane.b32.xlu0 %v823, 32
      %v2748 = vpop.permute.xlu0 %2747
      %2749 = vrot.lane.b32.xlu0 %v826, 32
      %v2750 = vpop.permute.xlu0 %2749
      %2751 = vrot.lane.b32.xlu0 %v828, 32
      %v2752 = vpop.permute.xlu0 %2751
      %2753 = vrot.lane.b32.xlu0 %v831, 32
      %v2754 = vpop.permute.xlu0 %2753
      %2755 = vrot.lane.b32.xlu0 %v833, 32
      %v2756 = vpop.permute.xlu0 %2755
      %2757 = vrot.lane.b32.xlu0 %v836, 32
      %v2758 = vpop.permute.xlu0 %2757
      %2759 = vrot.lane.b32.xlu0 %v838, 32
      %v2760 = vpop.permute.xlu0 %2759
      %2761 = vrot.lane.b32.xlu0 %v841, 32
      %v2762 = vpop.permute.xlu0 %2761
      %2763 = vrot.lane.b32.xlu0 %v843, 32
      %v2764 = vpop.permute.xlu0 %2763
      %2765 = vrot.lane.b32.xlu0 %v846, 32
      %v2766 = vpop.permute.xlu0 %2765
      %2767 = vrot.lane.b32.xlu0 %v848, 32
      %v2768 = vpop.permute.xlu0 %2767
      %2769 = vrot.lane.b32.xlu0 %v851, 32
      %v2770 = vpop.permute.xlu0 %2769
      %2771 = vrot.lane.b32.xlu0 %v853, 32
      %v2772 = vpop.permute.xlu0 %2771
      %2773 = vrot.lane.b32.xlu0 %v856, 32
      %v2774 = vpop.permute.xlu0 %2773
      %2775 = vrot.lane.b32.xlu0 %v858, 32
      %v2776 = vpop.permute.xlu0 %2775
      %2777 = vrot.lane.b32.xlu0 %v861, 32
      %v2778 = vpop.permute.xlu0 %2777
      %2779 = vrot.lane.b32.xlu0 %v863, 32
      %v2780 = vpop.permute.xlu0 %2779
      %2781 = vrot.lane.b32.xlu0 %v866, 32
      %v2782 = vpop.permute.xlu0 %2781
      %2783 = vrot.lane.b32.xlu0 %v868, 32
      %v2784 = vpop.permute.xlu0 %2783
      %2785 = vrot.lane.b32.xlu0 %v871, 32
      %v2786 = vpop.permute.xlu0 %2785
      %2787 = vrot.lane.b32.xlu0 %v873, 32
      %v2788 = vpop.permute.xlu0 %2787
      %2789 = vrot.lane.b32.xlu0 %v876, 32
      %v2790 = vpop.permute.xlu0 %2789
      %2791 = vrot.lane.b32.xlu0 %v878, 32
      %v2792 = vpop.permute.xlu0 %2791
      %2793 = vrot.lane.b32.xlu0 %v881, 32
      %v2794 = vpop.permute.xlu0 %2793
      %2795 = vrot.lane.b32.xlu0 %v883, 32
      %v2796 = vpop.permute.xlu0 %2795
      %2797 = vrot.lane.b32.xlu0 %v894, 32
      %v2798 = vpop.permute.xlu0 %2797
      %2799 = vrot.lane.b32.xlu0 %v896, 32
      %v2800 = vpop.permute.xlu0 %2799
      %2801 = vrot.lane.b32.xlu0 %v939, 32
      %v2802 = vpop.permute.xlu0 %2801
      %2803 = vrot.lane.b32.xlu0 %v941, 32
      %v2804 = vpop.permute.xlu0 %2803
      %v2837 = vsel %vm2319, %v736, %v2742
      %v2838 = vsel %vm2319, %v738, %v2744
      %v2839 = vsel %vm2319, %v741, %v2746
      %v2840 = vsel %vm2319, %v743, %v2748
      %v2841 = vsel %vm2319, %v746, %v2750
      %v2842 = vsel %vm2319, %v748, %v2752
      %v2843 = vsel %vm2319, %v751, %v2754
      %v2844 = vsel %vm2319, %v753, %v2756
      %v2845 = vsel %vm2319, %v756, %v2758
      %v2846 = vsel %vm2319, %v758, %v2760
      %v2847 = vsel %vm2319, %v761, %v2762
      %v2848 = vsel %vm2319, %v763, %v2764
      %v2849 = vsel %vm2319, %v766, %v2766
      %v2850 = vsel %vm2319, %v768, %v2768
      %v2851 = vsel %vm2319, %v771, %v2770
      %v2852 = vsel %vm2319, %v773, %v2772
      %v2853 = vsel %vm2319, %v776, %v2774
      %v2854 = vsel %vm2319, %v778, %v2776
      %v2855 = vsel %vm2319, %v781, %v2778
      %v2856 = vsel %vm2319, %v783, %v2780
      %v2857 = vsel %vm2319, %v786, %v2782
      %v2858 = vsel %vm2319, %v788, %v2784
      %v2859 = vsel %vm2319, %v791, %v2786
      %v2860 = vsel %vm2319, %v793, %v2788
      %v2861 = vsel %vm2319, %v796, %v2790
      %v2862 = vsel %vm2319, %v798, %v2792
      %v2863 = vsel %vm2319, %v801, %v2794
      %v2864 = vsel %vm2319, %v803, %v2796
      %v2865 = vsel %vm2319, %v889, %v2798
      %v2866 = vsel %vm2319, %v891, %v2800
      %v2867 = vsel %vm2319, %v902, %v2802
      %v2868 = vsel %vm2319, %v904, %v2804
      %2901 = vrot.lane.b32.xlu0 %v2837, 112
      %v2902 = vpop.permute.xlu0 %2901
      %2903 = vrot.lane.b32.xlu0 %v2838, 112
      %v2904 = vpop.permute.xlu0 %2903
      %2905 = vrot.lane.b32.xlu0 %v2839, 112
      %v2906 = vpop.permute.xlu0 %2905
      %2907 = vrot.lane.b32.xlu0 %v2840, 112
      %v2908 = vpop.permute.xlu0 %2907
      %2909 = vrot.lane.b32.xlu0 %v2841, 112
      %v2910 = vpop.permute.xlu0 %2909
      %2911 = vrot.lane.b32.xlu0 %v2842, 112
      %v2912 = vpop.permute.xlu0 %2911
      %2913 = vrot.lane.b32.xlu0 %v2843, 112
      %v2914 = vpop.permute.xlu0 %2913
      %2915 = vrot.lane.b32.xlu0 %v2844, 112
      %v2916 = vpop.permute.xlu0 %2915
      %2917 = vrot.lane.b32.xlu0 %v2845, 112
      %v2918 = vpop.permute.xlu0 %2917
      %2919 = vrot.lane.b32.xlu0 %v2846, 112
      %v2920 = vpop.permute.xlu0 %2919
      %2921 = vrot.lane.b32.xlu0 %v2847, 112
      %v2922 = vpop.permute.xlu0 %2921
      %2923 = vrot.lane.b32.xlu0 %v2848, 112
      %v2924 = vpop.permute.xlu0 %2923
      %2925 = vrot.lane.b32.xlu0 %v2849, 112
      %v2926 = vpop.permute.xlu0 %2925
      %2927 = vrot.lane.b32.xlu0 %v2850, 112
      %v2928 = vpop.permute.xlu0 %2927
      %2929 = vrot.lane.b32.xlu0 %v2851, 112
      %v2930 = vpop.permute.xlu0 %2929
      %2931 = vrot.lane.b32.xlu0 %v2852, 112
      %v2932 = vpop.permute.xlu0 %2931
      %2933 = vrot.lane.b32.xlu0 %v2853, 112
      %v2934 = vpop.permute.xlu0 %2933
      %2935 = vrot.lane.b32.xlu0 %v2854, 112
      %v2936 = vpop.permute.xlu0 %2935
      %2937 = vrot.lane.b32.xlu0 %v2855, 112
      %v2938 = vpop.permute.xlu0 %2937
      %2939 = vrot.lane.b32.xlu0 %v2856, 112
      %v2940 = vpop.permute.xlu0 %2939
      %2941 = vrot.lane.b32.xlu0 %v2857, 112
      %v2942 = vpop.permute.xlu0 %2941
      %2943 = vrot.lane.b32.xlu0 %v2858, 112
      %v2944 = vpop.permute.xlu0 %2943
      %2945 = vrot.lane.b32.xlu0 %v2859, 112
      %v2946 = vpop.permute.xlu0 %2945
      %2947 = vrot.lane.b32.xlu0 %v2860, 112
      %v2948 = vpop.permute.xlu0 %2947
      %2949 = vrot.lane.b32.xlu0 %v2861, 112
      %v2950 = vpop.permute.xlu0 %2949
      %2951 = vrot.lane.b32.xlu0 %v2862, 112
      %v2952 = vpop.permute.xlu0 %2951
      %2953 = vrot.lane.b32.xlu0 %v2863, 112
      %v2954 = vpop.permute.xlu0 %2953
      %2955 = vrot.lane.b32.xlu0 %v2864, 112
      %v2956 = vpop.permute.xlu0 %2955
      %2957 = vrot.lane.b32.xlu0 %v2865, 112
      %v2958 = vpop.permute.xlu0 %2957
      %2959 = vrot.lane.b32.xlu0 %v2866, 112
      %v2960 = vpop.permute.xlu0 %2959
      %2961 = vrot.lane.b32.xlu0 %v2867, 112
      %v2962 = vpop.permute.xlu0 %2961
      %2963 = vrot.lane.b32.xlu0 %v2868, 112
      %v2964 = vpop.permute.xlu0 %2963
      %v2997 = vsel %vm2484, %v2709, %v2902
      %v2998 = vsel %vm2484, %v2710, %v2904
      %v2999 = vsel %vm2484, %v2711, %v2906
      %v3000 = vsel %vm2484, %v2712, %v2908
      %v3001 = vsel %vm2484, %v2713, %v2910
      %v3002 = vsel %vm2484, %v2714, %v2912
      %v3003 = vsel %vm2484, %v2715, %v2914
      %v3004 = vsel %vm2484, %v2716, %v2916
      %v3005 = vsel %vm2484, %v2717, %v2918
      %v3006 = vsel %vm2484, %v2718, %v2920
      %v3007 = vsel %vm2484, %v2719, %v2922
      %v3008 = vsel %vm2484, %v2720, %v2924
      %v3009 = vsel %vm2484, %v2721, %v2926
      %v3010 = vsel %vm2484, %v2722, %v2928
      %v3011 = vsel %vm2484, %v2723, %v2930
      %v3012 = vsel %vm2484, %v2724, %v2932
      %v3013 = vsel %vm2484, %v2725, %v2934
      %v3014 = vsel %vm2484, %v2726, %v2936
      %v3015 = vsel %vm2484, %v2727, %v2938
      %v3016 = vsel %vm2484, %v2728, %v2940
      %v3017 = vsel %vm2484, %v2729, %v2942
      %v3018 = vsel %vm2484, %v2730, %v2944
      %v3019 = vsel %vm2484, %v2731, %v2946
      %v3020 = vsel %vm2484, %v2732, %v2948
      %v3021 = vsel %vm2484, %v2733, %v2950
      %v3022 = vsel %vm2484, %v2734, %v2952
      %v3023 = vsel %vm2484, %v2735, %v2954
      %v3024 = vsel %vm2484, %v2736, %v2956
      %v3025 = vsel %vm2484, %v2737, %v2958
      %v3026 = vsel %vm2484, %v2738, %v2960
      %v3027 = vsel %vm2484, %v2739, %v2962
      %v3028 = vsel %vm2484, %v2740, %v2964
      %v3029 = vpack.c.bf16 %v2486, %v2485
      %v3030 = vpack.c.bf16 %v2614, %v2613
      %v3031 = vpack.c.bf16 %v2998, %v2997
      %v3032 = vpack.c.bf16 %v2904, %v2902
      %v3033 = vpack.c.bf16 %v2488, %v2487
      %v3034 = vpack.c.bf16 %v2616, %v2615
      %v3035 = vpack.c.bf16 %v3000, %v2999
      %v3036 = vpack.c.bf16 %v2908, %v2906
      %v3037 = vpack.c.bf16 %v2490, %v2489
      %v3038 = vpack.c.bf16 %v2618, %v2617
      %v3039 = vpack.c.bf16 %v3002, %v3001
      %v3040 = vpack.c.bf16 %v2912, %v2910
      %v3041 = vpack.c.bf16 %v2492, %v2491
      %v3042 = vpack.c.bf16 %v2620, %v2619
      %v3043 = vpack.c.bf16 %v3004, %v3003
      %v3044 = vpack.c.bf16 %v2916, %v2914
      %v3045 = vpack.c.bf16 %v2494, %v2493
      %v3046 = vpack.c.bf16 %v2622, %v2621
      %v3047 = vpack.c.bf16 %v3006, %v3005
      %v3048 = vpack.c.bf16 %v2920, %v2918
      %v3049 = vpack.c.bf16 %v2496, %v2495
      %v3050 = vpack.c.bf16 %v2624, %v2623
      %v3051 = vpack.c.bf16 %v3008, %v3007
      %v3052 = vpack.c.bf16 %v2924, %v2922
      %v3053 = vpack.c.bf16 %v2498, %v2497
      %v3054 = vpack.c.bf16 %v2626, %v2625
      %v3055 = vpack.c.bf16 %v3010, %v3009
      %v3056 = vpack.c.bf16 %v2928, %v2926
      %v3057 = vpack.c.bf16 %v2500, %v2499
      %v3058 = vpack.c.bf16 %v2628, %v2627
      %v3059 = vpack.c.bf16 %v3012, %v3011
      %v3060 = vpack.c.bf16 %v2932, %v2930
      %v3061 = vpack.c.bf16 %v2502, %v2501
      %v3062 = vpack.c.bf16 %v2630, %v2629
      %v3063 = vpack.c.bf16 %v3014, %v3013
      %v3064 = vpack.c.bf16 %v2936, %v2934
      %v3065 = vpack.c.bf16 %v2504, %v2503
      %v3066 = vpack.c.bf16 %v2632, %v2631
      %v3067 = vpack.c.bf16 %v3016, %v3015
      %v3068 = vpack.c.bf16 %v2940, %v2938
      %v3069 = vpack.c.bf16 %v2506, %v2505
      %v3070 = vpack.c.bf16 %v2634, %v2633
      %v3071 = vpack.c.bf16 %v3018, %v3017
      %v3072 = vpack.c.bf16 %v2944, %v2942
      %v3073 = vpack.c.bf16 %v2508, %v2507
      %v3074 = vpack.c.bf16 %v2636, %v2635
      %v3075 = vpack.c.bf16 %v3020, %v3019
      %v3076 = vpack.c.bf16 %v2948, %v2946
      %v3077 = vpack.c.bf16 %v2510, %v2509
      %v3078 = vpack.c.bf16 %v2638, %v2637
      %v3079 = vpack.c.bf16 %v3022, %v3021
      %v3080 = vpack.c.bf16 %v2952, %v2950
      %v3081 = vpack.c.bf16 %v2512, %v2511
      %v3082 = vpack.c.bf16 %v2640, %v2639
      %v3083 = vpack.c.bf16 %v3024, %v3023
      %v3084 = vpack.c.bf16 %v2956, %v2954
      %v3085 = vpack.c.bf16 %v2514, %v2513
      %v3086 = vpack.c.bf16 %v2642, %v2641
      %v3087 = vpack.c.bf16 %v3026, %v3025
      %v3088 = vpack.c.bf16 %v2960, %v2958
      %v3089 = vpack.c.bf16 %v2516, %v2515
      %v3090 = vpack.c.bf16 %v2644, %v2643
      %v3091 = vpack.c.bf16 %v3028, %v3027
      %v3092 = vpack.c.bf16 %v2964, %v2962
      %v3093 = vld [vmem:[%s1] sm:$0xf]
      %v3094 = vld [vmem:[%s1 + $0x4] sm:$0xf]
      %v3095 = vld [vmem:[%s1 + $0x8] sm:$0xf]
      %v3096 = vld [vmem:[%s1 + $0xc] sm:$0xf]
      %v3097 = vld [vmem:[%s1 + $0x10] sm:$0xf]
      %v3098 = vld [vmem:[%s1 + $0x14] sm:$0xf]
      %v3099 = vld [vmem:[%s1 + $0x18] sm:$0xf]
      %v3100 = vld [vmem:[%s1 + $0x1c] sm:$0xf]
      %v3101 = vld [vmem:[%s1 + $0x20] sm:$0xf]
      %v3102 = vld [vmem:[%s1 + $0x24] sm:$0xf]
      %v3103 = vld [vmem:[%s1 + $0x28] sm:$0xf]
      %v3104 = vld [vmem:[%s1 + $0x2c] sm:$0xf]
      %v3105 = vld [vmem:[%s1 + $0x30] sm:$0xf]
      %v3106 = vld [vmem:[%s1 + $0x34] sm:$0xf]
      %v3107 = vld [vmem:[%s1 + $0x38] sm:$0xf]
      %v3108 = vld [vmem:[%s1 + $0x3c] sm:$0xf]
      %v3109 = vld [vmem:[%s1 + $0x40] sm:$0xf]
      %v3110 = vld [vmem:[%s1 + $0x44] sm:$0xf]
      %v3111 = vld [vmem:[%s1 + $0x48] sm:$0xf]
      %v3112 = vld [vmem:[%s1 + $0x4c] sm:$0xf]
      %v3113 = vld [vmem:[%s1 + $0x50] sm:$0xf]
      %v3114 = vld [vmem:[%s1 + $0x54] sm:$0xf]
      %v3115 = vld [vmem:[%s1 + $0x58] sm:$0xf]
      %v3116 = vld [vmem:[%s1 + $0x5c] sm:$0xf]
      %v3117 = vld [vmem:[%s1 + $0x60] sm:$0xf]
      %v3118 = vld [vmem:[%s1 + $0x64] sm:$0xf]
      %v3119 = vld [vmem:[%s1 + $0x68] sm:$0xf]
      %v3120 = vld [vmem:[%s1 + $0x6c] sm:$0xf]
      %v3121 = vld [vmem:[%s1 + $0x70] sm:$0xf]
      %v3122 = vld [vmem:[%s1 + $0x74] sm:$0xf]
      %v3123 = vld [vmem:[%s1 + $0x78] sm:$0xf]
      %v3124 = vld [vmem:[%s1 + $0x7c] sm:$0xf]
      %v3125 = vld [vmem:[%s1 + $0x80] sm:$0xf]
      %v3126 = vld [vmem:[%s1 + $0x84] sm:$0xf]
      %v3127 = vld [vmem:[%s1 + $0x88] sm:$0xf]
      %v3128 = vld [vmem:[%s1 + $0x8c] sm:$0xf]
      %v3129 = vld [vmem:[%s1 + $0x90] sm:$0xf]
      %v3130 = vld [vmem:[%s1 + $0x94] sm:$0xf]
      %v3131 = vld [vmem:[%s1 + $0x98] sm:$0xf]
      %v3132 = vld [vmem:[%s1 + $0x9c] sm:$0xf]
      %v3133 = vld [vmem:[%s1 + $0xa0] sm:$0xf]
      %v3134 = vld [vmem:[%s1 + $0xa4] sm:$0xf]
      %v3135 = vld [vmem:[%s1 + $0xa8] sm:$0xf]
      %v3136 = vld [vmem:[%s1 + $0xac] sm:$0xf]
      %v3137 = vld [vmem:[%s1 + $0xb0] sm:$0xf]
      %v3138 = vld [vmem:[%s1 + $0xb4] sm:$0xf]
      %v3139 = vld [vmem:[%s1 + $0xb8] sm:$0xf]
      %v3140 = vld [vmem:[%s1 + $0xbc] sm:$0xf]
      %v3141 = vld [vmem:[%s1 + $0xc0] sm:$0xf]
      %v3142 = vld [vmem:[%s1 + $0xc4] sm:$0xf]
      %v3143 = vld [vmem:[%s1 + $0xc8] sm:$0xf]
      %v3144 = vld [vmem:[%s1 + $0xcc] sm:$0xf]
      %v3145 = vld [vmem:[%s1 + $0xd0] sm:$0xf]
      %v3146 = vld [vmem:[%s1 + $0xd4] sm:$0xf]
      %v3147 = vld [vmem:[%s2] sm:$0x1]
      %v3149 = vlaneseq
      %v3150 = vshrl.u32 %v3149, 7
      %v3151 = vsub.s32 0, %v3150
      %v3152 = vrot.slane %v3147, %v3151
      %v3208 = vunpack.c.l.b16 %v3093
      %v3209 = vunpack.c.l.b16 %v3094
      %v3210 = vunpack.c.l.b16 %v3095
      %v3211 = vunpack.c.l.b16 %v3096
      %v3212 = vunpack.c.l.b16 %v3097
      %v3213 = vunpack.c.l.b16 %v3098
      %v3214 = vunpack.c.l.b16 %v3099
      %v3215 = vunpack.c.l.b16 %v3100
      %v3216 = vunpack.c.l.b16 %v3101
      %v3217 = vunpack.c.l.b16 %v3102
      %v3218 = vunpack.c.l.b16 %v3103
      %v3219 = vunpack.c.l.b16 %v3104
      %v3220 = vunpack.c.l.b16 %v3105
      %v3221 = vunpack.c.l.b16 %v3106
      %v3222 = vunpack.c.l.b16 %v3107
      %v3223 = vunpack.c.l.b16 %v3108
      %v3224 = vunpack.c.l.b16 %v3109
      %v3225 = vunpack.c.l.b16 %v3110
      %v3226 = vunpack.c.l.b16 %v3111
      %v3227 = vunpack.c.l.b16 %v3112
      %v3228 = vunpack.c.l.b16 %v3113
      %v3229 = vunpack.c.l.b16 %v3114
      %v3230 = vunpack.c.l.b16 %v3115
      %v3231 = vunpack.c.l.b16 %v3116
      %v3232 = vunpack.c.l.b16 %v3117
      %v3233 = vunpack.c.l.b16 %v3118
      %v3234 = vunpack.c.l.b16 %v3119
      %v3235 = vunpack.c.l.b16 %v3120
      %v3236 = vunpack.c.l.b16 %v3121
      %v3237 = vunpack.c.l.b16 %v3122
      %v3238 = vunpack.c.l.b16 %v3123
      %v3239 = vunpack.c.l.b16 %v3124
      %v3240 = vunpack.c.l.b16 %v3125
      %v3241 = vunpack.c.l.b16 %v3126
      %v3242 = vunpack.c.l.b16 %v3127
      %v3243 = vunpack.c.l.b16 %v3128
      %v3244 = vunpack.c.l.b16 %v3129
      %v3245 = vunpack.c.l.b16 %v3130
      %v3246 = vunpack.c.l.b16 %v3131
      %v3247 = vunpack.c.l.b16 %v3132
      %v3248 = vunpack.c.l.b16 %v3133
      %v3249 = vunpack.c.l.b16 %v3134
      %v3250 = vunpack.c.l.b16 %v3135
      %v3251 = vunpack.c.l.b16 %v3136
      %v3252 = vunpack.c.l.b16 %v3137
      %v3253 = vunpack.c.l.b16 %v3138
      %v3254 = vunpack.c.l.b16 %v3139
      %v3255 = vunpack.c.l.b16 %v3140
      %v3256 = vunpack.c.l.b16 %v3141
      %v3257 = vunpack.c.l.b16 %v3142
      %v3258 = vunpack.c.l.b16 %v3143
      %v3259 = vunpack.c.l.b16 %v3144
      %v3260 = vunpack.c.l.b16 %v3145
      %v3261 = vunpack.c.l.b16 %v3146
      %v3262 = vpack.c.b16 %v3209, %v3208
      %v3263 = vpack.c.b16 %v3211, %v3210
      %v3264 = vpack.c.b16 %v3213, %v3212
      %v3265 = vpack.c.b16 %v3215, %v3214
      %v3266 = vpack.c.b16 %v3217, %v3216
      %v3267 = vpack.c.b16 %v3219, %v3218
      %v3268 = vpack.c.b16 %v3221, %v3220
      %v3269 = vpack.c.b16 %v3223, %v3222
      %v3270 = vpack.c.b16 %v3225, %v3224
      %v3271 = vpack.c.b16 %v3227, %v3226
      %v3272 = vpack.c.b16 %v3229, %v3228
      %v3273 = vpack.c.b16 %v3231, %v3230
      %v3274 = vpack.c.b16 %v3233, %v3232
      %v3275 = vpack.c.b16 %v3235, %v3234
      %v3276 = vpack.c.b16 %v3237, %v3236
      %v3277 = vpack.c.b16 %v3239, %v3238
      %v3278 = vpack.c.b16 %v3241, %v3240
      %v3279 = vpack.c.b16 %v3243, %v3242
      %v3280 = vpack.c.b16 %v3245, %v3244
      %v3281 = vpack.c.b16 %v3247, %v3246
      %v3282 = vpack.c.b16 %v3249, %v3248
      %v3283 = vpack.c.b16 %v3251, %v3250
      %v3284 = vpack.c.b16 %v3253, %v3252
      %v3285 = vpack.c.b16 %v3255, %v3254
      %v3286 = vpack.c.b16 %v3257, %v3256
      %v3287 = vpack.c.b16 %v3259, %v3258
      %v3288 = vpack.c.b16 %v3261, %v3260
      %v3317 = vsel %vm2352, %v3032, 0
      %v3320 = vsel %vm2352, %v3036, 0
      %v3323 = vsel %vm2352, %v3040, 0
      %v3326 = vsel %vm2352, %v3044, 0
      %v3329 = vsel %vm2352, %v3048, 0
      %v3332 = vsel %vm2352, %v3052, 0
      %v3335 = vsel %vm2352, %v3056, 0
      %v3338 = vsel %vm2352, %v3060, 0
      %v3341 = vsel %vm2352, %v3064, 0
      %v3344 = vsel %vm2352, %v3068, 0
      %v3347 = vsel %vm2352, %v3072, 0
      %v3350 = vsel %vm2352, %v3076, 0
      %v3353 = vsel %vm2352, %v3080, 0
      %v3356 = vsel %vm2352, %v3084, 0
      %v3359 = vsel %vm2352, %v3088, 0
      %v3362 = vsel %vm2352, %v3092, 0
      %3364 = vmatprep.subr.bf16.mxu0 0
      %3365 = vmatpush1.bf16.msra.mxu0 %v3262
      %3366 = vmatprep.subr.bf16.mxu0 0
      %3367 = vmatpush1.bf16.msra.mxu0 %v3263
      %3368 = vmatprep.subr.bf16.mxu0 0
      %3369 = vmatpush1.bf16.msra.mxu0 %v3264
      %3370 = vmatprep.subr.bf16.mxu0 0
      %3371 = vmatpush1.bf16.msra.mxu0 %v3265
      %3372 = vmatprep.subr.bf16.mxu0 0
      %3373 = vmatpush1.bf16.msra.mxu0 %v3266
      %3374 = vmatprep.subr.bf16.mxu0 0
      %3375 = vmatpush1.bf16.msra.mxu0 %v3267
      %3376 = vmatprep.subr.bf16.mxu0 0
      %3377 = vmatpush1.bf16.msra.mxu0 %v3268
      %3378 = vmatprep.subr.bf16.mxu0 0
      %3379 = vmatpush1.bf16.msra.mxu0 %v3269
      %3380 = vmatprep.subr.bf16.mxu0 0
      %3381 = vmatpush1.bf16.msra.mxu0 %v3270
      %3382 = vmatprep.subr.bf16.mxu0 0
      %3383 = vmatpush1.bf16.msra.mxu0 %v3271
      %3384 = vmatprep.subr.bf16.mxu0 0
      %3385 = vmatpush1.bf16.msra.mxu0 %v3272
      %3386 = vmatprep.subr.bf16.mxu0 0
      %3387 = vmatpush1.bf16.msra.mxu0 %v3273
      %3388 = vmatprep.subr.bf16.mxu0 0
      %3389 = vmatpush1.bf16.msra.mxu0 %v3274
      %3390 = vmatprep.subr.bf16.mxu0 0
      %3391 = vmatpush1.bf16.msra.mxu0 %v3275
      %3392 = vmatprep.subr.bf16.mxu0 0
      %3393 = vmatpush1.bf16.msra.mxu0 %v3276
      %3394 = vmatprep.subr.bf16.mxu0 0
      %3395 = vmatpush1.bf16.msra.mxu0 %v3277
      %3396 = vmatprep.mubr.bf16.mxu0 %v3030
      %3397 = vmatmul.mubr.bf16.gmra.mrb[0].mxu0 %v3029
      %v3398 = vpop.f32.mrb[0].mxu0
      %v3399 = vadd.f32 %v3152, %v3398
      %v3400 = vpop.f32.mrb[0].mxu0
      %v3401 = vpop.f32.mrb[0].mxu0
      %v3402 = vadd.f32 %v3152, %v3401
      %v3403 = vpop.f32.mrb[0].mxu0
      %3404 = vmatprep.mubr.bf16.mxu0 %v3034
      %3405 = vmatmul.mubr.bf16.gmra.mrb[0].mxu0 %v3033
      %v3406 = vpop.f32.mrb[0].mxu0
      %v3407 = vadd.f32 %v3152, %v3406
      %v3408 = vpop.f32.mrb[0].mxu0
      %v3409 = vpop.f32.mrb[0].mxu0
      %v3410 = vadd.f32 %v3152, %v3409
      %v3411 = vpop.f32.mrb[0].mxu0
      %3412 = vmatprep.mubr.bf16.mxu0 %v3038
      %3413 = vmatmul.mubr.bf16.gmra.mrb[0].mxu0 %v3037
      %v3414 = vpop.f32.mrb[0].mxu0
      %v3415 = vadd.f32 %v3152, %v3414
      %v3416 = vpop.f32.mrb[0].mxu0
      %v3417 = vpop.f32.mrb[0].mxu0
      %v3418 = vadd.f32 %v3152, %v3417
      %v3419 = vpop.f32.mrb[0].mxu0
      %3420 = vmatprep.mubr.bf16.mxu0 %v3042
      %3421 = vmatmul.mubr.bf16.gmra.mrb[0].mxu0 %v3041
      %v3422 = vpop.f32.mrb[0].mxu0
      %v3423 = vadd.f32 %v3152, %v3422
      %v3424 = vpop.f32.mrb[0].mxu0
      %v3425 = vpop.f32.mrb[0].mxu0
      %v3426 = vadd.f32 %v3152, %v3425
      %v3427 = vpop.f32.mrb[0].mxu0
      %3428 = vmatprep.mubr.bf16.mxu0 %v3046
      %3429 = vmatmul.mubr.bf16.gmra.mrb[0].mxu0 %v3045
      %v3430 = vpop.f32.mrb[0].mxu0
      %v3431 = vadd.f32 %v3152, %v3430
      %v3432 = vpop.f32.mrb[0].mxu0
      %v3433 = vpop.f32.mrb[0].mxu0
      %v3434 = vadd.f32 %v3152, %v3433
      %v3435 = vpop.f32.mrb[0].mxu0
      %3436 = vmatprep.mubr.bf16.mxu0 %v3050
      %3437 = vmatmul.mubr.bf16.gmra.mrb[0].mxu0 %v3049
      %v3438 = vpop.f32.mrb[0].mxu0
      %v3439 = vadd.f32 %v3152, %v3438
      %v3440 = vpop.f32.mrb[0].mxu0
      %v3441 = vpop.f32.mrb[0].mxu0
      %v3442 = vadd.f32 %v3152, %v3441
      %v3443 = vpop.f32.mrb[0].mxu0
      %3444 = vmatprep.mubr.bf16.mxu0 %v3054
      %3445 = vmatmul.mubr.bf16.gmra.mrb[0].mxu0 %v3053
      %v3446 = vpop.f32.mrb[0].mxu0
      %v3447 = vadd.f32 %v3152, %v3446
      %v3448 = vpop.f32.mrb[0].mxu0
      %v3449 = vpop.f32.mrb[0].mxu0
      %v3450 = vadd.f32 %v3152, %v3449
      %v3451 = vpop.f32.mrb[0].mxu0
      %3452 = vmatprep.mubr.bf16.mxu0 %v3058
      %3453 = vmatmul.mubr.bf16.gmra.mrb[0].mxu0 %v3057
      %v3454 = vpop.f32.mrb[0].mxu0
      %v3455 = vadd.f32 %v3152, %v3454
      %v3456 = vpop.f32.mrb[0].mxu0
      %v3457 = vpop.f32.mrb[0].mxu0
      %v3458 = vadd.f32 %v3152, %v3457
      %v3459 = vpop.f32.mrb[0].mxu0
      %3460 = vmatprep.mubr.bf16.mxu0 %v3062
      %3461 = vmatmul.mubr.bf16.gmra.mrb[0].mxu0 %v3061
      %v3462 = vpop.f32.mrb[0].mxu0
      %v3463 = vadd.f32 %v3152, %v3462
      %v3464 = vpop.f32.mrb[0].mxu0
      %v3465 = vpop.f32.mrb[0].mxu0
      %v3466 = vadd.f32 %v3152, %v3465
      %v3467 = vpop.f32.mrb[0].mxu0
      %3468 = vmatprep.mubr.bf16.mxu0 %v3066
      %3469 = vmatmul.mubr.bf16.gmra.mrb[0].mxu0 %v3065
      %v3470 = vpop.f32.mrb[0].mxu0
      %v3471 = vadd.f32 %v3152, %v3470
      %v3472 = vpop.f32.mrb[0].mxu0
      %v3473 = vpop.f32.mrb[0].mxu0
      %v3474 = vadd.f32 %v3152, %v3473
      %v3475 = vpop.f32.mrb[0].mxu0
      %3476 = vmatprep.mubr.bf16.mxu0 %v3070
      %3477 = vmatmul.mubr.bf16.gmra.mrb[0].mxu0 %v3069
      %v3478 = vpop.f32.mrb[0].mxu0
      %v3479 = vadd.f32 %v3152, %v3478
      %v3480 = vpop.f32.mrb[0].mxu0
      %v3481 = vpop.f32.mrb[0].mxu0
      %v3482 = vadd.f32 %v3152, %v3481
      %v3483 = vpop.f32.mrb[0].mxu0
      %3484 = vmatprep.mubr.bf16.mxu0 %v3074
      %3485 = vmatmul.mubr.bf16.gmra.mrb[0].mxu0 %v3073
      %v3486 = vpop.f32.mrb[0].mxu0
      %v3487 = vadd.f32 %v3152, %v3486
      %v3488 = vpop.f32.mrb[0].mxu0
      %v3489 = vpop.f32.mrb[0].mxu0
      %v3490 = vadd.f32 %v3152, %v3489
      %v3491 = vpop.f32.mrb[0].mxu0
      %3492 = vmatprep.mubr.bf16.mxu0 %v3078
      %3493 = vmatmul.mubr.bf16.gmra.mrb[0].mxu0 %v3077
      %v3494 = vpop.f32.mrb[0].mxu0
      %v3495 = vadd.f32 %v3152, %v3494
      %v3496 = vpop.f32.mrb[0].mxu0
      %v3497 = vpop.f32.mrb[0].mxu0
      %v3498 = vadd.f32 %v3152, %v3497
      %v3499 = vpop.f32.mrb[0].mxu0
      %3500 = vmatprep.mubr.bf16.mxu0 %v3082
      %3501 = vmatmul.mubr.bf16.gmra.mrb[0].mxu0 %v3081
      %v3502 = vpop.f32.mrb[0].mxu0
      %v3503 = vadd.f32 %v3152, %v3502
      %v3504 = vpop.f32.mrb[0].mxu0
      %v3505 = vpop.f32.mrb[0].mxu0
      %v3506 = vadd.f32 %v3152, %v3505
      %v3507 = vpop.f32.mrb[0].mxu0
      %3508 = vmatprep.mubr.bf16.mxu0 %v3086
      %3509 = vmatmul.mubr.bf16.gmra.mrb[0].mxu0 %v3085
      %v3510 = vpop.f32.mrb[0].mxu0
      %v3511 = vadd.f32 %v3152, %v3510
      %v3512 = vpop.f32.mrb[0].mxu0
      %v3513 = vpop.f32.mrb[0].mxu0
      %v3514 = vadd.f32 %v3152, %v3513
      %v3515 = vpop.f32.mrb[0].mxu0
      %3516 = vmatprep.mubr.bf16.mxu0 %v3090
      %3517 = vmatmul.mubr.bf16.gmra.mrb[0].mxu0 %v3089
      %v3518 = vpop.f32.mrb[0].mxu0
      %v3519 = vadd.f32 %v3152, %v3518
      %v3520 = vpop.f32.mrb[0].mxu0
      %v3521 = vpop.f32.mrb[0].mxu0
      %v3522 = vadd.f32 %v3152, %v3521
      %v3523 = vpop.f32.mrb[0].mxu0
      %3524 = vdwg.mxu0
      %3525 = vmatprep.subr.bf16.mxu0 0
      %3526 = vmatpush1.bf16.msra.mxu0 %v3278
      %3527 = vmatprep.subr.bf16.mxu0 0
      %3528 = vmatpush1.bf16.msra.mxu0 %v3279
      %3529 = vmatprep.subr.bf16.mxu0 0
      %3530 = vmatpush1.bf16.msra.mxu0 %v3280
      %3531 = vmatprep.subr.bf16.mxu0 0
      %3532 = vmatpush1.bf16.msra.mxu0 %v3281
      %3533 = vmatprep.subr.bf16.mxu0 0
      %3534 = vmatpush1.bf16.msra.mxu0 %v3282
      %3535 = vmatprep.subr.bf16.mxu0 0
      %3536 = vmatpush1.bf16.msra.mxu0 %v3283
      %3537 = vmatprep.subr.bf16.mxu0 0
      %3538 = vmatpush1.bf16.msra.mxu0 %v3284
      %3539 = vmatprep.subr.bf16.mxu0 0
      %3540 = vmatpush1.bf16.msra.mxu0 %v3285
      %3541 = vmatprep.subr.bf16.mxu0 0
      %3542 = vmatpush1.bf16.msra.mxu0 %v3286
      %3543 = vmatprep.subr.bf16.mxu0 0
      %3544 = vmatpush1.bf16.msra.mxu0 %v3287
      %3545 = vmatprep.subr.bf16.mxu0 0
      %3546 = vmatpush1.bf16.msra.mxu0 %v3288
      %3547 = vmatprep.subr.bf16.mxu0 0
      %3548 = vmatpush1.bf16.msra.mxu0 0
      %3549 = vmatprep.subr.bf16.mxu0 0
      %3550 = vmatpush1.bf16.msra.mxu0 0
      %3551 = vmatprep.subr.bf16.mxu0 0
      %3552 = vmatpush1.bf16.msra.mxu0 0
      %3553 = vmatprep.subr.bf16.mxu0 0
      %3554 = vmatpush1.bf16.msra.mxu0 0
      %3555 = vmatprep.subr.bf16.mxu0 0
      %3556 = vmatpush1.bf16.msra.mxu0 0
      %3557 = vmatprep.mubr.bf16.mxu0 %v3317
      %3558 = vmatmul.mubr.bf16.gmra.mrb[0].mxu0 %v3031
      %v3559 = vpop.f32.mrb[0].mxu0
      %v3560 = vadd.f32 %v3399, %v3559
      %v3561 = vpop.f32.mrb[0].mxu0
      %v3562 = vpop.f32.mrb[0].mxu0
      %v3563 = vadd.f32 %v3402, %v3562
      %v3564 = vpop.f32.mrb[0].mxu0
      %3565 = vmatprep.mubr.bf16.mxu0 %v3320
      %3566 = vmatmul.mubr.bf16.gmra.mrb[0].mxu0 %v3035
      %v3567 = vpop.f32.mrb[0].mxu0
      %v3568 = vadd.f32 %v3407, %v3567
      %v3569 = vpop.f32.mrb[0].mxu0
      %v3570 = vpop.f32.mrb[0].mxu0
      %v3571 = vadd.f32 %v3410, %v3570
      %v3572 = vpop.f32.mrb[0].mxu0
      %3573 = vmatprep.mubr.bf16.mxu0 %v3323
      %3574 = vmatmul.mubr.bf16.gmra.mrb[0].mxu0 %v3039
      %v3575 = vpop.f32.mrb[0].mxu0
      %v3576 = vadd.f32 %v3415, %v3575
      %v3577 = vpop.f32.mrb[0].mxu0
      %v3578 = vpop.f32.mrb[0].mxu0
      %v3579 = vadd.f32 %v3418, %v3578
      %v3580 = vpop.f32.mrb[0].mxu0
      %3581 = vmatprep.mubr.bf16.mxu0 %v3326
      %3582 = vmatmul.mubr.bf16.gmra.mrb[0].mxu0 %v3043
      %v3583 = vpop.f32.mrb[0].mxu0
      %v3584 = vadd.f32 %v3423, %v3583
      %v3585 = vpop.f32.mrb[0].mxu0
      %v3586 = vpop.f32.mrb[0].mxu0
      %v3587 = vadd.f32 %v3426, %v3586
      %v3588 = vpop.f32.mrb[0].mxu0
      %3589 = vmatprep.mubr.bf16.mxu0 %v3329
      %3590 = vmatmul.mubr.bf16.gmra.mrb[0].mxu0 %v3047
      %v3591 = vpop.f32.mrb[0].mxu0
      %v3592 = vadd.f32 %v3431, %v3591
      %v3593 = vpop.f32.mrb[0].mxu0
      %v3594 = vpop.f32.mrb[0].mxu0
      %v3595 = vadd.f32 %v3434, %v3594
      %v3596 = vpop.f32.mrb[0].mxu0
      %3597 = vmatprep.mubr.bf16.mxu0 %v3332
      %3598 = vmatmul.mubr.bf16.gmra.mrb[0].mxu0 %v3051
      %v3599 = vpop.f32.mrb[0].mxu0
      %v3600 = vadd.f32 %v3439, %v3599
      %v3601 = vpop.f32.mrb[0].mxu0
      %v3602 = vpop.f32.mrb[0].mxu0
      %v3603 = vadd.f32 %v3442, %v3602
      %v3604 = vpop.f32.mrb[0].mxu0
      %3605 = vmatprep.mubr.bf16.mxu0 %v3335
      %3606 = vmatmul.mubr.bf16.gmra.mrb[0].mxu0 %v3055
      %v3607 = vpop.f32.mrb[0].mxu0
      %v3608 = vadd.f32 %v3447, %v3607
      %v3609 = vpop.f32.mrb[0].mxu0
      %v3610 = vpop.f32.mrb[0].mxu0
      %v3611 = vadd.f32 %v3450, %v3610
      %v3612 = vpop.f32.mrb[0].mxu0
      %3613 = vmatprep.mubr.bf16.mxu0 %v3338
      %3614 = vmatmul.mubr.bf16.gmra.mrb[0].mxu0 %v3059
      %v3615 = vpop.f32.mrb[0].mxu0
      %v3616 = vadd.f32 %v3455, %v3615
      %v3617 = vpop.f32.mrb[0].mxu0
      %v3618 = vpop.f32.mrb[0].mxu0
      %v3619 = vadd.f32 %v3458, %v3618
      %v3620 = vpop.f32.mrb[0].mxu0
      %3621 = vmatprep.mubr.bf16.mxu0 %v3341
      %3622 = vmatmul.mubr.bf16.gmra.mrb[0].mxu0 %v3063
      %v3623 = vpop.f32.mrb[0].mxu0
      %v3624 = vadd.f32 %v3463, %v3623
      %v3625 = vpop.f32.mrb[0].mxu0
      %v3626 = vpop.f32.mrb[0].mxu0
      %v3627 = vadd.f32 %v3466, %v3626
      %v3628 = vpop.f32.mrb[0].mxu0
      %3629 = vmatprep.mubr.bf16.mxu0 %v3344
      %3630 = vmatmul.mubr.bf16.gmra.mrb[0].mxu0 %v3067
      %v3631 = vpop.f32.mrb[0].mxu0
      %v3632 = vadd.f32 %v3471, %v3631
      %v3633 = vpop.f32.mrb[0].mxu0
      %v3634 = vpop.f32.mrb[0].mxu0
      %v3635 = vadd.f32 %v3474, %v3634
      %v3636 = vpop.f32.mrb[0].mxu0
      %3637 = vmatprep.mubr.bf16.mxu0 %v3347
      %3638 = vmatmul.mubr.bf16.gmra.mrb[0].mxu0 %v3071
      %v3639 = vpop.f32.mrb[0].mxu0
      %v3640 = vadd.f32 %v3479, %v3639
      %v3641 = vpop.f32.mrb[0].mxu0
      %v3642 = vpop.f32.mrb[0].mxu0
      %v3643 = vadd.f32 %v3482, %v3642
      %v3644 = vpop.f32.mrb[0].mxu0
      %3645 = vmatprep.mubr.bf16.mxu0 %v3350
      %3646 = vmatmul.mubr.bf16.gmra.mrb[0].mxu0 %v3075
      %v3647 = vpop.f32.mrb[0].mxu0
      %v3648 = vadd.f32 %v3487, %v3647
      %v3649 = vpop.f32.mrb[0].mxu0
      %v3650 = vpop.f32.mrb[0].mxu0
      %v3651 = vadd.f32 %v3490, %v3650
      %v3652 = vpop.f32.mrb[0].mxu0
      %3653 = vmatprep.mubr.bf16.mxu0 %v3353
      %3654 = vmatmul.mubr.bf16.gmra.mrb[0].mxu0 %v3079
      %v3655 = vpop.f32.mrb[0].mxu0
      %v3656 = vadd.f32 %v3495, %v3655
      %v3657 = vpop.f32.mrb[0].mxu0
      %v3658 = vpop.f32.mrb[0].mxu0
      %v3659 = vadd.f32 %v3498, %v3658
      %v3660 = vpop.f32.mrb[0].mxu0
      %3661 = vmatprep.mubr.bf16.mxu0 %v3356
      %3662 = vmatmul.mubr.bf16.gmra.mrb[0].mxu0 %v3083
      %v3663 = vpop.f32.mrb[0].mxu0
      %v3664 = vadd.f32 %v3503, %v3663
      %v3665 = vpop.f32.mrb[0].mxu0
      %v3666 = vpop.f32.mrb[0].mxu0
      %v3667 = vadd.f32 %v3506, %v3666
      %v3668 = vpop.f32.mrb[0].mxu0
      %3669 = vmatprep.mubr.bf16.mxu0 %v3359
      %3670 = vmatmul.mubr.bf16.gmra.mrb[0].mxu0 %v3087
      %v3671 = vpop.f32.mrb[0].mxu0
      %v3672 = vadd.f32 %v3511, %v3671
      %v3673 = vpop.f32.mrb[0].mxu0
      %v3674 = vpop.f32.mrb[0].mxu0
      %v3675 = vadd.f32 %v3514, %v3674
      %v3676 = vpop.f32.mrb[0].mxu0
      %3677 = vmatprep.mubr.bf16.mxu0 %v3362
      %3678 = vmatmul.mubr.bf16.gmra.mrb[0].mxu0 %v3091
      %v3679 = vpop.f32.mrb[0].mxu0
      %v3680 = vadd.f32 %v3519, %v3679
      %v3681 = vpop.f32.mrb[0].mxu0
      %v3682 = vpop.f32.mrb[0].mxu0
      %v3683 = vadd.f32 %v3522, %v3682
      %v3684 = vpop.f32.mrb[0].mxu0
      %3685 = vdwg.mxu0
      %v3686 = vld [vmem:[#allocation3] sm:$0xff]
      %v3687 = vld [vmem:[#allocation3 + $0x8] sm:$0xff]
      %v3688 = vld [vmem:[#allocation3 + $0x10] sm:$0xff]
      %v3689 = vld [vmem:[#allocation3 + $0x18] sm:$0xff]
      %v3690 = vld [vmem:[#allocation3 + $0x20] sm:$0xff]
      %v3691 = vld [vmem:[#allocation3 + $0x28] sm:$0xff]
      %v3692 = vld [vmem:[#allocation3 + $0x30] sm:$0xff]
      %v3693 = vld [vmem:[#allocation3 + $0x38] sm:$0xff]
      %v3694 = vld [vmem:[#allocation3 + $0x40] sm:$0xff]
      %v3695 = vld [vmem:[#allocation3 + $0x48] sm:$0xff]
      %v3696 = vld [vmem:[#allocation3 + $0x50] sm:$0xff]
      %v3697 = vld [vmem:[#allocation3 + $0x58] sm:$0xff]
      %v3698 = vld [vmem:[#allocation3 + $0x60] sm:$0xff]
      %v3699 = vld [vmem:[#allocation3 + $0x68] sm:$0xff]
      %v3700 = vld [vmem:[#allocation3 + $0x70] sm:$0xff]
      %v3701 = vld [vmem:[#allocation3 + $0x78] sm:$0xff]
      %v3702 = vld [vmem:[#allocation3 + $0x80] sm:$0xff]
      %v3703 = vld [vmem:[#allocation3 + $0x88] sm:$0xff]
      %v3704 = vld [vmem:[#allocation3 + $0x90] sm:$0xff]
      %v3705 = vld [vmem:[#allocation3 + $0x98] sm:$0xff]
      %v3706 = vld [vmem:[#allocation3 + $0xa0] sm:$0xff]
      %v3707 = vld [vmem:[#allocation3 + $0xa8] sm:$0xff]
      %v3708 = vld [vmem:[#allocation3 + $0xb0] sm:$0xff]
      %v3709 = vld [vmem:[#allocation3 + $0xb8] sm:$0xff]
      %v3710 = vld [vmem:[#allocation3 + $0xc0] sm:$0xff]
      %v3711 = vld [vmem:[#allocation3 + $0xc8] sm:$0xff]
      %v3712 = vld [vmem:[#allocation3 + $0xd0] sm:$0xff]
      %v3713 = vld [vmem:[#allocation3 + $0xd8] sm:$0xff]
      %v3714 = vld [vmem:[#allocation3 + $0xe0] sm:$0xff]
      %v3715 = vld [vmem:[#allocation3 + $0xe8] sm:$0xff]
      %v3716 = vld [vmem:[#allocation3 + $0xf0] sm:$0xff]
      %v3717 = vld [vmem:[#allocation3 + $0xf8] sm:$0xff]
      %v3718 = vsub.f32 0.0, %v3560
      %v3719 = vsub.f32 0.0, %v3563
      %v3720 = vsub.f32 0.0, %v3568
      %v3721 = vsub.f32 0.0, %v3571
      %v3722 = vsub.f32 0.0, %v3576
      %v3723 = vsub.f32 0.0, %v3579
      %v3724 = vsub.f32 0.0, %v3584
      %v3725 = vsub.f32 0.0, %v3587
      %v3726 = vsub.f32 0.0, %v3592
      %v3727 = vsub.f32 0.0, %v3595
      %v3728 = vsub.f32 0.0, %v3600
      %v3729 = vsub.f32 0.0, %v3603
      %v3730 = vsub.f32 0.0, %v3608
      %v3731 = vsub.f32 0.0, %v3611
      %v3732 = vsub.f32 0.0, %v3616
      %v3733 = vsub.f32 0.0, %v3619
      %v3734 = vsub.f32 0.0, %v3624
      %v3735 = vsub.f32 0.0, %v3627
      %v3736 = vsub.f32 0.0, %v3632
      %v3737 = vsub.f32 0.0, %v3635
      %v3738 = vsub.f32 0.0, %v3640
      %v3739 = vsub.f32 0.0, %v3643
      %v3740 = vsub.f32 0.0, %v3648
      %v3741 = vsub.f32 0.0, %v3651
      %v3742 = vsub.f32 0.0, %v3656
      %v3743 = vsub.f32 0.0, %v3659
      %v3744 = vsub.f32 0.0, %v3664
      %v3745 = vsub.f32 0.0, %v3667
      %v3746 = vsub.f32 0.0, %v3672
      %v3747 = vsub.f32 0.0, %v3675
      %v3748 = vsub.f32 0.0, %v3680
      %v3749 = vsub.f32 0.0, %v3683
      %v3750 = vmul.f32 %v3718, 1.442695
      %v3751 = vpow.pop %v3750
      %v3752 = vmul.f32 %v3719, 1.442695
      %v3753 = vpow.pop %v3752
      %v3754 = vmul.f32 %v3720, 1.442695
      %v3755 = vpow.pop %v3754
      %v3756 = vmul.f32 %v3721, 1.442695
      %v3757 = vpow.pop %v3756
      %v3758 = vmul.f32 %v3722, 1.442695
      %v3759 = vpow.pop %v3758
      %v3760 = vmul.f32 %v3723, 1.442695
      %v3761 = vpow.pop %v3760
      %v3762 = vmul.f32 %v3724, 1.442695
      %v3763 = vpow.pop %v3762
      %v3764 = vmul.f32 %v3725, 1.442695
      %v3765 = vpow.pop %v3764
      %v3766 = vmul.f32 %v3726, 1.442695
      %v3767 = vpow.pop %v3766
      %v3768 = vmul.f32 %v3727, 1.442695
      %v3769 = vpow.pop %v3768
      %v3770 = vmul.f32 %v3728, 1.442695
      %v3771 = vpow.pop %v3770
      %v3772 = vmul.f32 %v3729, 1.442695
      %v3773 = vpow.pop %v3772
      %v3774 = vmul.f32 %v3730, 1.442695
      %v3775 = vpow.pop %v3774
      %v3776 = vmul.f32 %v3731, 1.442695
      %v3777 = vpow.pop %v3776
      %v3778 = vmul.f32 %v3732, 1.442695
      %v3779 = vpow.pop %v3778
      %v3780 = vmul.f32 %v3733, 1.442695
      %v3781 = vpow.pop %v3780
      %v3782 = vmul.f32 %v3734, 1.442695
      %v3783 = vpow.pop %v3782
      %v3784 = vmul.f32 %v3735, 1.442695
      %v3785 = vpow.pop %v3784
      %v3786 = vmul.f32 %v3736, 1.442695
      %v3787 = vpow.pop %v3786
      %v3788 = vmul.f32 %v3737, 1.442695
      %v3789 = vpow.pop %v3788
      %v3790 = vmul.f32 %v3738, 1.442695
      %v3791 = vpow.pop %v3790
      %v3792 = vmul.f32 %v3739, 1.442695
      %v3793 = vpow.pop %v3792
      %v3794 = vmul.f32 %v3740, 1.442695
      %v3795 = vpow.pop %v3794
      %v3796 = vmul.f32 %v3741, 1.442695
      %v3797 = vpow.pop %v3796
      %v3798 = vmul.f32 %v3742, 1.442695
      %v3799 = vpow.pop %v3798
      %v3800 = vmul.f32 %v3743, 1.442695
      %v3801 = vpow.pop %v3800
      %v3802 = vmul.f32 %v3744, 1.442695
      %v3803 = vpow.pop %v3802
      %v3804 = vmul.f32 %v3745, 1.442695
      %v3805 = vpow.pop %v3804
      %v3806 = vmul.f32 %v3746, 1.442695
      %v3807 = vpow.pop %v3806
      %v3808 = vmul.f32 %v3747, 1.442695
      %v3809 = vpow.pop %v3808
      %v3810 = vmul.f32 %v3748, 1.442695
      %v3811 = vpow.pop %v3810
      %v3812 = vmul.f32 %v3749, 1.442695
      %v3813 = vpow.pop %v3812
      %v3814 = vadd.f32 %v3751, 1.0
      %v3815 = vadd.f32 %v3753, 1.0
      %v3816 = vadd.f32 %v3755, 1.0
      %v3817 = vadd.f32 %v3757, 1.0
      %v3818 = vadd.f32 %v3759, 1.0
      %v3819 = vadd.f32 %v3761, 1.0
      %v3820 = vadd.f32 %v3763, 1.0
      %v3821 = vadd.f32 %v3765, 1.0
      %v3822 = vadd.f32 %v3767, 1.0
      %v3823 = vadd.f32 %v3769, 1.0
      %v3824 = vadd.f32 %v3771, 1.0
      %v3825 = vadd.f32 %v3773, 1.0
      %v3826 = vadd.f32 %v3775, 1.0
      %v3827 = vadd.f32 %v3777, 1.0
      %v3828 = vadd.f32 %v3779, 1.0
      %v3829 = vadd.f32 %v3781, 1.0
      %v3830 = vadd.f32 %v3783, 1.0
      %v3831 = vadd.f32 %v3785, 1.0
      %v3832 = vadd.f32 %v3787, 1.0
      %v3833 = vadd.f32 %v3789, 1.0
      %v3834 = vadd.f32 %v3791, 1.0
      %v3835 = vadd.f32 %v3793, 1.0
      %v3836 = vadd.f32 %v3795, 1.0
      %v3837 = vadd.f32 %v3797, 1.0
      %v3838 = vadd.f32 %v3799, 1.0
      %v3839 = vadd.f32 %v3801, 1.0
      %v3840 = vadd.f32 %v3803, 1.0
      %v3841 = vadd.f32 %v3805, 1.0
      %v3842 = vadd.f32 %v3807, 1.0
      %v3843 = vadd.f32 %v3809, 1.0
      %v3844 = vadd.f32 %v3811, 1.0
      %v3845 = vadd.f32 %v3813, 1.0
      %v3846 = vrcp.pop %v3814
      %v3847 = vrcp.pop %v3815
      %v3848 = vrcp.pop %v3816
      %v3849 = vrcp.pop %v3817
      %v3850 = vrcp.pop %v3818
      %v3851 = vrcp.pop %v3819
      %v3852 = vrcp.pop %v3820
      %v3853 = vrcp.pop %v3821
      %v3854 = vrcp.pop %v3822
      %v3855 = vrcp.pop %v3823
      %v3856 = vrcp.pop %v3824
      %v3857 = vrcp.pop %v3825
      %v3858 = vrcp.pop %v3826
      %v3859 = vrcp.pop %v3827
      %v3860 = vrcp.pop %v3828
      %v3861 = vrcp.pop %v3829
      %v3862 = vrcp.pop %v3830
      %v3863 = vrcp.pop %v3831
      %v3864 = vrcp.pop %v3832
      %v3865 = vrcp.pop %v3833
      %v3866 = vrcp.pop %v3834
      %v3867 = vrcp.pop %v3835
      %v3868 = vrcp.pop %v3836
      %v3869 = vrcp.pop %v3837
      %v3870 = vrcp.pop %v3838
      %v3871 = vrcp.pop %v3839
      %v3872 = vrcp.pop %v3840
      %v3873 = vrcp.pop %v3841
      %v3874 = vrcp.pop %v3842
      %v3875 = vrcp.pop %v3843
      %v3876 = vrcp.pop %v3844
      %v3877 = vrcp.pop %v3845
      %3910 = vrot.lane.b32.xlu0 %v3686, 32
      %v3911 = vpop.permute.xlu0 %3910
      %3912 = vrot.lane.b32.xlu0 %v3687, 32
      %v3913 = vpop.permute.xlu0 %3912
      %3914 = vrot.lane.b32.xlu0 %v3688, 32
      %v3915 = vpop.permute.xlu0 %3914
      %3916 = vrot.lane.b32.xlu0 %v3689, 32
      %v3917 = vpop.permute.xlu0 %3916
      %3918 = vrot.lane.b32.xlu0 %v3690, 32
      %v3919 = vpop.permute.xlu0 %3918
      %3920 = vrot.lane.b32.xlu0 %v3691, 32
      %v3921 = vpop.permute.xlu0 %3920
      %3922 = vrot.lane.b32.xlu0 %v3692, 32
      %v3923 = vpop.permute.xlu0 %3922
      %3924 = vrot.lane.b32.xlu0 %v3693, 32
      %v3925 = vpop.permute.xlu0 %3924
      %3926 = vrot.lane.b32.xlu0 %v3694, 32
      %v3927 = vpop.permute.xlu0 %3926
      %3928 = vrot.lane.b32.xlu0 %v3695, 32
      %v3929 = vpop.permute.xlu0 %3928
      %3930 = vrot.lane.b32.xlu0 %v3696, 32
      %v3931 = vpop.permute.xlu0 %3930
      %3932 = vrot.lane.b32.xlu0 %v3697, 32
      %v3933 = vpop.permute.xlu0 %3932
      %3934 = vrot.lane.b32.xlu0 %v3698, 32
      %v3935 = vpop.permute.xlu0 %3934
      %3936 = vrot.lane.b32.xlu0 %v3699, 32
      %v3937 = vpop.permute.xlu0 %3936
      %3938 = vrot.lane.b32.xlu0 %v3700, 32
      %v3939 = vpop.permute.xlu0 %3938
      %3940 = vrot.lane.b32.xlu0 %v3701, 32
      %v3941 = vpop.permute.xlu0 %3940
      %3942 = vrot.lane.b32.xlu0 %v3702, 32
      %v3943 = vpop.permute.xlu0 %3942
      %3944 = vrot.lane.b32.xlu0 %v3703, 32
      %v3945 = vpop.permute.xlu0 %3944
      %3946 = vrot.lane.b32.xlu0 %v3704, 32
      %v3947 = vpop.permute.xlu0 %3946
      %3948 = vrot.lane.b32.xlu0 %v3705, 32
      %v3949 = vpop.permute.xlu0 %3948
      %3950 = vrot.lane.b32.xlu0 %v3706, 32
      %v3951 = vpop.permute.xlu0 %3950
      %3952 = vrot.lane.b32.xlu0 %v3707, 32
      %v3953 = vpop.permute.xlu0 %3952
      %3954 = vrot.lane.b32.xlu0 %v3708, 32
      %v3955 = vpop.permute.xlu0 %3954
      %3956 = vrot.lane.b32.xlu0 %v3709, 32
      %v3957 = vpop.permute.xlu0 %3956
      %3958 = vrot.lane.b32.xlu0 %v3710, 32
      %v3959 = vpop.permute.xlu0 %3958
      %3960 = vrot.lane.b32.xlu0 %v3711, 32
      %v3961 = vpop.permute.xlu0 %3960
      %3962 = vrot.lane.b32.xlu0 %v3712, 32
      %v3963 = vpop.permute.xlu0 %3962
      %3964 = vrot.lane.b32.xlu0 %v3713, 32
      %v3965 = vpop.permute.xlu0 %3964
      %3966 = vrot.lane.b32.xlu0 %v3714, 32
      %v3967 = vpop.permute.xlu0 %3966
      %3968 = vrot.lane.b32.xlu0 %v3715, 32
      %v3969 = vpop.permute.xlu0 %3968
      %3970 = vrot.lane.b32.xlu0 %v3716, 32
      %v3971 = vpop.permute.xlu0 %3970
      %3972 = vrot.lane.b32.xlu0 %v3717, 32
      %v3973 = vpop.permute.xlu0 %3972
      %v4006 = vmul.f32 %v3846, %v3911
      %v4007 = vmul.f32 %v3847, %v3913
      %v4008 = vmul.f32 %v3848, %v3915
      %v4009 = vmul.f32 %v3849, %v3917
      %v4010 = vmul.f32 %v3850, %v3919
      %v4011 = vmul.f32 %v3851, %v3921
      %v4012 = vmul.f32 %v3852, %v3923
      %v4013 = vmul.f32 %v3853, %v3925
      %v4014 = vmul.f32 %v3854, %v3927
      %v4015 = vmul.f32 %v3855, %v3929
      %v4016 = vmul.f32 %v3856, %v3931
      %v4017 = vmul.f32 %v3857, %v3933
      %v4018 = vmul.f32 %v3858, %v3935
      %v4019 = vmul.f32 %v3859, %v3937
      %v4020 = vmul.f32 %v3860, %v3939
      %v4021 = vmul.f32 %v3861, %v3941
      %v4022 = vmul.f32 %v3862, %v3943
      %v4023 = vmul.f32 %v3863, %v3945
      %v4024 = vmul.f32 %v3864, %v3947
      %v4025 = vmul.f32 %v3865, %v3949
      %v4026 = vmul.f32 %v3866, %v3951
      %v4027 = vmul.f32 %v3867, %v3953
      %v4028 = vmul.f32 %v3868, %v3955
      %v4029 = vmul.f32 %v3869, %v3957
      %v4030 = vmul.f32 %v3870, %v3959
      %v4031 = vmul.f32 %v3871, %v3961
      %v4032 = vmul.f32 %v3872, %v3963
      %v4033 = vmul.f32 %v3873, %v3965
      %v4034 = vmul.f32 %v3874, %v3967
      %v4035 = vmul.f32 %v3875, %v3969
      %v4036 = vmul.f32 %v3876, %v3971
      %v4037 = vmul.f32 %v3877, %v3973
      %v4038 = vtanh.pop %v3560
      %v4039 = vtanh.pop %v3563
      %v4040 = vtanh.pop %v3568
      %v4041 = vtanh.pop %v3571
      %v4042 = vtanh.pop %v3576
      %v4043 = vtanh.pop %v3579
      %v4044 = vtanh.pop %v3584
      %v4045 = vtanh.pop %v3587
      %v4046 = vtanh.pop %v3592
      %v4047 = vtanh.pop %v3595
      %v4048 = vtanh.pop %v3600
      %v4049 = vtanh.pop %v3603
      %v4050 = vtanh.pop %v3608
      %v4051 = vtanh.pop %v3611
      %v4052 = vtanh.pop %v3616
      %v4053 = vtanh.pop %v3619
      %v4054 = vtanh.pop %v3624
      %v4055 = vtanh.pop %v3627
      %v4056 = vtanh.pop %v3632
      %v4057 = vtanh.pop %v3635
      %v4058 = vtanh.pop %v3640
      %v4059 = vtanh.pop %v3643
      %v4060 = vtanh.pop %v3648
      %v4061 = vtanh.pop %v3651
      %v4062 = vtanh.pop %v3656
      %v4063 = vtanh.pop %v3659
      %v4064 = vtanh.pop %v3664
      %v4065 = vtanh.pop %v3667
      %v4066 = vtanh.pop %v3672
      %v4067 = vtanh.pop %v3675
      %v4068 = vtanh.pop %v3680
      %v4069 = vtanh.pop %v3683
      %4102 = vrot.lane.b32.xlu0 %v4038, 64
      %v4103 = vpop.permute.xlu0 %4102
      %4104 = vrot.lane.b32.xlu0 %v4039, 64
      %v4105 = vpop.permute.xlu0 %4104
      %4106 = vrot.lane.b32.xlu0 %v4040, 64
      %v4107 = vpop.permute.xlu0 %4106
      %4108 = vrot.lane.b32.xlu0 %v4041, 64
      %v4109 = vpop.permute.xlu0 %4108
      %4110 = vrot.lane.b32.xlu0 %v4042, 64
      %v4111 = vpop.permute.xlu0 %4110
      %4112 = vrot.lane.b32.xlu0 %v4043, 64
      %v4113 = vpop.permute.xlu0 %4112
      %4114 = vrot.lane.b32.xlu0 %v4044, 64
      %v4115 = vpop.permute.xlu0 %4114
      %4116 = vrot.lane.b32.xlu0 %v4045, 64
      %v4117 = vpop.permute.xlu0 %4116
      %4118 = vrot.lane.b32.xlu0 %v4046, 64
      %v4119 = vpop.permute.xlu0 %4118
      %4120 = vrot.lane.b32.xlu0 %v4047, 64
      %v4121 = vpop.permute.xlu0 %4120
      %4122 = vrot.lane.b32.xlu0 %v4048, 64
      %v4123 = vpop.permute.xlu0 %4122
      %4124 = vrot.lane.b32.xlu0 %v4049, 64
      %v4125 = vpop.permute.xlu0 %4124
      %4126 = vrot.lane.b32.xlu0 %v4050, 64
      %v4127 = vpop.permute.xlu0 %4126
      %4128 = vrot.lane.b32.xlu0 %v4051, 64
      %v4129 = vpop.permute.xlu0 %4128
      %4130 = vrot.lane.b32.xlu0 %v4052, 64
      %v4131 = vpop.permute.xlu0 %4130
      %4132 = vrot.lane.b32.xlu0 %v4053, 64
      %v4133 = vpop.permute.xlu0 %4132
      %4134 = vrot.lane.b32.xlu0 %v4054, 64
      %v4135 = vpop.permute.xlu0 %4134
      %4136 = vrot.lane.b32.xlu0 %v4055, 64
      %v4137 = vpop.permute.xlu0 %4136
      %4138 = vrot.lane.b32.xlu0 %v4056, 64
      %v4139 = vpop.permute.xlu0 %4138
      %4140 = vrot.lane.b32.xlu0 %v4057, 64
      %v4141 = vpop.permute.xlu0 %4140
      %4142 = vrot.lane.b32.xlu0 %v4058, 64
      %v4143 = vpop.permute.xlu0 %4142
      %4144 = vrot.lane.b32.xlu0 %v4059, 64
      %v4145 = vpop.permute.xlu0 %4144
      %4146 = vrot.lane.b32.xlu0 %v4060, 64
      %v4147 = vpop.permute.xlu0 %4146
      %4148 = vrot.lane.b32.xlu0 %v4061, 64
      %v4149 = vpop.permute.xlu0 %4148
      %4150 = vrot.lane.b32.xlu0 %v4062, 64
      %v4151 = vpop.permute.xlu0 %4150
      %4152 = vrot.lane.b32.xlu0 %v4063, 64
      %v4153 = vpop.permute.xlu0 %4152
      %4154 = vrot.lane.b32.xlu0 %v4064, 64
      %v4155 = vpop.permute.xlu0 %4154
      %4156 = vrot.lane.b32.xlu0 %v4065, 64
      %v4157 = vpop.permute.xlu0 %4156
      %4158 = vrot.lane.b32.xlu0 %v4066, 64
      %v4159 = vpop.permute.xlu0 %4158
      %4160 = vrot.lane.b32.xlu0 %v4067, 64
      %v4161 = vpop.permute.xlu0 %4160
      %4162 = vrot.lane.b32.xlu0 %v4068, 64
      %v4163 = vpop.permute.xlu0 %4162
      %4164 = vrot.lane.b32.xlu0 %v4069, 64
      %v4165 = vpop.permute.xlu0 %4164
      %v4198 = vmul.f32 %v3846, %v4103
      %v4199 = vmul.f32 %v3847, %v4105
      %v4200 = vmul.f32 %v3848, %v4107
      %v4201 = vmul.f32 %v3849, %v4109
      %v4202 = vmul.f32 %v3850, %v4111
      %v4203 = vmul.f32 %v3851, %v4113
      %v4204 = vmul.f32 %v3852, %v4115
      %v4205 = vmul.f32 %v3853, %v4117
      %v4206 = vmul.f32 %v3854, %v4119
      %v4207 = vmul.f32 %v3855, %v4121
      %v4208 = vmul.f32 %v3856, %v4123
      %v4209 = vmul.f32 %v3857, %v4125
      %v4210 = vmul.f32 %v3858, %v4127
      %v4211 = vmul.f32 %v3859, %v4129
      %v4212 = vmul.f32 %v3860, %v4131
      %v4213 = vmul.f32 %v3861, %v4133
      %v4214 = vmul.f32 %v3862, %v4135
      %v4215 = vmul.f32 %v3863, %v4137
      %v4216 = vmul.f32 %v3864, %v4139
      %v4217 = vmul.f32 %v3865, %v4141
      %v4218 = vmul.f32 %v3866, %v4143
      %v4219 = vmul.f32 %v3867, %v4145
      %v4220 = vmul.f32 %v3868, %v4147
      %v4221 = vmul.f32 %v3869, %v4149
      %v4222 = vmul.f32 %v3870, %v4151
      %v4223 = vmul.f32 %v3871, %v4153
      %v4224 = vmul.f32 %v3872, %v4155
      %v4225 = vmul.f32 %v3873, %v4157
      %v4226 = vmul.f32 %v3874, %v4159
      %v4227 = vmul.f32 %v3875, %v4161
      %v4228 = vmul.f32 %v3876, %v4163
      %v4229 = vmul.f32 %v3877, %v4165
      %4262 = vrot.lane.b32.xlu0 %v4198, 32
      %v4263 = vpop.permute.xlu0 %4262
      %4264 = vrot.lane.b32.xlu0 %v4199, 32
      %v4265 = vpop.permute.xlu0 %4264
      %4266 = vrot.lane.b32.xlu0 %v4200, 32
      %v4267 = vpop.permute.xlu0 %4266
      %4268 = vrot.lane.b32.xlu0 %v4201, 32
      %v4269 = vpop.permute.xlu0 %4268
      %4270 = vrot.lane.b32.xlu0 %v4202, 32
      %v4271 = vpop.permute.xlu0 %4270
      %4272 = vrot.lane.b32.xlu0 %v4203, 32
      %v4273 = vpop.permute.xlu0 %4272
      %4274 = vrot.lane.b32.xlu0 %v4204, 32
      %v4275 = vpop.permute.xlu0 %4274
      %4276 = vrot.lane.b32.xlu0 %v4205, 32
      %v4277 = vpop.permute.xlu0 %4276
      %4278 = vrot.lane.b32.xlu0 %v4206, 32
      %v4279 = vpop.permute.xlu0 %4278
      %4280 = vrot.lane.b32.xlu0 %v4207, 32
      %v4281 = vpop.permute.xlu0 %4280
      %4282 = vrot.lane.b32.xlu0 %v4208, 32
      %v4283 = vpop.permute.xlu0 %4282
      %4284 = vrot.lane.b32.xlu0 %v4209, 32
      %v4285 = vpop.permute.xlu0 %4284
      %4286 = vrot.lane.b32.xlu0 %v4210, 32
      %v4287 = vpop.permute.xlu0 %4286
      %4288 = vrot.lane.b32.xlu0 %v4211, 32
      %v4289 = vpop.permute.xlu0 %4288
      %4290 = vrot.lane.b32.xlu0 %v4212, 32
      %v4291 = vpop.permute.xlu0 %4290
      %4292 = vrot.lane.b32.xlu0 %v4213, 32
      %v4293 = vpop.permute.xlu0 %4292
      %4294 = vrot.lane.b32.xlu0 %v4214, 32
      %v4295 = vpop.permute.xlu0 %4294
      %4296 = vrot.lane.b32.xlu0 %v4215, 32
      %v4297 = vpop.permute.xlu0 %4296
      %4298 = vrot.lane.b32.xlu0 %v4216, 32
      %v4299 = vpop.permute.xlu0 %4298
      %4300 = vrot.lane.b32.xlu0 %v4217, 32
      %v4301 = vpop.permute.xlu0 %4300
      %4302 = vrot.lane.b32.xlu0 %v4218, 32
      %v4303 = vpop.permute.xlu0 %4302
      %4304 = vrot.lane.b32.xlu0 %v4219, 32
      %v4305 = vpop.permute.xlu0 %4304
      %4306 = vrot.lane.b32.xlu0 %v4220, 32
      %v4307 = vpop.permute.xlu0 %4306
      %4308 = vrot.lane.b32.xlu0 %v4221, 32
      %v4309 = vpop.permute.xlu0 %4308
      %4310 = vrot.lane.b32.xlu0 %v4222, 32
      %v4311 = vpop.permute.xlu0 %4310
      %4312 = vrot.lane.b32.xlu0 %v4223, 32
      %v4313 = vpop.permute.xlu0 %4312
      %4314 = vrot.lane.b32.xlu0 %v4224, 32
      %v4315 = vpop.permute.xlu0 %4314
      %4316 = vrot.lane.b32.xlu0 %v4225, 32
      %v4317 = vpop.permute.xlu0 %4316
      %4318 = vrot.lane.b32.xlu0 %v4226, 32
      %v4319 = vpop.permute.xlu0 %4318
      %4320 = vrot.lane.b32.xlu0 %v4227, 32
      %v4321 = vpop.permute.xlu0 %4320
      %4322 = vrot.lane.b32.xlu0 %v4228, 32
      %v4323 = vpop.permute.xlu0 %4322
      %4324 = vrot.lane.b32.xlu0 %v4229, 32
      %v4325 = vpop.permute.xlu0 %4324
      %v4358 = vadd.f32 %v4006, %v4263
      %v4359 = vadd.f32 %v4007, %v4265
      %v4360 = vadd.f32 %v4008, %v4267
      %v4361 = vadd.f32 %v4009, %v4269
      %v4362 = vadd.f32 %v4010, %v4271
      %v4363 = vadd.f32 %v4011, %v4273
      %v4364 = vadd.f32 %v4012, %v4275
      %v4365 = vadd.f32 %v4013, %v4277
      %v4366 = vadd.f32 %v4014, %v4279
      %v4367 = vadd.f32 %v4015, %v4281
      %v4368 = vadd.f32 %v4016, %v4283
      %v4369 = vadd.f32 %v4017, %v4285
      %v4370 = vadd.f32 %v4018, %v4287
      %v4371 = vadd.f32 %v4019, %v4289
      %v4372 = vadd.f32 %v4020, %v4291
      %v4373 = vadd.f32 %v4021, %v4293
      %v4374 = vadd.f32 %v4022, %v4295
      %v4375 = vadd.f32 %v4023, %v4297
      %v4376 = vadd.f32 %v4024, %v4299
      %v4377 = vadd.f32 %v4025, %v4301
      %v4378 = vadd.f32 %v4026, %v4303
      %v4379 = vadd.f32 %v4027, %v4305
      %v4380 = vadd.f32 %v4028, %v4307
      %v4381 = vadd.f32 %v4029, %v4309
      %v4382 = vadd.f32 %v4030, %v4311
      %v4383 = vadd.f32 %v4031, %v4313
      %v4384 = vadd.f32 %v4032, %v4315
      %v4385 = vadd.f32 %v4033, %v4317
      %v4386 = vadd.f32 %v4034, %v4319
      %v4387 = vadd.f32 %v4035, %v4321
      %v4388 = vadd.f32 %v4036, %v4323
      %v4389 = vadd.f32 %v4037, %v4325
      %v4390 = vtanh.pop %v4358
      %v4391 = vtanh.pop %v4359
      %v4392 = vtanh.pop %v4360
      %v4393 = vtanh.pop %v4361
      %v4394 = vtanh.pop %v4362
      %v4395 = vtanh.pop %v4363
      %v4396 = vtanh.pop %v4364
      %v4397 = vtanh.pop %v4365
      %v4398 = vtanh.pop %v4366
      %v4399 = vtanh.pop %v4367
      %v4400 = vtanh.pop %v4368
      %v4401 = vtanh.pop %v4369
      %v4402 = vtanh.pop %v4370
      %v4403 = vtanh.pop %v4371
      %v4404 = vtanh.pop %v4372
      %v4405 = vtanh.pop %v4373
      %v4406 = vtanh.pop %v4374
      %v4407 = vtanh.pop %v4375
      %v4408 = vtanh.pop %v4376
      %v4409 = vtanh.pop %v4377
      %v4410 = vtanh.pop %v4378
      %v4411 = vtanh.pop %v4379
      %v4412 = vtanh.pop %v4380
      %v4413 = vtanh.pop %v4381
      %v4414 = vtanh.pop %v4382
      %v4415 = vtanh.pop %v4383
      %v4416 = vtanh.pop %v4384
      %v4417 = vtanh.pop %v4385
      %v4418 = vtanh.pop %v4386
      %v4419 = vtanh.pop %v4387
      %v4420 = vtanh.pop %v4388
      %v4421 = vtanh.pop %v4389
      %4454 = vrot.lane.b32.xlu0 %v4390, 64
      %v4455 = vpop.permute.xlu0 %4454
      %4456 = vrot.lane.b32.xlu0 %v4391, 64
      %v4457 = vpop.permute.xlu0 %4456
      %4458 = vrot.lane.b32.xlu0 %v4392, 64
      %v4459 = vpop.permute.xlu0 %4458
      %4460 = vrot.lane.b32.xlu0 %v4393, 64
      %v4461 = vpop.permute.xlu0 %4460
      %4462 = vrot.lane.b32.xlu0 %v4394, 64
      %v4463 = vpop.permute.xlu0 %4462
      %4464 = vrot.lane.b32.xlu0 %v4395, 64
      %v4465 = vpop.permute.xlu0 %4464
      %4466 = vrot.lane.b32.xlu0 %v4396, 64
      %v4467 = vpop.permute.xlu0 %4466
      %4468 = vrot.lane.b32.xlu0 %v4397, 64
      %v4469 = vpop.permute.xlu0 %4468
      %4470 = vrot.lane.b32.xlu0 %v4398, 64
      %v4471 = vpop.permute.xlu0 %4470
      %4472 = vrot.lane.b32.xlu0 %v4399, 64
      %v4473 = vpop.permute.xlu0 %4472
      %4474 = vrot.lane.b32.xlu0 %v4400, 64
      %v4475 = vpop.permute.xlu0 %4474
      %4476 = vrot.lane.b32.xlu0 %v4401, 64
      %v4477 = vpop.permute.xlu0 %4476
      %4478 = vrot.lane.b32.xlu0 %v4402, 64
      %v4479 = vpop.permute.xlu0 %4478
      %4480 = vrot.lane.b32.xlu0 %v4403, 64
      %v4481 = vpop.permute.xlu0 %4480
      %4482 = vrot.lane.b32.xlu0 %v4404, 64
      %v4483 = vpop.permute.xlu0 %4482
      %4484 = vrot.lane.b32.xlu0 %v4405, 64
      %v4485 = vpop.permute.xlu0 %4484
      %4486 = vrot.lane.b32.xlu0 %v4406, 64
      %v4487 = vpop.permute.xlu0 %4486
      %4488 = vrot.lane.b32.xlu0 %v4407, 64
      %v4489 = vpop.permute.xlu0 %4488
      %4490 = vrot.lane.b32.xlu0 %v4408, 64
      %v4491 = vpop.permute.xlu0 %4490
      %4492 = vrot.lane.b32.xlu0 %v4409, 64
      %v4493 = vpop.permute.xlu0 %4492
      %4494 = vrot.lane.b32.xlu0 %v4410, 64
      %v4495 = vpop.permute.xlu0 %4494
      %4496 = vrot.lane.b32.xlu0 %v4411, 64
      %v4497 = vpop.permute.xlu0 %4496
      %4498 = vrot.lane.b32.xlu0 %v4412, 64
      %v4499 = vpop.permute.xlu0 %4498
      %4500 = vrot.lane.b32.xlu0 %v4413, 64
      %v4501 = vpop.permute.xlu0 %4500
      %4502 = vrot.lane.b32.xlu0 %v4414, 64
      %v4503 = vpop.permute.xlu0 %4502
      %4504 = vrot.lane.b32.xlu0 %v4415, 64
      %v4505 = vpop.permute.xlu0 %4504
      %4506 = vrot.lane.b32.xlu0 %v4416, 64
      %v4507 = vpop.permute.xlu0 %4506
      %4508 = vrot.lane.b32.xlu0 %v4417, 64
      %v4509 = vpop.permute.xlu0 %4508
      %4510 = vrot.lane.b32.xlu0 %v4418, 64
      %v4511 = vpop.permute.xlu0 %4510
      %4512 = vrot.lane.b32.xlu0 %v4419, 64
      %v4513 = vpop.permute.xlu0 %4512
      %4514 = vrot.lane.b32.xlu0 %v4420, 64
      %v4515 = vpop.permute.xlu0 %4514
      %4516 = vrot.lane.b32.xlu0 %v4421, 64
      %v4517 = vpop.permute.xlu0 %4516
      %v4550 = vmul.f32 %v3846, %v4455
      %v4551 = vmul.f32 %v3847, %v4457
      %v4552 = vmul.f32 %v3848, %v4459
      %v4553 = vmul.f32 %v3849, %v4461
      %v4554 = vmul.f32 %v3850, %v4463
      %v4555 = vmul.f32 %v3851, %v4465
      %v4556 = vmul.f32 %v3852, %v4467
      %v4557 = vmul.f32 %v3853, %v4469
      %v4558 = vmul.f32 %v3854, %v4471
      %v4559 = vmul.f32 %v3855, %v4473
      %v4560 = vmul.f32 %v3856, %v4475
      %v4561 = vmul.f32 %v3857, %v4477
      %v4562 = vmul.f32 %v3858, %v4479
      %v4563 = vmul.f32 %v3859, %v4481
      %v4564 = vmul.f32 %v3860, %v4483
      %v4565 = vmul.f32 %v3861, %v4485
      %v4566 = vmul.f32 %v3862, %v4487
      %v4567 = vmul.f32 %v3863, %v4489
      %v4568 = vmul.f32 %v3864, %v4491
      %v4569 = vmul.f32 %v3865, %v4493
      %v4570 = vmul.f32 %v3866, %v4495
      %v4571 = vmul.f32 %v3867, %v4497
      %v4572 = vmul.f32 %v3868, %v4499
      %v4573 = vmul.f32 %v3869, %v4501
      %v4574 = vmul.f32 %v3870, %v4503
      %v4575 = vmul.f32 %v3871, %v4505
      %v4576 = vmul.f32 %v3872, %v4507
      %v4577 = vmul.f32 %v3873, %v4509
      %v4578 = vmul.f32 %v3874, %v4511
      %v4579 = vmul.f32 %v3875, %v4513
      %v4580 = vmul.f32 %v3876, %v4515
      %v4581 = vmul.f32 %v3877, %v4517
      %4614 = vrot.lane.b32.xlu0 %v4358, 96
      %v4615 = vpop.permute.xlu0 %4614
      %4616 = vrot.lane.b32.xlu0 %v4359, 96
      %v4617 = vpop.permute.xlu0 %4616
      %4618 = vrot.lane.b32.xlu0 %v4360, 96
      %v4619 = vpop.permute.xlu0 %4618
      %4620 = vrot.lane.b32.xlu0 %v4361, 96
      %v4621 = vpop.permute.xlu0 %4620
      %4622 = vrot.lane.b32.xlu0 %v4362, 96
      %v4623 = vpop.permute.xlu0 %4622
      %4624 = vrot.lane.b32.xlu0 %v4363, 96
      %v4625 = vpop.permute.xlu0 %4624
      %4626 = vrot.lane.b32.xlu0 %v4364, 96
      %v4627 = vpop.permute.xlu0 %4626
      %4628 = vrot.lane.b32.xlu0 %v4365, 96
      %v4629 = vpop.permute.xlu0 %4628
      %4630 = vrot.lane.b32.xlu0 %v4366, 96
      %v4631 = vpop.permute.xlu0 %4630
      %4632 = vrot.lane.b32.xlu0 %v4367, 96
      %v4633 = vpop.permute.xlu0 %4632
      %4634 = vrot.lane.b32.xlu0 %v4368, 96
      %v4635 = vpop.permute.xlu0 %4634
      %4636 = vrot.lane.b32.xlu0 %v4369, 96
      %v4637 = vpop.permute.xlu0 %4636
      %4638 = vrot.lane.b32.xlu0 %v4370, 96
      %v4639 = vpop.permute.xlu0 %4638
      %4640 = vrot.lane.b32.xlu0 %v4371, 96
      %v4641 = vpop.permute.xlu0 %4640
      %4642 = vrot.lane.b32.xlu0 %v4372, 96
      %v4643 = vpop.permute.xlu0 %4642
      %4644 = vrot.lane.b32.xlu0 %v4373, 96
      %v4645 = vpop.permute.xlu0 %4644
      %4646 = vrot.lane.b32.xlu0 %v4374, 96
      %v4647 = vpop.permute.xlu0 %4646
      %4648 = vrot.lane.b32.xlu0 %v4375, 96
      %v4649 = vpop.permute.xlu0 %4648
      %4650 = vrot.lane.b32.xlu0 %v4376, 96
      %v4651 = vpop.permute.xlu0 %4650
      %4652 = vrot.lane.b32.xlu0 %v4377, 96
      %v4653 = vpop.permute.xlu0 %4652
      %4654 = vrot.lane.b32.xlu0 %v4378, 96
      %v4655 = vpop.permute.xlu0 %4654
      %4656 = vrot.lane.b32.xlu0 %v4379, 96
      %v4657 = vpop.permute.xlu0 %4656
      %4658 = vrot.lane.b32.xlu0 %v4380, 96
      %v4659 = vpop.permute.xlu0 %4658
      %4660 = vrot.lane.b32.xlu0 %v4381, 96
      %v4661 = vpop.permute.xlu0 %4660
      %4662 = vrot.lane.b32.xlu0 %v4382, 96
      %v4663 = vpop.permute.xlu0 %4662
      %4664 = vrot.lane.b32.xlu0 %v4383, 96
      %v4665 = vpop.permute.xlu0 %4664
      %4666 = vrot.lane.b32.xlu0 %v4384, 96
      %v4667 = vpop.permute.xlu0 %4666
      %4668 = vrot.lane.b32.xlu0 %v4385, 96
      %v4669 = vpop.permute.xlu0 %4668
      %4670 = vrot.lane.b32.xlu0 %v4386, 96
      %v4671 = vpop.permute.xlu0 %4670
      %4672 = vrot.lane.b32.xlu0 %v4387, 96
      %v4673 = vpop.permute.xlu0 %4672
      %4674 = vrot.lane.b32.xlu0 %v4388, 96
      %v4675 = vpop.permute.xlu0 %4674
      %4676 = vrot.lane.b32.xlu0 %v4389, 96
      %v4677 = vpop.permute.xlu0 %4676
      %4710 = vst.msk [vmem:[#allocation3] sm:$0xff] %vm2319, %v4615
      %4711 = vst.msk [vmem:[#allocation3 + $0x8] sm:$0xff] %vm2319, %v4617
      %4712 = vst.msk [vmem:[#allocation3 + $0x10] sm:$0xff] %vm2319, %v4619
      %4713 = vst.msk [vmem:[#allocation3 + $0x18] sm:$0xff] %vm2319, %v4621
      %4714 = vst.msk [vmem:[#allocation3 + $0x20] sm:$0xff] %vm2319, %v4623
      %4715 = vst.msk [vmem:[#allocation3 + $0x28] sm:$0xff] %vm2319, %v4625
      %4716 = vst.msk [vmem:[#allocation3 + $0x30] sm:$0xff] %vm2319, %v4627
      %4717 = vst.msk [vmem:[#allocation3 + $0x38] sm:$0xff] %vm2319, %v4629
      %4718 = vst.msk [vmem:[#allocation3 + $0x40] sm:$0xff] %vm2319, %v4631
      %4719 = vst.msk [vmem:[#allocation3 + $0x48] sm:$0xff] %vm2319, %v4633
      %4720 = vst.msk [vmem:[#allocation3 + $0x50] sm:$0xff] %vm2319, %v4635
      %4721 = vst.msk [vmem:[#allocation3 + $0x58] sm:$0xff] %vm2319, %v4637
      %4722 = vst.msk [vmem:[#allocation3 + $0x60] sm:$0xff] %vm2319, %v4639
      %4723 = vst.msk [vmem:[#allocation3 + $0x68] sm:$0xff] %vm2319, %v4641
      %4724 = vst.msk [vmem:[#allocation3 + $0x70] sm:$0xff] %vm2319, %v4643
      %4725 = vst.msk [vmem:[#allocation3 + $0x78] sm:$0xff] %vm2319, %v4645
      %4726 = vst.msk [vmem:[#allocation3 + $0x80] sm:$0xff] %vm2319, %v4647
      %4727 = vst.msk [vmem:[#allocation3 + $0x88] sm:$0xff] %vm2319, %v4649
      %4728 = vst.msk [vmem:[#allocation3 + $0x90] sm:$0xff] %vm2319, %v4651
      %4729 = vst.msk [vmem:[#allocation3 + $0x98] sm:$0xff] %vm2319, %v4653
      %4730 = vst.msk [vmem:[#allocation3 + $0xa0] sm:$0xff] %vm2319, %v4655
      %4731 = vst.msk [vmem:[#allocation3 + $0xa8] sm:$0xff] %vm2319, %v4657
      %4732 = vst.msk [vmem:[#allocation3 + $0xb0] sm:$0xff] %vm2319, %v4659
      %4733 = vst.msk [vmem:[#allocation3 + $0xb8] sm:$0xff] %vm2319, %v4661
      %4734 = vst.msk [vmem:[#allocation3 + $0xc0] sm:$0xff] %vm2319, %v4663
      %4735 = vst.msk [vmem:[#allocation3 + $0xc8] sm:$0xff] %vm2319, %v4665
      %4736 = vst.msk [vmem:[#allocation3 + $0xd0] sm:$0xff] %vm2319, %v4667
      %4737 = vst.msk [vmem:[#allocation3 + $0xd8] sm:$0xff] %vm2319, %v4669
      %4738 = vst.msk [vmem:[#allocation3 + $0xe0] sm:$0xff] %vm2319, %v4671
      %4739 = vst.msk [vmem:[#allocation3 + $0xe8] sm:$0xff] %vm2319, %v4673
      %4740 = vst.msk [vmem:[#allocation3 + $0xf0] sm:$0xff] %vm2319, %v4675
      %4741 = vst.msk [vmem:[#allocation3 + $0xf8] sm:$0xff] %vm2319, %v4677
      %4774 = vrot.lane.b32.xlu0 %v4550, 32
      %v4775 = vpop.permute.xlu0 %4774
      %4776 = vrot.lane.b32.xlu0 %v4551, 32
      %v4777 = vpop.permute.xlu0 %4776
      %4778 = vrot.lane.b32.xlu0 %v4552, 32
      %v4779 = vpop.permute.xlu0 %4778
      %4780 = vrot.lane.b32.xlu0 %v4553, 32
      %v4781 = vpop.permute.xlu0 %4780
      %4782 = vrot.lane.b32.xlu0 %v4554, 32
      %v4783 = vpop.permute.xlu0 %4782
      %4784 = vrot.lane.b32.xlu0 %v4555, 32
      %v4785 = vpop.permute.xlu0 %4784
      %4786 = vrot.lane.b32.xlu0 %v4556, 32
      %v4787 = vpop.permute.xlu0 %4786
      %4788 = vrot.lane.b32.xlu0 %v4557, 32
      %v4789 = vpop.permute.xlu0 %4788
      %4790 = vrot.lane.b32.xlu0 %v4558, 32
      %v4791 = vpop.permute.xlu0 %4790
      %4792 = vrot.lane.b32.xlu0 %v4559, 32
      %v4793 = vpop.permute.xlu0 %4792
      %4794 = vrot.lane.b32.xlu0 %v4560, 32
      %v4795 = vpop.permute.xlu0 %4794
      %4796 = vrot.lane.b32.xlu0 %v4561, 32
      %v4797 = vpop.permute.xlu0 %4796
      %4798 = vrot.lane.b32.xlu0 %v4562, 32
      %v4799 = vpop.permute.xlu0 %4798
      %4800 = vrot.lane.b32.xlu0 %v4563, 32
      %v4801 = vpop.permute.xlu0 %4800
      %4802 = vrot.lane.b32.xlu0 %v4564, 32
      %v4803 = vpop.permute.xlu0 %4802
      %4804 = vrot.lane.b32.xlu0 %v4565, 32
      %v4805 = vpop.permute.xlu0 %4804
      %4806 = vrot.lane.b32.xlu0 %v4566, 32
      %v4807 = vpop.permute.xlu0 %4806
      %4808 = vrot.lane.b32.xlu0 %v4567, 32
      %v4809 = vpop.permute.xlu0 %4808
      %4810 = vrot.lane.b32.xlu0 %v4568, 32
      %v4811 = vpop.permute.xlu0 %4810
      %4812 = vrot.lane.b32.xlu0 %v4569, 32
      %v4813 = vpop.permute.xlu0 %4812
      %4814 = vrot.lane.b32.xlu0 %v4570, 32
      %v4815 = vpop.permute.xlu0 %4814
      %4816 = vrot.lane.b32.xlu0 %v4571, 32
      %v4817 = vpop.permute.xlu0 %4816
      %4818 = vrot.lane.b32.xlu0 %v4572, 32
      %v4819 = vpop.permute.xlu0 %4818
      %4820 = vrot.lane.b32.xlu0 %v4573, 32
      %v4821 = vpop.permute.xlu0 %4820
      %4822 = vrot.lane.b32.xlu0 %v4574, 32
      %v4823 = vpop.permute.xlu0 %4822
      %4824 = vrot.lane.b32.xlu0 %v4575, 32
      %v4825 = vpop.permute.xlu0 %4824
      %4826 = vrot.lane.b32.xlu0 %v4576, 32
      %v4827 = vpop.permute.xlu0 %4826
      %4828 = vrot.lane.b32.xlu0 %v4577, 32
      %v4829 = vpop.permute.xlu0 %4828
      %4830 = vrot.lane.b32.xlu0 %v4578, 32
      %v4831 = vpop.permute.xlu0 %4830
      %4832 = vrot.lane.b32.xlu0 %v4579, 32
      %v4833 = vpop.permute.xlu0 %4832
      %4834 = vrot.lane.b32.xlu0 %v4580, 32
      %v4835 = vpop.permute.xlu0 %4834
      %4836 = vrot.lane.b32.xlu0 %v4581, 32
      %v4837 = vpop.permute.xlu0 %4836
      %s4870 = scalar_lea.vmem [#allocation2], 24
      %4871 = vst.msk [vmem:[%s4870 + $0x1] sm:$0xff] %vm2319, %v4775
      %4872 = vst.msk [vmem:[%s4870 + $0x9] sm:$0xff] %vm2319, %v4777
      %4873 = vst.msk [vmem:[%s4870 + $0x19] sm:$0xff] %vm2319, %v4779
      %4874 = vst.msk [vmem:[%s4870 + $0x21] sm:$0xff] %vm2319, %v4781
      %4875 = vst.msk [vmem:[%s4870 + $0x31] sm:$0xff] %vm2319, %v4783
      %4876 = vst.msk [vmem:[%s4870 + $0x39] sm:$0xff] %vm2319, %v4785
      %4877 = vst.msk [vmem:[%s4870 + $0x49] sm:$0xff] %vm2319, %v4787
      %4878 = vst.msk [vmem:[%s4870 + $0x51] sm:$0xff] %vm2319, %v4789
      %4879 = vst.msk [vmem:[%s4870 + $0x61] sm:$0xff] %vm2319, %v4791
      %4880 = vst.msk [vmem:[%s4870 + $0x69] sm:$0xff] %vm2319, %v4793
      %4881 = vst.msk [vmem:[%s4870 + $0x79] sm:$0xff] %vm2319, %v4795
      %4882 = vst.msk [vmem:[%s4870 + $0x81] sm:$0xff] %vm2319, %v4797
      %4883 = vst.msk [vmem:[%s4870 + $0x91] sm:$0xff] %vm2319, %v4799
      %4884 = vst.msk [vmem:[%s4870 + $0x99] sm:$0xff] %vm2319, %v4801
      %4885 = vst.msk [vmem:[%s4870 + $0xa9] sm:$0xff] %vm2319, %v4803
      %4886 = vst.msk [vmem:[%s4870 + $0xb1] sm:$0xff] %vm2319, %v4805
      %4887 = vst.msk [vmem:[%s4870 + $0xc1] sm:$0xff] %vm2319, %v4807
      %4888 = vst.msk [vmem:[%s4870 + $0xc9] sm:$0xff] %vm2319, %v4809
      %4889 = vst.msk [vmem:[%s4870 + $0xd9] sm:$0xff] %vm2319, %v4811
      %4890 = vst.msk [vmem:[%s4870 + $0xe1] sm:$0xff] %vm2319, %v4813
      %4891 = vst.msk [vmem:[%s4870 + $0xf1] sm:$0xff] %vm2319, %v4815
      %4892 = vst.msk [vmem:[%s4870 + $0xf9] sm:$0xff] %vm2319, %v4817
      %4893 = vst.msk [vmem:[%s4870 + $0x109] sm:$0xff] %vm2319, %v4819
      %4894 = vst.msk [vmem:[%s4870 + $0x111] sm:$0xff] %vm2319, %v4821
      %4895 = vst.msk [vmem:[%s4870 + $0x121] sm:$0xff] %vm2319, %v4823
      %4896 = vst.msk [vmem:[%s4870 + $0x129] sm:$0xff] %vm2319, %v4825
      %4897 = vst.msk [vmem:[%s4870 + $0x139] sm:$0xff] %vm2319, %v4827
      %4898 = vst.msk [vmem:[%s4870 + $0x141] sm:$0xff] %vm2319, %v4829
      %4899 = vst.msk [vmem:[%s4870 + $0x151] sm:$0xff] %vm2319, %v4831
      %4900 = vst.msk [vmem:[%s4870 + $0x159] sm:$0xff] %vm2319, %v4833
      %4901 = vst.msk [vmem:[%s4870 + $0x169] sm:$0xff] %vm2319, %v4835
      %4902 = vst.msk [vmem:[%s4870 + $0x171] sm:$0xff] %vm2319, %v4837
      %v4903 = vld [vmem:[#allocation2] sm:$0xff]
      %v4904 = vld [vmem:[#allocation2 + $0x8] sm:$0xff]
      %v4905 = vld [vmem:[#allocation2 + $0x10] sm:$0x3]
      %v4906 = vld [vmem:[#allocation2 + $0x18] sm:$0xff]
      %v4907 = vld [vmem:[#allocation2 + $0x20] sm:$0xff]
      %v4908 = vld [vmem:[#allocation2 + $0x28] sm:$0x3]
      %v4909 = vld [vmem:[#allocation2 + $0x30] sm:$0xff]
      %v4910 = vld [vmem:[#allocation2 + $0x38] sm:$0xff]
      %v4911 = vld [vmem:[#allocation2 + $0x40] sm:$0x3]
      %v4912 = vld [vmem:[#allocation2 + $0x48] sm:$0xff]
      %v4913 = vld [vmem:[#allocation2 + $0x50] sm:$0xff]
      %v4914 = vld [vmem:[#allocation2 + $0x58] sm:$0x3]
      %v4915 = vld [vmem:[#allocation2 + $0x60] sm:$0xff]
      %v4916 = vld [vmem:[#allocation2 + $0x68] sm:$0xff]
      %v4917 = vld [vmem:[#allocation2 + $0x70] sm:$0x3]
      %v4918 = vld [vmem:[#allocation2 + $0x78] sm:$0xff]
      %v4919 = vld [vmem:[#allocation2 + $0x80] sm:$0xff]
      %v4920 = vld [vmem:[#allocation2 + $0x88] sm:$0x3]
      %v4921 = vld [vmem:[#allocation2 + $0x90] sm:$0xff]
      %v4922 = vld [vmem:[#allocation2 + $0x98] sm:$0xff]
      %v4923 = vld [vmem:[#allocation2 + $0xa0] sm:$0x3]
      %v4924 = vld [vmem:[#allocation2 + $0xa8] sm:$0xff]
      %v4925 = vld [vmem:[#allocation2 + $0xb0] sm:$0xff]
      %v4926 = vld [vmem:[#allocation2 + $0xb8] sm:$0x3]
      %v4927 = vld [vmem:[#allocation2 + $0xc0] sm:$0xff]
      %v4928 = vld [vmem:[#allocation2 + $0xc8] sm:$0xff]
      %v4929 = vld [vmem:[#allocation2 + $0xd0] sm:$0x3]
      %v4930 = vld [vmem:[#allocation2 + $0xd8] sm:$0xff]
      %v4931 = vld [vmem:[#allocation2 + $0xe0] sm:$0xff]
      %v4932 = vld [vmem:[#allocation2 + $0xe8] sm:$0x3]
      %v4933 = vld [vmem:[#allocation2 + $0xf0] sm:$0xff]
      %v4934 = vld [vmem:[#allocation2 + $0xf8] sm:$0xff]
      %v4935 = vld [vmem:[#allocation2 + $0x100] sm:$0x3]
      %v4936 = vld [vmem:[#allocation2 + $0x108] sm:$0xff]
      %v4937 = vld [vmem:[#allocation2 + $0x110] sm:$0xff]
      %v4938 = vld [vmem:[#allocation2 + $0x118] sm:$0x3]
      %v4939 = vld [vmem:[#allocation2 + $0x120] sm:$0xff]
      %v4940 = vld [vmem:[#allocation2 + $0x128] sm:$0xff]
      %v4941 = vld [vmem:[#allocation2 + $0x130] sm:$0x3]
      %v4942 = vld [vmem:[#allocation2 + $0x138] sm:$0xff]
      %v4943 = vld [vmem:[#allocation2 + $0x140] sm:$0xff]
      %v4944 = vld [vmem:[#allocation2 + $0x148] sm:$0x3]
      %v4945 = vld [vmem:[#allocation2 + $0x150] sm:$0xff]
      %v4946 = vld [vmem:[#allocation2 + $0x158] sm:$0xff]
      %v4947 = vld [vmem:[#allocation2 + $0x160] sm:$0x3]
      %v4948 = vld [vmem:[#allocation2 + $0x168] sm:$0xff]
      %v4949 = vld [vmem:[#allocation2 + $0x170] sm:$0xff]
      %v4950 = vld [vmem:[#allocation2 + $0x178] sm:$0x3]
      %v4951 = vld [vmem:[#allocation2 + $0x180] sm:$0xff]
      %v4952 = vld [vmem:[#allocation2 + $0x188] sm:$0xff]
      %v4953 = vld [vmem:[#allocation2 + $0x190] sm:$0x3]
      %v4954 = vld [vmem:[#allocation2 + $0x198] sm:$0xff]
      %v4955 = vld [vmem:[#allocation2 + $0x1a0] sm:$0xff]
      %v4956 = vld [vmem:[#allocation2 + $0x1a8] sm:$0x3]
      %4957 = vst.msk [vmem:[%s206] sm:$0xff] %vm2319, %v4903
      %4958 = vst.msk [vmem:[%s206 + $0x8] sm:$0xff] %vm2319, %v4904
      %vm4959 = vcmask 254976
      %4960 = vst.msk [vmem:[%s206 + $0x10] sm:$0x3] %vm4959, %v4905
      %4961 = vst.msk [vmem:[%s206 + $0x18] sm:$0xff] %vm2319, %v4906
      %4962 = vst.msk [vmem:[%s206 + $0x20] sm:$0xff] %vm2319, %v4907
      %4963 = vst.msk [vmem:[%s206 + $0x28] sm:$0x3] %vm4959, %v4908
      %4964 = vst.msk [vmem:[%s206 + $0x30] sm:$0xff] %vm2319, %v4909
      %4965 = vst.msk [vmem:[%s206 + $0x38] sm:$0xff] %vm2319, %v4910
      %4966 = vst.msk [vmem:[%s206 + $0x40] sm:$0x3] %vm4959, %v4911
      %4967 = vst.msk [vmem:[%s206 + $0x48] sm:$0xff] %vm2319, %v4912
      %4968 = vst.msk [vmem:[%s206 + $0x50] sm:$0xff] %vm2319, %v4913
      %4969 = vst.msk [vmem:[%s206 + $0x58] sm:$0x3] %vm4959, %v4914
      %4970 = vst.msk [vmem:[%s206 + $0x60] sm:$0xff] %vm2319, %v4915
      %4971 = vst.msk [vmem:[%s206 + $0x68] sm:$0xff] %vm2319, %v4916
      %4972 = vst.msk [vmem:[%s206 + $0x70] sm:$0x3] %vm4959, %v4917
      %4973 = vst.msk [vmem:[%s206 + $0x78] sm:$0xff] %vm2319, %v4918
      %4974 = vst.msk [vmem:[%s206 + $0x80] sm:$0xff] %vm2319, %v4919
      %4975 = vst.msk [vmem:[%s206 + $0x88] sm:$0x3] %vm4959, %v4920
      %4976 = vst.msk [vmem:[%s206 + $0x90] sm:$0xff] %vm2319, %v4921
      %4977 = vst.msk [vmem:[%s206 + $0x98] sm:$0xff] %vm2319, %v4922
      %4978 = vst.msk [vmem:[%s206 + $0xa0] sm:$0x3] %vm4959, %v4923
      %4979 = vst.msk [vmem:[%s206 + $0xa8] sm:$0xff] %vm2319, %v4924
      %4980 = vst.msk [vmem:[%s206 + $0xb0] sm:$0xff] %vm2319, %v4925
      %4981 = vst.msk [vmem:[%s206 + $0xb8] sm:$0x3] %vm4959, %v4926
      %4982 = vst.msk [vmem:[%s206 + $0xc0] sm:$0xff] %vm2319, %v4927
      %4983 = vst.msk [vmem:[%s206 + $0xc8] sm:$0xff] %vm2319, %v4928
      %4984 = vst.msk [vmem:[%s206 + $0xd0] sm:$0x3] %vm4959, %v4929
      %4985 = vst.msk [vmem:[%s206 + $0xd8] sm:$0xff] %vm2319, %v4930
      %4986 = vst.msk [vmem:[%s206 + $0xe0] sm:$0xff] %vm2319, %v4931
      %4987 = vst.msk [vmem:[%s206 + $0xe8] sm:$0x3] %vm4959, %v4932
      %4988 = vst.msk [vmem:[%s206 + $0xf0] sm:$0xff] %vm2319, %v4933
      %4989 = vst.msk [vmem:[%s206 + $0xf8] sm:$0xff] %vm2319, %v4934
      %4990 = vst.msk [vmem:[%s206 + $0x100] sm:$0x3] %vm4959, %v4935
      %4991 = vst.msk [vmem:[%s206 + $0x108] sm:$0xff] %vm2319, %v4936
      %4992 = vst.msk [vmem:[%s206 + $0x110] sm:$0xff] %vm2319, %v4937
      %4993 = vst.msk [vmem:[%s206 + $0x118] sm:$0x3] %vm4959, %v4938
      %4994 = vst.msk [vmem:[%s206 + $0x120] sm:$0xff] %vm2319, %v4939
      %4995 = vst.msk [vmem:[%s206 + $0x128] sm:$0xff] %vm2319, %v4940
      %4996 = vst.msk [vmem:[%s206 + $0x130] sm:$0x3] %vm4959, %v4941
      %4997 = vst.msk [vmem:[%s206 + $0x138] sm:$0xff] %vm2319, %v4942
      %4998 = vst.msk [vmem:[%s206 + $0x140] sm:$0xff] %vm2319, %v4943
      %4999 = vst.msk [vmem:[%s206 + $0x148] sm:$0x3] %vm4959, %v4944
      %5000 = vst.msk [vmem:[%s206 + $0x150] sm:$0xff] %vm2319, %v4945
      %5001 = vst.msk [vmem:[%s206 + $0x158] sm:$0xff] %vm2319, %v4946
      %5002 = vst.msk [vmem:[%s206 + $0x160] sm:$0x3] %vm4959, %v4947
      %5003 = vst.msk [vmem:[%s206 + $0x168] sm:$0xff] %vm2319, %v4948
      %5004 = vst.msk [vmem:[%s206 + $0x170] sm:$0xff] %vm2319, %v4949
      %5005 = vst.msk [vmem:[%s206 + $0x178] sm:$0x3] %vm4959, %v4950
      %5006 = vst.msk [vmem:[%s206 + $0x180] sm:$0xff] %vm2319, %v4951
      %5007 = vst.msk [vmem:[%s206 + $0x188] sm:$0xff] %vm2319, %v4952
      %5008 = vst.msk [vmem:[%s206 + $0x190] sm:$0x3] %vm4959, %v4953
      %5009 = vst.msk [vmem:[%s206 + $0x198] sm:$0xff] %vm2319, %v4954
      %5010 = vst.msk [vmem:[%s206 + $0x1a0] sm:$0xff] %vm2319, %v4955
      %5011 = vst.msk [vmem:[%s206 + $0x1a8] sm:$0x3] %vm4959, %v4956
      %p5012 = scmp.lt.s32.totalorder %s19, 3
      %s5013 = scalar_select %p5012, %s19, 3
      %p5014 = scmp.lt.s32.totalorder %s18, 1
      %s5015 = scalar_select %p5014, %s18, 1
      %s5016 = smul.addr %s5015, 54
      %s5017 = smul.addr %s5013, 108
      %s5018 = sadd.s32 %s5016, %s5017
      %s5019 = smul.addr %s5018, 8
      %s5020 = scalar_lea.vmem %s3, %s5019
      // Predicated region
      $region37: #{_lambda_.4} parent=31 // pred_check
        %p5021 = pneg %p116
      $region38: #{_lambda_.4} parent=31 // pred_check_branch
        %5023 = sbr.rel (%p5021) target = $region40
      $region39: #{_lambda_.4} parent=31 // pred_region
        _
      $region40: #{_lambda_.4} parent=31 // pred_fallthru
        _
    $region32: #{_lambda_.4} parent=5 // pred_fallthru
      _
    %p5024 = scmp.le.s32.totalorder 2, %s9
    // Predicated region
    $region41: #{_lambda_.4} parent=5 // pred_check
      %p5025 = pneg %p5024
    $region42: #{_lambda_.4} parent=5 // pred_check_branch
      %5027 = sbr.rel (%p5025) target = $region44
    $region43: #{_lambda_.4} parent=5 // pred_region
      %s5028 = ssub.s32 %s9, 2
      // Predicated region
      $region45: #{_lambda_.4} parent=43 // pred_check
        %p5029 = pneg %p122
      $region46: #{_lambda_.4} parent=43 // pred_check_branch
        %5031 = sbr.rel (%p5029) target = $region48
      $region47: #{_lambda_.4} parent=43 // pred_region
        %p5032 = scmp.lt.s32.totalorder %s21, 3
        %s5033 = scalar_select %p5032, %s21, 3
        %p5034 = scmp.lt.s32.totalorder %s20, 1
        %s5035 = scalar_select %p5034, %s20, 1
        %s5036 = smul.addr %s5035, 54
        %s5037 = smul.addr %s5033, 108
        %s5038 = sadd.s32 %s5036, %s5037
        %s5039 = smul.addr %s5038, 8
        %s5040 = scalar_lea.vmem %s3, %s5039
      $region48: #{_lambda_.4} parent=43 // pred_fallthru
        _
    $region44: #{_lambda_.4} parent=5 // pred_fallthru
      _
  $region6: #{_lambda_.4} parent=0 // loop_footer
    %s13 = sadd.s32 1, %s9
  $region7: #{_lambda_.4} parent=0 // loop_footer_branch
    %8 = sbr.rel target = $region3
  $region8: #{_lambda_.4} parent=0 // loop_exit
    _

</llo_original>
